<compile_context>
chip_gen: v6e
topology: v6e:2x2x1
jax: 0.10.0
libtpu: 0.0.40
codegen_flags: <defaults>
</compile_context>

<pallas_src>
import functools
import math

import jax
import jax.numpy as jnp
from jax.experimental import pallas as pl
from jax.experimental.pallas import tpu as pltpu

NEG_INF = -1e9
LN_EPS = 1e-5


# ----------------------------------------------------------------------------
# In-kernel building blocks (operate on values already loaded from refs)
# ----------------------------------------------------------------------------
def _layer_norm(y, g, b):
    mu = jnp.mean(y, axis=-1, keepdims=True)
    var = jnp.mean((y - mu) ** 2, axis=-1, keepdims=True)
    return (y - mu) * jax.lax.rsqrt(var + LN_EPS) * g + b


def _project_heads(x, w_h, b_h, num_heads):
    """x: (S, D) f32, w_h: (H, D, F) bf16, b_h: (H, 1, F) f32 -> (H, S, F) f32."""
    s, d = x.shape
    xb = jnp.broadcast_to(x.astype(jnp.bfloat16)[None], (num_heads, s, d))
    y = jnp.einsum("hsd,hdf->hsf", xb, w_h, preferred_element_type=jnp.float32)
    return y + b_h


def _attn_core(q_h, k_h, v_h, bias, wo_h, bo, x_res, g, b):
    """Head-batched scaled-dot-product attention + Wo + residual + LayerNorm.

    q_h/k_h/v_h: (H, S, Dh) f32 (scale already folded into the q weights),
    bias: additive (broadcastable to (H, Sq, Sk)), wo_h: (H, Dh, D) bf16.
    """
    s = jnp.einsum("hqd,hkd->hqk", q_h.astype(jnp.bfloat16),
                   k_h.astype(jnp.bfloat16), preferred_element_type=jnp.float32)
    s = s + bias
    s = s - jnp.max(s, axis=-1, keepdims=True)
    p = jnp.exp(s)
    p = p * pl.reciprocal(jnp.sum(p, axis=-1, keepdims=True), approx=True)
    o_h = jnp.einsum("hqk,hkd->hqd", p.astype(jnp.bfloat16),
                     v_h.astype(jnp.bfloat16), preferred_element_type=jnp.float32)
    proj = jnp.einsum("hqd,hde->hqe", o_h.astype(jnp.bfloat16), wo_h,
                      preferred_element_type=jnp.float32)      # (H, Sq, D)
    y = x_res + jnp.sum(proj, axis=0) + bo                     # sum over heads == concat @ Wo
    return _layer_norm(y, g, b)


def _ffn_ln(x, w1, b1, w2, b2, g, b):
    h = jnp.dot(x.astype(jnp.bfloat16), w1, preferred_element_type=jnp.float32) + b1
    h = jnp.maximum(h, 0.0)
    y = jnp.dot(h.astype(jnp.bfloat16), w2, preferred_element_type=jnp.float32) + b2
    return _layer_norm(x + y, g, b)


# ----------------------------------------------------------------------------
# Whole-model fused kernel
# ----------------------------------------------------------------------------
def _make_transformer_kernel(treedef, n_w, num_heads, bb):
    def kernel(xs_ref, xt_ref, srcb_ref, tgtk_ref, *rest):
        w_refs = jax.tree_util.tree_unflatten(treedef, list(rest[:n_w]))
        o_ref = rest[n_w]
        # Load all (tiny, VMEM-resident) weights once per grid step.
        W = jax.tree_util.tree_map(lambda r: r[...], w_refs)

        st = xt_ref.shape[1]
        row = jax.lax.broadcasted_iota(jnp.int32, (st, st), 0)
        col = jax.lax.broadcasted_iota(jnp.int32, (st, st), 1)
        causal = row >= col                                    # (St, St) bool

        for i in range(bb):                                    # static unroll over batch-in-block
            xs = xs_ref[i]                                     # (Ss, D) f32
            xt = xt_ref[i]                                     # (St, D) f32
            src_bias = srcb_ref[i]                             # (1, Ss) additive key-padding bias
            tgt_keep = tgtk_ref[i]                             # (St, 1) 1.0 keep / 0.0 pad (query rows)

            # Decoder self-attention bias: causal AND tgt-query-keep (same
            # semantics as the assignment-style generate_mask).
            dec_keep = jnp.logical_and(causal, tgt_keep > 0.5)
            dec_bias = jnp.where(dec_keep, 0.0, NEG_INF)       # (St, St)

            # ------------------------- encoder stack -------------------------
            h_src = xs
            for lw in W["encoder"]:
                dh = lw["wo"].shape[1]
                qkv = _project_heads(h_src, lw["wqkv"], lw["bqkv"], num_heads)
                h_src = _attn_core(qkv[:, :, :dh], qkv[:, :, dh:2 * dh],
                                   qkv[:, :, 2 * dh:], src_bias,
                                   lw["wo"], lw["bo"], h_src,
                                   lw["ln1_g"], lw["ln1_b"])
                h_src = _ffn_ln(h_src, lw["w1"], lw["b1"], lw["w2"], lw["b2"],
                                lw["ln2_g"], lw["ln2_b"])

            # ------------------------- decoder stack -------------------------
            h_tgt = xt
            for lw in W["decoder"]:
                dh = lw["self_wo"].shape[1]
                qkv = _project_heads(h_tgt, lw["self_wqkv"], lw["self_bqkv"], num_heads)
                h_tgt = _attn_core(qkv[:, :, :dh], qkv[:, :, dh:2 * dh],
                                   qkv[:, :, 2 * dh:], dec_bias,
                                   lw["self_wo"], lw["self_bo"], h_tgt,
                                   lw["ln1_g"], lw["ln1_b"])

                q_h = _project_heads(h_tgt, lw["cross_wq"], lw["cross_bq"], num_heads)
                kv = _project_heads(h_src, lw["cross_wkv"], lw["cross_bkv"], num_heads)
                h_tgt = _attn_core(q_h, kv[:, :, :dh], kv[:, :, dh:], src_bias,
                                   lw["cross_wo"], lw["cross_bo"], h_tgt,
                                   lw["ln2_g"], lw["ln2_b"])

                h_tgt = _ffn_ln(h_tgt, lw["w1"], lw["b1"], lw["w2"], lw["b2"],
                                lw["ln3_g"], lw["ln3_b"])

            # ---------------- lane-dense vocab projection (only HBM write) ---
            logits = jnp.dot(h_tgt.astype(jnp.bfloat16), W["fc_w"],
                             preferred_element_type=jnp.float32) + W["fc_b"]
            o_ref[i] = logits

    return kernel


def _auto_batch_per_step(batch):
    """Fold batch into one block on single-core chips; keep a parallel grid
    axis on chips with multiple (mega)cores (v7x / v4 / v5p)."""
    try:
        kind = jax.devices()[0].device_kind.lower()
    except Exception:
        return 1
    single_core = any(t in kind for t in ("lite", "v5e", "v6e", "v2", "v3"))
    return batch if single_core else 1


def fused_transformer(x_src, x_tgt, src_bias, tgt_keep, weights, *, num_heads,
                      vocab_padded, batch_per_step):
    B, Ss, D = x_src.shape
    St = x_tgt.shape[1]
    bb = batch_per_step
    assert B % bb == 0

    flat_w, treedef = jax.tree_util.tree_flatten(weights)
    n_w = len(flat_w)
    kernel = _make_transformer_kernel(treedef, n_w, num_heads, bb)

    def _bcast_spec(arr):
        nd = arr.ndim
        return pl.BlockSpec(arr.shape, lambda g, _nd=nd: (0,) * _nd)

    in_specs = ([
        pl.BlockSpec((bb, Ss, D), lambda g: (g, 0, 0)),        # x_src
        pl.BlockSpec((bb, St, D), lambda g: (g, 0, 0)),        # x_tgt
        pl.BlockSpec((bb, 1, Ss), lambda g: (g, 0, 0)),        # src key-padding bias
        pl.BlockSpec((bb, St, 1), lambda g: (g, 0, 0)),        # tgt query keep
    ] + [_bcast_spec(a) for a in flat_w])

    return pl.pallas_call(
        kernel,
        out_shape=jax.ShapeDtypeStruct((B, St, vocab_padded), jnp.float32),
        grid=(B // bb,),
        in_specs=in_specs,
        out_specs=pl.BlockSpec((bb, St, vocab_padded), lambda g: (g, 0, 0)),
        compiler_params=pltpu.CompilerParams(dimension_semantics=("parallel",)),
    )(x_src, x_tgt, src_bias, tgt_keep, *flat_w)


# ----------------------------------------------------------------------------
# Plain-JAX glue: embeddings, positional encoding, masks, orchestration
# ----------------------------------------------------------------------------
def positional_encoding(max_len, d_model):
    pos = jnp.arange(max_len, dtype=jnp.float32)[:, None]
    i = jnp.arange(0, d_model, 2, dtype=jnp.float32)[None, :]
    div = jnp.exp(-(i / d_model) * math.log(10000.0))
    pe = jnp.zeros((max_len, d_model), dtype=jnp.float32)
    pe = pe.at[:, 0::2].set(jnp.sin(pos * div))
    pe = pe.at[:, 1::2].set(jnp.cos(pos * div))
    return pe


def transformer_forward(kparams, src, tgt, *, num_heads, max_len, out_vocab,
                        batch_per_step=None):
    d_model = kparams["enc_emb"].shape[1]
    B, Ss = src.shape
    St = tgt.shape[1]
    if batch_per_step is None:
        batch_per_step = _auto_batch_per_step(B)

    pe = positional_encoding(max_len, d_model)
    x_src = jnp.take(kparams["enc_emb"], src, axis=0) + pe[None, :Ss, :]
    x_tgt = jnp.take(kparams["dec_emb"], tgt, axis=0) + pe[None, :St, :]

    # Compact mask inputs (no (B, Sq, Sk) materialization).
    src_bias = jnp.where(src != 0, 0.0, NEG_INF).astype(jnp.float32)[:, None, :]  # (B,1,Ss)
    tgt_keep = (tgt != 0).astype(jnp.float32)[:, :, None]                          # (B,St,1)

    vocab_padded = kparams["weights"]["fc_w"].shape[1]
    logits_pad = fused_transformer(
        x_src, x_tgt, src_bias, tgt_keep, kparams["weights"],
        num_heads=num_heads, vocab_padded=vocab_padded,
        batch_per_step=batch_per_step)
    return logits_pad[:, :, :out_vocab]


# ----------------------------------------------------------------------------
# Parameter init (PyTorch-like layout) + one-time kernel-facing prep
# ----------------------------------------------------------------------------
def _dense(key, d_in, d_out):
    kw, kb = jax.random.split(key)
    w = jax.random.normal(kw, (d_in, d_out), dtype=jnp.float32) * 0.02
    b = jax.random.normal(kb, (d_out,), dtype=jnp.float32) * 0.02
    return w, b


def _mha_params(key, d_model):
    ks = jax.random.split(key, 4)
    wq, bq = _dense(ks[0], d_model, d_model)
    wk, bk = _dense(ks[1], d_model, d_model)
    wv, bv = _dense(ks[2], d_model, d_model)
    wo, bo = _dense(ks[3], d_model, d_model)
    return dict(wq=wq, bq=bq, wk=wk, bk=bk, wv=wv, bv=bv, wo=wo, bo=bo)


def init_params(key, in_vocab, out_vocab, d_model, n_enc, n_dec, d_ff):
    keys = jax.random.split(key, 4 + n_enc + n_dec)
    params = {
        "enc_emb": jax.random.normal(keys[0], (in_vocab, d_model), jnp.float32) * 0.02,
        "dec_emb": jax.random.normal(keys[1], (out_vocab, d_model), jnp.float32) * 0.02,
    }
    params["fc_w"], params["fc_b"] = _dense(keys[2], d_model, out_vocab)

    enc_layers = []
    for li in range(n_enc):
        k = jax.random.split(keys[4 + li], 3)
        w1, b1 = _dense(k[1], d_model, d_ff)
        w2, b2 = _dense(k[2], d_ff, d_model)
        enc_layers.append(dict(
            mha=_mha_params(k[0], d_model), w1=w1, b1=b1, w2=w2, b2=b2,
            ln1_g=jnp.ones((d_model,), jnp.float32), ln1_b=jnp.zeros((d_model,), jnp.float32),
            ln2_g=jnp.ones((d_model,), jnp.float32), ln2_b=jnp.zeros((d_model,), jnp.float32),
        ))
    params["encoder"] = enc_layers

    dec_layers = []
    for li in range(n_dec):
        k = jax.random.split(keys[4 + n_enc + li], 4)
        w1, b1 = _dense(k[2], d_model, d_ff)
        w2, b2 = _dense(k[3], d_ff, d_model)
        dec_layers.append(dict(
            self_mha=_mha_params(k[0], d_model), cross_mha=_mha_params(k[1], d_model),
            w1=w1, b1=b1, w2=w2, b2=b2,
            ln1_g=jnp.ones((d_model,), jnp.float32), ln1_b=jnp.zeros((d_model,), jnp.float32),
            ln2_g=jnp.ones((d_model,), jnp.float32), ln2_b=jnp.zeros((d_model,), jnp.float32),
            ln3_g=jnp.ones((d_model,), jnp.float32), ln3_b=jnp.zeros((d_model,), jnp.float32),
        ))
    params["decoder"] = dec_layers
    return params


def prepare_params(raw, d_model, d_ff, out_vocab, num_heads):
    """One-time conversion to the kernel-facing, head-batched layout."""
    H = num_heads
    Dh = d_model // H
    scale = 1.0 / math.sqrt(Dh)

    def heads_in(w):   # (D, F) -> (H, D, F//H), output columns split by head
        D, F = w.shape
        return jnp.transpose(w.reshape(D, H, F // H), (1, 0, 2)).astype(jnp.bfloat16)

    def heads_b(b):    # (F,) -> (H, 1, F//H)
        return b.reshape(H, 1, b.shape[0] // H).astype(jnp.float32)

    def ln2(g, b):
        return g.reshape(1, -1).astype(jnp.float32), b.reshape(1, -1).astype(jnp.float32)

    def prep_self(p):
        wqkv = jnp.concatenate([heads_in(p["wq"] * scale), heads_in(p["wk"]),
                                heads_in(p["wv"])], axis=2)                 # (H, D, 3Dh)
        bqkv = jnp.concatenate([heads_b(p["bq"] * scale), heads_b(p["bk"]),
                                heads_b(p["bv"])], axis=2)                  # (H, 1, 3Dh)
        wo = p["wo"].reshape(H, Dh, d_model).astype(jnp.bfloat16)           # (H, Dh, D)
        bo = p["bo"].reshape(1, d_model).astype(jnp.float32)
        return wqkv, bqkv, wo, bo

    def prep_cross(p):
        wq = heads_in(p["wq"] * scale)                                      # (H, D, Dh)
        bq = heads_b(p["bq"] * scale)
        wkv = jnp.concatenate([heads_in(p["wk"]), heads_in(p["wv"])], axis=2)  # (H, D, 2Dh)
        bkv = jnp.concatenate([heads_b(p["bk"]), heads_b(p["bv"])], axis=2)
        wo = p["wo"].reshape(H, Dh, d_model).astype(jnp.bfloat16)
        bo = p["bo"].reshape(1, d_model).astype(jnp.float32)
        return wq, bq, wkv, bkv, wo, bo

    def prep_ffn(lp):
        return dict(w1=lp["w1"].astype(jnp.bfloat16),
                    b1=lp["b1"].reshape(1, d_ff).astype(jnp.float32),
                    w2=lp["w2"].astype(jnp.bfloat16),
                    b2=lp["b2"].reshape(1, d_model).astype(jnp.float32))

    enc = []
    for lp in raw["encoder"]:
        wqkv, bqkv, wo, bo = prep_self(lp["mha"])
        g1, b1 = ln2(lp["ln1_g"], lp["ln1_b"])
        g2, b2 = ln2(lp["ln2_g"], lp["ln2_b"])
        enc.append(dict(wqkv=wqkv, bqkv=bqkv, wo=wo, bo=bo,
                        ln1_g=g1, ln1_b=b1, ln2_g=g2, ln2_b=b2, **prep_ffn(lp)))

    dec = []
    for lp in raw["decoder"]:
        swqkv, sbqkv, swo, sbo = prep_self(lp["self_mha"])
        cwq, cbq, cwkv, cbkv, cwo, cbo = prep_cross(lp["cross_mha"])
        g1, b1 = ln2(lp["ln1_g"], lp["ln1_b"])
        g2, b2 = ln2(lp["ln2_g"], lp["ln2_b"])
        g3, b3 = ln2(lp["ln3_g"], lp["ln3_b"])
        dec.append(dict(self_wqkv=swqkv, self_bqkv=sbqkv, self_wo=swo, self_bo=sbo,
                        cross_wq=cwq, cross_bq=cbq, cross_wkv=cwkv, cross_bkv=cbkv,
                        cross_wo=cwo, cross_bo=cbo,
                        ln1_g=g1, ln1_b=b1, ln2_g=g2, ln2_b=b2, ln3_g=g3, ln3_b=b3,
                        **prep_ffn(lp)))

    # Lane-dense final projection: pad vocab to a multiple of 128.
    v_pad = ((out_vocab + 127) // 128) * 128
    fc_w = jnp.zeros((d_model, v_pad), jnp.float32).at[:, :out_vocab].set(raw["fc_w"])
    fc_b = jnp.zeros((1, v_pad), jnp.float32).at[0, :out_vocab].set(raw["fc_b"])

    weights = dict(encoder=enc, decoder=dec,
                   fc_w=fc_w.astype(jnp.bfloat16), fc_b=fc_b)
    return {"enc_emb": raw["enc_emb"].astype(jnp.float32),
            "dec_emb": raw["dec_emb"].astype(jnp.float32),
            "weights": weights}


# ----------------------------------------------------------------------------
if __name__ == "__main__":
    IN_VOCAB, OUT_VOCAB = 37, 41
    D_MODEL, N_ENC, N_DEC, N_HEADS, D_FF = 32, 2, 2, 4, 64
    MAX_LEN = 16
    B, S_SRC, S_TGT = 2, 8, 8
    # TODO(synk): dropout is treated as identity (inference/eval semantics).

    root = jax.random.PRNGKey(0)
    kp_key, ks, kt = jax.random.split(root, 3)
    raw_params = init_params(kp_key, IN_VOCAB, OUT_VOCAB, D_MODEL, N_ENC, N_DEC, D_FF)
    kparams = prepare_params(raw_params, D_MODEL, D_FF, OUT_VOCAB, N_HEADS)

    src = jax.random.randint(ks, (B, S_SRC), 1, IN_VOCAB, dtype=jnp.int32)
    tgt = jax.random.randint(kt, (B, S_TGT), 1, OUT_VOCAB, dtype=jnp.int32)
    # introduce some padding (token id 0) to exercise the masks
    src = src.at[:, -2:].set(0)
    tgt = tgt.at[:, -1:].set(0)

    fwd = jax.jit(functools.partial(transformer_forward, num_heads=N_HEADS,
                                    max_len=MAX_LEN, out_vocab=OUT_VOCAB))
    logits = jax.block_until_ready(fwd(kparams, src, tgt))
    assert logits.shape == (B, S_TGT, OUT_VOCAB)
    assert bool(jnp.all(jnp.isfinite(logits)))
    print("KERNEL_OK")
</pallas_src>

<mosaic_0001>
module attributes {stable_mosaic.version = 11 : i64} {
  func.func @kernel(%arg0: i32, %arg1: memref<1x8x32xf32, #tpu.memory_space<vmem>>, %arg2: memref<1x8x32xf32, #tpu.memory_space<vmem>>, %arg3: memref<1x1x8xf32, #tpu.memory_space<vmem>>, %arg4: memref<1x8x1xf32, #tpu.memory_space<vmem>>, %arg5: memref<1x64xf32, #tpu.memory_space<vmem>>, %arg6: memref<1x32xf32, #tpu.memory_space<vmem>>, %arg7: memref<4x1x16xf32, #tpu.memory_space<vmem>>, %arg8: memref<1x32xf32, #tpu.memory_space<vmem>>, %arg9: memref<4x1x8xf32, #tpu.memory_space<vmem>>, %arg10: memref<4x32x16xbf16, #tpu.memory_space<vmem>>, %arg11: memref<4x8x32xbf16, #tpu.memory_space<vmem>>, %arg12: memref<4x32x8xbf16, #tpu.memory_space<vmem>>, %arg13: memref<1x32xf32, #tpu.memory_space<vmem>>, %arg14: memref<1x32xf32, #tpu.memory_space<vmem>>, %arg15: memref<1x32xf32, #tpu.memory_space<vmem>>, %arg16: memref<1x32xf32, #tpu.memory_space<vmem>>, %arg17: memref<1x32xf32, #tpu.memory_space<vmem>>, %arg18: memref<1x32xf32, #tpu.memory_space<vmem>>, %arg19: memref<1x32xf32, #tpu.memory_space<vmem>>, %arg20: memref<4x1x24xf32, #tpu.memory_space<vmem>>, %arg21: memref<4x8x32xbf16, #tpu.memory_space<vmem>>, %arg22: memref<4x32x24xbf16, #tpu.memory_space<vmem>>, %arg23: memref<32x64xbf16, #tpu.memory_space<vmem>>, %arg24: memref<64x32xbf16, #tpu.memory_space<vmem>>, %arg25: memref<1x64xf32, #tpu.memory_space<vmem>>, %arg26: memref<1x32xf32, #tpu.memory_space<vmem>>, %arg27: memref<4x1x16xf32, #tpu.memory_space<vmem>>, %arg28: memref<1x32xf32, #tpu.memory_space<vmem>>, %arg29: memref<4x1x8xf32, #tpu.memory_space<vmem>>, %arg30: memref<4x32x16xbf16, #tpu.memory_space<vmem>>, %arg31: memref<4x8x32xbf16, #tpu.memory_space<vmem>>, %arg32: memref<4x32x8xbf16, #tpu.memory_space<vmem>>, %arg33: memref<1x32xf32, #tpu.memory_space<vmem>>, %arg34: memref<1x32xf32, #tpu.memory_space<vmem>>, %arg35: memref<1x32xf32, #tpu.memory_space<vmem>>, %arg36: memref<1x32xf32, #tpu.memory_space<vmem>>, %arg37: memref<1x32xf32, #tpu.memory_space<vmem>>, %arg38: memref<1x32xf32, #tpu.memory_space<vmem>>, %arg39: memref<1x32xf32, #tpu.memory_space<vmem>>, %arg40: memref<4x1x24xf32, #tpu.memory_space<vmem>>, %arg41: memref<4x8x32xbf16, #tpu.memory_space<vmem>>, %arg42: memref<4x32x24xbf16, #tpu.memory_space<vmem>>, %arg43: memref<32x64xbf16, #tpu.memory_space<vmem>>, %arg44: memref<64x32xbf16, #tpu.memory_space<vmem>>, %arg45: memref<1x64xf32, #tpu.memory_space<vmem>>, %arg46: memref<1x32xf32, #tpu.memory_space<vmem>>, %arg47: memref<1x32xf32, #tpu.memory_space<vmem>>, %arg48: memref<4x1x24xf32, #tpu.memory_space<vmem>>, %arg49: memref<1x32xf32, #tpu.memory_space<vmem>>, %arg50: memref<1x32xf32, #tpu.memory_space<vmem>>, %arg51: memref<1x32xf32, #tpu.memory_space<vmem>>, %arg52: memref<1x32xf32, #tpu.memory_space<vmem>>, %arg53: memref<32x64xbf16, #tpu.memory_space<vmem>>, %arg54: memref<64x32xbf16, #tpu.memory_space<vmem>>, %arg55: memref<4x8x32xbf16, #tpu.memory_space<vmem>>, %arg56: memref<4x32x24xbf16, #tpu.memory_space<vmem>>, %arg57: memref<1x64xf32, #tpu.memory_space<vmem>>, %arg58: memref<1x32xf32, #tpu.memory_space<vmem>>, %arg59: memref<1x32xf32, #tpu.memory_space<vmem>>, %arg60: memref<4x1x24xf32, #tpu.memory_space<vmem>>, %arg61: memref<1x32xf32, #tpu.memory_space<vmem>>, %arg62: memref<1x32xf32, #tpu.memory_space<vmem>>, %arg63: memref<1x32xf32, #tpu.memory_space<vmem>>, %arg64: memref<1x32xf32, #tpu.memory_space<vmem>>, %arg65: memref<32x64xbf16, #tpu.memory_space<vmem>>, %arg66: memref<64x32xbf16, #tpu.memory_space<vmem>>, %arg67: memref<4x8x32xbf16, #tpu.memory_space<vmem>>, %arg68: memref<4x32x24xbf16, #tpu.memory_space<vmem>>, %arg69: memref<1x128xf32, #tpu.memory_space<vmem>>, %arg70: memref<32x128xbf16, #tpu.memory_space<vmem>>, %arg71: memref<1x8x128xf32, #tpu.memory_space<vmem>>) attributes {dimension_semantics = [#tpu.dimension_semantics<parallel>], iteration_bounds = array<i64: 2>, scalar_prefetch = 0 : i64, scratch_operands = 0 : i64, tpu.core_type = #tpu.core_type<tc>, window_params = [{transform_indices = @transform_0, window_bounds = array<i64: 1, 8, 32>}, {transform_indices = @transform_1, window_bounds = array<i64: 1, 8, 32>}, {transform_indices = @transform_2, window_bounds = array<i64: 1, 1, 8>}, {transform_indices = @transform_3, window_bounds = array<i64: 1, 8, 1>}, {pipeline_mode = #tpu.pipeline_mode<synchronous>, transform_indices = @transform_4, window_bounds = array<i64: 1, 64>}, {pipeline_mode = #tpu.pipeline_mode<synchronous>, transform_indices = @transform_5, window_bounds = array<i64: 1, 32>}, {pipeline_mode = #tpu.pipeline_mode<synchronous>, transform_indices = @transform_6, window_bounds = array<i64: 4, 1, 16>}, {pipeline_mode = #tpu.pipeline_mode<synchronous>, transform_indices = @transform_7, window_bounds = array<i64: 1, 32>}, {pipeline_mode = #tpu.pipeline_mode<synchronous>, transform_indices = @transform_8, window_bounds = array<i64: 4, 1, 8>}, {pipeline_mode = #tpu.pipeline_mode<synchronous>, transform_indices = @transform_9, window_bounds = array<i64: 4, 32, 16>}, {pipeline_mode = #tpu.pipeline_mode<synchronous>, transform_indices = @transform_10, window_bounds = array<i64: 4, 8, 32>}, {pipeline_mode = #tpu.pipeline_mode<synchronous>, transform_indices = @transform_11, window_bounds = array<i64: 4, 32, 8>}, {pipeline_mode = #tpu.pipeline_mode<synchronous>, transform_indices = @transform_12, window_bounds = array<i64: 1, 32>}, {pipeline_mode = #tpu.pipeline_mode<synchronous>, transform_indices = @transform_13, window_bounds = array<i64: 1, 32>}, {pipeline_mode = #tpu.pipeline_mode<synchronous>, transform_indices = @transform_14, window_bounds = array<i64: 1, 32>}, {pipeline_mode = #tpu.pipeline_mode<synchronous>, transform_indices = @transform_15, window_bounds = array<i64: 1, 32>}, {pipeline_mode = #tpu.pipeline_mode<synchronous>, transform_indices = @transform_16, window_bounds = array<i64: 1, 32>}, {pipeline_mode = #tpu.pipeline_mode<synchronous>, transform_indices = @transform_17, window_bounds = array<i64: 1, 32>}, {pipeline_mode = #tpu.pipeline_mode<synchronous>, transform_indices = @transform_18, window_bounds = array<i64: 1, 32>}, {pipeline_mode = #tpu.pipeline_mode<synchronous>, transform_indices = @transform_19, window_bounds = array<i64: 4, 1, 24>}, {pipeline_mode = #tpu.pipeline_mode<synchronous>, transform_indices = @transform_20, window_bounds = array<i64: 4, 8, 32>}, {pipeline_mode = #tpu.pipeline_mode<synchronous>, transform_indices = @transform_21, window_bounds = array<i64: 4, 32, 24>}, {pipeline_mode = #tpu.pipeline_mode<synchronous>, transform_indices = @transform_22, window_bounds = array<i64: 32, 64>}, {pipeline_mode = #tpu.pipeline_mode<synchronous>, transform_indices = @transform_23, window_bounds = array<i64: 64, 32>}, {pipeline_mode = #tpu.pipeline_mode<synchronous>, transform_indices = @transform_24, window_bounds = array<i64: 1, 64>}, {pipeline_mode = #tpu.pipeline_mode<synchronous>, transform_indices = @transform_25, window_bounds = array<i64: 1, 32>}, {pipeline_mode = #tpu.pipeline_mode<synchronous>, transform_indices = @transform_26, window_bounds = array<i64: 4, 1, 16>}, {pipeline_mode = #tpu.pipeline_mode<synchronous>, transform_indices = @transform_27, window_bounds = array<i64: 1, 32>}, {pipeline_mode = #tpu.pipeline_mode<synchronous>, transform_indices = @transform_28, window_bounds = array<i64: 4, 1, 8>}, {pipeline_mode = #tpu.pipeline_mode<synchronous>, transform_indices = @transform_29, window_bounds = array<i64: 4, 32, 16>}, {pipeline_mode = #tpu.pipeline_mode<synchronous>, transform_indices = @transform_30, window_bounds = array<i64: 4, 8, 32>}, {pipeline_mode = #tpu.pipeline_mode<synchronous>, transform_indices = @transform_31, window_bounds = array<i64: 4, 32, 8>}, {pipeline_mode = #tpu.pipeline_mode<synchronous>, transform_indices = @transform_32, window_bounds = array<i64: 1, 32>}, {pipeline_mode = #tpu.pipeline_mode<synchronous>, transform_indices = @transform_33, window_bounds = array<i64: 1, 32>}, {pipeline_mode = #tpu.pipeline_mode<synchronous>, transform_indices = @transform_34, window_bounds = array<i64: 1, 32>}, {pipeline_mode = #tpu.pipeline_mode<synchronous>, transform_indices = @transform_35, window_bounds = array<i64: 1, 32>}, {pipeline_mode = #tpu.pipeline_mode<synchronous>, transform_indices = @transform_36, window_bounds = array<i64: 1, 32>}, {pipeline_mode = #tpu.pipeline_mode<synchronous>, transform_indices = @transform_37, window_bounds = array<i64: 1, 32>}, {pipeline_mode = #tpu.pipeline_mode<synchronous>, transform_indices = @transform_38, window_bounds = array<i64: 1, 32>}, {pipeline_mode = #tpu.pipeline_mode<synchronous>, transform_indices = @transform_39, window_bounds = array<i64: 4, 1, 24>}, {pipeline_mode = #tpu.pipeline_mode<synchronous>, transform_indices = @transform_40, window_bounds = array<i64: 4, 8, 32>}, {pipeline_mode = #tpu.pipeline_mode<synchronous>, transform_indices = @transform_41, window_bounds = array<i64: 4, 32, 24>}, {pipeline_mode = #tpu.pipeline_mode<synchronous>, transform_indices = @transform_42, window_bounds = array<i64: 32, 64>}, {pipeline_mode = #tpu.pipeline_mode<synchronous>, transform_indices = @transform_43, window_bounds = array<i64: 64, 32>}, {pipeline_mode = #tpu.pipeline_mode<synchronous>, transform_indices = @transform_44, window_bounds = array<i64: 1, 64>}, {pipeline_mode = #tpu.pipeline_mode<synchronous>, transform_indices = @transform_45, window_bounds = array<i64: 1, 32>}, {pipeline_mode = #tpu.pipeline_mode<synchronous>, transform_indices = @transform_46, window_bounds = array<i64: 1, 32>}, {pipeline_mode = #tpu.pipeline_mode<synchronous>, transform_indices = @transform_47, window_bounds = array<i64: 4, 1, 24>}, {pipeline_mode = #tpu.pipeline_mode<synchronous>, transform_indices = @transform_48, window_bounds = array<i64: 1, 32>}, {pipeline_mode = #tpu.pipeline_mode<synchronous>, transform_indices = @transform_49, window_bounds = array<i64: 1, 32>}, {pipeline_mode = #tpu.pipeline_mode<synchronous>, transform_indices = @transform_50, window_bounds = array<i64: 1, 32>}, {pipeline_mode = #tpu.pipeline_mode<synchronous>, transform_indices = @transform_51, window_bounds = array<i64: 1, 32>}, {pipeline_mode = #tpu.pipeline_mode<synchronous>, transform_indices = @transform_52, window_bounds = array<i64: 32, 64>}, {pipeline_mode = #tpu.pipeline_mode<synchronous>, transform_indices = @transform_53, window_bounds = array<i64: 64, 32>}, {pipeline_mode = #tpu.pipeline_mode<synchronous>, transform_indices = @transform_54, window_bounds = array<i64: 4, 8, 32>}, {pipeline_mode = #tpu.pipeline_mode<synchronous>, transform_indices = @transform_55, window_bounds = array<i64: 4, 32, 24>}, {pipeline_mode = #tpu.pipeline_mode<synchronous>, transform_indices = @transform_56, window_bounds = array<i64: 1, 64>}, {pipeline_mode = #tpu.pipeline_mode<synchronous>, transform_indices = @transform_57, window_bounds = array<i64: 1, 32>}, {pipeline_mode = #tpu.pipeline_mode<synchronous>, transform_indices = @transform_58, window_bounds = array<i64: 1, 32>}, {pipeline_mode = #tpu.pipeline_mode<synchronous>, transform_indices = @transform_59, window_bounds = array<i64: 4, 1, 24>}, {pipeline_mode = #tpu.pipeline_mode<synchronous>, transform_indices = @transform_60, window_bounds = array<i64: 1, 32>}, {pipeline_mode = #tpu.pipeline_mode<synchronous>, transform_indices = @transform_61, window_bounds = array<i64: 1, 32>}, {pipeline_mode = #tpu.pipeline_mode<synchronous>, transform_indices = @transform_62, window_bounds = array<i64: 1, 32>}, {pipeline_mode = #tpu.pipeline_mode<synchronous>, transform_indices = @transform_63, window_bounds = array<i64: 1, 32>}, {pipeline_mode = #tpu.pipeline_mode<synchronous>, transform_indices = @transform_64, window_bounds = array<i64: 32, 64>}, {pipeline_mode = #tpu.pipeline_mode<synchronous>, transform_indices = @transform_65, window_bounds = array<i64: 64, 32>}, {pipeline_mode = #tpu.pipeline_mode<synchronous>, transform_indices = @transform_66, window_bounds = array<i64: 4, 8, 32>}, {pipeline_mode = #tpu.pipeline_mode<synchronous>, transform_indices = @transform_67, window_bounds = array<i64: 4, 32, 24>}, {pipeline_mode = #tpu.pipeline_mode<synchronous>, transform_indices = @transform_68, window_bounds = array<i64: 1, 128>}, {pipeline_mode = #tpu.pipeline_mode<synchronous>, transform_indices = @transform_69, window_bounds = array<i64: 32, 128>}, {transform_indices = @transform_70, window_bounds = array<i64: 1, 8, 128>}]} {
    %c0 = arith.constant 0 : index
    %c0_0 = arith.constant 0 : index
    %0 = vector.load %arg5[%c0, %c0_0] : memref<1x64xf32, #tpu.memory_space<vmem>>, vector<1x64xf32>
    %c0_1 = arith.constant 0 : index
    %c0_2 = arith.constant 0 : index
    %1 = vector.load %arg6[%c0_1, %c0_2] : memref<1x32xf32, #tpu.memory_space<vmem>>, vector<1x32xf32>
    %c0_3 = arith.constant 0 : index
    %c0_4 = arith.constant 0 : index
    %c0_5 = arith.constant 0 : index
    %2 = vector.load %arg7[%c0_3, %c0_4, %c0_5] : memref<4x1x16xf32, #tpu.memory_space<vmem>>, vector<4x1x16xf32>
    %c0_6 = arith.constant 0 : index
    %c0_7 = arith.constant 0 : index
    %3 = vector.load %arg8[%c0_6, %c0_7] : memref<1x32xf32, #tpu.memory_space<vmem>>, vector<1x32xf32>
    %c0_8 = arith.constant 0 : index
    %c0_9 = arith.constant 0 : index
    %c0_10 = arith.constant 0 : index
    %4 = vector.load %arg9[%c0_8, %c0_9, %c0_10] : memref<4x1x8xf32, #tpu.memory_space<vmem>>, vector<4x1x8xf32>
    %c0_11 = arith.constant 0 : index
    %c0_12 = arith.constant 0 : index
    %c0_13 = arith.constant 0 : index
    %5 = vector.load %arg10[%c0_11, %c0_12, %c0_13] : memref<4x32x16xbf16, #tpu.memory_space<vmem>>, vector<4x32x16xbf16>
    %c0_14 = arith.constant 0 : index
    %c0_15 = arith.constant 0 : index
    %c0_16 = arith.constant 0 : index
    %6 = vector.load %arg11[%c0_14, %c0_15, %c0_16] : memref<4x8x32xbf16, #tpu.memory_space<vmem>>, vector<4x8x32xbf16>
    %c0_17 = arith.constant 0 : index
    %c0_18 = arith.constant 0 : index
    %c0_19 = arith.constant 0 : index
    %7 = vector.load %arg12[%c0_17, %c0_18, %c0_19] : memref<4x32x8xbf16, #tpu.memory_space<vmem>>, vector<4x32x8xbf16>
    %c0_20 = arith.constant 0 : index
    %c0_21 = arith.constant 0 : index
    %8 = vector.load %arg13[%c0_20, %c0_21] : memref<1x32xf32, #tpu.memory_space<vmem>>, vector<1x32xf32>
    %c0_22 = arith.constant 0 : index
    %c0_23 = arith.constant 0 : index
    %9 = vector.load %arg14[%c0_22, %c0_23] : memref<1x32xf32, #tpu.memory_space<vmem>>, vector<1x32xf32>
    %c0_24 = arith.constant 0 : index
    %c0_25 = arith.constant 0 : index
    %10 = vector.load %arg15[%c0_24, %c0_25] : memref<1x32xf32, #tpu.memory_space<vmem>>, vector<1x32xf32>
    %c0_26 = arith.constant 0 : index
    %c0_27 = arith.constant 0 : index
    %11 = vector.load %arg16[%c0_26, %c0_27] : memref<1x32xf32, #tpu.memory_space<vmem>>, vector<1x32xf32>
    %c0_28 = arith.constant 0 : index
    %c0_29 = arith.constant 0 : index
    %12 = vector.load %arg17[%c0_28, %c0_29] : memref<1x32xf32, #tpu.memory_space<vmem>>, vector<1x32xf32>
    %c0_30 = arith.constant 0 : index
    %c0_31 = arith.constant 0 : index
    %13 = vector.load %arg18[%c0_30, %c0_31] : memref<1x32xf32, #tpu.memory_space<vmem>>, vector<1x32xf32>
    %c0_32 = arith.constant 0 : index
    %c0_33 = arith.constant 0 : index
    %14 = vector.load %arg19[%c0_32, %c0_33] : memref<1x32xf32, #tpu.memory_space<vmem>>, vector<1x32xf32>
    %c0_34 = arith.constant 0 : index
    %c0_35 = arith.constant 0 : index
    %c0_36 = arith.constant 0 : index
    %15 = vector.load %arg20[%c0_34, %c0_35, %c0_36] : memref<4x1x24xf32, #tpu.memory_space<vmem>>, vector<4x1x24xf32>
    %c0_37 = arith.constant 0 : index
    %c0_38 = arith.constant 0 : index
    %c0_39 = arith.constant 0 : index
    %16 = vector.load %arg21[%c0_37, %c0_38, %c0_39] : memref<4x8x32xbf16, #tpu.memory_space<vmem>>, vector<4x8x32xbf16>
    %c0_40 = arith.constant 0 : index
    %c0_41 = arith.constant 0 : index
    %c0_42 = arith.constant 0 : index
    %17 = vector.load %arg22[%c0_40, %c0_41, %c0_42] : memref<4x32x24xbf16, #tpu.memory_space<vmem>>, vector<4x32x24xbf16>
    %c0_43 = arith.constant 0 : index
    %c0_44 = arith.constant 0 : index
    %18 = vector.load %arg23[%c0_43, %c0_44] : memref<32x64xbf16, #tpu.memory_space<vmem>>, vector<32x64xbf16>
    %c0_45 = arith.constant 0 : index
    %c0_46 = arith.constant 0 : index
    %19 = vector.load %arg24[%c0_45, %c0_46] : memref<64x32xbf16, #tpu.memory_space<vmem>>, vector<64x32xbf16>
    %c0_47 = arith.constant 0 : index
    %c0_48 = arith.constant 0 : index
    %20 = vector.load %arg25[%c0_47, %c0_48] : memref<1x64xf32, #tpu.memory_space<vmem>>, vector<1x64xf32>
    %c0_49 = arith.constant 0 : index
    %c0_50 = arith.constant 0 : index
    %21 = vector.load %arg26[%c0_49, %c0_50] : memref<1x32xf32, #tpu.memory_space<vmem>>, vector<1x32xf32>
    %c0_51 = arith.constant 0 : index
    %c0_52 = arith.constant 0 : index
    %c0_53 = arith.constant 0 : index
    %22 = vector.load %arg27[%c0_51, %c0_52, %c0_53] : memref<4x1x16xf32, #tpu.memory_space<vmem>>, vector<4x1x16xf32>
    %c0_54 = arith.constant 0 : index
    %c0_55 = arith.constant 0 : index
    %23 = vector.load %arg28[%c0_54, %c0_55] : memref<1x32xf32, #tpu.memory_space<vmem>>, vector<1x32xf32>
    %c0_56 = arith.constant 0 : index
    %c0_57 = arith.constant 0 : index
    %c0_58 = arith.constant 0 : index
    %24 = vector.load %arg29[%c0_56, %c0_57, %c0_58] : memref<4x1x8xf32, #tpu.memory_space<vmem>>, vector<4x1x8xf32>
    %c0_59 = arith.constant 0 : index
    %c0_60 = arith.constant 0 : index
    %c0_61 = arith.constant 0 : index
    %25 = vector.load %arg30[%c0_59, %c0_60, %c0_61] : memref<4x32x16xbf16, #tpu.memory_space<vmem>>, vector<4x32x16xbf16>
    %c0_62 = arith.constant 0 : index
    %c0_63 = arith.constant 0 : index
    %c0_64 = arith.constant 0 : index
    %26 = vector.load %arg31[%c0_62, %c0_63, %c0_64] : memref<4x8x32xbf16, #tpu.memory_space<vmem>>, vector<4x8x32xbf16>
    %c0_65 = arith.constant 0 : index
    %c0_66 = arith.constant 0 : index
    %c0_67 = arith.constant 0 : index
    %27 = vector.load %arg32[%c0_65, %c0_66, %c0_67] : memref<4x32x8xbf16, #tpu.memory_space<vmem>>, vector<4x32x8xbf16>
    %c0_68 = arith.constant 0 : index
    %c0_69 = arith.constant 0 : index
    %28 = vector.load %arg33[%c0_68, %c0_69] : memref<1x32xf32, #tpu.memory_space<vmem>>, vector<1x32xf32>
    %c0_70 = arith.constant 0 : index
    %c0_71 = arith.constant 0 : index
    %29 = vector.load %arg34[%c0_70, %c0_71] : memref<1x32xf32, #tpu.memory_space<vmem>>, vector<1x32xf32>
    %c0_72 = arith.constant 0 : index
    %c0_73 = arith.constant 0 : index
    %30 = vector.load %arg35[%c0_72, %c0_73] : memref<1x32xf32, #tpu.memory_space<vmem>>, vector<1x32xf32>
    %c0_74 = arith.constant 0 : index
    %c0_75 = arith.constant 0 : index
    %31 = vector.load %arg36[%c0_74, %c0_75] : memref<1x32xf32, #tpu.memory_space<vmem>>, vector<1x32xf32>
    %c0_76 = arith.constant 0 : index
    %c0_77 = arith.constant 0 : index
    %32 = vector.load %arg37[%c0_76, %c0_77] : memref<1x32xf32, #tpu.memory_space<vmem>>, vector<1x32xf32>
    %c0_78 = arith.constant 0 : index
    %c0_79 = arith.constant 0 : index
    %33 = vector.load %arg38[%c0_78, %c0_79] : memref<1x32xf32, #tpu.memory_space<vmem>>, vector<1x32xf32>
    %c0_80 = arith.constant 0 : index
    %c0_81 = arith.constant 0 : index
    %34 = vector.load %arg39[%c0_80, %c0_81] : memref<1x32xf32, #tpu.memory_space<vmem>>, vector<1x32xf32>
    %c0_82 = arith.constant 0 : index
    %c0_83 = arith.constant 0 : index
    %c0_84 = arith.constant 0 : index
    %35 = vector.load %arg40[%c0_82, %c0_83, %c0_84] : memref<4x1x24xf32, #tpu.memory_space<vmem>>, vector<4x1x24xf32>
    %c0_85 = arith.constant 0 : index
    %c0_86 = arith.constant 0 : index
    %c0_87 = arith.constant 0 : index
    %36 = vector.load %arg41[%c0_85, %c0_86, %c0_87] : memref<4x8x32xbf16, #tpu.memory_space<vmem>>, vector<4x8x32xbf16>
    %c0_88 = arith.constant 0 : index
    %c0_89 = arith.constant 0 : index
    %c0_90 = arith.constant 0 : index
    %37 = vector.load %arg42[%c0_88, %c0_89, %c0_90] : memref<4x32x24xbf16, #tpu.memory_space<vmem>>, vector<4x32x24xbf16>
    %c0_91 = arith.constant 0 : index
    %c0_92 = arith.constant 0 : index
    %38 = vector.load %arg43[%c0_91, %c0_92] : memref<32x64xbf16, #tpu.memory_space<vmem>>, vector<32x64xbf16>
    %c0_93 = arith.constant 0 : index
    %c0_94 = arith.constant 0 : index
    %39 = vector.load %arg44[%c0_93, %c0_94] : memref<64x32xbf16, #tpu.memory_space<vmem>>, vector<64x32xbf16>
    %c0_95 = arith.constant 0 : index
    %c0_96 = arith.constant 0 : index
    %40 = vector.load %arg45[%c0_95, %c0_96] : memref<1x64xf32, #tpu.memory_space<vmem>>, vector<1x64xf32>
    %c0_97 = arith.constant 0 : index
    %c0_98 = arith.constant 0 : index
    %41 = vector.load %arg46[%c0_97, %c0_98] : memref<1x32xf32, #tpu.memory_space<vmem>>, vector<1x32xf32>
    %c0_99 = arith.constant 0 : index
    %c0_100 = arith.constant 0 : index
    %42 = vector.load %arg47[%c0_99, %c0_100] : memref<1x32xf32, #tpu.memory_space<vmem>>, vector<1x32xf32>
    %c0_101 = arith.constant 0 : index
    %c0_102 = arith.constant 0 : index
    %c0_103 = arith.constant 0 : index
    %43 = vector.load %arg48[%c0_101, %c0_102, %c0_103] : memref<4x1x24xf32, #tpu.memory_space<vmem>>, vector<4x1x24xf32>
    %c0_104 = arith.constant 0 : index
    %c0_105 = arith.constant 0 : index
    %44 = vector.load %arg49[%c0_104, %c0_105] : memref<1x32xf32, #tpu.memory_space<vmem>>, vector<1x32xf32>
    %c0_106 = arith.constant 0 : index
    %c0_107 = arith.constant 0 : index
    %45 = vector.load %arg50[%c0_106, %c0_107] : memref<1x32xf32, #tpu.memory_space<vmem>>, vector<1x32xf32>
    %c0_108 = arith.constant 0 : index
    %c0_109 = arith.constant 0 : index
    %46 = vector.load %arg51[%c0_108, %c0_109] : memref<1x32xf32, #tpu.memory_space<vmem>>, vector<1x32xf32>
    %c0_110 = arith.constant 0 : index
    %c0_111 = arith.constant 0 : index
    %47 = vector.load %arg52[%c0_110, %c0_111] : memref<1x32xf32, #tpu.memory_space<vmem>>, vector<1x32xf32>
    %c0_112 = arith.constant 0 : index
    %c0_113 = arith.constant 0 : index
    %48 = vector.load %arg53[%c0_112, %c0_113] : memref<32x64xbf16, #tpu.memory_space<vmem>>, vector<32x64xbf16>
    %c0_114 = arith.constant 0 : index
    %c0_115 = arith.constant 0 : index
    %49 = vector.load %arg54[%c0_114, %c0_115] : memref<64x32xbf16, #tpu.memory_space<vmem>>, vector<64x32xbf16>
    %c0_116 = arith.constant 0 : index
    %c0_117 = arith.constant 0 : index
    %c0_118 = arith.constant 0 : index
    %50 = vector.load %arg55[%c0_116, %c0_117, %c0_118] : memref<4x8x32xbf16, #tpu.memory_space<vmem>>, vector<4x8x32xbf16>
    %c0_119 = arith.constant 0 : index
    %c0_120 = arith.constant 0 : index
    %c0_121 = arith.constant 0 : index
    %51 = vector.load %arg56[%c0_119, %c0_120, %c0_121] : memref<4x32x24xbf16, #tpu.memory_space<vmem>>, vector<4x32x24xbf16>
    %c0_122 = arith.constant 0 : index
    %c0_123 = arith.constant 0 : index
    %52 = vector.load %arg57[%c0_122, %c0_123] : memref<1x64xf32, #tpu.memory_space<vmem>>, vector<1x64xf32>
    %c0_124 = arith.constant 0 : index
    %c0_125 = arith.constant 0 : index
    %53 = vector.load %arg58[%c0_124, %c0_125] : memref<1x32xf32, #tpu.memory_space<vmem>>, vector<1x32xf32>
    %c0_126 = arith.constant 0 : index
    %c0_127 = arith.constant 0 : index
    %54 = vector.load %arg59[%c0_126, %c0_127] : memref<1x32xf32, #tpu.memory_space<vmem>>, vector<1x32xf32>
    %c0_128 = arith.constant 0 : index
    %c0_129 = arith.constant 0 : index
    %c0_130 = arith.constant 0 : index
    %55 = vector.load %arg60[%c0_128, %c0_129, %c0_130] : memref<4x1x24xf32, #tpu.memory_space<vmem>>, vector<4x1x24xf32>
    %c0_131 = arith.constant 0 : index
    %c0_132 = arith.constant 0 : index
    %56 = vector.load %arg61[%c0_131, %c0_132] : memref<1x32xf32, #tpu.memory_space<vmem>>, vector<1x32xf32>
    %c0_133 = arith.constant 0 : index
    %c0_134 = arith.constant 0 : index
    %57 = vector.load %arg62[%c0_133, %c0_134] : memref<1x32xf32, #tpu.memory_space<vmem>>, vector<1x32xf32>
    %c0_135 = arith.constant 0 : index
    %c0_136 = arith.constant 0 : index
    %58 = vector.load %arg63[%c0_135, %c0_136] : memref<1x32xf32, #tpu.memory_space<vmem>>, vector<1x32xf32>
    %c0_137 = arith.constant 0 : index
    %c0_138 = arith.constant 0 : index
    %59 = vector.load %arg64[%c0_137, %c0_138] : memref<1x32xf32, #tpu.memory_space<vmem>>, vector<1x32xf32>
    %c0_139 = arith.constant 0 : index
    %c0_140 = arith.constant 0 : index
    %60 = vector.load %arg65[%c0_139, %c0_140] : memref<32x64xbf16, #tpu.memory_space<vmem>>, vector<32x64xbf16>
    %c0_141 = arith.constant 0 : index
    %c0_142 = arith.constant 0 : index
    %61 = vector.load %arg66[%c0_141, %c0_142] : memref<64x32xbf16, #tpu.memory_space<vmem>>, vector<64x32xbf16>
    %c0_143 = arith.constant 0 : index
    %c0_144 = arith.constant 0 : index
    %c0_145 = arith.constant 0 : index
    %62 = vector.load %arg67[%c0_143, %c0_144, %c0_145] : memref<4x8x32xbf16, #tpu.memory_space<vmem>>, vector<4x8x32xbf16>
    %c0_146 = arith.constant 0 : index
    %c0_147 = arith.constant 0 : index
    %c0_148 = arith.constant 0 : index
    %63 = vector.load %arg68[%c0_146, %c0_147, %c0_148] : memref<4x32x24xbf16, #tpu.memory_space<vmem>>, vector<4x32x24xbf16>
    %c0_149 = arith.constant 0 : index
    %c0_150 = arith.constant 0 : index
    %64 = vector.load %arg69[%c0_149, %c0_150] : memref<1x128xf32, #tpu.memory_space<vmem>>, vector<1x128xf32>
    %c0_151 = arith.constant 0 : index
    %c0_152 = arith.constant 0 : index
    %65 = vector.load %arg70[%c0_151, %c0_152] : memref<32x128xbf16, #tpu.memory_space<vmem>>, vector<32x128xbf16>
    %66 = tpu.iota {dimensions = array<i32: 0>} : vector<8x8xi32>
    %67 = tpu.iota {dimensions = array<i32: 1>} : vector<8x8xi32>
    %68 = arith.cmpi sge, %66, %67 : vector<8x8xi32>
    %c0_153 = arith.constant 0 : index
    %c0_154 = arith.constant 0 : index
    %c0_155 = arith.constant 0 : index
    %69 = vector.load %arg1[%c0_153, %c0_154, %c0_155] : memref<1x8x32xf32, #tpu.memory_space<vmem>>, vector<1x8x32xf32>
    %70 = vector.shape_cast %69 : vector<1x8x32xf32> to vector<8x32xf32>
    %c0_156 = arith.constant 0 : index
    %c0_157 = arith.constant 0 : index
    %c0_158 = arith.constant 0 : index
    %71 = vector.load %arg2[%c0_156, %c0_157, %c0_158] : memref<1x8x32xf32, #tpu.memory_space<vmem>>, vector<1x8x32xf32>
    %72 = vector.shape_cast %71 : vector<1x8x32xf32> to vector<8x32xf32>
    %c0_159 = arith.constant 0 : index
    %c0_160 = arith.constant 0 : index
    %c0_161 = arith.constant 0 : index
    %73 = vector.load %arg3[%c0_159, %c0_160, %c0_161] : memref<1x1x8xf32, #tpu.memory_space<vmem>>, vector<1x1x8xf32>
    %74 = vector.shape_cast %73 : vector<1x1x8xf32> to vector<1x8xf32>
    %c0_162 = arith.constant 0 : index
    %c0_163 = arith.constant 0 : index
    %c0_164 = arith.constant 0 : index
    %75 = vector.load %arg4[%c0_162, %c0_163, %c0_164] : memref<1x8x1xf32, #tpu.memory_space<vmem>>, vector<1x8x1xf32>
    %76 = vector.shape_cast %75 : vector<1x8x1xf32> to vector<8x1xf32>
    %cst = arith.constant 5.000000e-01 : f32
    %77 = vector.broadcast %cst : f32 to vector<8x1xf32>
    %78 = arith.cmpf ogt, %76, %77 : vector<8x1xf32>
    %79 = vector.broadcast %78 : vector<8x1xi1> to vector<8x8xi1>
    %80 = arith.andi %68, %79 : vector<8x8xi1>
    %cst_165 = arith.constant 0.000000e+00 : f32
    %cst_166 = arith.constant -1.000000e+09 : f32
    %81 = vector.broadcast %cst_165 : f32 to vector<8x8xf32>
    %82 = vector.broadcast %cst_166 : f32 to vector<8x8xf32>
    %83 = arith.select %80, %81, %82 : vector<8x8xi1>, vector<8x8xf32>
    %84 = arith.truncf %70 : vector<8x32xf32> to vector<8x32xbf16>
    %85 = vector.shape_cast %84 : vector<8x32xbf16> to vector<1x8x32xbf16>
    %86 = vector.shape_cast %85 : vector<1x8x32xbf16> to vector<1x8x32xbf16>
    %87 = vector.broadcast %86 : vector<1x8x32xbf16> to vector<4x8x32xbf16>
    "tpu.trace_start"() <{level = 10 : i32, message = "hsd,hdf->hsf"}> : () -> ()
    %cst_167 = arith.constant dense<0.000000e+00> : vector<4x8x24xf32>
    %88 = tpu.matmul %87, %51, %cst_167 {dimension_numbers = #tpu.dot_dimension_numbers<[2], [1], [1], [2], [0, 0, 0, 1, 1, 2], [0], [0]>} : vector<4x8x32xbf16>, vector<4x32x24xbf16>, vector<4x8x24xf32> -> vector<4x8x24xf32>
    "tpu.trace_stop"() : () -> ()
    %89 = vector.broadcast %43 : vector<4x1x24xf32> to vector<4x8x24xf32>
    %90 = arith.addf %88, %89 : vector<4x8x24xf32>
    %91 = vector.extract_strided_slice %90 {offsets = [0, 0, 0], sizes = [4, 8, 8], strides = [1, 1, 1]} : vector<4x8x24xf32> to vector<4x8x8xf32>
    %92 = vector.extract_strided_slice %90 {offsets = [0, 0, 8], sizes = [4, 8, 8], strides = [1, 1, 1]} : vector<4x8x24xf32> to vector<4x8x8xf32>
    %93 = vector.extract_strided_slice %90 {offsets = [0, 0, 16], sizes = [4, 8, 8], strides = [1, 1, 1]} : vector<4x8x24xf32> to vector<4x8x8xf32>
    %94 = arith.truncf %91 : vector<4x8x8xf32> to vector<4x8x8xbf16>
    %95 = arith.truncf %92 : vector<4x8x8xf32> to vector<4x8x8xbf16>
    "tpu.trace_start"() <{level = 10 : i32, message = "hqd,hkd->hqk"}> : () -> ()
    %cst_168 = arith.constant dense<0.000000e+00> : vector<4x8x8xf32>
    %96 = tpu.matmul %94, %95, %cst_168 {dimension_numbers = #tpu.dot_dimension_numbers<[2], [2], [1], [1], [0, 0, 0, 1, 1, 1], [0], [0]>} : vector<4x8x8xbf16>, vector<4x8x8xbf16>, vector<4x8x8xf32> -> vector<4x8x8xf32>
    "tpu.trace_stop"() : () -> ()
    %97 = vector.shape_cast %74 : vector<1x8xf32> to vector<1x1x8xf32>
    %98 = vector.broadcast %97 : vector<1x1x8xf32> to vector<4x8x8xf32>
    %99 = arith.addf %96, %98 : vector<4x8x8xf32>
    %cst_169 = arith.constant dense<0xFF800000> : vector<4x8xf32>
    %100 = vector.multi_reduction <maximumf>, %99, %cst_169 [2] : vector<4x8x8xf32> to vector<4x8xf32>
    %101 = vector.shape_cast %100 : vector<4x8xf32> to vector<4x8x1xf32>
    %102 = vector.broadcast %101 : vector<4x8x1xf32> to vector<4x8x8xf32>
    %103 = arith.subf %99, %102 : vector<4x8x8xf32>
    %104 = math.exp %103 : vector<4x8x8xf32>
    %cst_170 = arith.constant dense<0.000000e+00> : vector<4x8xf32>
    %105 = vector.multi_reduction <add>, %104, %cst_170 [2] : vector<4x8x8xf32> to vector<4x8xf32>
    %106 = vector.shape_cast %105 : vector<4x8xf32> to vector<4x8x1xf32>
    %107 = tpu.reciprocal %106 {approx = true} : vector<4x8x1xf32> -> vector<4x8x1xf32>
    %108 = vector.broadcast %107 : vector<4x8x1xf32> to vector<4x8x8xf32>
    %109 = arith.mulf %104, %108 : vector<4x8x8xf32>
    %110 = arith.truncf %109 : vector<4x8x8xf32> to vector<4x8x8xbf16>
    %111 = arith.truncf %93 : vector<4x8x8xf32> to vector<4x8x8xbf16>
    "tpu.trace_start"() <{level = 10 : i32, message = "hqk,hkd->hqd"}> : () -> ()
    %cst_171 = arith.constant dense<0.000000e+00> : vector<4x8x8xf32>
    %112 = tpu.matmul %110, %111, %cst_171 {dimension_numbers = #tpu.dot_dimension_numbers<[2], [1], [1], [2], [0, 0, 0, 1, 1, 2], [0], [0]>} : vector<4x8x8xbf16>, vector<4x8x8xbf16>, vector<4x8x8xf32> -> vector<4x8x8xf32>
    "tpu.trace_stop"() : () -> ()
    %113 = arith.truncf %112 : vector<4x8x8xf32> to vector<4x8x8xbf16>
    "tpu.trace_start"() <{level = 10 : i32, message = "hqd,hde->hqe"}> : () -> ()
    %cst_172 = arith.constant dense<0.000000e+00> : vector<4x8x32xf32>
    %114 = tpu.matmul %113, %50, %cst_172 {dimension_numbers = #tpu.dot_dimension_numbers<[2], [1], [1], [2], [0, 0, 0, 1, 1, 2], [0], [0]>} : vector<4x8x8xbf16>, vector<4x8x32xbf16>, vector<4x8x32xf32> -> vector<4x8x32xf32>
    "tpu.trace_stop"() : () -> ()
    %cst_173 = arith.constant dense<0.000000e+00> : vector<8x32xf32>
    %115 = vector.multi_reduction <add>, %114, %cst_173 [0] : vector<4x8x32xf32> to vector<8x32xf32>
    %116 = arith.addf %70, %115 : vector<8x32xf32>
    %117 = vector.broadcast %42 : vector<1x32xf32> to vector<8x32xf32>
    %118 = arith.addf %116, %117 : vector<8x32xf32>
    %cst_174 = arith.constant dense<0.000000e+00> : vector<8xf32>
    %119 = vector.multi_reduction <add>, %118, %cst_174 [1] : vector<8x32xf32> to vector<8xf32>
    %120 = vector.shape_cast %119 : vector<8xf32> to vector<8x1xf32>
    %cst_175 = arith.constant 3.200000e+01 : f32
    %121 = vector.broadcast %cst_175 : f32 to vector<8x1xf32>
    %122 = arith.divf %120, %121 : vector<8x1xf32>
    %123 = vector.broadcast %122 : vector<8x1xf32> to vector<8x32xf32>
    %124 = arith.subf %118, %123 : vector<8x32xf32>
    %125 = arith.mulf %124, %124 : vector<8x32xf32>
    %cst_176 = arith.constant dense<0.000000e+00> : vector<8xf32>
    %126 = vector.multi_reduction <add>, %125, %cst_176 [1] : vector<8x32xf32> to vector<8xf32>
    %127 = vector.shape_cast %126 : vector<8xf32> to vector<8x1xf32>
    %cst_177 = arith.constant 3.200000e+01 : f32
    %128 = vector.broadcast %cst_177 : f32 to vector<8x1xf32>
    %129 = arith.divf %127, %128 : vector<8x1xf32>
    %130 = vector.broadcast %122 : vector<8x1xf32> to vector<8x32xf32>
    %131 = arith.subf %118, %130 : vector<8x32xf32>
    %cst_178 = arith.constant 9.99999974E-6 : f32
    %132 = vector.broadcast %cst_178 : f32 to vector<8x1xf32>
    %133 = arith.addf %129, %132 : vector<8x1xf32>
    %134 = math.rsqrt %133 : vector<8x1xf32>
    %135 = vector.broadcast %134 : vector<8x1xf32> to vector<8x32xf32>
    %136 = arith.mulf %131, %135 : vector<8x32xf32>
    %137 = vector.broadcast %45 : vector<1x32xf32> to vector<8x32xf32>
    %138 = arith.mulf %136, %137 : vector<8x32xf32>
    %139 = vector.broadcast %44 : vector<1x32xf32> to vector<8x32xf32>
    %140 = arith.addf %138, %139 : vector<8x32xf32>
    %141 = arith.truncf %140 : vector<8x32xf32> to vector<8x32xbf16>
    %cst_179 = arith.constant dense<0.000000e+00> : vector<8x64xf32>
    %142 = tpu.matmul %141, %48, %cst_179 {dimension_numbers = #tpu.dot_dimension_numbers<[1], [0], [0], [1], [0, 0, 1, 1], [], []>} : vector<8x32xbf16>, vector<32x64xbf16>, vector<8x64xf32> -> vector<8x64xf32>
    %143 = vector.broadcast %40 : vector<1x64xf32> to vector<8x64xf32>
    %144 = arith.addf %142, %143 : vector<8x64xf32>
    %cst_180 = arith.constant 0.000000e+00 : f32
    %145 = vector.broadcast %cst_180 : f32 to vector<8x64xf32>
    %146 = arith.maximumf %144, %145 : vector<8x64xf32>
    %147 = arith.truncf %146 : vector<8x64xf32> to vector<8x64xbf16>
    %cst_181 = arith.constant dense<0.000000e+00> : vector<8x32xf32>
    %148 = tpu.matmul %147, %49, %cst_181 {dimension_numbers = #tpu.dot_dimension_numbers<[1], [0], [0], [1], [0, 0, 1, 1], [], []>} : vector<8x64xbf16>, vector<64x32xbf16>, vector<8x32xf32> -> vector<8x32xf32>
    %149 = vector.broadcast %41 : vector<1x32xf32> to vector<8x32xf32>
    %150 = arith.addf %148, %149 : vector<8x32xf32>
    %151 = arith.addf %140, %150 : vector<8x32xf32>
    %cst_182 = arith.constant dense<0.000000e+00> : vector<8xf32>
    %152 = vector.multi_reduction <add>, %151, %cst_182 [1] : vector<8x32xf32> to vector<8xf32>
    %153 = vector.shape_cast %152 : vector<8xf32> to vector<8x1xf32>
    %cst_183 = arith.constant 3.200000e+01 : f32
    %154 = vector.broadcast %cst_183 : f32 to vector<8x1xf32>
    %155 = arith.divf %153, %154 : vector<8x1xf32>
    %156 = vector.broadcast %155 : vector<8x1xf32> to vector<8x32xf32>
    %157 = arith.subf %151, %156 : vector<8x32xf32>
    %158 = arith.mulf %157, %157 : vector<8x32xf32>
    %cst_184 = arith.constant dense<0.000000e+00> : vector<8xf32>
    %159 = vector.multi_reduction <add>, %158, %cst_184 [1] : vector<8x32xf32> to vector<8xf32>
    %160 = vector.shape_cast %159 : vector<8xf32> to vector<8x1xf32>
    %cst_185 = arith.constant 3.200000e+01 : f32
    %161 = vector.broadcast %cst_185 : f32 to vector<8x1xf32>
    %162 = arith.divf %160, %161 : vector<8x1xf32>
    %163 = vector.broadcast %155 : vector<8x1xf32> to vector<8x32xf32>
    %164 = arith.subf %151, %163 : vector<8x32xf32>
    %cst_186 = arith.constant 9.99999974E-6 : f32
    %165 = vector.broadcast %cst_186 : f32 to vector<8x1xf32>
    %166 = arith.addf %162, %165 : vector<8x1xf32>
    %167 = math.rsqrt %166 : vector<8x1xf32>
    %168 = vector.broadcast %167 : vector<8x1xf32> to vector<8x32xf32>
    %169 = arith.mulf %164, %168 : vector<8x32xf32>
    %170 = vector.broadcast %47 : vector<1x32xf32> to vector<8x32xf32>
    %171 = arith.mulf %169, %170 : vector<8x32xf32>
    %172 = vector.broadcast %46 : vector<1x32xf32> to vector<8x32xf32>
    %173 = arith.addf %171, %172 : vector<8x32xf32>
    %174 = arith.truncf %173 : vector<8x32xf32> to vector<8x32xbf16>
    %175 = vector.shape_cast %174 : vector<8x32xbf16> to vector<1x8x32xbf16>
    %176 = vector.shape_cast %175 : vector<1x8x32xbf16> to vector<1x8x32xbf16>
    %177 = vector.broadcast %176 : vector<1x8x32xbf16> to vector<4x8x32xbf16>
    "tpu.trace_start"() <{level = 10 : i32, message = "hsd,hdf->hsf"}> : () -> ()
    %cst_187 = arith.constant dense<0.000000e+00> : vector<4x8x24xf32>
    %178 = tpu.matmul %177, %63, %cst_187 {dimension_numbers = #tpu.dot_dimension_numbers<[2], [1], [1], [2], [0, 0, 0, 1, 1, 2], [0], [0]>} : vector<4x8x32xbf16>, vector<4x32x24xbf16>, vector<4x8x24xf32> -> vector<4x8x24xf32>
    "tpu.trace_stop"() : () -> ()
    %179 = vector.broadcast %55 : vector<4x1x24xf32> to vector<4x8x24xf32>
    %180 = arith.addf %178, %179 : vector<4x8x24xf32>
    %181 = vector.extract_strided_slice %180 {offsets = [0, 0, 0], sizes = [4, 8, 8], strides = [1, 1, 1]} : vector<4x8x24xf32> to vector<4x8x8xf32>
    %182 = vector.extract_strided_slice %180 {offsets = [0, 0, 8], sizes = [4, 8, 8], strides = [1, 1, 1]} : vector<4x8x24xf32> to vector<4x8x8xf32>
    %183 = vector.extract_strided_slice %180 {offsets = [0, 0, 16], sizes = [4, 8, 8], strides = [1, 1, 1]} : vector<4x8x24xf32> to vector<4x8x8xf32>
    %184 = arith.truncf %181 : vector<4x8x8xf32> to vector<4x8x8xbf16>
    %185 = arith.truncf %182 : vector<4x8x8xf32> to vector<4x8x8xbf16>
    "tpu.trace_start"() <{level = 10 : i32, message = "hqd,hkd->hqk"}> : () -> ()
    %cst_188 = arith.constant dense<0.000000e+00> : vector<4x8x8xf32>
    %186 = tpu.matmul %184, %185, %cst_188 {dimension_numbers = #tpu.dot_dimension_numbers<[2], [2], [1], [1], [0, 0, 0, 1, 1, 1], [0], [0]>} : vector<4x8x8xbf16>, vector<4x8x8xbf16>, vector<4x8x8xf32> -> vector<4x8x8xf32>
    "tpu.trace_stop"() : () -> ()
    %187 = vector.shape_cast %74 : vector<1x8xf32> to vector<1x1x8xf32>
    %188 = vector.broadcast %187 : vector<1x1x8xf32> to vector<4x8x8xf32>
    %189 = arith.addf %186, %188 : vector<4x8x8xf32>
    %cst_189 = arith.constant dense<0xFF800000> : vector<4x8xf32>
    %190 = vector.multi_reduction <maximumf>, %189, %cst_189 [2] : vector<4x8x8xf32> to vector<4x8xf32>
    %191 = vector.shape_cast %190 : vector<4x8xf32> to vector<4x8x1xf32>
    %192 = vector.broadcast %191 : vector<4x8x1xf32> to vector<4x8x8xf32>
    %193 = arith.subf %189, %192 : vector<4x8x8xf32>
    %194 = math.exp %193 : vector<4x8x8xf32>
    %cst_190 = arith.constant dense<0.000000e+00> : vector<4x8xf32>
    %195 = vector.multi_reduction <add>, %194, %cst_190 [2] : vector<4x8x8xf32> to vector<4x8xf32>
    %196 = vector.shape_cast %195 : vector<4x8xf32> to vector<4x8x1xf32>
    %197 = tpu.reciprocal %196 {approx = true} : vector<4x8x1xf32> -> vector<4x8x1xf32>
    %198 = vector.broadcast %197 : vector<4x8x1xf32> to vector<4x8x8xf32>
    %199 = arith.mulf %194, %198 : vector<4x8x8xf32>
    %200 = arith.truncf %199 : vector<4x8x8xf32> to vector<4x8x8xbf16>
    %201 = arith.truncf %183 : vector<4x8x8xf32> to vector<4x8x8xbf16>
    "tpu.trace_start"() <{level = 10 : i32, message = "hqk,hkd->hqd"}> : () -> ()
    %cst_191 = arith.constant dense<0.000000e+00> : vector<4x8x8xf32>
    %202 = tpu.matmul %200, %201, %cst_191 {dimension_numbers = #tpu.dot_dimension_numbers<[2], [1], [1], [2], [0, 0, 0, 1, 1, 2], [0], [0]>} : vector<4x8x8xbf16>, vector<4x8x8xbf16>, vector<4x8x8xf32> -> vector<4x8x8xf32>
    "tpu.trace_stop"() : () -> ()
    %203 = arith.truncf %202 : vector<4x8x8xf32> to vector<4x8x8xbf16>
    "tpu.trace_start"() <{level = 10 : i32, message = "hqd,hde->hqe"}> : () -> ()
    %cst_192 = arith.constant dense<0.000000e+00> : vector<4x8x32xf32>
    %204 = tpu.matmul %203, %62, %cst_192 {dimension_numbers = #tpu.dot_dimension_numbers<[2], [1], [1], [2], [0, 0, 0, 1, 1, 2], [0], [0]>} : vector<4x8x8xbf16>, vector<4x8x32xbf16>, vector<4x8x32xf32> -> vector<4x8x32xf32>
    "tpu.trace_stop"() : () -> ()
    %cst_193 = arith.constant dense<0.000000e+00> : vector<8x32xf32>
    %205 = vector.multi_reduction <add>, %204, %cst_193 [0] : vector<4x8x32xf32> to vector<8x32xf32>
    %206 = arith.addf %173, %205 : vector<8x32xf32>
    %207 = vector.broadcast %54 : vector<1x32xf32> to vector<8x32xf32>
    %208 = arith.addf %206, %207 : vector<8x32xf32>
    %cst_194 = arith.constant dense<0.000000e+00> : vector<8xf32>
    %209 = vector.multi_reduction <add>, %208, %cst_194 [1] : vector<8x32xf32> to vector<8xf32>
    %210 = vector.shape_cast %209 : vector<8xf32> to vector<8x1xf32>
    %cst_195 = arith.constant 3.200000e+01 : f32
    %211 = vector.broadcast %cst_195 : f32 to vector<8x1xf32>
    %212 = arith.divf %210, %211 : vector<8x1xf32>
    %213 = vector.broadcast %212 : vector<8x1xf32> to vector<8x32xf32>
    %214 = arith.subf %208, %213 : vector<8x32xf32>
    %215 = arith.mulf %214, %214 : vector<8x32xf32>
    %cst_196 = arith.constant dense<0.000000e+00> : vector<8xf32>
    %216 = vector.multi_reduction <add>, %215, %cst_196 [1] : vector<8x32xf32> to vector<8xf32>
    %217 = vector.shape_cast %216 : vector<8xf32> to vector<8x1xf32>
    %cst_197 = arith.constant 3.200000e+01 : f32
    %218 = vector.broadcast %cst_197 : f32 to vector<8x1xf32>
    %219 = arith.divf %217, %218 : vector<8x1xf32>
    %220 = vector.broadcast %212 : vector<8x1xf32> to vector<8x32xf32>
    %221 = arith.subf %208, %220 : vector<8x32xf32>
    %cst_198 = arith.constant 9.99999974E-6 : f32
    %222 = vector.broadcast %cst_198 : f32 to vector<8x1xf32>
    %223 = arith.addf %219, %222 : vector<8x1xf32>
    %224 = math.rsqrt %223 : vector<8x1xf32>
    %225 = vector.broadcast %224 : vector<8x1xf32> to vector<8x32xf32>
    %226 = arith.mulf %221, %225 : vector<8x32xf32>
    %227 = vector.broadcast %57 : vector<1x32xf32> to vector<8x32xf32>
    %228 = arith.mulf %226, %227 : vector<8x32xf32>
    %229 = vector.broadcast %56 : vector<1x32xf32> to vector<8x32xf32>
    %230 = arith.addf %228, %229 : vector<8x32xf32>
    %231 = arith.truncf %230 : vector<8x32xf32> to vector<8x32xbf16>
    %cst_199 = arith.constant dense<0.000000e+00> : vector<8x64xf32>
    %232 = tpu.matmul %231, %60, %cst_199 {dimension_numbers = #tpu.dot_dimension_numbers<[1], [0], [0], [1], [0, 0, 1, 1], [], []>} : vector<8x32xbf16>, vector<32x64xbf16>, vector<8x64xf32> -> vector<8x64xf32>
    %233 = vector.broadcast %52 : vector<1x64xf32> to vector<8x64xf32>
    %234 = arith.addf %232, %233 : vector<8x64xf32>
    %cst_200 = arith.constant 0.000000e+00 : f32
    %235 = vector.broadcast %cst_200 : f32 to vector<8x64xf32>
    %236 = arith.maximumf %234, %235 : vector<8x64xf32>
    %237 = arith.truncf %236 : vector<8x64xf32> to vector<8x64xbf16>
    %cst_201 = arith.constant dense<0.000000e+00> : vector<8x32xf32>
    %238 = tpu.matmul %237, %61, %cst_201 {dimension_numbers = #tpu.dot_dimension_numbers<[1], [0], [0], [1], [0, 0, 1, 1], [], []>} : vector<8x64xbf16>, vector<64x32xbf16>, vector<8x32xf32> -> vector<8x32xf32>
    %239 = vector.broadcast %53 : vector<1x32xf32> to vector<8x32xf32>
    %240 = arith.addf %238, %239 : vector<8x32xf32>
    %241 = arith.addf %230, %240 : vector<8x32xf32>
    %cst_202 = arith.constant dense<0.000000e+00> : vector<8xf32>
    %242 = vector.multi_reduction <add>, %241, %cst_202 [1] : vector<8x32xf32> to vector<8xf32>
    %243 = vector.shape_cast %242 : vector<8xf32> to vector<8x1xf32>
    %cst_203 = arith.constant 3.200000e+01 : f32
    %244 = vector.broadcast %cst_203 : f32 to vector<8x1xf32>
    %245 = arith.divf %243, %244 : vector<8x1xf32>
    %246 = vector.broadcast %245 : vector<8x1xf32> to vector<8x32xf32>
    %247 = arith.subf %241, %246 : vector<8x32xf32>
    %248 = arith.mulf %247, %247 : vector<8x32xf32>
    %cst_204 = arith.constant dense<0.000000e+00> : vector<8xf32>
    %249 = vector.multi_reduction <add>, %248, %cst_204 [1] : vector<8x32xf32> to vector<8xf32>
    %250 = vector.shape_cast %249 : vector<8xf32> to vector<8x1xf32>
    %cst_205 = arith.constant 3.200000e+01 : f32
    %251 = vector.broadcast %cst_205 : f32 to vector<8x1xf32>
    %252 = arith.divf %250, %251 : vector<8x1xf32>
    %253 = vector.broadcast %245 : vector<8x1xf32> to vector<8x32xf32>
    %254 = arith.subf %241, %253 : vector<8x32xf32>
    %cst_206 = arith.constant 9.99999974E-6 : f32
    %255 = vector.broadcast %cst_206 : f32 to vector<8x1xf32>
    %256 = arith.addf %252, %255 : vector<8x1xf32>
    %257 = math.rsqrt %256 : vector<8x1xf32>
    %258 = vector.broadcast %257 : vector<8x1xf32> to vector<8x32xf32>
    %259 = arith.mulf %254, %258 : vector<8x32xf32>
    %260 = vector.broadcast %59 : vector<1x32xf32> to vector<8x32xf32>
    %261 = arith.mulf %259, %260 : vector<8x32xf32>
    %262 = vector.broadcast %58 : vector<1x32xf32> to vector<8x32xf32>
    %263 = arith.addf %261, %262 : vector<8x32xf32>
    %264 = arith.truncf %72 : vector<8x32xf32> to vector<8x32xbf16>
    %265 = vector.shape_cast %264 : vector<8x32xbf16> to vector<1x8x32xbf16>
    %266 = vector.shape_cast %265 : vector<1x8x32xbf16> to vector<1x8x32xbf16>
    %267 = vector.broadcast %266 : vector<1x8x32xbf16> to vector<4x8x32xbf16>
    "tpu.trace_start"() <{level = 10 : i32, message = "hsd,hdf->hsf"}> : () -> ()
    %cst_207 = arith.constant dense<0.000000e+00> : vector<4x8x24xf32>
    %268 = tpu.matmul %267, %17, %cst_207 {dimension_numbers = #tpu.dot_dimension_numbers<[2], [1], [1], [2], [0, 0, 0, 1, 1, 2], [0], [0]>} : vector<4x8x32xbf16>, vector<4x32x24xbf16>, vector<4x8x24xf32> -> vector<4x8x24xf32>
    "tpu.trace_stop"() : () -> ()
    %269 = vector.broadcast %15 : vector<4x1x24xf32> to vector<4x8x24xf32>
    %270 = arith.addf %268, %269 : vector<4x8x24xf32>
    %271 = vector.extract_strided_slice %270 {offsets = [0, 0, 0], sizes = [4, 8, 8], strides = [1, 1, 1]} : vector<4x8x24xf32> to vector<4x8x8xf32>
    %272 = vector.extract_strided_slice %270 {offsets = [0, 0, 8], sizes = [4, 8, 8], strides = [1, 1, 1]} : vector<4x8x24xf32> to vector<4x8x8xf32>
    %273 = vector.extract_strided_slice %270 {offsets = [0, 0, 16], sizes = [4, 8, 8], strides = [1, 1, 1]} : vector<4x8x24xf32> to vector<4x8x8xf32>
    %274 = arith.truncf %271 : vector<4x8x8xf32> to vector<4x8x8xbf16>
    %275 = arith.truncf %272 : vector<4x8x8xf32> to vector<4x8x8xbf16>
    "tpu.trace_start"() <{level = 10 : i32, message = "hqd,hkd->hqk"}> : () -> ()
    %cst_208 = arith.constant dense<0.000000e+00> : vector<4x8x8xf32>
    %276 = tpu.matmul %274, %275, %cst_208 {dimension_numbers = #tpu.dot_dimension_numbers<[2], [2], [1], [1], [0, 0, 0, 1, 1, 1], [0], [0]>} : vector<4x8x8xbf16>, vector<4x8x8xbf16>, vector<4x8x8xf32> -> vector<4x8x8xf32>
    "tpu.trace_stop"() : () -> ()
    %277 = vector.shape_cast %83 : vector<8x8xf32> to vector<1x8x8xf32>
    %278 = vector.broadcast %277 : vector<1x8x8xf32> to vector<4x8x8xf32>
    %279 = arith.addf %276, %278 : vector<4x8x8xf32>
    %cst_209 = arith.constant dense<0xFF800000> : vector<4x8xf32>
    %280 = vector.multi_reduction <maximumf>, %279, %cst_209 [2] : vector<4x8x8xf32> to vector<4x8xf32>
    %281 = vector.shape_cast %280 : vector<4x8xf32> to vector<4x8x1xf32>
    %282 = vector.broadcast %281 : vector<4x8x1xf32> to vector<4x8x8xf32>
    %283 = arith.subf %279, %282 : vector<4x8x8xf32>
    %284 = math.exp %283 : vector<4x8x8xf32>
    %cst_210 = arith.constant dense<0.000000e+00> : vector<4x8xf32>
    %285 = vector.multi_reduction <add>, %284, %cst_210 [2] : vector<4x8x8xf32> to vector<4x8xf32>
    %286 = vector.shape_cast %285 : vector<4x8xf32> to vector<4x8x1xf32>
    %287 = tpu.reciprocal %286 {approx = true} : vector<4x8x1xf32> -> vector<4x8x1xf32>
    %288 = vector.broadcast %287 : vector<4x8x1xf32> to vector<4x8x8xf32>
    %289 = arith.mulf %284, %288 : vector<4x8x8xf32>
    %290 = arith.truncf %289 : vector<4x8x8xf32> to vector<4x8x8xbf16>
    %291 = arith.truncf %273 : vector<4x8x8xf32> to vector<4x8x8xbf16>
    "tpu.trace_start"() <{level = 10 : i32, message = "hqk,hkd->hqd"}> : () -> ()
    %cst_211 = arith.constant dense<0.000000e+00> : vector<4x8x8xf32>
    %292 = tpu.matmul %290, %291, %cst_211 {dimension_numbers = #tpu.dot_dimension_numbers<[2], [1], [1], [2], [0, 0, 0, 1, 1, 2], [0], [0]>} : vector<4x8x8xbf16>, vector<4x8x8xbf16>, vector<4x8x8xf32> -> vector<4x8x8xf32>
    "tpu.trace_stop"() : () -> ()
    %293 = arith.truncf %292 : vector<4x8x8xf32> to vector<4x8x8xbf16>
    "tpu.trace_start"() <{level = 10 : i32, message = "hqd,hde->hqe"}> : () -> ()
    %cst_212 = arith.constant dense<0.000000e+00> : vector<4x8x32xf32>
    %294 = tpu.matmul %293, %16, %cst_212 {dimension_numbers = #tpu.dot_dimension_numbers<[2], [1], [1], [2], [0, 0, 0, 1, 1, 2], [0], [0]>} : vector<4x8x8xbf16>, vector<4x8x32xbf16>, vector<4x8x32xf32> -> vector<4x8x32xf32>
    "tpu.trace_stop"() : () -> ()
    %cst_213 = arith.constant dense<0.000000e+00> : vector<8x32xf32>
    %295 = vector.multi_reduction <add>, %294, %cst_213 [0] : vector<4x8x32xf32> to vector<8x32xf32>
    %296 = arith.addf %72, %295 : vector<8x32xf32>
    %297 = vector.broadcast %14 : vector<1x32xf32> to vector<8x32xf32>
    %298 = arith.addf %296, %297 : vector<8x32xf32>
    %cst_214 = arith.constant dense<0.000000e+00> : vector<8xf32>
    %299 = vector.multi_reduction <add>, %298, %cst_214 [1] : vector<8x32xf32> to vector<8xf32>
    %300 = vector.shape_cast %299 : vector<8xf32> to vector<8x1xf32>
    %cst_215 = arith.constant 3.200000e+01 : f32
    %301 = vector.broadcast %cst_215 : f32 to vector<8x1xf32>
    %302 = arith.divf %300, %301 : vector<8x1xf32>
    %303 = vector.broadcast %302 : vector<8x1xf32> to vector<8x32xf32>
    %304 = arith.subf %298, %303 : vector<8x32xf32>
    %305 = arith.mulf %304, %304 : vector<8x32xf32>
    %cst_216 = arith.constant dense<0.000000e+00> : vector<8xf32>
    %306 = vector.multi_reduction <add>, %305, %cst_216 [1] : vector<8x32xf32> to vector<8xf32>
    %307 = vector.shape_cast %306 : vector<8xf32> to vector<8x1xf32>
    %cst_217 = arith.constant 3.200000e+01 : f32
    %308 = vector.broadcast %cst_217 : f32 to vector<8x1xf32>
    %309 = arith.divf %307, %308 : vector<8x1xf32>
    %310 = vector.broadcast %302 : vector<8x1xf32> to vector<8x32xf32>
    %311 = arith.subf %298, %310 : vector<8x32xf32>
    %cst_218 = arith.constant 9.99999974E-6 : f32
    %312 = vector.broadcast %cst_218 : f32 to vector<8x1xf32>
    %313 = arith.addf %309, %312 : vector<8x1xf32>
    %314 = math.rsqrt %313 : vector<8x1xf32>
    %315 = vector.broadcast %314 : vector<8x1xf32> to vector<8x32xf32>
    %316 = arith.mulf %311, %315 : vector<8x32xf32>
    %317 = vector.broadcast %9 : vector<1x32xf32> to vector<8x32xf32>
    %318 = arith.mulf %316, %317 : vector<8x32xf32>
    %319 = vector.broadcast %8 : vector<1x32xf32> to vector<8x32xf32>
    %320 = arith.addf %318, %319 : vector<8x32xf32>
    %321 = arith.truncf %320 : vector<8x32xf32> to vector<8x32xbf16>
    %322 = vector.shape_cast %321 : vector<8x32xbf16> to vector<1x8x32xbf16>
    %323 = vector.shape_cast %322 : vector<1x8x32xbf16> to vector<1x8x32xbf16>
    %324 = vector.broadcast %323 : vector<1x8x32xbf16> to vector<4x8x32xbf16>
    "tpu.trace_start"() <{level = 10 : i32, message = "hsd,hdf->hsf"}> : () -> ()
    %cst_219 = arith.constant dense<0.000000e+00> : vector<4x8x8xf32>
    %325 = tpu.matmul %324, %7, %cst_219 {dimension_numbers = #tpu.dot_dimension_numbers<[2], [1], [1], [2], [0, 0, 0, 1, 1, 2], [0], [0]>} : vector<4x8x32xbf16>, vector<4x32x8xbf16>, vector<4x8x8xf32> -> vector<4x8x8xf32>
    "tpu.trace_stop"() : () -> ()
    %326 = vector.broadcast %4 : vector<4x1x8xf32> to vector<4x8x8xf32>
    %327 = arith.addf %325, %326 : vector<4x8x8xf32>
    %328 = arith.truncf %263 : vector<8x32xf32> to vector<8x32xbf16>
    %329 = vector.shape_cast %328 : vector<8x32xbf16> to vector<1x8x32xbf16>
    %330 = vector.shape_cast %329 : vector<1x8x32xbf16> to vector<1x8x32xbf16>
    %331 = vector.broadcast %330 : vector<1x8x32xbf16> to vector<4x8x32xbf16>
    "tpu.trace_start"() <{level = 10 : i32, message = "hsd,hdf->hsf"}> : () -> ()
    %cst_220 = arith.constant dense<0.000000e+00> : vector<4x8x16xf32>
    %332 = tpu.matmul %331, %5, %cst_220 {dimension_numbers = #tpu.dot_dimension_numbers<[2], [1], [1], [2], [0, 0, 0, 1, 1, 2], [0], [0]>} : vector<4x8x32xbf16>, vector<4x32x16xbf16>, vector<4x8x16xf32> -> vector<4x8x16xf32>
    "tpu.trace_stop"() : () -> ()
    %333 = vector.broadcast %2 : vector<4x1x16xf32> to vector<4x8x16xf32>
    %334 = arith.addf %332, %333 : vector<4x8x16xf32>
    %335 = vector.extract_strided_slice %334 {offsets = [0, 0, 0], sizes = [4, 8, 8], strides = [1, 1, 1]} : vector<4x8x16xf32> to vector<4x8x8xf32>
    %336 = vector.extract_strided_slice %334 {offsets = [0, 0, 8], sizes = [4, 8, 8], strides = [1, 1, 1]} : vector<4x8x16xf32> to vector<4x8x8xf32>
    %337 = arith.truncf %327 : vector<4x8x8xf32> to vector<4x8x8xbf16>
    %338 = arith.truncf %335 : vector<4x8x8xf32> to vector<4x8x8xbf16>
    "tpu.trace_start"() <{level = 10 : i32, message = "hqd,hkd->hqk"}> : () -> ()
    %cst_221 = arith.constant dense<0.000000e+00> : vector<4x8x8xf32>
    %339 = tpu.matmul %337, %338, %cst_221 {dimension_numbers = #tpu.dot_dimension_numbers<[2], [2], [1], [1], [0, 0, 0, 1, 1, 1], [0], [0]>} : vector<4x8x8xbf16>, vector<4x8x8xbf16>, vector<4x8x8xf32> -> vector<4x8x8xf32>
    "tpu.trace_stop"() : () -> ()
    %340 = vector.shape_cast %74 : vector<1x8xf32> to vector<1x1x8xf32>
    %341 = vector.broadcast %340 : vector<1x1x8xf32> to vector<4x8x8xf32>
    %342 = arith.addf %339, %341 : vector<4x8x8xf32>
    %cst_222 = arith.constant dense<0xFF800000> : vector<4x8xf32>
    %343 = vector.multi_reduction <maximumf>, %342, %cst_222 [2] : vector<4x8x8xf32> to vector<4x8xf32>
    %344 = vector.shape_cast %343 : vector<4x8xf32> to vector<4x8x1xf32>
    %345 = vector.broadcast %344 : vector<4x8x1xf32> to vector<4x8x8xf32>
    %346 = arith.subf %342, %345 : vector<4x8x8xf32>
    %347 = math.exp %346 : vector<4x8x8xf32>
    %cst_223 = arith.constant dense<0.000000e+00> : vector<4x8xf32>
    %348 = vector.multi_reduction <add>, %347, %cst_223 [2] : vector<4x8x8xf32> to vector<4x8xf32>
    %349 = vector.shape_cast %348 : vector<4x8xf32> to vector<4x8x1xf32>
    %350 = tpu.reciprocal %349 {approx = true} : vector<4x8x1xf32> -> vector<4x8x1xf32>
    %351 = vector.broadcast %350 : vector<4x8x1xf32> to vector<4x8x8xf32>
    %352 = arith.mulf %347, %351 : vector<4x8x8xf32>
    %353 = arith.truncf %352 : vector<4x8x8xf32> to vector<4x8x8xbf16>
    %354 = arith.truncf %336 : vector<4x8x8xf32> to vector<4x8x8xbf16>
    "tpu.trace_start"() <{level = 10 : i32, message = "hqk,hkd->hqd"}> : () -> ()
    %cst_224 = arith.constant dense<0.000000e+00> : vector<4x8x8xf32>
    %355 = tpu.matmul %353, %354, %cst_224 {dimension_numbers = #tpu.dot_dimension_numbers<[2], [1], [1], [2], [0, 0, 0, 1, 1, 2], [0], [0]>} : vector<4x8x8xbf16>, vector<4x8x8xbf16>, vector<4x8x8xf32> -> vector<4x8x8xf32>
    "tpu.trace_stop"() : () -> ()
    %356 = arith.truncf %355 : vector<4x8x8xf32> to vector<4x8x8xbf16>
    "tpu.trace_start"() <{level = 10 : i32, message = "hqd,hde->hqe"}> : () -> ()
    %cst_225 = arith.constant dense<0.000000e+00> : vector<4x8x32xf32>
    %357 = tpu.matmul %356, %6, %cst_225 {dimension_numbers = #tpu.dot_dimension_numbers<[2], [1], [1], [2], [0, 0, 0, 1, 1, 2], [0], [0]>} : vector<4x8x8xbf16>, vector<4x8x32xbf16>, vector<4x8x32xf32> -> vector<4x8x32xf32>
    "tpu.trace_stop"() : () -> ()
    %cst_226 = arith.constant dense<0.000000e+00> : vector<8x32xf32>
    %358 = vector.multi_reduction <add>, %357, %cst_226 [0] : vector<4x8x32xf32> to vector<8x32xf32>
    %359 = arith.addf %320, %358 : vector<8x32xf32>
    %360 = vector.broadcast %3 : vector<1x32xf32> to vector<8x32xf32>
    %361 = arith.addf %359, %360 : vector<8x32xf32>
    %cst_227 = arith.constant dense<0.000000e+00> : vector<8xf32>
    %362 = vector.multi_reduction <add>, %361, %cst_227 [1] : vector<8x32xf32> to vector<8xf32>
    %363 = vector.shape_cast %362 : vector<8xf32> to vector<8x1xf32>
    %cst_228 = arith.constant 3.200000e+01 : f32
    %364 = vector.broadcast %cst_228 : f32 to vector<8x1xf32>
    %365 = arith.divf %363, %364 : vector<8x1xf32>
    %366 = vector.broadcast %365 : vector<8x1xf32> to vector<8x32xf32>
    %367 = arith.subf %361, %366 : vector<8x32xf32>
    %368 = arith.mulf %367, %367 : vector<8x32xf32>
    %cst_229 = arith.constant dense<0.000000e+00> : vector<8xf32>
    %369 = vector.multi_reduction <add>, %368, %cst_229 [1] : vector<8x32xf32> to vector<8xf32>
    %370 = vector.shape_cast %369 : vector<8xf32> to vector<8x1xf32>
    %cst_230 = arith.constant 3.200000e+01 : f32
    %371 = vector.broadcast %cst_230 : f32 to vector<8x1xf32>
    %372 = arith.divf %370, %371 : vector<8x1xf32>
    %373 = vector.broadcast %365 : vector<8x1xf32> to vector<8x32xf32>
    %374 = arith.subf %361, %373 : vector<8x32xf32>
    %cst_231 = arith.constant 9.99999974E-6 : f32
    %375 = vector.broadcast %cst_231 : f32 to vector<8x1xf32>
    %376 = arith.addf %372, %375 : vector<8x1xf32>
    %377 = math.rsqrt %376 : vector<8x1xf32>
    %378 = vector.broadcast %377 : vector<8x1xf32> to vector<8x32xf32>
    %379 = arith.mulf %374, %378 : vector<8x32xf32>
    %380 = vector.broadcast %11 : vector<1x32xf32> to vector<8x32xf32>
    %381 = arith.mulf %379, %380 : vector<8x32xf32>
    %382 = vector.broadcast %10 : vector<1x32xf32> to vector<8x32xf32>
    %383 = arith.addf %381, %382 : vector<8x32xf32>
    %384 = arith.truncf %383 : vector<8x32xf32> to vector<8x32xbf16>
    %cst_232 = arith.constant dense<0.000000e+00> : vector<8x64xf32>
    %385 = tpu.matmul %384, %18, %cst_232 {dimension_numbers = #tpu.dot_dimension_numbers<[1], [0], [0], [1], [0, 0, 1, 1], [], []>} : vector<8x32xbf16>, vector<32x64xbf16>, vector<8x64xf32> -> vector<8x64xf32>
    %386 = vector.broadcast %0 : vector<1x64xf32> to vector<8x64xf32>
    %387 = arith.addf %385, %386 : vector<8x64xf32>
    %cst_233 = arith.constant 0.000000e+00 : f32
    %388 = vector.broadcast %cst_233 : f32 to vector<8x64xf32>
    %389 = arith.maximumf %387, %388 : vector<8x64xf32>
    %390 = arith.truncf %389 : vector<8x64xf32> to vector<8x64xbf16>
    %cst_234 = arith.constant dense<0.000000e+00> : vector<8x32xf32>
    %391 = tpu.matmul %390, %19, %cst_234 {dimension_numbers = #tpu.dot_dimension_numbers<[1], [0], [0], [1], [0, 0, 1, 1], [], []>} : vector<8x64xbf16>, vector<64x32xbf16>, vector<8x32xf32> -> vector<8x32xf32>
    %392 = vector.broadcast %1 : vector<1x32xf32> to vector<8x32xf32>
    %393 = arith.addf %391, %392 : vector<8x32xf32>
    %394 = arith.addf %383, %393 : vector<8x32xf32>
    %cst_235 = arith.constant dense<0.000000e+00> : vector<8xf32>
    %395 = vector.multi_reduction <add>, %394, %cst_235 [1] : vector<8x32xf32> to vector<8xf32>
    %396 = vector.shape_cast %395 : vector<8xf32> to vector<8x1xf32>
    %cst_236 = arith.constant 3.200000e+01 : f32
    %397 = vector.broadcast %cst_236 : f32 to vector<8x1xf32>
    %398 = arith.divf %396, %397 : vector<8x1xf32>
    %399 = vector.broadcast %398 : vector<8x1xf32> to vector<8x32xf32>
    %400 = arith.subf %394, %399 : vector<8x32xf32>
    %401 = arith.mulf %400, %400 : vector<8x32xf32>
    %cst_237 = arith.constant dense<0.000000e+00> : vector<8xf32>
    %402 = vector.multi_reduction <add>, %401, %cst_237 [1] : vector<8x32xf32> to vector<8xf32>
    %403 = vector.shape_cast %402 : vector<8xf32> to vector<8x1xf32>
    %cst_238 = arith.constant 3.200000e+01 : f32
    %404 = vector.broadcast %cst_238 : f32 to vector<8x1xf32>
    %405 = arith.divf %403, %404 : vector<8x1xf32>
    %406 = vector.broadcast %398 : vector<8x1xf32> to vector<8x32xf32>
    %407 = arith.subf %394, %406 : vector<8x32xf32>
    %cst_239 = arith.constant 9.99999974E-6 : f32
    %408 = vector.broadcast %cst_239 : f32 to vector<8x1xf32>
    %409 = arith.addf %405, %408 : vector<8x1xf32>
    %410 = math.rsqrt %409 : vector<8x1xf32>
    %411 = vector.broadcast %410 : vector<8x1xf32> to vector<8x32xf32>
    %412 = arith.mulf %407, %411 : vector<8x32xf32>
    %413 = vector.broadcast %13 : vector<1x32xf32> to vector<8x32xf32>
    %414 = arith.mulf %412, %413 : vector<8x32xf32>
    %415 = vector.broadcast %12 : vector<1x32xf32> to vector<8x32xf32>
    %416 = arith.addf %414, %415 : vector<8x32xf32>
    %417 = arith.truncf %416 : vector<8x32xf32> to vector<8x32xbf16>
    %418 = vector.shape_cast %417 : vector<8x32xbf16> to vector<1x8x32xbf16>
    %419 = vector.shape_cast %418 : vector<1x8x32xbf16> to vector<1x8x32xbf16>
    %420 = vector.broadcast %419 : vector<1x8x32xbf16> to vector<4x8x32xbf16>
    "tpu.trace_start"() <{level = 10 : i32, message = "hsd,hdf->hsf"}> : () -> ()
    %cst_240 = arith.constant dense<0.000000e+00> : vector<4x8x24xf32>
    %421 = tpu.matmul %420, %37, %cst_240 {dimension_numbers = #tpu.dot_dimension_numbers<[2], [1], [1], [2], [0, 0, 0, 1, 1, 2], [0], [0]>} : vector<4x8x32xbf16>, vector<4x32x24xbf16>, vector<4x8x24xf32> -> vector<4x8x24xf32>
    "tpu.trace_stop"() : () -> ()
    %422 = vector.broadcast %35 : vector<4x1x24xf32> to vector<4x8x24xf32>
    %423 = arith.addf %421, %422 : vector<4x8x24xf32>
    %424 = vector.extract_strided_slice %423 {offsets = [0, 0, 0], sizes = [4, 8, 8], strides = [1, 1, 1]} : vector<4x8x24xf32> to vector<4x8x8xf32>
    %425 = vector.extract_strided_slice %423 {offsets = [0, 0, 8], sizes = [4, 8, 8], strides = [1, 1, 1]} : vector<4x8x24xf32> to vector<4x8x8xf32>
    %426 = vector.extract_strided_slice %423 {offsets = [0, 0, 16], sizes = [4, 8, 8], strides = [1, 1, 1]} : vector<4x8x24xf32> to vector<4x8x8xf32>
    %427 = arith.truncf %424 : vector<4x8x8xf32> to vector<4x8x8xbf16>
    %428 = arith.truncf %425 : vector<4x8x8xf32> to vector<4x8x8xbf16>
    "tpu.trace_start"() <{level = 10 : i32, message = "hqd,hkd->hqk"}> : () -> ()
    %cst_241 = arith.constant dense<0.000000e+00> : vector<4x8x8xf32>
    %429 = tpu.matmul %427, %428, %cst_241 {dimension_numbers = #tpu.dot_dimension_numbers<[2], [2], [1], [1], [0, 0, 0, 1, 1, 1], [0], [0]>} : vector<4x8x8xbf16>, vector<4x8x8xbf16>, vector<4x8x8xf32> -> vector<4x8x8xf32>
    "tpu.trace_stop"() : () -> ()
    %430 = vector.shape_cast %83 : vector<8x8xf32> to vector<1x8x8xf32>
    %431 = vector.broadcast %430 : vector<1x8x8xf32> to vector<4x8x8xf32>
    %432 = arith.addf %429, %431 : vector<4x8x8xf32>
    %cst_242 = arith.constant dense<0xFF800000> : vector<4x8xf32>
    %433 = vector.multi_reduction <maximumf>, %432, %cst_242 [2] : vector<4x8x8xf32> to vector<4x8xf32>
    %434 = vector.shape_cast %433 : vector<4x8xf32> to vector<4x8x1xf32>
    %435 = vector.broadcast %434 : vector<4x8x1xf32> to vector<4x8x8xf32>
    %436 = arith.subf %432, %435 : vector<4x8x8xf32>
    %437 = math.exp %436 : vector<4x8x8xf32>
    %cst_243 = arith.constant dense<0.000000e+00> : vector<4x8xf32>
    %438 = vector.multi_reduction <add>, %437, %cst_243 [2] : vector<4x8x8xf32> to vector<4x8xf32>
    %439 = vector.shape_cast %438 : vector<4x8xf32> to vector<4x8x1xf32>
    %440 = tpu.reciprocal %439 {approx = true} : vector<4x8x1xf32> -> vector<4x8x1xf32>
    %441 = vector.broadcast %440 : vector<4x8x1xf32> to vector<4x8x8xf32>
    %442 = arith.mulf %437, %441 : vector<4x8x8xf32>
    %443 = arith.truncf %442 : vector<4x8x8xf32> to vector<4x8x8xbf16>
    %444 = arith.truncf %426 : vector<4x8x8xf32> to vector<4x8x8xbf16>
    "tpu.trace_start"() <{level = 10 : i32, message = "hqk,hkd->hqd"}> : () -> ()
    %cst_244 = arith.constant dense<0.000000e+00> : vector<4x8x8xf32>
    %445 = tpu.matmul %443, %444, %cst_244 {dimension_numbers = #tpu.dot_dimension_numbers<[2], [1], [1], [2], [0, 0, 0, 1, 1, 2], [0], [0]>} : vector<4x8x8xbf16>, vector<4x8x8xbf16>, vector<4x8x8xf32> -> vector<4x8x8xf32>
    "tpu.trace_stop"() : () -> ()
    %446 = arith.truncf %445 : vector<4x8x8xf32> to vector<4x8x8xbf16>
    "tpu.trace_start"() <{level = 10 : i32, message = "hqd,hde->hqe"}> : () -> ()
    %cst_245 = arith.constant dense<0.000000e+00> : vector<4x8x32xf32>
    %447 = tpu.matmul %446, %36, %cst_245 {dimension_numbers = #tpu.dot_dimension_numbers<[2], [1], [1], [2], [0, 0, 0, 1, 1, 2], [0], [0]>} : vector<4x8x8xbf16>, vector<4x8x32xbf16>, vector<4x8x32xf32> -> vector<4x8x32xf32>
    "tpu.trace_stop"() : () -> ()
    %cst_246 = arith.constant dense<0.000000e+00> : vector<8x32xf32>
    %448 = vector.multi_reduction <add>, %447, %cst_246 [0] : vector<4x8x32xf32> to vector<8x32xf32>
    %449 = arith.addf %416, %448 : vector<8x32xf32>
    %450 = vector.broadcast %34 : vector<1x32xf32> to vector<8x32xf32>
    %451 = arith.addf %449, %450 : vector<8x32xf32>
    %cst_247 = arith.constant dense<0.000000e+00> : vector<8xf32>
    %452 = vector.multi_reduction <add>, %451, %cst_247 [1] : vector<8x32xf32> to vector<8xf32>
    %453 = vector.shape_cast %452 : vector<8xf32> to vector<8x1xf32>
    %cst_248 = arith.constant 3.200000e+01 : f32
    %454 = vector.broadcast %cst_248 : f32 to vector<8x1xf32>
    %455 = arith.divf %453, %454 : vector<8x1xf32>
    %456 = vector.broadcast %455 : vector<8x1xf32> to vector<8x32xf32>
    %457 = arith.subf %451, %456 : vector<8x32xf32>
    %458 = arith.mulf %457, %457 : vector<8x32xf32>
    %cst_249 = arith.constant dense<0.000000e+00> : vector<8xf32>
    %459 = vector.multi_reduction <add>, %458, %cst_249 [1] : vector<8x32xf32> to vector<8xf32>
    %460 = vector.shape_cast %459 : vector<8xf32> to vector<8x1xf32>
    %cst_250 = arith.constant 3.200000e+01 : f32
    %461 = vector.broadcast %cst_250 : f32 to vector<8x1xf32>
    %462 = arith.divf %460, %461 : vector<8x1xf32>
    %463 = vector.broadcast %455 : vector<8x1xf32> to vector<8x32xf32>
    %464 = arith.subf %451, %463 : vector<8x32xf32>
    %cst_251 = arith.constant 9.99999974E-6 : f32
    %465 = vector.broadcast %cst_251 : f32 to vector<8x1xf32>
    %466 = arith.addf %462, %465 : vector<8x1xf32>
    %467 = math.rsqrt %466 : vector<8x1xf32>
    %468 = vector.broadcast %467 : vector<8x1xf32> to vector<8x32xf32>
    %469 = arith.mulf %464, %468 : vector<8x32xf32>
    %470 = vector.broadcast %29 : vector<1x32xf32> to vector<8x32xf32>
    %471 = arith.mulf %469, %470 : vector<8x32xf32>
    %472 = vector.broadcast %28 : vector<1x32xf32> to vector<8x32xf32>
    %473 = arith.addf %471, %472 : vector<8x32xf32>
    %474 = arith.truncf %473 : vector<8x32xf32> to vector<8x32xbf16>
    %475 = vector.shape_cast %474 : vector<8x32xbf16> to vector<1x8x32xbf16>
    %476 = vector.shape_cast %475 : vector<1x8x32xbf16> to vector<1x8x32xbf16>
    %477 = vector.broadcast %476 : vector<1x8x32xbf16> to vector<4x8x32xbf16>
    "tpu.trace_start"() <{level = 10 : i32, message = "hsd,hdf->hsf"}> : () -> ()
    %cst_252 = arith.constant dense<0.000000e+00> : vector<4x8x8xf32>
    %478 = tpu.matmul %477, %27, %cst_252 {dimension_numbers = #tpu.dot_dimension_numbers<[2], [1], [1], [2], [0, 0, 0, 1, 1, 2], [0], [0]>} : vector<4x8x32xbf16>, vector<4x32x8xbf16>, vector<4x8x8xf32> -> vector<4x8x8xf32>
    "tpu.trace_stop"() : () -> ()
    %479 = vector.broadcast %24 : vector<4x1x8xf32> to vector<4x8x8xf32>
    %480 = arith.addf %478, %479 : vector<4x8x8xf32>
    %481 = arith.truncf %263 : vector<8x32xf32> to vector<8x32xbf16>
    %482 = vector.shape_cast %481 : vector<8x32xbf16> to vector<1x8x32xbf16>
    %483 = vector.shape_cast %482 : vector<1x8x32xbf16> to vector<1x8x32xbf16>
    %484 = vector.broadcast %483 : vector<1x8x32xbf16> to vector<4x8x32xbf16>
    "tpu.trace_start"() <{level = 10 : i32, message = "hsd,hdf->hsf"}> : () -> ()
    %cst_253 = arith.constant dense<0.000000e+00> : vector<4x8x16xf32>
    %485 = tpu.matmul %484, %25, %cst_253 {dimension_numbers = #tpu.dot_dimension_numbers<[2], [1], [1], [2], [0, 0, 0, 1, 1, 2], [0], [0]>} : vector<4x8x32xbf16>, vector<4x32x16xbf16>, vector<4x8x16xf32> -> vector<4x8x16xf32>
    "tpu.trace_stop"() : () -> ()
    %486 = vector.broadcast %22 : vector<4x1x16xf32> to vector<4x8x16xf32>
    %487 = arith.addf %485, %486 : vector<4x8x16xf32>
    %488 = vector.extract_strided_slice %487 {offsets = [0, 0, 0], sizes = [4, 8, 8], strides = [1, 1, 1]} : vector<4x8x16xf32> to vector<4x8x8xf32>
    %489 = vector.extract_strided_slice %487 {offsets = [0, 0, 8], sizes = [4, 8, 8], strides = [1, 1, 1]} : vector<4x8x16xf32> to vector<4x8x8xf32>
    %490 = arith.truncf %480 : vector<4x8x8xf32> to vector<4x8x8xbf16>
    %491 = arith.truncf %488 : vector<4x8x8xf32> to vector<4x8x8xbf16>
    "tpu.trace_start"() <{level = 10 : i32, message = "hqd,hkd->hqk"}> : () -> ()
    %cst_254 = arith.constant dense<0.000000e+00> : vector<4x8x8xf32>
    %492 = tpu.matmul %490, %491, %cst_254 {dimension_numbers = #tpu.dot_dimension_numbers<[2], [2], [1], [1], [0, 0, 0, 1, 1, 1], [0], [0]>} : vector<4x8x8xbf16>, vector<4x8x8xbf16>, vector<4x8x8xf32> -> vector<4x8x8xf32>
    "tpu.trace_stop"() : () -> ()
    %493 = vector.shape_cast %74 : vector<1x8xf32> to vector<1x1x8xf32>
    %494 = vector.broadcast %493 : vector<1x1x8xf32> to vector<4x8x8xf32>
    %495 = arith.addf %492, %494 : vector<4x8x8xf32>
    %cst_255 = arith.constant dense<0xFF800000> : vector<4x8xf32>
    %496 = vector.multi_reduction <maximumf>, %495, %cst_255 [2] : vector<4x8x8xf32> to vector<4x8xf32>
    %497 = vector.shape_cast %496 : vector<4x8xf32> to vector<4x8x1xf32>
    %498 = vector.broadcast %497 : vector<4x8x1xf32> to vector<4x8x8xf32>
    %499 = arith.subf %495, %498 : vector<4x8x8xf32>
    %500 = math.exp %499 : vector<4x8x8xf32>
    %cst_256 = arith.constant dense<0.000000e+00> : vector<4x8xf32>
    %501 = vector.multi_reduction <add>, %500, %cst_256 [2] : vector<4x8x8xf32> to vector<4x8xf32>
    %502 = vector.shape_cast %501 : vector<4x8xf32> to vector<4x8x1xf32>
    %503 = tpu.reciprocal %502 {approx = true} : vector<4x8x1xf32> -> vector<4x8x1xf32>
    %504 = vector.broadcast %503 : vector<4x8x1xf32> to vector<4x8x8xf32>
    %505 = arith.mulf %500, %504 : vector<4x8x8xf32>
    %506 = arith.truncf %505 : vector<4x8x8xf32> to vector<4x8x8xbf16>
    %507 = arith.truncf %489 : vector<4x8x8xf32> to vector<4x8x8xbf16>
    "tpu.trace_start"() <{level = 10 : i32, message = "hqk,hkd->hqd"}> : () -> ()
    %cst_257 = arith.constant dense<0.000000e+00> : vector<4x8x8xf32>
    %508 = tpu.matmul %506, %507, %cst_257 {dimension_numbers = #tpu.dot_dimension_numbers<[2], [1], [1], [2], [0, 0, 0, 1, 1, 2], [0], [0]>} : vector<4x8x8xbf16>, vector<4x8x8xbf16>, vector<4x8x8xf32> -> vector<4x8x8xf32>
    "tpu.trace_stop"() : () -> ()
    %509 = arith.truncf %508 : vector<4x8x8xf32> to vector<4x8x8xbf16>
    "tpu.trace_start"() <{level = 10 : i32, message = "hqd,hde->hqe"}> : () -> ()
    %cst_258 = arith.constant dense<0.000000e+00> : vector<4x8x32xf32>
    %510 = tpu.matmul %509, %26, %cst_258 {dimension_numbers = #tpu.dot_dimension_numbers<[2], [1], [1], [2], [0, 0, 0, 1, 1, 2], [0], [0]>} : vector<4x8x8xbf16>, vector<4x8x32xbf16>, vector<4x8x32xf32> -> vector<4x8x32xf32>
    "tpu.trace_stop"() : () -> ()
    %cst_259 = arith.constant dense<0.000000e+00> : vector<8x32xf32>
    %511 = vector.multi_reduction <add>, %510, %cst_259 [0] : vector<4x8x32xf32> to vector<8x32xf32>
    %512 = arith.addf %473, %511 : vector<8x32xf32>
    %513 = vector.broadcast %23 : vector<1x32xf32> to vector<8x32xf32>
    %514 = arith.addf %512, %513 : vector<8x32xf32>
    %cst_260 = arith.constant dense<0.000000e+00> : vector<8xf32>
    %515 = vector.multi_reduction <add>, %514, %cst_260 [1] : vector<8x32xf32> to vector<8xf32>
    %516 = vector.shape_cast %515 : vector<8xf32> to vector<8x1xf32>
    %cst_261 = arith.constant 3.200000e+01 : f32
    %517 = vector.broadcast %cst_261 : f32 to vector<8x1xf32>
    %518 = arith.divf %516, %517 : vector<8x1xf32>
    %519 = vector.broadcast %518 : vector<8x1xf32> to vector<8x32xf32>
    %520 = arith.subf %514, %519 : vector<8x32xf32>
    %521 = arith.mulf %520, %520 : vector<8x32xf32>
    %cst_262 = arith.constant dense<0.000000e+00> : vector<8xf32>
    %522 = vector.multi_reduction <add>, %521, %cst_262 [1] : vector<8x32xf32> to vector<8xf32>
    %523 = vector.shape_cast %522 : vector<8xf32> to vector<8x1xf32>
    %cst_263 = arith.constant 3.200000e+01 : f32
    %524 = vector.broadcast %cst_263 : f32 to vector<8x1xf32>
    %525 = arith.divf %523, %524 : vector<8x1xf32>
    %526 = vector.broadcast %518 : vector<8x1xf32> to vector<8x32xf32>
    %527 = arith.subf %514, %526 : vector<8x32xf32>
    %cst_264 = arith.constant 9.99999974E-6 : f32
    %528 = vector.broadcast %cst_264 : f32 to vector<8x1xf32>
    %529 = arith.addf %525, %528 : vector<8x1xf32>
    %530 = math.rsqrt %529 : vector<8x1xf32>
    %531 = vector.broadcast %530 : vector<8x1xf32> to vector<8x32xf32>
    %532 = arith.mulf %527, %531 : vector<8x32xf32>
    %533 = vector.broadcast %31 : vector<1x32xf32> to vector<8x32xf32>
    %534 = arith.mulf %532, %533 : vector<8x32xf32>
    %535 = vector.broadcast %30 : vector<1x32xf32> to vector<8x32xf32>
    %536 = arith.addf %534, %535 : vector<8x32xf32>
    %537 = arith.truncf %536 : vector<8x32xf32> to vector<8x32xbf16>
    %cst_265 = arith.constant dense<0.000000e+00> : vector<8x64xf32>
    %538 = tpu.matmul %537, %38, %cst_265 {dimension_numbers = #tpu.dot_dimension_numbers<[1], [0], [0], [1], [0, 0, 1, 1], [], []>} : vector<8x32xbf16>, vector<32x64xbf16>, vector<8x64xf32> -> vector<8x64xf32>
    %539 = vector.broadcast %20 : vector<1x64xf32> to vector<8x64xf32>
    %540 = arith.addf %538, %539 : vector<8x64xf32>
    %cst_266 = arith.constant 0.000000e+00 : f32
    %541 = vector.broadcast %cst_266 : f32 to vector<8x64xf32>
    %542 = arith.maximumf %540, %541 : vector<8x64xf32>
    %543 = arith.truncf %542 : vector<8x64xf32> to vector<8x64xbf16>
    %cst_267 = arith.constant dense<0.000000e+00> : vector<8x32xf32>
    %544 = tpu.matmul %543, %39, %cst_267 {dimension_numbers = #tpu.dot_dimension_numbers<[1], [0], [0], [1], [0, 0, 1, 1], [], []>} : vector<8x64xbf16>, vector<64x32xbf16>, vector<8x32xf32> -> vector<8x32xf32>
    %545 = vector.broadcast %21 : vector<1x32xf32> to vector<8x32xf32>
    %546 = arith.addf %544, %545 : vector<8x32xf32>
    %547 = arith.addf %536, %546 : vector<8x32xf32>
    %cst_268 = arith.constant dense<0.000000e+00> : vector<8xf32>
    %548 = vector.multi_reduction <add>, %547, %cst_268 [1] : vector<8x32xf32> to vector<8xf32>
    %549 = vector.shape_cast %548 : vector<8xf32> to vector<8x1xf32>
    %cst_269 = arith.constant 3.200000e+01 : f32
    %550 = vector.broadcast %cst_269 : f32 to vector<8x1xf32>
    %551 = arith.divf %549, %550 : vector<8x1xf32>
    %552 = vector.broadcast %551 : vector<8x1xf32> to vector<8x32xf32>
    %553 = arith.subf %547, %552 : vector<8x32xf32>
    %554 = arith.mulf %553, %553 : vector<8x32xf32>
    %cst_270 = arith.constant dense<0.000000e+00> : vector<8xf32>
    %555 = vector.multi_reduction <add>, %554, %cst_270 [1] : vector<8x32xf32> to vector<8xf32>
    %556 = vector.shape_cast %555 : vector<8xf32> to vector<8x1xf32>
    %cst_271 = arith.constant 3.200000e+01 : f32
    %557 = vector.broadcast %cst_271 : f32 to vector<8x1xf32>
    %558 = arith.divf %556, %557 : vector<8x1xf32>
    %559 = vector.broadcast %551 : vector<8x1xf32> to vector<8x32xf32>
    %560 = arith.subf %547, %559 : vector<8x32xf32>
    %cst_272 = arith.constant 9.99999974E-6 : f32
    %561 = vector.broadcast %cst_272 : f32 to vector<8x1xf32>
    %562 = arith.addf %558, %561 : vector<8x1xf32>
    %563 = math.rsqrt %562 : vector<8x1xf32>
    %564 = vector.broadcast %563 : vector<8x1xf32> to vector<8x32xf32>
    %565 = arith.mulf %560, %564 : vector<8x32xf32>
    %566 = vector.broadcast %33 : vector<1x32xf32> to vector<8x32xf32>
    %567 = arith.mulf %565, %566 : vector<8x32xf32>
    %568 = vector.broadcast %32 : vector<1x32xf32> to vector<8x32xf32>
    %569 = arith.addf %567, %568 : vector<8x32xf32>
    %570 = arith.truncf %569 : vector<8x32xf32> to vector<8x32xbf16>
    %cst_273 = arith.constant dense<0.000000e+00> : vector<8x128xf32>
    %571 = tpu.matmul %570, %65, %cst_273 {dimension_numbers = #tpu.dot_dimension_numbers<[1], [0], [0], [1], [0, 0, 1, 1], [], []>} : vector<8x32xbf16>, vector<32x128xbf16>, vector<8x128xf32> -> vector<8x128xf32>
    %572 = vector.broadcast %64 : vector<1x128xf32> to vector<8x128xf32>
    %573 = arith.addf %571, %572 : vector<8x128xf32>
    %c0_274 = arith.constant 0 : index
    %c0_275 = arith.constant 0 : index
    %c0_276 = arith.constant 0 : index
    %574 = vector.load %arg71[%c0_274, %c0_275, %c0_276] : memref<1x8x128xf32, #tpu.memory_space<vmem>>, vector<1x8x128xf32>
    %575 = vector.shape_cast %574 : vector<1x8x128xf32> to vector<8x128xf32>
    %576 = vector.shape_cast %573 : vector<8x128xf32> to vector<1x8x128xf32>
    tpu.vector_store %arg71[%c0_274, %c0_275, %c0_276], %576 {strides = array<i32>} : memref<1x8x128xf32, #tpu.memory_space<vmem>>, vector<1x8x128xf32>,
    return
  }
  func.func @transform_0(%arg0: i32) -> (i32, i32, i32) {
    %c0_i32 = arith.constant 0 : i32
    %c0_i32_0 = arith.constant 0 : i32
    %c0_i32_1 = arith.constant 0 : i32
    return %arg0, %c0_i32, %c0_i32_0 : i32, i32, i32
  }
  func.func @transform_1(%arg0: i32) -> (i32, i32, i32) {
    %c0_i32 = arith.constant 0 : i32
    %c0_i32_0 = arith.constant 0 : i32
    %c0_i32_1 = arith.constant 0 : i32
    return %arg0, %c0_i32, %c0_i32_0 : i32, i32, i32
  }
  func.func @transform_2(%arg0: i32) -> (i32, i32, i32) {
    %c0_i32 = arith.constant 0 : i32
    %c0_i32_0 = arith.constant 0 : i32
    %c0_i32_1 = arith.constant 0 : i32
    return %arg0, %c0_i32, %c0_i32_0 : i32, i32, i32
  }
  func.func @transform_3(%arg0: i32) -> (i32, i32, i32) {
    %c0_i32 = arith.constant 0 : i32
    %c0_i32_0 = arith.constant 0 : i32
    %c0_i32_1 = arith.constant 0 : i32
    return %arg0, %c0_i32, %c0_i32_0 : i32, i32, i32
  }
  func.func @transform_4(%arg0: i32) -> (i32, i32) {
    %c0_i32 = arith.constant 0 : i32
    %c0_i32_0 = arith.constant 0 : i32
    %c0_i32_1 = arith.constant 0 : i32
    return %c0_i32, %c0_i32_0 : i32, i32
  }
  func.func @transform_5(%arg0: i32) -> (i32, i32) {
    %c0_i32 = arith.constant 0 : i32
    %c0_i32_0 = arith.constant 0 : i32
    %c0_i32_1 = arith.constant 0 : i32
    return %c0_i32, %c0_i32_0 : i32, i32
  }
  func.func @transform_6(%arg0: i32) -> (i32, i32, i32) {
    %c0_i32 = arith.constant 0 : i32
    %c0_i32_0 = arith.constant 0 : i32
    %c0_i32_1 = arith.constant 0 : i32
    %c0_i32_2 = arith.constant 0 : i32
    return %c0_i32, %c0_i32_0, %c0_i32_1 : i32, i32, i32
  }
  func.func @transform_7(%arg0: i32) -> (i32, i32) {
    %c0_i32 = arith.constant 0 : i32
    %c0_i32_0 = arith.constant 0 : i32
    %c0_i32_1 = arith.constant 0 : i32
    return %c0_i32, %c0_i32_0 : i32, i32
  }
  func.func @transform_8(%arg0: i32) -> (i32, i32, i32) {
    %c0_i32 = arith.constant 0 : i32
    %c0_i32_0 = arith.constant 0 : i32
    %c0_i32_1 = arith.constant 0 : i32
    %c0_i32_2 = arith.constant 0 : i32
    return %c0_i32, %c0_i32_0, %c0_i32_1 : i32, i32, i32
  }
  func.func @transform_9(%arg0: i32) -> (i32, i32, i32) {
    %c0_i32 = arith.constant 0 : i32
    %c0_i32_0 = arith.constant 0 : i32
    %c0_i32_1 = arith.constant 0 : i32
    %c0_i32_2 = arith.constant 0 : i32
    return %c0_i32, %c0_i32_0, %c0_i32_1 : i32, i32, i32
  }
  func.func @transform_10(%arg0: i32) -> (i32, i32, i32) {
    %c0_i32 = arith.constant 0 : i32
    %c0_i32_0 = arith.constant 0 : i32
    %c0_i32_1 = arith.constant 0 : i32
    %c0_i32_2 = arith.constant 0 : i32
    return %c0_i32, %c0_i32_0, %c0_i32_1 : i32, i32, i32
  }
  func.func @transform_11(%arg0: i32) -> (i32, i32, i32) {
    %c0_i32 = arith.constant 0 : i32
    %c0_i32_0 = arith.constant 0 : i32
    %c0_i32_1 = arith.constant 0 : i32
    %c0_i32_2 = arith.constant 0 : i32
    return %c0_i32, %c0_i32_0, %c0_i32_1 : i32, i32, i32
  }
  func.func @transform_12(%arg0: i32) -> (i32, i32) {
    %c0_i32 = arith.constant 0 : i32
    %c0_i32_0 = arith.constant 0 : i32
    %c0_i32_1 = arith.constant 0 : i32
    return %c0_i32, %c0_i32_0 : i32, i32
  }
  func.func @transform_13(%arg0: i32) -> (i32, i32) {
    %c0_i32 = arith.constant 0 : i32
    %c0_i32_0 = arith.constant 0 : i32
    %c0_i32_1 = arith.constant 0 : i32
    return %c0_i32, %c0_i32_0 : i32, i32
  }
  func.func @transform_14(%arg0: i32) -> (i32, i32) {
    %c0_i32 = arith.constant 0 : i32
    %c0_i32_0 = arith.constant 0 : i32
    %c0_i32_1 = arith.constant 0 : i32
    return %c0_i32, %c0_i32_0 : i32, i32
  }
  func.func @transform_15(%arg0: i32) -> (i32, i32) {
    %c0_i32 = arith.constant 0 : i32
    %c0_i32_0 = arith.constant 0 : i32
    %c0_i32_1 = arith.constant 0 : i32
    return %c0_i32, %c0_i32_0 : i32, i32
  }
  func.func @transform_16(%arg0: i32) -> (i32, i32) {
    %c0_i32 = arith.constant 0 : i32
    %c0_i32_0 = arith.constant 0 : i32
    %c0_i32_1 = arith.constant 0 : i32
    return %c0_i32, %c0_i32_0 : i32, i32
  }
  func.func @transform_17(%arg0: i32) -> (i32, i32) {
    %c0_i32 = arith.constant 0 : i32
    %c0_i32_0 = arith.constant 0 : i32
    %c0_i32_1 = arith.constant 0 : i32
    return %c0_i32, %c0_i32_0 : i32, i32
  }
  func.func @transform_18(%arg0: i32) -> (i32, i32) {
    %c0_i32 = arith.constant 0 : i32
    %c0_i32_0 = arith.constant 0 : i32
    %c0_i32_1 = arith.constant 0 : i32
    return %c0_i32, %c0_i32_0 : i32, i32
  }
  func.func @transform_19(%arg0: i32) -> (i32, i32, i32) {
    %c0_i32 = arith.constant 0 : i32
    %c0_i32_0 = arith.constant 0 : i32
    %c0_i32_1 = arith.constant 0 : i32
    %c0_i32_2 = arith.constant 0 : i32
    return %c0_i32, %c0_i32_0, %c0_i32_1 : i32, i32, i32
  }
  func.func @transform_20(%arg0: i32) -> (i32, i32, i32) {
    %c0_i32 = arith.constant 0 : i32
    %c0_i32_0 = arith.constant 0 : i32
    %c0_i32_1 = arith.constant 0 : i32
    %c0_i32_2 = arith.constant 0 : i32
    return %c0_i32, %c0_i32_0, %c0_i32_1 : i32, i32, i32
  }
  func.func @transform_21(%arg0: i32) -> (i32, i32, i32) {
    %c0_i32 = arith.constant 0 : i32
    %c0_i32_0 = arith.constant 0 : i32
    %c0_i32_1 = arith.constant 0 : i32
    %c0_i32_2 = arith.constant 0 : i32
    return %c0_i32, %c0_i32_0, %c0_i32_1 : i32, i32, i32
  }
  func.func @transform_22(%arg0: i32) -> (i32, i32) {
    %c0_i32 = arith.constant 0 : i32
    %c0_i32_0 = arith.constant 0 : i32
    %c0_i32_1 = arith.constant 0 : i32
    return %c0_i32, %c0_i32_0 : i32, i32
  }
  func.func @transform_23(%arg0: i32) -> (i32, i32) {
    %c0_i32 = arith.constant 0 : i32
    %c0_i32_0 = arith.constant 0 : i32
    %c0_i32_1 = arith.constant 0 : i32
    return %c0_i32, %c0_i32_0 : i32, i32
  }
  func.func @transform_24(%arg0: i32) -> (i32, i32) {
    %c0_i32 = arith.constant 0 : i32
    %c0_i32_0 = arith.constant 0 : i32
    %c0_i32_1 = arith.constant 0 : i32
    return %c0_i32, %c0_i32_0 : i32, i32
  }
  func.func @transform_25(%arg0: i32) -> (i32, i32) {
    %c0_i32 = arith.constant 0 : i32
    %c0_i32_0 = arith.constant 0 : i32
    %c0_i32_1 = arith.constant 0 : i32
    return %c0_i32, %c0_i32_0 : i32, i32
  }
  func.func @transform_26(%arg0: i32) -> (i32, i32, i32) {
    %c0_i32 = arith.constant 0 : i32
    %c0_i32_0 = arith.constant 0 : i32
    %c0_i32_1 = arith.constant 0 : i32
    %c0_i32_2 = arith.constant 0 : i32
    return %c0_i32, %c0_i32_0, %c0_i32_1 : i32, i32, i32
  }
  func.func @transform_27(%arg0: i32) -> (i32, i32) {
    %c0_i32 = arith.constant 0 : i32
    %c0_i32_0 = arith.constant 0 : i32
    %c0_i32_1 = arith.constant 0 : i32
    return %c0_i32, %c0_i32_0 : i32, i32
  }
  func.func @transform_28(%arg0: i32) -> (i32, i32, i32) {
    %c0_i32 = arith.constant 0 : i32
    %c0_i32_0 = arith.constant 0 : i32
    %c0_i32_1 = arith.constant 0 : i32
    %c0_i32_2 = arith.constant 0 : i32
    return %c0_i32, %c0_i32_0, %c0_i32_1 : i32, i32, i32
  }
  func.func @transform_29(%arg0: i32) -> (i32, i32, i32) {
    %c0_i32 = arith.constant 0 : i32
    %c0_i32_0 = arith.constant 0 : i32
    %c0_i32_1 = arith.constant 0 : i32
    %c0_i32_2 = arith.constant 0 : i32
    return %c0_i32, %c0_i32_0, %c0_i32_1 : i32, i32, i32
  }
  func.func @transform_30(%arg0: i32) -> (i32, i32, i32) {
    %c0_i32 = arith.constant 0 : i32
    %c0_i32_0 = arith.constant 0 : i32
    %c0_i32_1 = arith.constant 0 : i32
    %c0_i32_2 = arith.constant 0 : i32
    return %c0_i32, %c0_i32_0, %c0_i32_1 : i32, i32, i32
  }
  func.func @transform_31(%arg0: i32) -> (i32, i32, i32) {
    %c0_i32 = arith.constant 0 : i32
    %c0_i32_0 = arith.constant 0 : i32
    %c0_i32_1 = arith.constant 0 : i32
    %c0_i32_2 = arith.constant 0 : i32
    return %c0_i32, %c0_i32_0, %c0_i32_1 : i32, i32, i32
  }
  func.func @transform_32(%arg0: i32) -> (i32, i32) {
    %c0_i32 = arith.constant 0 : i32
    %c0_i32_0 = arith.constant 0 : i32
    %c0_i32_1 = arith.constant 0 : i32
    return %c0_i32, %c0_i32_0 : i32, i32
  }
  func.func @transform_33(%arg0: i32) -> (i32, i32) {
    %c0_i32 = arith.constant 0 : i32
    %c0_i32_0 = arith.constant 0 : i32
    %c0_i32_1 = arith.constant 0 : i32
    return %c0_i32, %c0_i32_0 : i32, i32
  }
  func.func @transform_34(%arg0: i32) -> (i32, i32) {
    %c0_i32 = arith.constant 0 : i32
    %c0_i32_0 = arith.constant 0 : i32
    %c0_i32_1 = arith.constant 0 : i32
    return %c0_i32, %c0_i32_0 : i32, i32
  }
  func.func @transform_35(%arg0: i32) -> (i32, i32) {
    %c0_i32 = arith.constant 0 : i32
    %c0_i32_0 = arith.constant 0 : i32
    %c0_i32_1 = arith.constant 0 : i32
    return %c0_i32, %c0_i32_0 : i32, i32
  }
  func.func @transform_36(%arg0: i32) -> (i32, i32) {
    %c0_i32 = arith.constant 0 : i32
    %c0_i32_0 = arith.constant 0 : i32
    %c0_i32_1 = arith.constant 0 : i32
    return %c0_i32, %c0_i32_0 : i32, i32
  }
  func.func @transform_37(%arg0: i32) -> (i32, i32) {
    %c0_i32 = arith.constant 0 : i32
    %c0_i32_0 = arith.constant 0 : i32
    %c0_i32_1 = arith.constant 0 : i32
    return %c0_i32, %c0_i32_0 : i32, i32
  }
  func.func @transform_38(%arg0: i32) -> (i32, i32) {
    %c0_i32 = arith.constant 0 : i32
    %c0_i32_0 = arith.constant 0 : i32
    %c0_i32_1 = arith.constant 0 : i32
    return %c0_i32, %c0_i32_0 : i32, i32
  }
  func.func @transform_39(%arg0: i32) -> (i32, i32, i32) {
    %c0_i32 = arith.constant 0 : i32
    %c0_i32_0 = arith.constant 0 : i32
    %c0_i32_1 = arith.constant 0 : i32
    %c0_i32_2 = arith.constant 0 : i32
    return %c0_i32, %c0_i32_0, %c0_i32_1 : i32, i32, i32
  }
  func.func @transform_40(%arg0: i32) -> (i32, i32, i32) {
    %c0_i32 = arith.constant 0 : i32
    %c0_i32_0 = arith.constant 0 : i32
    %c0_i32_1 = arith.constant 0 : i32
    %c0_i32_2 = arith.constant 0 : i32
    return %c0_i32, %c0_i32_0, %c0_i32_1 : i32, i32, i32
  }
  func.func @transform_41(%arg0: i32) -> (i32, i32, i32) {
    %c0_i32 = arith.constant 0 : i32
    %c0_i32_0 = arith.constant 0 : i32
    %c0_i32_1 = arith.constant 0 : i32
    %c0_i32_2 = arith.constant 0 : i32
    return %c0_i32, %c0_i32_0, %c0_i32_1 : i32, i32, i32
  }
  func.func @transform_42(%arg0: i32) -> (i32, i32) {
    %c0_i32 = arith.constant 0 : i32
    %c0_i32_0 = arith.constant 0 : i32
    %c0_i32_1 = arith.constant 0 : i32
    return %c0_i32, %c0_i32_0 : i32, i32
  }
  func.func @transform_43(%arg0: i32) -> (i32, i32) {
    %c0_i32 = arith.constant 0 : i32
    %c0_i32_0 = arith.constant 0 : i32
    %c0_i32_1 = arith.constant 0 : i32
    return %c0_i32, %c0_i32_0 : i32, i32
  }
  func.func @transform_44(%arg0: i32) -> (i32, i32) {
    %c0_i32 = arith.constant 0 : i32
    %c0_i32_0 = arith.constant 0 : i32
    %c0_i32_1 = arith.constant 0 : i32
    return %c0_i32, %c0_i32_0 : i32, i32
  }
  func.func @transform_45(%arg0: i32) -> (i32, i32) {
    %c0_i32 = arith.constant 0 : i32
    %c0_i32_0 = arith.constant 0 : i32
    %c0_i32_1 = arith.constant 0 : i32
    return %c0_i32, %c0_i32_0 : i32, i32
  }
  func.func @transform_46(%arg0: i32) -> (i32, i32) {
    %c0_i32 = arith.constant 0 : i32
    %c0_i32_0 = arith.constant 0 : i32
    %c0_i32_1 = arith.constant 0 : i32
    return %c0_i32, %c0_i32_0 : i32, i32
  }
  func.func @transform_47(%arg0: i32) -> (i32, i32, i32) {
    %c0_i32 = arith.constant 0 : i32
    %c0_i32_0 = arith.constant 0 : i32
    %c0_i32_1 = arith.constant 0 : i32
    %c0_i32_2 = arith.constant 0 : i32
    return %c0_i32, %c0_i32_0, %c0_i32_1 : i32, i32, i32
  }
  func.func @transform_48(%arg0: i32) -> (i32, i32) {
    %c0_i32 = arith.constant 0 : i32
    %c0_i32_0 = arith.constant 0 : i32
    %c0_i32_1 = arith.constant 0 : i32
    return %c0_i32, %c0_i32_0 : i32, i32
  }
  func.func @transform_49(%arg0: i32) -> (i32, i32) {
    %c0_i32 = arith.constant 0 : i32
    %c0_i32_0 = arith.constant 0 : i32
    %c0_i32_1 = arith.constant 0 : i32
    return %c0_i32, %c0_i32_0 : i32, i32
  }
  func.func @transform_50(%arg0: i32) -> (i32, i32) {
    %c0_i32 = arith.constant 0 : i32
    %c0_i32_0 = arith.constant 0 : i32
    %c0_i32_1 = arith.constant 0 : i32
    return %c0_i32, %c0_i32_0 : i32, i32
  }
  func.func @transform_51(%arg0: i32) -> (i32, i32) {
    %c0_i32 = arith.constant 0 : i32
    %c0_i32_0 = arith.constant 0 : i32
    %c0_i32_1 = arith.constant 0 : i32
    return %c0_i32, %c0_i32_0 : i32, i32
  }
  func.func @transform_52(%arg0: i32) -> (i32, i32) {
    %c0_i32 = arith.constant 0 : i32
    %c0_i32_0 = arith.constant 0 : i32
    %c0_i32_1 = arith.constant 0 : i32
    return %c0_i32, %c0_i32_0 : i32, i32
  }
  func.func @transform_53(%arg0: i32) -> (i32, i32) {
    %c0_i32 = arith.constant 0 : i32
    %c0_i32_0 = arith.constant 0 : i32
    %c0_i32_1 = arith.constant 0 : i32
    return %c0_i32, %c0_i32_0 : i32, i32
  }
  func.func @transform_54(%arg0: i32) -> (i32, i32, i32) {
    %c0_i32 = arith.constant 0 : i32
    %c0_i32_0 = arith.constant 0 : i32
    %c0_i32_1 = arith.constant 0 : i32
    %c0_i32_2 = arith.constant 0 : i32
    return %c0_i32, %c0_i32_0, %c0_i32_1 : i32, i32, i32
  }
  func.func @transform_55(%arg0: i32) -> (i32, i32, i32) {
    %c0_i32 = arith.constant 0 : i32
    %c0_i32_0 = arith.constant 0 : i32
    %c0_i32_1 = arith.constant 0 : i32
    %c0_i32_2 = arith.constant 0 : i32
    return %c0_i32, %c0_i32_0, %c0_i32_1 : i32, i32, i32
  }
  func.func @transform_56(%arg0: i32) -> (i32, i32) {
    %c0_i32 = arith.constant 0 : i32
    %c0_i32_0 = arith.constant 0 : i32
    %c0_i32_1 = arith.constant 0 : i32
    return %c0_i32, %c0_i32_0 : i32, i32
  }
  func.func @transform_57(%arg0: i32) -> (i32, i32) {
    %c0_i32 = arith.constant 0 : i32
    %c0_i32_0 = arith.constant 0 : i32
    %c0_i32_1 = arith.constant 0 : i32
    return %c0_i32, %c0_i32_0 : i32, i32
  }
  func.func @transform_58(%arg0: i32) -> (i32, i32) {
    %c0_i32 = arith.constant 0 : i32
    %c0_i32_0 = arith.constant 0 : i32
    %c0_i32_1 = arith.constant 0 : i32
    return %c0_i32, %c0_i32_0 : i32, i32
  }
  func.func @transform_59(%arg0: i32) -> (i32, i32, i32) {
    %c0_i32 = arith.constant 0 : i32
    %c0_i32_0 = arith.constant 0 : i32
    %c0_i32_1 = arith.constant 0 : i32
    %c0_i32_2 = arith.constant 0 : i32
    return %c0_i32, %c0_i32_0, %c0_i32_1 : i32, i32, i32
  }
  func.func @transform_60(%arg0: i32) -> (i32, i32) {
    %c0_i32 = arith.constant 0 : i32
    %c0_i32_0 = arith.constant 0 : i32
    %c0_i32_1 = arith.constant 0 : i32
    return %c0_i32, %c0_i32_0 : i32, i32
  }
  func.func @transform_61(%arg0: i32) -> (i32, i32) {
    %c0_i32 = arith.constant 0 : i32
    %c0_i32_0 = arith.constant 0 : i32
    %c0_i32_1 = arith.constant 0 : i32
    return %c0_i32, %c0_i32_0 : i32, i32
  }
  func.func @transform_62(%arg0: i32) -> (i32, i32) {
    %c0_i32 = arith.constant 0 : i32
    %c0_i32_0 = arith.constant 0 : i32
    %c0_i32_1 = arith.constant 0 : i32
    return %c0_i32, %c0_i32_0 : i32, i32
  }
  func.func @transform_63(%arg0: i32) -> (i32, i32) {
    %c0_i32 = arith.constant 0 : i32
    %c0_i32_0 = arith.constant 0 : i32
    %c0_i32_1 = arith.constant 0 : i32
    return %c0_i32, %c0_i32_0 : i32, i32
  }
  func.func @transform_64(%arg0: i32) -> (i32, i32) {
    %c0_i32 = arith.constant 0 : i32
    %c0_i32_0 = arith.constant 0 : i32
    %c0_i32_1 = arith.constant 0 : i32
    return %c0_i32, %c0_i32_0 : i32, i32
  }
  func.func @transform_65(%arg0: i32) -> (i32, i32) {
    %c0_i32 = arith.constant 0 : i32
    %c0_i32_0 = arith.constant 0 : i32
    %c0_i32_1 = arith.constant 0 : i32
    return %c0_i32, %c0_i32_0 : i32, i32
  }
  func.func @transform_66(%arg0: i32) -> (i32, i32, i32) {
    %c0_i32 = arith.constant 0 : i32
    %c0_i32_0 = arith.constant 0 : i32
    %c0_i32_1 = arith.constant 0 : i32
    %c0_i32_2 = arith.constant 0 : i32
    return %c0_i32, %c0_i32_0, %c0_i32_1 : i32, i32, i32
  }
  func.func @transform_67(%arg0: i32) -> (i32, i32, i32) {
    %c0_i32 = arith.constant 0 : i32
    %c0_i32_0 = arith.constant 0 : i32
    %c0_i32_1 = arith.constant 0 : i32
    %c0_i32_2 = arith.constant 0 : i32
    return %c0_i32, %c0_i32_0, %c0_i32_1 : i32, i32, i32
  }
  func.func @transform_68(%arg0: i32) -> (i32, i32) {
    %c0_i32 = arith.constant 0 : i32
    %c0_i32_0 = arith.constant 0 : i32
    %c0_i32_1 = arith.constant 0 : i32
    return %c0_i32, %c0_i32_0 : i32, i32
  }
  func.func @transform_69(%arg0: i32) -> (i32, i32) {
    %c0_i32 = arith.constant 0 : i32
    %c0_i32_0 = arith.constant 0 : i32
    %c0_i32_1 = arith.constant 0 : i32
    return %c0_i32, %c0_i32_0 : i32, i32
  }
  func.func @transform_70(%arg0: i32) -> (i32, i32, i32) {
    %c0_i32 = arith.constant 0 : i32
    %c0_i32_0 = arith.constant 0 : i32
    %c0_i32_1 = arith.constant 0 : i32
    return %arg0, %c0_i32, %c0_i32_0 : i32, i32, i32
  }
}

</mosaic_0001>

<llo_original>
// kernel: transformer_forward.1
$region0: #{transformer_forward.1}
  #allocation0 [shape = 'u32[]', space=smem, size = 0x4, offset = 0x4, fixed_abs, tag = 'smem constant byte address 0x4 - core index']
  #allocation1 [shape = 'u32[144,128]{1,0:T(1,128)}', space=vmem, size = 0x12000, scoped, tag = 'internal scratch']
  %s0 = inlined_call_operand.smem [shape: u32[71], index: -1, kind: input, shape index: {}]
  %s1 = sld [smem:[%s0]]
  %s2 = scalar_lea.smem %s0, 1
  %s3 = sld [smem:[%s2]]
  %s4 = scalar_lea.smem %s0, 2
  %s5 = sld [smem:[%s4]]
  %s6 = scalar_lea.smem %s0, 3
  %s7 = sld [smem:[%s6]]
  %s8 = scalar_lea.smem %s0, 4
  %s9 = sld [smem:[%s8]]
  %s10 = scalar_lea.smem %s0, 5
  %s11 = sld [smem:[%s10]]
  %s12 = scalar_lea.smem %s0, 6
  %s13 = sld [smem:[%s12]]
  %s14 = scalar_lea.smem %s0, 7
  %s15 = sld [smem:[%s14]]
  %s16 = scalar_lea.smem %s0, 8
  %s17 = sld [smem:[%s16]]
  %s18 = scalar_lea.smem %s0, 9
  %s19 = sld [smem:[%s18]]
  %s20 = scalar_lea.smem %s0, 10
  %s21 = sld [smem:[%s20]]
  %s22 = scalar_lea.smem %s0, 11
  %s23 = sld [smem:[%s22]]
  %s24 = scalar_lea.smem %s0, 12
  %s25 = sld [smem:[%s24]]
  %s26 = scalar_lea.smem %s0, 13
  %s27 = sld [smem:[%s26]]
  %s28 = scalar_lea.smem %s0, 14
  %s29 = sld [smem:[%s28]]
  %s30 = scalar_lea.smem %s0, 15
  %s31 = sld [smem:[%s30]]
  %s32 = scalar_lea.smem %s0, 16
  %s33 = sld [smem:[%s32]]
  %s34 = scalar_lea.smem %s0, 17
  %s35 = sld [smem:[%s34]]
  %s36 = scalar_lea.smem %s0, 18
  %s37 = sld [smem:[%s36]]
  %s38 = scalar_lea.smem %s0, 19
  %s39 = sld [smem:[%s38]]
  %s40 = scalar_lea.smem %s0, 20
  %s41 = sld [smem:[%s40]]
  %s42 = scalar_lea.smem %s0, 21
  %s43 = sld [smem:[%s42]]
  %s44 = scalar_lea.smem %s0, 22
  %s45 = sld [smem:[%s44]]
  %s46 = scalar_lea.smem %s0, 23
  %s47 = sld [smem:[%s46]]
  %s48 = scalar_lea.smem %s0, 24
  %s49 = sld [smem:[%s48]]
  %s50 = scalar_lea.smem %s0, 25
  %s51 = sld [smem:[%s50]]
  %s52 = scalar_lea.smem %s0, 26
  %s53 = sld [smem:[%s52]]
  %s54 = scalar_lea.smem %s0, 27
  %s55 = sld [smem:[%s54]]
  %s56 = scalar_lea.smem %s0, 28
  %s57 = sld [smem:[%s56]]
  %s58 = scalar_lea.smem %s0, 29
  %s59 = sld [smem:[%s58]]
  %s60 = scalar_lea.smem %s0, 30
  %s61 = sld [smem:[%s60]]
  %s62 = scalar_lea.smem %s0, 31
  %s63 = sld [smem:[%s62]]
  %s64 = scalar_lea.smem %s0, 32
  %s65 = sld [smem:[%s64]]
  %s66 = scalar_lea.smem %s0, 33
  %s67 = sld [smem:[%s66]]
  %s68 = scalar_lea.smem %s0, 34
  %s69 = sld [smem:[%s68]]
  %s70 = scalar_lea.smem %s0, 35
  %s71 = sld [smem:[%s70]]
  %s72 = scalar_lea.smem %s0, 36
  %s73 = sld [smem:[%s72]]
  %s74 = scalar_lea.smem %s0, 37
  %s75 = sld [smem:[%s74]]
  %s76 = scalar_lea.smem %s0, 38
  %s77 = sld [smem:[%s76]]
  %s78 = scalar_lea.smem %s0, 39
  %s79 = sld [smem:[%s78]]
  %s80 = scalar_lea.smem %s0, 40
  %s81 = sld [smem:[%s80]]
  %s82 = scalar_lea.smem %s0, 41
  %s83 = sld [smem:[%s82]]
  %s84 = scalar_lea.smem %s0, 42
  %s85 = sld [smem:[%s84]]
  %s86 = scalar_lea.smem %s0, 43
  %s87 = sld [smem:[%s86]]
  %s88 = scalar_lea.smem %s0, 44
  %s89 = sld [smem:[%s88]]
  %s90 = scalar_lea.smem %s0, 45
  %s91 = sld [smem:[%s90]]
  %s92 = scalar_lea.smem %s0, 46
  %s93 = sld [smem:[%s92]]
  %s94 = scalar_lea.smem %s0, 47
  %s95 = sld [smem:[%s94]]
  %s96 = scalar_lea.smem %s0, 48
  %s97 = sld [smem:[%s96]]
  %s98 = scalar_lea.smem %s0, 49
  %s99 = sld [smem:[%s98]]
  %s100 = scalar_lea.smem %s0, 50
  %s101 = sld [smem:[%s100]]
  %s102 = scalar_lea.smem %s0, 51
  %s103 = sld [smem:[%s102]]
  %s104 = scalar_lea.smem %s0, 52
  %s105 = sld [smem:[%s104]]
  %s106 = scalar_lea.smem %s0, 53
  %s107 = sld [smem:[%s106]]
  %s108 = scalar_lea.smem %s0, 54
  %s109 = sld [smem:[%s108]]
  %s110 = scalar_lea.smem %s0, 55
  %s111 = sld [smem:[%s110]]
  %s112 = scalar_lea.smem %s0, 56
  %s113 = sld [smem:[%s112]]
  %s114 = scalar_lea.smem %s0, 57
  %s115 = sld [smem:[%s114]]
  %s116 = scalar_lea.smem %s0, 58
  %s117 = sld [smem:[%s116]]
  %s118 = scalar_lea.smem %s0, 59
  %s119 = sld [smem:[%s118]]
  %s120 = scalar_lea.smem %s0, 60
  %s121 = sld [smem:[%s120]]
  %s122 = scalar_lea.smem %s0, 61
  %s123 = sld [smem:[%s122]]
  %s124 = scalar_lea.smem %s0, 62
  %s125 = sld [smem:[%s124]]
  %s126 = scalar_lea.smem %s0, 63
  %s127 = sld [smem:[%s126]]
  %s128 = scalar_lea.smem %s0, 64
  %s129 = sld [smem:[%s128]]
  %s130 = scalar_lea.smem %s0, 65
  %s131 = sld [smem:[%s130]]
  %s132 = scalar_lea.smem %s0, 66
  %s133 = sld [smem:[%s132]]
  %s134 = scalar_lea.smem %s0, 67
  %s135 = sld [smem:[%s134]]
  %s136 = scalar_lea.smem %s0, 68
  %s137 = sld [smem:[%s136]]
  %s138 = scalar_lea.smem %s0, 69
  %s139 = sld [smem:[%s138]]
  %s140 = scalar_lea.smem %s0, 70
  %s141 = sld [smem:[%s140]]
  %s142 = sld [smem:[#allocation0]]
  $region385: #{transformer_forward.1} parent=0
    _
  %s144 = ssub.s32 1, %s142
  %s145 = scalar_select 0, %s144, %s142
  $region1: #{transformer_forward.1} parent=0
    #allocation2 [shape = 'u8[512]{0}', space=vmem, size = 0x400, scoped, tag = 'input window, operand 36, single buffered']
    #allocation3 [shape = 's32[2]{0}', space=sflag, size = 0x8, scoped, tag = 'scoped memory for transformer_forward.1']
    #allocation4 [shape = 's32[2]{0}', space=sflag, size = 0x8, scoped, tag = 'scoped memory for transformer_forward.1']
    #allocation5 [shape = 'u8[512]{0}', space=vmem, size = 0x400, scoped, tag = 'input window, operand 37, single buffered']
    #allocation6 [shape = 's32[1]{0}', space=sflag, size = 0x4, scoped, tag = 'scoped memory for transformer_forward.1']
    #allocation7 [shape = 'u8[512]{0}', space=vmem, size = 0x400, scoped, tag = 'input window, operand 38, single buffered']
    #allocation8 [shape = 'u8[512]{0}', space=vmem, size = 0x400, scoped, tag = 'input window, operand 44, single buffered']
    #allocation9 [shape = 's32[1]{0}', space=sflag, size = 0x4, scoped, tag = 'scoped memory for transformer_forward.1']
    #allocation10 [shape = 'u8[512]{0}', space=vmem, size = 0x400, scoped, tag = 'input window, operand 45, single buffered']
    #allocation11 [shape = 'u8[512]{0}', space=vmem, size = 0x400, scoped, tag = 'input window, operand 46, single buffered']
    #allocation12 [shape = 's32[1]{0}', space=sflag, size = 0x4, scoped, tag = 'scoped memory for transformer_forward.1']
    #allocation13 [shape = 'u8[512]{0}', space=vmem, size = 0x400, scoped, tag = 'input window, operand 48, single buffered']
    #allocation14 [shape = 'u8[512]{0}', space=vmem, size = 0x400, scoped, tag = 'input window, operand 49, single buffered']
    #allocation15 [shape = 's32[1]{0}', space=sflag, size = 0x4, scoped, tag = 'scoped memory for transformer_forward.1']
    #allocation16 [shape = 'u8[512]{0}', space=vmem, size = 0x400, scoped, tag = 'input window, operand 50, single buffered']
    #allocation17 [shape = 'u8[512]{0}', space=vmem, size = 0x400, scoped, tag = 'input window, operand 51, single buffered']
    #allocation18 [shape = 's32[1]{0}', space=sflag, size = 0x4, scoped, tag = 'scoped memory for transformer_forward.1']
    #allocation19 [shape = 'u8[512]{0}', space=vmem, size = 0x400, scoped, tag = 'input window, operand 56, single buffered']
    #allocation20 [shape = 'u8[512]{0}', space=vmem, size = 0x400, scoped, tag = 'input window, operand 57, single buffered']
    #allocation21 [shape = 's32[1]{0}', space=sflag, size = 0x4, scoped, tag = 'scoped memory for transformer_forward.1']
    #allocation22 [shape = 'u8[512]{0}', space=vmem, size = 0x400, scoped, tag = 'input window, operand 58, single buffered']
    #allocation23 [shape = 'u8[512]{0}', space=vmem, size = 0x400, scoped, tag = 'input window, operand 60, single buffered']
    #allocation24 [shape = 's32[1]{0}', space=sflag, size = 0x4, scoped, tag = 'scoped memory for transformer_forward.1']
    #allocation25 [shape = 'u8[512]{0}', space=vmem, size = 0x400, scoped, tag = 'input window, operand 61, single buffered']
    #allocation26 [shape = 'u8[512]{0}', space=vmem, size = 0x400, scoped, tag = 'input window, operand 62, single buffered']
    #allocation27 [shape = 's32[1]{0}', space=sflag, size = 0x4, scoped, tag = 'scoped memory for transformer_forward.1']
    #allocation28 [shape = 'u8[512]{0}', space=vmem, size = 0x400, scoped, tag = 'input window, operand 63, single buffered']
    #allocation29 [shape = 'u8[512]{0}', space=vmem, size = 0x400, scoped, tag = 'input window, operand 68, single buffered']
    #allocation30 [shape = 's32[1]{0}', space=sflag, size = 0x4, scoped, tag = 'scoped memory for transformer_forward.1']
    #allocation31 [shape = 'u8[8192]{0}', space=vmem, size = 0x2000, scoped, tag = 'output window, operand 0']
    %146 = vsyncpa [#allocation3], 0
    %147 = vsyncpa [#allocation6], 0
    %148 = vsyncpa [#allocation9], 0
    %149 = vsyncpa [#allocation12], 0
    %150 = vsyncpa [#allocation15], 0
    %151 = vsyncpa [#allocation18], 0
    %152 = vsyncpa [#allocation21], 0
    %153 = vsyncpa [#allocation24], 0
    %154 = vsyncpa [#allocation27], 0
    %155 = vsyncpa [#allocation30], 0
    %156 = vsyncpa [#allocation4], 0
    %s157 = scalar_lea.sflag [#allocation4], 1
    %158 = vsyncpa %s157, 0
    loop: start=0, step=1, limit=4
    $region2: #{transformer_forward.1} parent=1 // loop_pre_header
      _
    $region3: #{transformer_forward.1} parent=1 // loop_header
      %s160 = sphi 0, %s164
      %p161 = scmp.ge.s32.totalorder %s160, 4
      %s170 = sphi 0, %s172
      %s173 = sphi 0, %s170
      %s174 = sphi 0, %s173
      %s190 = sphi 0, %s174
      %s196 = sphi 0, %s198
      %s199 = sphi 0, %s196
      %s200 = sphi 0, %s199
      %s216 = sphi 0, %s200
      %s222 = sphi 0, %s224
      %s225 = sphi 0, %s222
      %s226 = sphi 0, %s225
      %s242 = sphi 0, %s226
      %s248 = sphi 0, %s250
      %s251 = sphi 0, %s248
      %s252 = sphi 0, %s251
      %s268 = sphi 0, %s252
      %s272 = sphi 0, %s272
      %s274 = sphi 0, %s272
      %s275 = sphi 0, %s274
      %s289 = sphi 0, %s275
      %s293 = sphi 0, %s293
      %s295 = sphi 0, %s293
      %s296 = sphi 0, %s295
      %s310 = sphi 0, %s296
      %s314 = sphi 0, %s314
      %s316 = sphi 0, %s314
      %s317 = sphi 0, %s316
      %s331 = sphi 0, %s317
      %s335 = sphi 0, %s335
      %s337 = sphi 0, %s335
      %s338 = sphi 0, %s337
      %s352 = sphi 0, %s338
      %s356 = sphi 0, %s356
      %s358 = sphi 0, %s356
      %s359 = sphi 0, %s358
      %s373 = sphi 0, %s359
      %s377 = sphi 0, %s377
      %s379 = sphi 0, %s377
      %s380 = sphi 0, %s379
      %s394 = sphi 0, %s380
      %s398 = sphi 0, %s398
      %s400 = sphi 0, %s398
      %s401 = sphi 0, %s400
      %s415 = sphi 0, %s401
      %s419 = sphi 0, %s419
      %s421 = sphi 0, %s419
      %s422 = sphi 0, %s421
      %s436 = sphi 0, %s422
      %s440 = sphi 0, %s440
      %s442 = sphi 0, %s440
      %s443 = sphi 0, %s442
      %s457 = sphi 0, %s443
      %s461 = sphi 0, %s461
      %s463 = sphi 0, %s461
      %s464 = sphi 0, %s463
      %s478 = sphi 0, %s464
      %s482 = sphi 0, %s482
      %s484 = sphi 0, %s482
      %s485 = sphi 0, %s484
      %s499 = sphi 0, %s485
      %s503 = sphi 0, %s503
      %s505 = sphi 0, %s503
      %s506 = sphi 0, %s505
      %s520 = sphi 0, %s506
      %s524 = sphi 0, %s524
      %s526 = sphi 0, %s524
      %s527 = sphi 0, %s526
      %s541 = sphi 0, %s527
      %s545 = sphi 0, %s545
      %s547 = sphi 0, %s545
      %s548 = sphi 0, %s547
      %s562 = sphi 0, %s548
      %s566 = sphi 0, %s566
      %s568 = sphi 0, %s566
      %s569 = sphi 0, %s568
      %s583 = sphi 0, %s569
      %s587 = sphi 0, %s587
      %s589 = sphi 0, %s587
      %s590 = sphi 0, %s589
      %s604 = sphi 0, %s590
      %s608 = sphi 0, %s608
      %s610 = sphi 0, %s608
      %s611 = sphi 0, %s610
      %s625 = sphi 0, %s611
      %s629 = sphi 0, %s629
      %s631 = sphi 0, %s629
      %s632 = sphi 0, %s631
      %s646 = sphi 0, %s632
      %s650 = sphi 0, %s650
      %s652 = sphi 0, %s650
      %s653 = sphi 0, %s652
      %s667 = sphi 0, %s653
      %s671 = sphi 0, %s671
      %s673 = sphi 0, %s671
      %s674 = sphi 0, %s673
      %s688 = sphi 0, %s674
      %s692 = sphi 0, %s692
      %s694 = sphi 0, %s692
      %s695 = sphi 0, %s694
      %s709 = sphi 0, %s695
      %s713 = sphi 0, %s713
      %s715 = sphi 0, %s713
      %s716 = sphi 0, %s715
      %s730 = sphi 0, %s716
      %s734 = sphi 0, %s734
      %s736 = sphi 0, %s734
      %s737 = sphi 0, %s736
      %s751 = sphi 0, %s737
      %s755 = sphi 0, %s755
      %s757 = sphi 0, %s755
      %s758 = sphi 0, %s757
      %s772 = sphi 0, %s758
      %s776 = sphi 0, %s776
      %s778 = sphi 0, %s776
      %s779 = sphi 0, %s778
      %s793 = sphi 0, %s779
      %s797 = sphi 0, %s797
      %s799 = sphi 0, %s797
      %s800 = sphi 0, %s799
      %s814 = sphi 0, %s800
      %s818 = sphi 0, %s818
      %s820 = sphi 0, %s818
      %s821 = sphi 0, %s820
      %s835 = sphi 0, %s821
      %s839 = sphi 0, %s839
      %s841 = sphi 0, %s839
      %s842 = sphi 0, %s841
      %s856 = sphi 0, %s842
      %s860 = sphi 0, %s860
      %s862 = sphi 0, %s860
      %s863 = sphi 0, %s862
      %s877 = sphi 0, %s863
      %s881 = sphi 0, %s881
      %s883 = sphi 0, %s881
      %s884 = sphi 0, %s883
      %s898 = sphi 0, %s884
      %s902 = sphi 0, %s902
      %s904 = sphi 0, %s902
      %s905 = sphi 0, %s904
      %s919 = sphi 0, %s905
      %s923 = sphi 0, %s923
      %s925 = sphi 0, %s923
      %s926 = sphi 0, %s925
      %s940 = sphi 0, %s926
      %s944 = sphi 0, %s944
      %s946 = sphi 0, %s944
      %s947 = sphi 0, %s946
      %s961 = sphi 0, %s947
      %s965 = sphi 0, %s965
      %s967 = sphi 0, %s965
      %s968 = sphi 0, %s967
      %s982 = sphi 0, %s968
      %s986 = sphi 0, %s986
      %s988 = sphi 0, %s986
      %s989 = sphi 0, %s988
      %s1003 = sphi 0, %s989
      %s1007 = sphi 0, %s1007
      %s1009 = sphi 0, %s1007
      %s1010 = sphi 0, %s1009
      %s1024 = sphi 0, %s1010
      %s1028 = sphi 0, %s1028
      %s1030 = sphi 0, %s1028
      %s1031 = sphi 0, %s1030
      %s1045 = sphi 0, %s1031
      %s1049 = sphi 0, %s1049
      %s1051 = sphi 0, %s1049
      %s1052 = sphi 0, %s1051
      %s1066 = sphi 0, %s1052
      %s1070 = sphi 0, %s1070
      %s1072 = sphi 0, %s1070
      %s1073 = sphi 0, %s1072
      %s1087 = sphi 0, %s1073
      %s1091 = sphi 0, %s1091
      %s1093 = sphi 0, %s1091
      %s1094 = sphi 0, %s1093
      %s1108 = sphi 0, %s1094
      %s1112 = sphi 0, %s1112
      %s1114 = sphi 0, %s1112
      %s1115 = sphi 0, %s1114
      %s1129 = sphi 0, %s1115
      %s1133 = sphi 0, %s1133
      %s1135 = sphi 0, %s1133
      %s1136 = sphi 0, %s1135
      %s1150 = sphi 0, %s1136
      %s1154 = sphi 0, %s1154
      %s1156 = sphi 0, %s1154
      %s1157 = sphi 0, %s1156
      %s1171 = sphi 0, %s1157
      %s1175 = sphi 0, %s1175
      %s1177 = sphi 0, %s1175
      %s1178 = sphi 0, %s1177
      %s1192 = sphi 0, %s1178
      %s1196 = sphi 0, %s1196
      %s1198 = sphi 0, %s1196
      %s1199 = sphi 0, %s1198
      %s1213 = sphi 0, %s1199
      %s1217 = sphi 0, %s1217
      %s1219 = sphi 0, %s1217
      %s1220 = sphi 0, %s1219
      %s1234 = sphi 0, %s1220
      %s1238 = sphi 0, %s1238
      %s1240 = sphi 0, %s1238
      %s1241 = sphi 0, %s1240
      %s1255 = sphi 0, %s1241
      %s1259 = sphi 0, %s1259
      %s1261 = sphi 0, %s1259
      %s1262 = sphi 0, %s1261
      %s1276 = sphi 0, %s1262
      %s1280 = sphi 0, %s1280
      %s1282 = sphi 0, %s1280
      %s1283 = sphi 0, %s1282
      %s1297 = sphi 0, %s1283
      %s1301 = sphi 0, %s1301
      %s1303 = sphi 0, %s1301
      %s1304 = sphi 0, %s1303
      %s1318 = sphi 0, %s1304
      %s1322 = sphi 0, %s1322
      %s1324 = sphi 0, %s1322
      %s1325 = sphi 0, %s1324
      %s1339 = sphi 0, %s1325
      %s1343 = sphi 0, %s1343
      %s1345 = sphi 0, %s1343
      %s1346 = sphi 0, %s1345
      %s1360 = sphi 0, %s1346
      %s1364 = sphi 0, %s1364
      %s1366 = sphi 0, %s1364
      %s1367 = sphi 0, %s1366
      %s1381 = sphi 0, %s1367
      %s1385 = sphi 0, %s1385
      %s1387 = sphi 0, %s1385
      %s1388 = sphi 0, %s1387
      %s1402 = sphi 0, %s1388
      %s1406 = sphi 0, %s1406
      %s1408 = sphi 0, %s1406
      %s1409 = sphi 0, %s1408
      %s1423 = sphi 0, %s1409
      %s1427 = sphi 0, %s1427
      %s1429 = sphi 0, %s1427
      %s1430 = sphi 0, %s1429
      %s1444 = sphi 0, %s1430
      %s1448 = sphi 0, %s1448
      %s1450 = sphi 0, %s1448
      %s1451 = sphi 0, %s1450
      %s1465 = sphi 0, %s1451
      %s1469 = sphi 0, %s1469
      %s1471 = sphi 0, %s1469
      %s1472 = sphi 0, %s1471
      %s1486 = sphi 0, %s1472
      %s1490 = sphi 0, %s1490
      %s1492 = sphi 0, %s1490
      %s1493 = sphi 0, %s1492
      %s1507 = sphi 0, %s1493
      %s1511 = sphi 0, %s1511
      %s1513 = sphi 0, %s1511
      %s1514 = sphi 0, %s1513
      %s1528 = sphi 0, %s1514
      %s1532 = sphi 0, %s1532
      %s1534 = sphi 0, %s1532
      %s1535 = sphi 0, %s1534
      %s1549 = sphi 0, %s1535
      %s1553 = sphi 0, %s1553
      %s1555 = sphi 0, %s1553
      %s1556 = sphi 0, %s1555
      %s1570 = sphi 0, %s1556
      %s1574 = sphi 0, %s1574
      %s1576 = sphi 0, %s1574
      %s1577 = sphi 0, %s1576
      %s1591 = sphi 0, %s1577
      %s1595 = sphi 0, %s1595
      %s1597 = sphi 0, %s1595
      %s1598 = sphi 0, %s1597
      %s1612 = sphi 0, %s1598
      %s1616 = sphi 0, %s1616
      %s1618 = sphi 0, %s1616
      %s1619 = sphi 0, %s1618
      %s1633 = sphi 0, %s1619
      %s1637 = sphi 0, %s1637
      %s1639 = sphi 0, %s1637
      %s1640 = sphi 0, %s1639
      %s1654 = sphi 0, %s1640
      %s1660 = sphi 0, %s1662
      %s1663 = sphi 0, %s1660
      %s1664 = sphi 0, %s1663
      %s1680 = sphi 0, %s1664
    $region4: #{transformer_forward.1} parent=1 // loop_header_branch
      %163 = sbr.rel (%p161) target = $region8
    $region5: #{transformer_forward.1} parent=1 // loop_body
      %s165 = ssub.s32 %s160, 1
      %s166 = ssub.s32 %s160, 2
      %s167 = sadd.s32 %s160, 1
      %s168 = ssub.s32 %s160, %s167
      %p169 = scmp.eq.s32.totalorder %s168, 0
      %s171 = sadd.s32 %s170, 1
      %s172 = scalar_select %p169, %s170, %s171
      %p175 = pneg %p169
      %p176 = scmp.eq.s32.totalorder %s160, 1
      %p177 = por %p175, %p176
      %p178 = scmp.ne.s32.totalorder %s170, %s173
      %p179 = scmp.eq.s32.totalorder %s160, 0
      %p180 = por %p178, %p179
      %p181 = scmp.ne.s32.totalorder %s170, %s173
      %p182 = scmp.eq.s32.totalorder %s165, 1
      %p183 = por %p181, %p182
      %p184 = scmp.ne.s32.totalorder %s173, %s174
      %p185 = scmp.eq.s32.totalorder %s165, 0
      %p186 = por %p184, %p185
      %p187 = scmp.ne.s32.totalorder %s173, %s174
      %p188 = scmp.eq.s32.totalorder %s166, 1
      %p189 = por %p187, %p188
      %p191 = scmp.ne.s32.totalorder %s174, %s190
      %p192 = scmp.eq.s32.totalorder %s166, 0
      %p193 = por %p191, %p192
      %s194 = ssub.s32 %s160, %s167
      %p195 = scmp.eq.s32.totalorder %s194, 0
      %s197 = sadd.s32 %s196, 1
      %s198 = scalar_select %p195, %s196, %s197
      %p201 = pneg %p195
      %p202 = scmp.eq.s32.totalorder %s160, 1
      %p203 = por %p201, %p202
      %p204 = scmp.ne.s32.totalorder %s196, %s199
      %p205 = scmp.eq.s32.totalorder %s160, 0
      %p206 = por %p204, %p205
      %p207 = scmp.ne.s32.totalorder %s196, %s199
      %p208 = scmp.eq.s32.totalorder %s165, 1
      %p209 = por %p207, %p208
      %p210 = scmp.ne.s32.totalorder %s199, %s200
      %p211 = scmp.eq.s32.totalorder %s165, 0
      %p212 = por %p210, %p211
      %p213 = scmp.ne.s32.totalorder %s199, %s200
      %p214 = scmp.eq.s32.totalorder %s166, 1
      %p215 = por %p213, %p214
      %p217 = scmp.ne.s32.totalorder %s200, %s216
      %p218 = scmp.eq.s32.totalorder %s166, 0
      %p219 = por %p217, %p218
      %s220 = ssub.s32 %s160, %s167
      %p221 = scmp.eq.s32.totalorder %s220, 0
      %s223 = sadd.s32 %s222, 1
      %s224 = scalar_select %p221, %s222, %s223
      %p227 = pneg %p221
      %p228 = scmp.eq.s32.totalorder %s160, 1
      %p229 = por %p227, %p228
      %p230 = scmp.ne.s32.totalorder %s222, %s225
      %p231 = scmp.eq.s32.totalorder %s160, 0
      %p232 = por %p230, %p231
      %p233 = scmp.ne.s32.totalorder %s222, %s225
      %p234 = scmp.eq.s32.totalorder %s165, 1
      %p235 = por %p233, %p234
      %p236 = scmp.ne.s32.totalorder %s225, %s226
      %p237 = scmp.eq.s32.totalorder %s165, 0
      %p238 = por %p236, %p237
      %p239 = scmp.ne.s32.totalorder %s225, %s226
      %p240 = scmp.eq.s32.totalorder %s166, 1
      %p241 = por %p239, %p240
      %p243 = scmp.ne.s32.totalorder %s226, %s242
      %p244 = scmp.eq.s32.totalorder %s166, 0
      %p245 = por %p243, %p244
      %s246 = ssub.s32 %s160, %s167
      %p247 = scmp.eq.s32.totalorder %s246, 0
      %s249 = sadd.s32 %s248, 1
      %s250 = scalar_select %p247, %s248, %s249
      %p253 = pneg %p247
      %p254 = scmp.eq.s32.totalorder %s160, 1
      %p255 = por %p253, %p254
      %p256 = scmp.ne.s32.totalorder %s248, %s251
      %p257 = scmp.eq.s32.totalorder %s160, 0
      %p258 = por %p256, %p257
      %p259 = scmp.ne.s32.totalorder %s248, %s251
      %p260 = scmp.eq.s32.totalorder %s165, 1
      %p261 = por %p259, %p260
      %p262 = scmp.ne.s32.totalorder %s251, %s252
      %p263 = scmp.eq.s32.totalorder %s165, 0
      %p264 = por %p262, %p263
      %p265 = scmp.ne.s32.totalorder %s251, %s252
      %p266 = scmp.eq.s32.totalorder %s166, 1
      %p267 = por %p265, %p266
      %p269 = scmp.ne.s32.totalorder %s252, %s268
      %p270 = scmp.eq.s32.totalorder %s166, 0
      %p271 = por %p269, %p270
      %s273 = sadd.s32 %s272, 1
      %p276 = scmp.eq.s32.totalorder %s160, 1
      %p277 = scmp.ne.s32.totalorder %s272, %s274
      %p278 = scmp.eq.s32.totalorder %s160, 0
      %p279 = por %p277, %p278
      %p280 = scmp.ne.s32.totalorder %s272, %s274
      %p281 = scmp.eq.s32.totalorder %s165, 1
      %p282 = por %p280, %p281
      %p283 = scmp.ne.s32.totalorder %s274, %s275
      %p284 = scmp.eq.s32.totalorder %s165, 0
      %p285 = por %p283, %p284
      %p286 = scmp.ne.s32.totalorder %s274, %s275
      %p287 = scmp.eq.s32.totalorder %s166, 1
      %p288 = por %p286, %p287
      %p290 = scmp.ne.s32.totalorder %s275, %s289
      %p291 = scmp.eq.s32.totalorder %s166, 0
      %p292 = por %p290, %p291
      %s294 = sadd.s32 %s293, 1
      %p297 = scmp.eq.s32.totalorder %s160, 1
      %p298 = scmp.ne.s32.totalorder %s293, %s295
      %p299 = scmp.eq.s32.totalorder %s160, 0
      %p300 = por %p298, %p299
      %p301 = scmp.ne.s32.totalorder %s293, %s295
      %p302 = scmp.eq.s32.totalorder %s165, 1
      %p303 = por %p301, %p302
      %p304 = scmp.ne.s32.totalorder %s295, %s296
      %p305 = scmp.eq.s32.totalorder %s165, 0
      %p306 = por %p304, %p305
      %p307 = scmp.ne.s32.totalorder %s295, %s296
      %p308 = scmp.eq.s32.totalorder %s166, 1
      %p309 = por %p307, %p308
      %p311 = scmp.ne.s32.totalorder %s296, %s310
      %p312 = scmp.eq.s32.totalorder %s166, 0
      %p313 = por %p311, %p312
      %s315 = sadd.s32 %s314, 1
      %p318 = scmp.eq.s32.totalorder %s160, 1
      %p319 = scmp.ne.s32.totalorder %s314, %s316
      %p320 = scmp.eq.s32.totalorder %s160, 0
      %p321 = por %p319, %p320
      %p322 = scmp.ne.s32.totalorder %s314, %s316
      %p323 = scmp.eq.s32.totalorder %s165, 1
      %p324 = por %p322, %p323
      %p325 = scmp.ne.s32.totalorder %s316, %s317
      %p326 = scmp.eq.s32.totalorder %s165, 0
      %p327 = por %p325, %p326
      %p328 = scmp.ne.s32.totalorder %s316, %s317
      %p329 = scmp.eq.s32.totalorder %s166, 1
      %p330 = por %p328, %p329
      %p332 = scmp.ne.s32.totalorder %s317, %s331
      %p333 = scmp.eq.s32.totalorder %s166, 0
      %p334 = por %p332, %p333
      %s336 = sadd.s32 %s335, 1
      %p339 = scmp.eq.s32.totalorder %s160, 1
      %p340 = scmp.ne.s32.totalorder %s335, %s337
      %p341 = scmp.eq.s32.totalorder %s160, 0
      %p342 = por %p340, %p341
      %p343 = scmp.ne.s32.totalorder %s335, %s337
      %p344 = scmp.eq.s32.totalorder %s165, 1
      %p345 = por %p343, %p344
      %p346 = scmp.ne.s32.totalorder %s337, %s338
      %p347 = scmp.eq.s32.totalorder %s165, 0
      %p348 = por %p346, %p347
      %p349 = scmp.ne.s32.totalorder %s337, %s338
      %p350 = scmp.eq.s32.totalorder %s166, 1
      %p351 = por %p349, %p350
      %p353 = scmp.ne.s32.totalorder %s338, %s352
      %p354 = scmp.eq.s32.totalorder %s166, 0
      %p355 = por %p353, %p354
      %s357 = sadd.s32 %s356, 1
      %p360 = scmp.eq.s32.totalorder %s160, 1
      %p361 = scmp.ne.s32.totalorder %s356, %s358
      %p362 = scmp.eq.s32.totalorder %s160, 0
      %p363 = por %p361, %p362
      %p364 = scmp.ne.s32.totalorder %s356, %s358
      %p365 = scmp.eq.s32.totalorder %s165, 1
      %p366 = por %p364, %p365
      %p367 = scmp.ne.s32.totalorder %s358, %s359
      %p368 = scmp.eq.s32.totalorder %s165, 0
      %p369 = por %p367, %p368
      %p370 = scmp.ne.s32.totalorder %s358, %s359
      %p371 = scmp.eq.s32.totalorder %s166, 1
      %p372 = por %p370, %p371
      %p374 = scmp.ne.s32.totalorder %s359, %s373
      %p375 = scmp.eq.s32.totalorder %s166, 0
      %p376 = por %p374, %p375
      %s378 = sadd.s32 %s377, 1
      %p381 = scmp.eq.s32.totalorder %s160, 1
      %p382 = scmp.ne.s32.totalorder %s377, %s379
      %p383 = scmp.eq.s32.totalorder %s160, 0
      %p384 = por %p382, %p383
      %p385 = scmp.ne.s32.totalorder %s377, %s379
      %p386 = scmp.eq.s32.totalorder %s165, 1
      %p387 = por %p385, %p386
      %p388 = scmp.ne.s32.totalorder %s379, %s380
      %p389 = scmp.eq.s32.totalorder %s165, 0
      %p390 = por %p388, %p389
      %p391 = scmp.ne.s32.totalorder %s379, %s380
      %p392 = scmp.eq.s32.totalorder %s166, 1
      %p393 = por %p391, %p392
      %p395 = scmp.ne.s32.totalorder %s380, %s394
      %p396 = scmp.eq.s32.totalorder %s166, 0
      %p397 = por %p395, %p396
      %s399 = sadd.s32 %s398, 1
      %p402 = scmp.eq.s32.totalorder %s160, 1
      %p403 = scmp.ne.s32.totalorder %s398, %s400
      %p404 = scmp.eq.s32.totalorder %s160, 0
      %p405 = por %p403, %p404
      %p406 = scmp.ne.s32.totalorder %s398, %s400
      %p407 = scmp.eq.s32.totalorder %s165, 1
      %p408 = por %p406, %p407
      %p409 = scmp.ne.s32.totalorder %s400, %s401
      %p410 = scmp.eq.s32.totalorder %s165, 0
      %p411 = por %p409, %p410
      %p412 = scmp.ne.s32.totalorder %s400, %s401
      %p413 = scmp.eq.s32.totalorder %s166, 1
      %p414 = por %p412, %p413
      %p416 = scmp.ne.s32.totalorder %s401, %s415
      %p417 = scmp.eq.s32.totalorder %s166, 0
      %p418 = por %p416, %p417
      %s420 = sadd.s32 %s419, 1
      %p423 = scmp.eq.s32.totalorder %s160, 1
      %p424 = scmp.ne.s32.totalorder %s419, %s421
      %p425 = scmp.eq.s32.totalorder %s160, 0
      %p426 = por %p424, %p425
      %p427 = scmp.ne.s32.totalorder %s419, %s421
      %p428 = scmp.eq.s32.totalorder %s165, 1
      %p429 = por %p427, %p428
      %p430 = scmp.ne.s32.totalorder %s421, %s422
      %p431 = scmp.eq.s32.totalorder %s165, 0
      %p432 = por %p430, %p431
      %p433 = scmp.ne.s32.totalorder %s421, %s422
      %p434 = scmp.eq.s32.totalorder %s166, 1
      %p435 = por %p433, %p434
      %p437 = scmp.ne.s32.totalorder %s422, %s436
      %p438 = scmp.eq.s32.totalorder %s166, 0
      %p439 = por %p437, %p438
      %s441 = sadd.s32 %s440, 1
      %p444 = scmp.eq.s32.totalorder %s160, 1
      %p445 = scmp.ne.s32.totalorder %s440, %s442
      %p446 = scmp.eq.s32.totalorder %s160, 0
      %p447 = por %p445, %p446
      %p448 = scmp.ne.s32.totalorder %s440, %s442
      %p449 = scmp.eq.s32.totalorder %s165, 1
      %p450 = por %p448, %p449
      %p451 = scmp.ne.s32.totalorder %s442, %s443
      %p452 = scmp.eq.s32.totalorder %s165, 0
      %p453 = por %p451, %p452
      %p454 = scmp.ne.s32.totalorder %s442, %s443
      %p455 = scmp.eq.s32.totalorder %s166, 1
      %p456 = por %p454, %p455
      %p458 = scmp.ne.s32.totalorder %s443, %s457
      %p459 = scmp.eq.s32.totalorder %s166, 0
      %p460 = por %p458, %p459
      %s462 = sadd.s32 %s461, 1
      %p465 = scmp.eq.s32.totalorder %s160, 1
      %p466 = scmp.ne.s32.totalorder %s461, %s463
      %p467 = scmp.eq.s32.totalorder %s160, 0
      %p468 = por %p466, %p467
      %p469 = scmp.ne.s32.totalorder %s461, %s463
      %p470 = scmp.eq.s32.totalorder %s165, 1
      %p471 = por %p469, %p470
      %p472 = scmp.ne.s32.totalorder %s463, %s464
      %p473 = scmp.eq.s32.totalorder %s165, 0
      %p474 = por %p472, %p473
      %p475 = scmp.ne.s32.totalorder %s463, %s464
      %p476 = scmp.eq.s32.totalorder %s166, 1
      %p477 = por %p475, %p476
      %p479 = scmp.ne.s32.totalorder %s464, %s478
      %p480 = scmp.eq.s32.totalorder %s166, 0
      %p481 = por %p479, %p480
      %s483 = sadd.s32 %s482, 1
      %p486 = scmp.eq.s32.totalorder %s160, 1
      %p487 = scmp.ne.s32.totalorder %s482, %s484
      %p488 = scmp.eq.s32.totalorder %s160, 0
      %p489 = por %p487, %p488
      %p490 = scmp.ne.s32.totalorder %s482, %s484
      %p491 = scmp.eq.s32.totalorder %s165, 1
      %p492 = por %p490, %p491
      %p493 = scmp.ne.s32.totalorder %s484, %s485
      %p494 = scmp.eq.s32.totalorder %s165, 0
      %p495 = por %p493, %p494
      %p496 = scmp.ne.s32.totalorder %s484, %s485
      %p497 = scmp.eq.s32.totalorder %s166, 1
      %p498 = por %p496, %p497
      %p500 = scmp.ne.s32.totalorder %s485, %s499
      %p501 = scmp.eq.s32.totalorder %s166, 0
      %p502 = por %p500, %p501
      %s504 = sadd.s32 %s503, 1
      %p507 = scmp.eq.s32.totalorder %s160, 1
      %p508 = scmp.ne.s32.totalorder %s503, %s505
      %p509 = scmp.eq.s32.totalorder %s160, 0
      %p510 = por %p508, %p509
      %p511 = scmp.ne.s32.totalorder %s503, %s505
      %p512 = scmp.eq.s32.totalorder %s165, 1
      %p513 = por %p511, %p512
      %p514 = scmp.ne.s32.totalorder %s505, %s506
      %p515 = scmp.eq.s32.totalorder %s165, 0
      %p516 = por %p514, %p515
      %p517 = scmp.ne.s32.totalorder %s505, %s506
      %p518 = scmp.eq.s32.totalorder %s166, 1
      %p519 = por %p517, %p518
      %p521 = scmp.ne.s32.totalorder %s506, %s520
      %p522 = scmp.eq.s32.totalorder %s166, 0
      %p523 = por %p521, %p522
      %s525 = sadd.s32 %s524, 1
      %p528 = scmp.eq.s32.totalorder %s160, 1
      %p529 = scmp.ne.s32.totalorder %s524, %s526
      %p530 = scmp.eq.s32.totalorder %s160, 0
      %p531 = por %p529, %p530
      %p532 = scmp.ne.s32.totalorder %s524, %s526
      %p533 = scmp.eq.s32.totalorder %s165, 1
      %p534 = por %p532, %p533
      %p535 = scmp.ne.s32.totalorder %s526, %s527
      %p536 = scmp.eq.s32.totalorder %s165, 0
      %p537 = por %p535, %p536
      %p538 = scmp.ne.s32.totalorder %s526, %s527
      %p539 = scmp.eq.s32.totalorder %s166, 1
      %p540 = por %p538, %p539
      %p542 = scmp.ne.s32.totalorder %s527, %s541
      %p543 = scmp.eq.s32.totalorder %s166, 0
      %p544 = por %p542, %p543
      %s546 = sadd.s32 %s545, 1
      %p549 = scmp.eq.s32.totalorder %s160, 1
      %p550 = scmp.ne.s32.totalorder %s545, %s547
      %p551 = scmp.eq.s32.totalorder %s160, 0
      %p552 = por %p550, %p551
      %p553 = scmp.ne.s32.totalorder %s545, %s547
      %p554 = scmp.eq.s32.totalorder %s165, 1
      %p555 = por %p553, %p554
      %p556 = scmp.ne.s32.totalorder %s547, %s548
      %p557 = scmp.eq.s32.totalorder %s165, 0
      %p558 = por %p556, %p557
      %p559 = scmp.ne.s32.totalorder %s547, %s548
      %p560 = scmp.eq.s32.totalorder %s166, 1
      %p561 = por %p559, %p560
      %p563 = scmp.ne.s32.totalorder %s548, %s562
      %p564 = scmp.eq.s32.totalorder %s166, 0
      %p565 = por %p563, %p564
      %s567 = sadd.s32 %s566, 1
      %p570 = scmp.eq.s32.totalorder %s160, 1
      %p571 = scmp.ne.s32.totalorder %s566, %s568
      %p572 = scmp.eq.s32.totalorder %s160, 0
      %p573 = por %p571, %p572
      %p574 = scmp.ne.s32.totalorder %s566, %s568
      %p575 = scmp.eq.s32.totalorder %s165, 1
      %p576 = por %p574, %p575
      %p577 = scmp.ne.s32.totalorder %s568, %s569
      %p578 = scmp.eq.s32.totalorder %s165, 0
      %p579 = por %p577, %p578
      %p580 = scmp.ne.s32.totalorder %s568, %s569
      %p581 = scmp.eq.s32.totalorder %s166, 1
      %p582 = por %p580, %p581
      %p584 = scmp.ne.s32.totalorder %s569, %s583
      %p585 = scmp.eq.s32.totalorder %s166, 0
      %p586 = por %p584, %p585
      %s588 = sadd.s32 %s587, 1
      %p591 = scmp.eq.s32.totalorder %s160, 1
      %p592 = scmp.ne.s32.totalorder %s587, %s589
      %p593 = scmp.eq.s32.totalorder %s160, 0
      %p594 = por %p592, %p593
      %p595 = scmp.ne.s32.totalorder %s587, %s589
      %p596 = scmp.eq.s32.totalorder %s165, 1
      %p597 = por %p595, %p596
      %p598 = scmp.ne.s32.totalorder %s589, %s590
      %p599 = scmp.eq.s32.totalorder %s165, 0
      %p600 = por %p598, %p599
      %p601 = scmp.ne.s32.totalorder %s589, %s590
      %p602 = scmp.eq.s32.totalorder %s166, 1
      %p603 = por %p601, %p602
      %p605 = scmp.ne.s32.totalorder %s590, %s604
      %p606 = scmp.eq.s32.totalorder %s166, 0
      %p607 = por %p605, %p606
      %s609 = sadd.s32 %s608, 1
      %p612 = scmp.eq.s32.totalorder %s160, 1
      %p613 = scmp.ne.s32.totalorder %s608, %s610
      %p614 = scmp.eq.s32.totalorder %s160, 0
      %p615 = por %p613, %p614
      %p616 = scmp.ne.s32.totalorder %s608, %s610
      %p617 = scmp.eq.s32.totalorder %s165, 1
      %p618 = por %p616, %p617
      %p619 = scmp.ne.s32.totalorder %s610, %s611
      %p620 = scmp.eq.s32.totalorder %s165, 0
      %p621 = por %p619, %p620
      %p622 = scmp.ne.s32.totalorder %s610, %s611
      %p623 = scmp.eq.s32.totalorder %s166, 1
      %p624 = por %p622, %p623
      %p626 = scmp.ne.s32.totalorder %s611, %s625
      %p627 = scmp.eq.s32.totalorder %s166, 0
      %p628 = por %p626, %p627
      %s630 = sadd.s32 %s629, 1
      %p633 = scmp.eq.s32.totalorder %s160, 1
      %p634 = scmp.ne.s32.totalorder %s629, %s631
      %p635 = scmp.eq.s32.totalorder %s160, 0
      %p636 = por %p634, %p635
      %p637 = scmp.ne.s32.totalorder %s629, %s631
      %p638 = scmp.eq.s32.totalorder %s165, 1
      %p639 = por %p637, %p638
      %p640 = scmp.ne.s32.totalorder %s631, %s632
      %p641 = scmp.eq.s32.totalorder %s165, 0
      %p642 = por %p640, %p641
      %p643 = scmp.ne.s32.totalorder %s631, %s632
      %p644 = scmp.eq.s32.totalorder %s166, 1
      %p645 = por %p643, %p644
      %p647 = scmp.ne.s32.totalorder %s632, %s646
      %p648 = scmp.eq.s32.totalorder %s166, 0
      %p649 = por %p647, %p648
      %s651 = sadd.s32 %s650, 1
      %p654 = scmp.eq.s32.totalorder %s160, 1
      %p655 = scmp.ne.s32.totalorder %s650, %s652
      %p656 = scmp.eq.s32.totalorder %s160, 0
      %p657 = por %p655, %p656
      %p658 = scmp.ne.s32.totalorder %s650, %s652
      %p659 = scmp.eq.s32.totalorder %s165, 1
      %p660 = por %p658, %p659
      %p661 = scmp.ne.s32.totalorder %s652, %s653
      %p662 = scmp.eq.s32.totalorder %s165, 0
      %p663 = por %p661, %p662
      %p664 = scmp.ne.s32.totalorder %s652, %s653
      %p665 = scmp.eq.s32.totalorder %s166, 1
      %p666 = por %p664, %p665
      %p668 = scmp.ne.s32.totalorder %s653, %s667
      %p669 = scmp.eq.s32.totalorder %s166, 0
      %p670 = por %p668, %p669
      %s672 = sadd.s32 %s671, 1
      %p675 = scmp.eq.s32.totalorder %s160, 1
      %p676 = scmp.ne.s32.totalorder %s671, %s673
      %p677 = scmp.eq.s32.totalorder %s160, 0
      %p678 = por %p676, %p677
      %p679 = scmp.ne.s32.totalorder %s671, %s673
      %p680 = scmp.eq.s32.totalorder %s165, 1
      %p681 = por %p679, %p680
      %p682 = scmp.ne.s32.totalorder %s673, %s674
      %p683 = scmp.eq.s32.totalorder %s165, 0
      %p684 = por %p682, %p683
      %p685 = scmp.ne.s32.totalorder %s673, %s674
      %p686 = scmp.eq.s32.totalorder %s166, 1
      %p687 = por %p685, %p686
      %p689 = scmp.ne.s32.totalorder %s674, %s688
      %p690 = scmp.eq.s32.totalorder %s166, 0
      %p691 = por %p689, %p690
      %s693 = sadd.s32 %s692, 1
      %p696 = scmp.eq.s32.totalorder %s160, 1
      %p697 = scmp.ne.s32.totalorder %s692, %s694
      %p698 = scmp.eq.s32.totalorder %s160, 0
      %p699 = por %p697, %p698
      %p700 = scmp.ne.s32.totalorder %s692, %s694
      %p701 = scmp.eq.s32.totalorder %s165, 1
      %p702 = por %p700, %p701
      %p703 = scmp.ne.s32.totalorder %s694, %s695
      %p704 = scmp.eq.s32.totalorder %s165, 0
      %p705 = por %p703, %p704
      %p706 = scmp.ne.s32.totalorder %s694, %s695
      %p707 = scmp.eq.s32.totalorder %s166, 1
      %p708 = por %p706, %p707
      %p710 = scmp.ne.s32.totalorder %s695, %s709
      %p711 = scmp.eq.s32.totalorder %s166, 0
      %p712 = por %p710, %p711
      %s714 = sadd.s32 %s713, 1
      %p717 = scmp.eq.s32.totalorder %s160, 1
      %p718 = scmp.ne.s32.totalorder %s713, %s715
      %p719 = scmp.eq.s32.totalorder %s160, 0
      %p720 = por %p718, %p719
      %p721 = scmp.ne.s32.totalorder %s713, %s715
      %p722 = scmp.eq.s32.totalorder %s165, 1
      %p723 = por %p721, %p722
      %p724 = scmp.ne.s32.totalorder %s715, %s716
      %p725 = scmp.eq.s32.totalorder %s165, 0
      %p726 = por %p724, %p725
      %p727 = scmp.ne.s32.totalorder %s715, %s716
      %p728 = scmp.eq.s32.totalorder %s166, 1
      %p729 = por %p727, %p728
      %p731 = scmp.ne.s32.totalorder %s716, %s730
      %p732 = scmp.eq.s32.totalorder %s166, 0
      %p733 = por %p731, %p732
      %s735 = sadd.s32 %s734, 1
      %p738 = scmp.eq.s32.totalorder %s160, 1
      %p739 = scmp.ne.s32.totalorder %s734, %s736
      %p740 = scmp.eq.s32.totalorder %s160, 0
      %p741 = por %p739, %p740
      %p742 = scmp.ne.s32.totalorder %s734, %s736
      %p743 = scmp.eq.s32.totalorder %s165, 1
      %p744 = por %p742, %p743
      %p745 = scmp.ne.s32.totalorder %s736, %s737
      %p746 = scmp.eq.s32.totalorder %s165, 0
      %p747 = por %p745, %p746
      %p748 = scmp.ne.s32.totalorder %s736, %s737
      %p749 = scmp.eq.s32.totalorder %s166, 1
      %p750 = por %p748, %p749
      %p752 = scmp.ne.s32.totalorder %s737, %s751
      %p753 = scmp.eq.s32.totalorder %s166, 0
      %p754 = por %p752, %p753
      %s756 = sadd.s32 %s755, 1
      %p759 = scmp.eq.s32.totalorder %s160, 1
      %p760 = scmp.ne.s32.totalorder %s755, %s757
      %p761 = scmp.eq.s32.totalorder %s160, 0
      %p762 = por %p760, %p761
      %p763 = scmp.ne.s32.totalorder %s755, %s757
      %p764 = scmp.eq.s32.totalorder %s165, 1
      %p765 = por %p763, %p764
      %p766 = scmp.ne.s32.totalorder %s757, %s758
      %p767 = scmp.eq.s32.totalorder %s165, 0
      %p768 = por %p766, %p767
      %p769 = scmp.ne.s32.totalorder %s757, %s758
      %p770 = scmp.eq.s32.totalorder %s166, 1
      %p771 = por %p769, %p770
      %p773 = scmp.ne.s32.totalorder %s758, %s772
      %p774 = scmp.eq.s32.totalorder %s166, 0
      %p775 = por %p773, %p774
      %s777 = sadd.s32 %s776, 1
      %p780 = scmp.eq.s32.totalorder %s160, 1
      %p781 = scmp.ne.s32.totalorder %s776, %s778
      %p782 = scmp.eq.s32.totalorder %s160, 0
      %p783 = por %p781, %p782
      %p784 = scmp.ne.s32.totalorder %s776, %s778
      %p785 = scmp.eq.s32.totalorder %s165, 1
      %p786 = por %p784, %p785
      %p787 = scmp.ne.s32.totalorder %s778, %s779
      %p788 = scmp.eq.s32.totalorder %s165, 0
      %p789 = por %p787, %p788
      %p790 = scmp.ne.s32.totalorder %s778, %s779
      %p791 = scmp.eq.s32.totalorder %s166, 1
      %p792 = por %p790, %p791
      %p794 = scmp.ne.s32.totalorder %s779, %s793
      %p795 = scmp.eq.s32.totalorder %s166, 0
      %p796 = por %p794, %p795
      %s798 = sadd.s32 %s797, 1
      %p801 = scmp.eq.s32.totalorder %s160, 1
      %p802 = scmp.ne.s32.totalorder %s797, %s799
      %p803 = scmp.eq.s32.totalorder %s160, 0
      %p804 = por %p802, %p803
      %p805 = scmp.ne.s32.totalorder %s797, %s799
      %p806 = scmp.eq.s32.totalorder %s165, 1
      %p807 = por %p805, %p806
      %p808 = scmp.ne.s32.totalorder %s799, %s800
      %p809 = scmp.eq.s32.totalorder %s165, 0
      %p810 = por %p808, %p809
      %p811 = scmp.ne.s32.totalorder %s799, %s800
      %p812 = scmp.eq.s32.totalorder %s166, 1
      %p813 = por %p811, %p812
      %p815 = scmp.ne.s32.totalorder %s800, %s814
      %p816 = scmp.eq.s32.totalorder %s166, 0
      %p817 = por %p815, %p816
      %s819 = sadd.s32 %s818, 1
      %p822 = scmp.eq.s32.totalorder %s160, 1
      %p823 = scmp.ne.s32.totalorder %s818, %s820
      %p824 = scmp.eq.s32.totalorder %s160, 0
      %p825 = por %p823, %p824
      %p826 = scmp.ne.s32.totalorder %s818, %s820
      %p827 = scmp.eq.s32.totalorder %s165, 1
      %p828 = por %p826, %p827
      %p829 = scmp.ne.s32.totalorder %s820, %s821
      %p830 = scmp.eq.s32.totalorder %s165, 0
      %p831 = por %p829, %p830
      %p832 = scmp.ne.s32.totalorder %s820, %s821
      %p833 = scmp.eq.s32.totalorder %s166, 1
      %p834 = por %p832, %p833
      %p836 = scmp.ne.s32.totalorder %s821, %s835
      %p837 = scmp.eq.s32.totalorder %s166, 0
      %p838 = por %p836, %p837
      %s840 = sadd.s32 %s839, 1
      %p843 = scmp.eq.s32.totalorder %s160, 1
      %p844 = scmp.ne.s32.totalorder %s839, %s841
      %p845 = scmp.eq.s32.totalorder %s160, 0
      %p846 = por %p844, %p845
      %p847 = scmp.ne.s32.totalorder %s839, %s841
      %p848 = scmp.eq.s32.totalorder %s165, 1
      %p849 = por %p847, %p848
      %p850 = scmp.ne.s32.totalorder %s841, %s842
      %p851 = scmp.eq.s32.totalorder %s165, 0
      %p852 = por %p850, %p851
      %p853 = scmp.ne.s32.totalorder %s841, %s842
      %p854 = scmp.eq.s32.totalorder %s166, 1
      %p855 = por %p853, %p854
      %p857 = scmp.ne.s32.totalorder %s842, %s856
      %p858 = scmp.eq.s32.totalorder %s166, 0
      %p859 = por %p857, %p858
      %s861 = sadd.s32 %s860, 1
      %p864 = scmp.eq.s32.totalorder %s160, 1
      %p865 = scmp.ne.s32.totalorder %s860, %s862
      %p866 = scmp.eq.s32.totalorder %s160, 0
      %p867 = por %p865, %p866
      %p868 = scmp.ne.s32.totalorder %s860, %s862
      %p869 = scmp.eq.s32.totalorder %s165, 1
      %p870 = por %p868, %p869
      %p871 = scmp.ne.s32.totalorder %s862, %s863
      %p872 = scmp.eq.s32.totalorder %s165, 0
      %p873 = por %p871, %p872
      %p874 = scmp.ne.s32.totalorder %s862, %s863
      %p875 = scmp.eq.s32.totalorder %s166, 1
      %p876 = por %p874, %p875
      %p878 = scmp.ne.s32.totalorder %s863, %s877
      %p879 = scmp.eq.s32.totalorder %s166, 0
      %p880 = por %p878, %p879
      %s882 = sadd.s32 %s881, 1
      %p885 = scmp.eq.s32.totalorder %s160, 1
      %p886 = scmp.ne.s32.totalorder %s881, %s883
      %p887 = scmp.eq.s32.totalorder %s160, 0
      %p888 = por %p886, %p887
      %p889 = scmp.ne.s32.totalorder %s881, %s883
      %p890 = scmp.eq.s32.totalorder %s165, 1
      %p891 = por %p889, %p890
      %p892 = scmp.ne.s32.totalorder %s883, %s884
      %p893 = scmp.eq.s32.totalorder %s165, 0
      %p894 = por %p892, %p893
      %p895 = scmp.ne.s32.totalorder %s883, %s884
      %p896 = scmp.eq.s32.totalorder %s166, 1
      %p897 = por %p895, %p896
      %p899 = scmp.ne.s32.totalorder %s884, %s898
      %p900 = scmp.eq.s32.totalorder %s166, 0
      %p901 = por %p899, %p900
      %s903 = sadd.s32 %s902, 1
      %p906 = scmp.eq.s32.totalorder %s160, 1
      %p907 = scmp.ne.s32.totalorder %s902, %s904
      %p908 = scmp.eq.s32.totalorder %s160, 0
      %p909 = por %p907, %p908
      %p910 = scmp.ne.s32.totalorder %s902, %s904
      %p911 = scmp.eq.s32.totalorder %s165, 1
      %p912 = por %p910, %p911
      %p913 = scmp.ne.s32.totalorder %s904, %s905
      %p914 = scmp.eq.s32.totalorder %s165, 0
      %p915 = por %p913, %p914
      %p916 = scmp.ne.s32.totalorder %s904, %s905
      %p917 = scmp.eq.s32.totalorder %s166, 1
      %p918 = por %p916, %p917
      %p920 = scmp.ne.s32.totalorder %s905, %s919
      %p921 = scmp.eq.s32.totalorder %s166, 0
      %p922 = por %p920, %p921
      %s924 = sadd.s32 %s923, 1
      %p927 = scmp.eq.s32.totalorder %s160, 1
      %p928 = scmp.ne.s32.totalorder %s923, %s925
      %p929 = scmp.eq.s32.totalorder %s160, 0
      %p930 = por %p928, %p929
      %p931 = scmp.ne.s32.totalorder %s923, %s925
      %p932 = scmp.eq.s32.totalorder %s165, 1
      %p933 = por %p931, %p932
      %p934 = scmp.ne.s32.totalorder %s925, %s926
      %p935 = scmp.eq.s32.totalorder %s165, 0
      %p936 = por %p934, %p935
      %p937 = scmp.ne.s32.totalorder %s925, %s926
      %p938 = scmp.eq.s32.totalorder %s166, 1
      %p939 = por %p937, %p938
      %p941 = scmp.ne.s32.totalorder %s926, %s940
      %p942 = scmp.eq.s32.totalorder %s166, 0
      %p943 = por %p941, %p942
      %s945 = sadd.s32 %s944, 1
      %p948 = scmp.eq.s32.totalorder %s160, 1
      %p949 = scmp.ne.s32.totalorder %s944, %s946
      %p950 = scmp.eq.s32.totalorder %s160, 0
      %p951 = por %p949, %p950
      %p952 = scmp.ne.s32.totalorder %s944, %s946
      %p953 = scmp.eq.s32.totalorder %s165, 1
      %p954 = por %p952, %p953
      %p955 = scmp.ne.s32.totalorder %s946, %s947
      %p956 = scmp.eq.s32.totalorder %s165, 0
      %p957 = por %p955, %p956
      %p958 = scmp.ne.s32.totalorder %s946, %s947
      %p959 = scmp.eq.s32.totalorder %s166, 1
      %p960 = por %p958, %p959
      %p962 = scmp.ne.s32.totalorder %s947, %s961
      %p963 = scmp.eq.s32.totalorder %s166, 0
      %p964 = por %p962, %p963
      %s966 = sadd.s32 %s965, 1
      %p969 = scmp.eq.s32.totalorder %s160, 1
      %p970 = scmp.ne.s32.totalorder %s965, %s967
      %p971 = scmp.eq.s32.totalorder %s160, 0
      %p972 = por %p970, %p971
      %p973 = scmp.ne.s32.totalorder %s965, %s967
      %p974 = scmp.eq.s32.totalorder %s165, 1
      %p975 = por %p973, %p974
      %p976 = scmp.ne.s32.totalorder %s967, %s968
      %p977 = scmp.eq.s32.totalorder %s165, 0
      %p978 = por %p976, %p977
      %p979 = scmp.ne.s32.totalorder %s967, %s968
      %p980 = scmp.eq.s32.totalorder %s166, 1
      %p981 = por %p979, %p980
      %p983 = scmp.ne.s32.totalorder %s968, %s982
      %p984 = scmp.eq.s32.totalorder %s166, 0
      %p985 = por %p983, %p984
      %s987 = sadd.s32 %s986, 1
      %p990 = scmp.eq.s32.totalorder %s160, 1
      %p991 = scmp.ne.s32.totalorder %s986, %s988
      %p992 = scmp.eq.s32.totalorder %s160, 0
      %p993 = por %p991, %p992
      %p994 = scmp.ne.s32.totalorder %s986, %s988
      %p995 = scmp.eq.s32.totalorder %s165, 1
      %p996 = por %p994, %p995
      %p997 = scmp.ne.s32.totalorder %s988, %s989
      %p998 = scmp.eq.s32.totalorder %s165, 0
      %p999 = por %p997, %p998
      %p1000 = scmp.ne.s32.totalorder %s988, %s989
      %p1001 = scmp.eq.s32.totalorder %s166, 1
      %p1002 = por %p1000, %p1001
      %p1004 = scmp.ne.s32.totalorder %s989, %s1003
      %p1005 = scmp.eq.s32.totalorder %s166, 0
      %p1006 = por %p1004, %p1005
      %s1008 = sadd.s32 %s1007, 1
      %p1011 = scmp.eq.s32.totalorder %s160, 1
      %p1012 = scmp.ne.s32.totalorder %s1007, %s1009
      %p1013 = scmp.eq.s32.totalorder %s160, 0
      %p1014 = por %p1012, %p1013
      %p1015 = scmp.ne.s32.totalorder %s1007, %s1009
      %p1016 = scmp.eq.s32.totalorder %s165, 1
      %p1017 = por %p1015, %p1016
      %p1018 = scmp.ne.s32.totalorder %s1009, %s1010
      %p1019 = scmp.eq.s32.totalorder %s165, 0
      %p1020 = por %p1018, %p1019
      %p1021 = scmp.ne.s32.totalorder %s1009, %s1010
      %p1022 = scmp.eq.s32.totalorder %s166, 1
      %p1023 = por %p1021, %p1022
      %p1025 = scmp.ne.s32.totalorder %s1010, %s1024
      %p1026 = scmp.eq.s32.totalorder %s166, 0
      %p1027 = por %p1025, %p1026
      %s1029 = sadd.s32 %s1028, 1
      %p1032 = scmp.eq.s32.totalorder %s160, 1
      %p1033 = scmp.ne.s32.totalorder %s1028, %s1030
      %p1034 = scmp.eq.s32.totalorder %s160, 0
      %p1035 = por %p1033, %p1034
      %p1036 = scmp.ne.s32.totalorder %s1028, %s1030
      %p1037 = scmp.eq.s32.totalorder %s165, 1
      %p1038 = por %p1036, %p1037
      %p1039 = scmp.ne.s32.totalorder %s1030, %s1031
      %p1040 = scmp.eq.s32.totalorder %s165, 0
      %p1041 = por %p1039, %p1040
      %p1042 = scmp.ne.s32.totalorder %s1030, %s1031
      %p1043 = scmp.eq.s32.totalorder %s166, 1
      %p1044 = por %p1042, %p1043
      %p1046 = scmp.ne.s32.totalorder %s1031, %s1045
      %p1047 = scmp.eq.s32.totalorder %s166, 0
      %p1048 = por %p1046, %p1047
      %s1050 = sadd.s32 %s1049, 1
      %p1053 = scmp.eq.s32.totalorder %s160, 1
      %p1054 = scmp.ne.s32.totalorder %s1049, %s1051
      %p1055 = scmp.eq.s32.totalorder %s160, 0
      %p1056 = por %p1054, %p1055
      %p1057 = scmp.ne.s32.totalorder %s1049, %s1051
      %p1058 = scmp.eq.s32.totalorder %s165, 1
      %p1059 = por %p1057, %p1058
      %p1060 = scmp.ne.s32.totalorder %s1051, %s1052
      %p1061 = scmp.eq.s32.totalorder %s165, 0
      %p1062 = por %p1060, %p1061
      %p1063 = scmp.ne.s32.totalorder %s1051, %s1052
      %p1064 = scmp.eq.s32.totalorder %s166, 1
      %p1065 = por %p1063, %p1064
      %p1067 = scmp.ne.s32.totalorder %s1052, %s1066
      %p1068 = scmp.eq.s32.totalorder %s166, 0
      %p1069 = por %p1067, %p1068
      %s1071 = sadd.s32 %s1070, 1
      %p1074 = scmp.eq.s32.totalorder %s160, 1
      %p1075 = scmp.ne.s32.totalorder %s1070, %s1072
      %p1076 = scmp.eq.s32.totalorder %s160, 0
      %p1077 = por %p1075, %p1076
      %p1078 = scmp.ne.s32.totalorder %s1070, %s1072
      %p1079 = scmp.eq.s32.totalorder %s165, 1
      %p1080 = por %p1078, %p1079
      %p1081 = scmp.ne.s32.totalorder %s1072, %s1073
      %p1082 = scmp.eq.s32.totalorder %s165, 0
      %p1083 = por %p1081, %p1082
      %p1084 = scmp.ne.s32.totalorder %s1072, %s1073
      %p1085 = scmp.eq.s32.totalorder %s166, 1
      %p1086 = por %p1084, %p1085
      %p1088 = scmp.ne.s32.totalorder %s1073, %s1087
      %p1089 = scmp.eq.s32.totalorder %s166, 0
      %p1090 = por %p1088, %p1089
      %s1092 = sadd.s32 %s1091, 1
      %p1095 = scmp.eq.s32.totalorder %s160, 1
      %p1096 = scmp.ne.s32.totalorder %s1091, %s1093
      %p1097 = scmp.eq.s32.totalorder %s160, 0
      %p1098 = por %p1096, %p1097
      %p1099 = scmp.ne.s32.totalorder %s1091, %s1093
      %p1100 = scmp.eq.s32.totalorder %s165, 1
      %p1101 = por %p1099, %p1100
      %p1102 = scmp.ne.s32.totalorder %s1093, %s1094
      %p1103 = scmp.eq.s32.totalorder %s165, 0
      %p1104 = por %p1102, %p1103
      %p1105 = scmp.ne.s32.totalorder %s1093, %s1094
      %p1106 = scmp.eq.s32.totalorder %s166, 1
      %p1107 = por %p1105, %p1106
      %p1109 = scmp.ne.s32.totalorder %s1094, %s1108
      %p1110 = scmp.eq.s32.totalorder %s166, 0
      %p1111 = por %p1109, %p1110
      %s1113 = sadd.s32 %s1112, 1
      %p1116 = scmp.eq.s32.totalorder %s160, 1
      %p1117 = scmp.ne.s32.totalorder %s1112, %s1114
      %p1118 = scmp.eq.s32.totalorder %s160, 0
      %p1119 = por %p1117, %p1118
      %p1120 = scmp.ne.s32.totalorder %s1112, %s1114
      %p1121 = scmp.eq.s32.totalorder %s165, 1
      %p1122 = por %p1120, %p1121
      %p1123 = scmp.ne.s32.totalorder %s1114, %s1115
      %p1124 = scmp.eq.s32.totalorder %s165, 0
      %p1125 = por %p1123, %p1124
      %p1126 = scmp.ne.s32.totalorder %s1114, %s1115
      %p1127 = scmp.eq.s32.totalorder %s166, 1
      %p1128 = por %p1126, %p1127
      %p1130 = scmp.ne.s32.totalorder %s1115, %s1129
      %p1131 = scmp.eq.s32.totalorder %s166, 0
      %p1132 = por %p1130, %p1131
      %s1134 = sadd.s32 %s1133, 1
      %p1137 = scmp.eq.s32.totalorder %s160, 1
      %p1138 = scmp.ne.s32.totalorder %s1133, %s1135
      %p1139 = scmp.eq.s32.totalorder %s160, 0
      %p1140 = por %p1138, %p1139
      %p1141 = scmp.ne.s32.totalorder %s1133, %s1135
      %p1142 = scmp.eq.s32.totalorder %s165, 1
      %p1143 = por %p1141, %p1142
      %p1144 = scmp.ne.s32.totalorder %s1135, %s1136
      %p1145 = scmp.eq.s32.totalorder %s165, 0
      %p1146 = por %p1144, %p1145
      %p1147 = scmp.ne.s32.totalorder %s1135, %s1136
      %p1148 = scmp.eq.s32.totalorder %s166, 1
      %p1149 = por %p1147, %p1148
      %p1151 = scmp.ne.s32.totalorder %s1136, %s1150
      %p1152 = scmp.eq.s32.totalorder %s166, 0
      %p1153 = por %p1151, %p1152
      %s1155 = sadd.s32 %s1154, 1
      %p1158 = scmp.eq.s32.totalorder %s160, 1
      %p1159 = scmp.ne.s32.totalorder %s1154, %s1156
      %p1160 = scmp.eq.s32.totalorder %s160, 0
      %p1161 = por %p1159, %p1160
      %p1162 = scmp.ne.s32.totalorder %s1154, %s1156
      %p1163 = scmp.eq.s32.totalorder %s165, 1
      %p1164 = por %p1162, %p1163
      %p1165 = scmp.ne.s32.totalorder %s1156, %s1157
      %p1166 = scmp.eq.s32.totalorder %s165, 0
      %p1167 = por %p1165, %p1166
      %p1168 = scmp.ne.s32.totalorder %s1156, %s1157
      %p1169 = scmp.eq.s32.totalorder %s166, 1
      %p1170 = por %p1168, %p1169
      %p1172 = scmp.ne.s32.totalorder %s1157, %s1171
      %p1173 = scmp.eq.s32.totalorder %s166, 0
      %p1174 = por %p1172, %p1173
      %s1176 = sadd.s32 %s1175, 1
      %p1179 = scmp.eq.s32.totalorder %s160, 1
      %p1180 = scmp.ne.s32.totalorder %s1175, %s1177
      %p1181 = scmp.eq.s32.totalorder %s160, 0
      %p1182 = por %p1180, %p1181
      %p1183 = scmp.ne.s32.totalorder %s1175, %s1177
      %p1184 = scmp.eq.s32.totalorder %s165, 1
      %p1185 = por %p1183, %p1184
      %p1186 = scmp.ne.s32.totalorder %s1177, %s1178
      %p1187 = scmp.eq.s32.totalorder %s165, 0
      %p1188 = por %p1186, %p1187
      %p1189 = scmp.ne.s32.totalorder %s1177, %s1178
      %p1190 = scmp.eq.s32.totalorder %s166, 1
      %p1191 = por %p1189, %p1190
      %p1193 = scmp.ne.s32.totalorder %s1178, %s1192
      %p1194 = scmp.eq.s32.totalorder %s166, 0
      %p1195 = por %p1193, %p1194
      %s1197 = sadd.s32 %s1196, 1
      %p1200 = scmp.eq.s32.totalorder %s160, 1
      %p1201 = scmp.ne.s32.totalorder %s1196, %s1198
      %p1202 = scmp.eq.s32.totalorder %s160, 0
      %p1203 = por %p1201, %p1202
      %p1204 = scmp.ne.s32.totalorder %s1196, %s1198
      %p1205 = scmp.eq.s32.totalorder %s165, 1
      %p1206 = por %p1204, %p1205
      %p1207 = scmp.ne.s32.totalorder %s1198, %s1199
      %p1208 = scmp.eq.s32.totalorder %s165, 0
      %p1209 = por %p1207, %p1208
      %p1210 = scmp.ne.s32.totalorder %s1198, %s1199
      %p1211 = scmp.eq.s32.totalorder %s166, 1
      %p1212 = por %p1210, %p1211
      %p1214 = scmp.ne.s32.totalorder %s1199, %s1213
      %p1215 = scmp.eq.s32.totalorder %s166, 0
      %p1216 = por %p1214, %p1215
      %s1218 = sadd.s32 %s1217, 1
      %p1221 = scmp.eq.s32.totalorder %s160, 1
      %p1222 = scmp.ne.s32.totalorder %s1217, %s1219
      %p1223 = scmp.eq.s32.totalorder %s160, 0
      %p1224 = por %p1222, %p1223
      %p1225 = scmp.ne.s32.totalorder %s1217, %s1219
      %p1226 = scmp.eq.s32.totalorder %s165, 1
      %p1227 = por %p1225, %p1226
      %p1228 = scmp.ne.s32.totalorder %s1219, %s1220
      %p1229 = scmp.eq.s32.totalorder %s165, 0
      %p1230 = por %p1228, %p1229
      %p1231 = scmp.ne.s32.totalorder %s1219, %s1220
      %p1232 = scmp.eq.s32.totalorder %s166, 1
      %p1233 = por %p1231, %p1232
      %p1235 = scmp.ne.s32.totalorder %s1220, %s1234
      %p1236 = scmp.eq.s32.totalorder %s166, 0
      %p1237 = por %p1235, %p1236
      %s1239 = sadd.s32 %s1238, 1
      %p1242 = scmp.eq.s32.totalorder %s160, 1
      %p1243 = scmp.ne.s32.totalorder %s1238, %s1240
      %p1244 = scmp.eq.s32.totalorder %s160, 0
      %p1245 = por %p1243, %p1244
      %p1246 = scmp.ne.s32.totalorder %s1238, %s1240
      %p1247 = scmp.eq.s32.totalorder %s165, 1
      %p1248 = por %p1246, %p1247
      %p1249 = scmp.ne.s32.totalorder %s1240, %s1241
      %p1250 = scmp.eq.s32.totalorder %s165, 0
      %p1251 = por %p1249, %p1250
      %p1252 = scmp.ne.s32.totalorder %s1240, %s1241
      %p1253 = scmp.eq.s32.totalorder %s166, 1
      %p1254 = por %p1252, %p1253
      %p1256 = scmp.ne.s32.totalorder %s1241, %s1255
      %p1257 = scmp.eq.s32.totalorder %s166, 0
      %p1258 = por %p1256, %p1257
      %s1260 = sadd.s32 %s1259, 1
      %p1263 = scmp.eq.s32.totalorder %s160, 1
      %p1264 = scmp.ne.s32.totalorder %s1259, %s1261
      %p1265 = scmp.eq.s32.totalorder %s160, 0
      %p1266 = por %p1264, %p1265
      %p1267 = scmp.ne.s32.totalorder %s1259, %s1261
      %p1268 = scmp.eq.s32.totalorder %s165, 1
      %p1269 = por %p1267, %p1268
      %p1270 = scmp.ne.s32.totalorder %s1261, %s1262
      %p1271 = scmp.eq.s32.totalorder %s165, 0
      %p1272 = por %p1270, %p1271
      %p1273 = scmp.ne.s32.totalorder %s1261, %s1262
      %p1274 = scmp.eq.s32.totalorder %s166, 1
      %p1275 = por %p1273, %p1274
      %p1277 = scmp.ne.s32.totalorder %s1262, %s1276
      %p1278 = scmp.eq.s32.totalorder %s166, 0
      %p1279 = por %p1277, %p1278
      %s1281 = sadd.s32 %s1280, 1
      %p1284 = scmp.eq.s32.totalorder %s160, 1
      %p1285 = scmp.ne.s32.totalorder %s1280, %s1282
      %p1286 = scmp.eq.s32.totalorder %s160, 0
      %p1287 = por %p1285, %p1286
      %p1288 = scmp.ne.s32.totalorder %s1280, %s1282
      %p1289 = scmp.eq.s32.totalorder %s165, 1
      %p1290 = por %p1288, %p1289
      %p1291 = scmp.ne.s32.totalorder %s1282, %s1283
      %p1292 = scmp.eq.s32.totalorder %s165, 0
      %p1293 = por %p1291, %p1292
      %p1294 = scmp.ne.s32.totalorder %s1282, %s1283
      %p1295 = scmp.eq.s32.totalorder %s166, 1
      %p1296 = por %p1294, %p1295
      %p1298 = scmp.ne.s32.totalorder %s1283, %s1297
      %p1299 = scmp.eq.s32.totalorder %s166, 0
      %p1300 = por %p1298, %p1299
      %s1302 = sadd.s32 %s1301, 1
      %p1305 = scmp.eq.s32.totalorder %s160, 1
      %p1306 = scmp.ne.s32.totalorder %s1301, %s1303
      %p1307 = scmp.eq.s32.totalorder %s160, 0
      %p1308 = por %p1306, %p1307
      %p1309 = scmp.ne.s32.totalorder %s1301, %s1303
      %p1310 = scmp.eq.s32.totalorder %s165, 1
      %p1311 = por %p1309, %p1310
      %p1312 = scmp.ne.s32.totalorder %s1303, %s1304
      %p1313 = scmp.eq.s32.totalorder %s165, 0
      %p1314 = por %p1312, %p1313
      %p1315 = scmp.ne.s32.totalorder %s1303, %s1304
      %p1316 = scmp.eq.s32.totalorder %s166, 1
      %p1317 = por %p1315, %p1316
      %p1319 = scmp.ne.s32.totalorder %s1304, %s1318
      %p1320 = scmp.eq.s32.totalorder %s166, 0
      %p1321 = por %p1319, %p1320
      %s1323 = sadd.s32 %s1322, 1
      %p1326 = scmp.eq.s32.totalorder %s160, 1
      %p1327 = scmp.ne.s32.totalorder %s1322, %s1324
      %p1328 = scmp.eq.s32.totalorder %s160, 0
      %p1329 = por %p1327, %p1328
      %p1330 = scmp.ne.s32.totalorder %s1322, %s1324
      %p1331 = scmp.eq.s32.totalorder %s165, 1
      %p1332 = por %p1330, %p1331
      %p1333 = scmp.ne.s32.totalorder %s1324, %s1325
      %p1334 = scmp.eq.s32.totalorder %s165, 0
      %p1335 = por %p1333, %p1334
      %p1336 = scmp.ne.s32.totalorder %s1324, %s1325
      %p1337 = scmp.eq.s32.totalorder %s166, 1
      %p1338 = por %p1336, %p1337
      %p1340 = scmp.ne.s32.totalorder %s1325, %s1339
      %p1341 = scmp.eq.s32.totalorder %s166, 0
      %p1342 = por %p1340, %p1341
      %s1344 = sadd.s32 %s1343, 1
      %p1347 = scmp.eq.s32.totalorder %s160, 1
      %p1348 = scmp.ne.s32.totalorder %s1343, %s1345
      %p1349 = scmp.eq.s32.totalorder %s160, 0
      %p1350 = por %p1348, %p1349
      %p1351 = scmp.ne.s32.totalorder %s1343, %s1345
      %p1352 = scmp.eq.s32.totalorder %s165, 1
      %p1353 = por %p1351, %p1352
      %p1354 = scmp.ne.s32.totalorder %s1345, %s1346
      %p1355 = scmp.eq.s32.totalorder %s165, 0
      %p1356 = por %p1354, %p1355
      %p1357 = scmp.ne.s32.totalorder %s1345, %s1346
      %p1358 = scmp.eq.s32.totalorder %s166, 1
      %p1359 = por %p1357, %p1358
      %p1361 = scmp.ne.s32.totalorder %s1346, %s1360
      %p1362 = scmp.eq.s32.totalorder %s166, 0
      %p1363 = por %p1361, %p1362
      %s1365 = sadd.s32 %s1364, 1
      %p1368 = scmp.eq.s32.totalorder %s160, 1
      %p1369 = scmp.ne.s32.totalorder %s1364, %s1366
      %p1370 = scmp.eq.s32.totalorder %s160, 0
      %p1371 = por %p1369, %p1370
      %p1372 = scmp.ne.s32.totalorder %s1364, %s1366
      %p1373 = scmp.eq.s32.totalorder %s165, 1
      %p1374 = por %p1372, %p1373
      %p1375 = scmp.ne.s32.totalorder %s1366, %s1367
      %p1376 = scmp.eq.s32.totalorder %s165, 0
      %p1377 = por %p1375, %p1376
      %p1378 = scmp.ne.s32.totalorder %s1366, %s1367
      %p1379 = scmp.eq.s32.totalorder %s166, 1
      %p1380 = por %p1378, %p1379
      %p1382 = scmp.ne.s32.totalorder %s1367, %s1381
      %p1383 = scmp.eq.s32.totalorder %s166, 0
      %p1384 = por %p1382, %p1383
      %s1386 = sadd.s32 %s1385, 1
      %p1389 = scmp.eq.s32.totalorder %s160, 1
      %p1390 = scmp.ne.s32.totalorder %s1385, %s1387
      %p1391 = scmp.eq.s32.totalorder %s160, 0
      %p1392 = por %p1390, %p1391
      %p1393 = scmp.ne.s32.totalorder %s1385, %s1387
      %p1394 = scmp.eq.s32.totalorder %s165, 1
      %p1395 = por %p1393, %p1394
      %p1396 = scmp.ne.s32.totalorder %s1387, %s1388
      %p1397 = scmp.eq.s32.totalorder %s165, 0
      %p1398 = por %p1396, %p1397
      %p1399 = scmp.ne.s32.totalorder %s1387, %s1388
      %p1400 = scmp.eq.s32.totalorder %s166, 1
      %p1401 = por %p1399, %p1400
      %p1403 = scmp.ne.s32.totalorder %s1388, %s1402
      %p1404 = scmp.eq.s32.totalorder %s166, 0
      %p1405 = por %p1403, %p1404
      %s1407 = sadd.s32 %s1406, 1
      %p1410 = scmp.eq.s32.totalorder %s160, 1
      %p1411 = scmp.ne.s32.totalorder %s1406, %s1408
      %p1412 = scmp.eq.s32.totalorder %s160, 0
      %p1413 = por %p1411, %p1412
      %p1414 = scmp.ne.s32.totalorder %s1406, %s1408
      %p1415 = scmp.eq.s32.totalorder %s165, 1
      %p1416 = por %p1414, %p1415
      %p1417 = scmp.ne.s32.totalorder %s1408, %s1409
      %p1418 = scmp.eq.s32.totalorder %s165, 0
      %p1419 = por %p1417, %p1418
      %p1420 = scmp.ne.s32.totalorder %s1408, %s1409
      %p1421 = scmp.eq.s32.totalorder %s166, 1
      %p1422 = por %p1420, %p1421
      %p1424 = scmp.ne.s32.totalorder %s1409, %s1423
      %p1425 = scmp.eq.s32.totalorder %s166, 0
      %p1426 = por %p1424, %p1425
      %s1428 = sadd.s32 %s1427, 1
      %p1431 = scmp.eq.s32.totalorder %s160, 1
      %p1432 = scmp.ne.s32.totalorder %s1427, %s1429
      %p1433 = scmp.eq.s32.totalorder %s160, 0
      %p1434 = por %p1432, %p1433
      %p1435 = scmp.ne.s32.totalorder %s1427, %s1429
      %p1436 = scmp.eq.s32.totalorder %s165, 1
      %p1437 = por %p1435, %p1436
      %p1438 = scmp.ne.s32.totalorder %s1429, %s1430
      %p1439 = scmp.eq.s32.totalorder %s165, 0
      %p1440 = por %p1438, %p1439
      %p1441 = scmp.ne.s32.totalorder %s1429, %s1430
      %p1442 = scmp.eq.s32.totalorder %s166, 1
      %p1443 = por %p1441, %p1442
      %p1445 = scmp.ne.s32.totalorder %s1430, %s1444
      %p1446 = scmp.eq.s32.totalorder %s166, 0
      %p1447 = por %p1445, %p1446
      %s1449 = sadd.s32 %s1448, 1
      %p1452 = scmp.eq.s32.totalorder %s160, 1
      %p1453 = scmp.ne.s32.totalorder %s1448, %s1450
      %p1454 = scmp.eq.s32.totalorder %s160, 0
      %p1455 = por %p1453, %p1454
      %p1456 = scmp.ne.s32.totalorder %s1448, %s1450
      %p1457 = scmp.eq.s32.totalorder %s165, 1
      %p1458 = por %p1456, %p1457
      %p1459 = scmp.ne.s32.totalorder %s1450, %s1451
      %p1460 = scmp.eq.s32.totalorder %s165, 0
      %p1461 = por %p1459, %p1460
      %p1462 = scmp.ne.s32.totalorder %s1450, %s1451
      %p1463 = scmp.eq.s32.totalorder %s166, 1
      %p1464 = por %p1462, %p1463
      %p1466 = scmp.ne.s32.totalorder %s1451, %s1465
      %p1467 = scmp.eq.s32.totalorder %s166, 0
      %p1468 = por %p1466, %p1467
      %s1470 = sadd.s32 %s1469, 1
      %p1473 = scmp.eq.s32.totalorder %s160, 1
      %p1474 = scmp.ne.s32.totalorder %s1469, %s1471
      %p1475 = scmp.eq.s32.totalorder %s160, 0
      %p1476 = por %p1474, %p1475
      %p1477 = scmp.ne.s32.totalorder %s1469, %s1471
      %p1478 = scmp.eq.s32.totalorder %s165, 1
      %p1479 = por %p1477, %p1478
      %p1480 = scmp.ne.s32.totalorder %s1471, %s1472
      %p1481 = scmp.eq.s32.totalorder %s165, 0
      %p1482 = por %p1480, %p1481
      %p1483 = scmp.ne.s32.totalorder %s1471, %s1472
      %p1484 = scmp.eq.s32.totalorder %s166, 1
      %p1485 = por %p1483, %p1484
      %p1487 = scmp.ne.s32.totalorder %s1472, %s1486
      %p1488 = scmp.eq.s32.totalorder %s166, 0
      %p1489 = por %p1487, %p1488
      %s1491 = sadd.s32 %s1490, 1
      %p1494 = scmp.eq.s32.totalorder %s160, 1
      %p1495 = scmp.ne.s32.totalorder %s1490, %s1492
      %p1496 = scmp.eq.s32.totalorder %s160, 0
      %p1497 = por %p1495, %p1496
      %p1498 = scmp.ne.s32.totalorder %s1490, %s1492
      %p1499 = scmp.eq.s32.totalorder %s165, 1
      %p1500 = por %p1498, %p1499
      %p1501 = scmp.ne.s32.totalorder %s1492, %s1493
      %p1502 = scmp.eq.s32.totalorder %s165, 0
      %p1503 = por %p1501, %p1502
      %p1504 = scmp.ne.s32.totalorder %s1492, %s1493
      %p1505 = scmp.eq.s32.totalorder %s166, 1
      %p1506 = por %p1504, %p1505
      %p1508 = scmp.ne.s32.totalorder %s1493, %s1507
      %p1509 = scmp.eq.s32.totalorder %s166, 0
      %p1510 = por %p1508, %p1509
      %s1512 = sadd.s32 %s1511, 1
      %p1515 = scmp.eq.s32.totalorder %s160, 1
      %p1516 = scmp.ne.s32.totalorder %s1511, %s1513
      %p1517 = scmp.eq.s32.totalorder %s160, 0
      %p1518 = por %p1516, %p1517
      %p1519 = scmp.ne.s32.totalorder %s1511, %s1513
      %p1520 = scmp.eq.s32.totalorder %s165, 1
      %p1521 = por %p1519, %p1520
      %p1522 = scmp.ne.s32.totalorder %s1513, %s1514
      %p1523 = scmp.eq.s32.totalorder %s165, 0
      %p1524 = por %p1522, %p1523
      %p1525 = scmp.ne.s32.totalorder %s1513, %s1514
      %p1526 = scmp.eq.s32.totalorder %s166, 1
      %p1527 = por %p1525, %p1526
      %p1529 = scmp.ne.s32.totalorder %s1514, %s1528
      %p1530 = scmp.eq.s32.totalorder %s166, 0
      %p1531 = por %p1529, %p1530
      %s1533 = sadd.s32 %s1532, 1
      %p1536 = scmp.eq.s32.totalorder %s160, 1
      %p1537 = scmp.ne.s32.totalorder %s1532, %s1534
      %p1538 = scmp.eq.s32.totalorder %s160, 0
      %p1539 = por %p1537, %p1538
      %p1540 = scmp.ne.s32.totalorder %s1532, %s1534
      %p1541 = scmp.eq.s32.totalorder %s165, 1
      %p1542 = por %p1540, %p1541
      %p1543 = scmp.ne.s32.totalorder %s1534, %s1535
      %p1544 = scmp.eq.s32.totalorder %s165, 0
      %p1545 = por %p1543, %p1544
      %p1546 = scmp.ne.s32.totalorder %s1534, %s1535
      %p1547 = scmp.eq.s32.totalorder %s166, 1
      %p1548 = por %p1546, %p1547
      %p1550 = scmp.ne.s32.totalorder %s1535, %s1549
      %p1551 = scmp.eq.s32.totalorder %s166, 0
      %p1552 = por %p1550, %p1551
      %s1554 = sadd.s32 %s1553, 1
      %p1557 = scmp.eq.s32.totalorder %s160, 1
      %p1558 = scmp.ne.s32.totalorder %s1553, %s1555
      %p1559 = scmp.eq.s32.totalorder %s160, 0
      %p1560 = por %p1558, %p1559
      %p1561 = scmp.ne.s32.totalorder %s1553, %s1555
      %p1562 = scmp.eq.s32.totalorder %s165, 1
      %p1563 = por %p1561, %p1562
      %p1564 = scmp.ne.s32.totalorder %s1555, %s1556
      %p1565 = scmp.eq.s32.totalorder %s165, 0
      %p1566 = por %p1564, %p1565
      %p1567 = scmp.ne.s32.totalorder %s1555, %s1556
      %p1568 = scmp.eq.s32.totalorder %s166, 1
      %p1569 = por %p1567, %p1568
      %p1571 = scmp.ne.s32.totalorder %s1556, %s1570
      %p1572 = scmp.eq.s32.totalorder %s166, 0
      %p1573 = por %p1571, %p1572
      %s1575 = sadd.s32 %s1574, 1
      %p1578 = scmp.eq.s32.totalorder %s160, 1
      %p1579 = scmp.ne.s32.totalorder %s1574, %s1576
      %p1580 = scmp.eq.s32.totalorder %s160, 0
      %p1581 = por %p1579, %p1580
      %p1582 = scmp.ne.s32.totalorder %s1574, %s1576
      %p1583 = scmp.eq.s32.totalorder %s165, 1
      %p1584 = por %p1582, %p1583
      %p1585 = scmp.ne.s32.totalorder %s1576, %s1577
      %p1586 = scmp.eq.s32.totalorder %s165, 0
      %p1587 = por %p1585, %p1586
      %p1588 = scmp.ne.s32.totalorder %s1576, %s1577
      %p1589 = scmp.eq.s32.totalorder %s166, 1
      %p1590 = por %p1588, %p1589
      %p1592 = scmp.ne.s32.totalorder %s1577, %s1591
      %p1593 = scmp.eq.s32.totalorder %s166, 0
      %p1594 = por %p1592, %p1593
      %s1596 = sadd.s32 %s1595, 1
      %p1599 = scmp.eq.s32.totalorder %s160, 1
      %p1600 = scmp.ne.s32.totalorder %s1595, %s1597
      %p1601 = scmp.eq.s32.totalorder %s160, 0
      %p1602 = por %p1600, %p1601
      %p1603 = scmp.ne.s32.totalorder %s1595, %s1597
      %p1604 = scmp.eq.s32.totalorder %s165, 1
      %p1605 = por %p1603, %p1604
      %p1606 = scmp.ne.s32.totalorder %s1597, %s1598
      %p1607 = scmp.eq.s32.totalorder %s165, 0
      %p1608 = por %p1606, %p1607
      %p1609 = scmp.ne.s32.totalorder %s1597, %s1598
      %p1610 = scmp.eq.s32.totalorder %s166, 1
      %p1611 = por %p1609, %p1610
      %p1613 = scmp.ne.s32.totalorder %s1598, %s1612
      %p1614 = scmp.eq.s32.totalorder %s166, 0
      %p1615 = por %p1613, %p1614
      %s1617 = sadd.s32 %s1616, 1
      %p1620 = scmp.eq.s32.totalorder %s160, 1
      %p1621 = scmp.ne.s32.totalorder %s1616, %s1618
      %p1622 = scmp.eq.s32.totalorder %s160, 0
      %p1623 = por %p1621, %p1622
      %p1624 = scmp.ne.s32.totalorder %s1616, %s1618
      %p1625 = scmp.eq.s32.totalorder %s165, 1
      %p1626 = por %p1624, %p1625
      %p1627 = scmp.ne.s32.totalorder %s1618, %s1619
      %p1628 = scmp.eq.s32.totalorder %s165, 0
      %p1629 = por %p1627, %p1628
      %p1630 = scmp.ne.s32.totalorder %s1618, %s1619
      %p1631 = scmp.eq.s32.totalorder %s166, 1
      %p1632 = por %p1630, %p1631
      %p1634 = scmp.ne.s32.totalorder %s1619, %s1633
      %p1635 = scmp.eq.s32.totalorder %s166, 0
      %p1636 = por %p1634, %p1635
      %s1638 = sadd.s32 %s1637, 1
      %p1641 = scmp.eq.s32.totalorder %s160, 1
      %p1642 = scmp.ne.s32.totalorder %s1637, %s1639
      %p1643 = scmp.eq.s32.totalorder %s160, 0
      %p1644 = por %p1642, %p1643
      %p1645 = scmp.ne.s32.totalorder %s1637, %s1639
      %p1646 = scmp.eq.s32.totalorder %s165, 1
      %p1647 = por %p1645, %p1646
      %p1648 = scmp.ne.s32.totalorder %s1639, %s1640
      %p1649 = scmp.eq.s32.totalorder %s165, 0
      %p1650 = por %p1648, %p1649
      %p1651 = scmp.ne.s32.totalorder %s1639, %s1640
      %p1652 = scmp.eq.s32.totalorder %s166, 1
      %p1653 = por %p1651, %p1652
      %p1655 = scmp.ne.s32.totalorder %s1640, %s1654
      %p1656 = scmp.eq.s32.totalorder %s166, 0
      %p1657 = por %p1655, %p1656
      %s1658 = ssub.s32 %s160, %s167
      %p1659 = scmp.eq.s32.totalorder %s1658, 0
      %s1661 = sadd.s32 %s1660, 1
      %s1662 = scalar_select %p1659, %s1660, %s1661
      %p1665 = pneg %p1659
      %p1666 = scmp.eq.s32.totalorder %s160, 1
      %p1667 = por %p1665, %p1666
      %p1668 = scmp.ne.s32.totalorder %s1660, %s1663
      %p1669 = scmp.eq.s32.totalorder %s160, 0
      %p1670 = por %p1668, %p1669
      %p1671 = scmp.ne.s32.totalorder %s1660, %s1663
      %p1672 = scmp.eq.s32.totalorder %s165, 1
      %p1673 = por %p1671, %p1672
      %p1674 = scmp.ne.s32.totalorder %s1663, %s1664
      %p1675 = scmp.eq.s32.totalorder %s165, 0
      %p1676 = por %p1674, %p1675
      %p1677 = scmp.ne.s32.totalorder %s1663, %s1664
      %p1678 = scmp.eq.s32.totalorder %s166, 1
      %p1679 = por %p1677, %p1678
      %p1681 = scmp.ne.s32.totalorder %s1664, %s1680
      %p1682 = scmp.eq.s32.totalorder %s166, 0
      %p1683 = por %p1681, %p1682
      %p1684 = scmp.le.s32.totalorder 1, %s160
      %p1685 = scmp.lt.s32.totalorder %s160, 3
      %p1686 = pnand %p1684, %p1685
      %p1687 = pneg %p1686
      // Predicated region
      $region9: #{transformer_forward.1} parent=5 // pred_check
        _
      $region10: #{transformer_forward.1} parent=5 // pred_check_branch
        %1689 = sbr.rel (%p1686) target = $region12
      $region11: #{transformer_forward.1} parent=5 // pred_region
        %s1690 = ssub.s32 %s160, 1
        // Predicated region
        $region13: #{transformer_forward.1} parent=11 // pred_check
          %p1691 = pneg %p285
        $region14: #{transformer_forward.1} parent=11 // pred_check_branch
          %1693 = sbr.rel (%p1691) target = $region16
        $region15: #{transformer_forward.1} parent=11 // pred_region
          _
        $region16: #{transformer_forward.1} parent=11 // pred_fallthru
          _
        // Predicated region
        $region17: #{transformer_forward.1} parent=11 // pred_check
          %p1694 = pneg %p306
        $region18: #{transformer_forward.1} parent=11 // pred_check_branch
          %1696 = sbr.rel (%p1694) target = $region20
        $region19: #{transformer_forward.1} parent=11 // pred_region
          _
        $region20: #{transformer_forward.1} parent=11 // pred_fallthru
          _
        // Predicated region
        $region21: #{transformer_forward.1} parent=11 // pred_check
          %p1697 = pneg %p327
        $region22: #{transformer_forward.1} parent=11 // pred_check_branch
          %1699 = sbr.rel (%p1697) target = $region24
        $region23: #{transformer_forward.1} parent=11 // pred_region
          _
        $region24: #{transformer_forward.1} parent=11 // pred_fallthru
          _
        // Predicated region
        $region25: #{transformer_forward.1} parent=11 // pred_check
          %p1700 = pneg %p348
        $region26: #{transformer_forward.1} parent=11 // pred_check_branch
          %1702 = sbr.rel (%p1700) target = $region28
        $region27: #{transformer_forward.1} parent=11 // pred_region
          _
        $region28: #{transformer_forward.1} parent=11 // pred_fallthru
          _
        // Predicated region
        $region29: #{transformer_forward.1} parent=11 // pred_check
          %p1703 = pneg %p369
        $region30: #{transformer_forward.1} parent=11 // pred_check_branch
          %1705 = sbr.rel (%p1703) target = $region32
        $region31: #{transformer_forward.1} parent=11 // pred_region
          _
        $region32: #{transformer_forward.1} parent=11 // pred_fallthru
          _
        // Predicated region
        $region33: #{transformer_forward.1} parent=11 // pred_check
          %p1706 = pneg %p390
        $region34: #{transformer_forward.1} parent=11 // pred_check_branch
          %1708 = sbr.rel (%p1706) target = $region36
        $region35: #{transformer_forward.1} parent=11 // pred_region
          _
        $region36: #{transformer_forward.1} parent=11 // pred_fallthru
          _
        // Predicated region
        $region37: #{transformer_forward.1} parent=11 // pred_check
          %p1709 = pneg %p411
        $region38: #{transformer_forward.1} parent=11 // pred_check_branch
          %1711 = sbr.rel (%p1709) target = $region40
        $region39: #{transformer_forward.1} parent=11 // pred_region
          _
        $region40: #{transformer_forward.1} parent=11 // pred_fallthru
          _
        // Predicated region
        $region41: #{transformer_forward.1} parent=11 // pred_check
          %p1712 = pneg %p432
        $region42: #{transformer_forward.1} parent=11 // pred_check_branch
          %1714 = sbr.rel (%p1712) target = $region44
        $region43: #{transformer_forward.1} parent=11 // pred_region
          _
        $region44: #{transformer_forward.1} parent=11 // pred_fallthru
          _
        // Predicated region
        $region45: #{transformer_forward.1} parent=11 // pred_check
          %p1715 = pneg %p453
        $region46: #{transformer_forward.1} parent=11 // pred_check_branch
          %1717 = sbr.rel (%p1715) target = $region48
        $region47: #{transformer_forward.1} parent=11 // pred_region
          _
        $region48: #{transformer_forward.1} parent=11 // pred_fallthru
          _
        // Predicated region
        $region49: #{transformer_forward.1} parent=11 // pred_check
          %p1718 = pneg %p474
        $region50: #{transformer_forward.1} parent=11 // pred_check_branch
          %1720 = sbr.rel (%p1718) target = $region52
        $region51: #{transformer_forward.1} parent=11 // pred_region
          _
        $region52: #{transformer_forward.1} parent=11 // pred_fallthru
          _
        // Predicated region
        $region53: #{transformer_forward.1} parent=11 // pred_check
          %p1721 = pneg %p495
        $region54: #{transformer_forward.1} parent=11 // pred_check_branch
          %1723 = sbr.rel (%p1721) target = $region56
        $region55: #{transformer_forward.1} parent=11 // pred_region
          _
        $region56: #{transformer_forward.1} parent=11 // pred_fallthru
          _
        // Predicated region
        $region57: #{transformer_forward.1} parent=11 // pred_check
          %p1724 = pneg %p516
        $region58: #{transformer_forward.1} parent=11 // pred_check_branch
          %1726 = sbr.rel (%p1724) target = $region60
        $region59: #{transformer_forward.1} parent=11 // pred_region
          _
        $region60: #{transformer_forward.1} parent=11 // pred_fallthru
          _
        // Predicated region
        $region61: #{transformer_forward.1} parent=11 // pred_check
          %p1727 = pneg %p537
        $region62: #{transformer_forward.1} parent=11 // pred_check_branch
          %1729 = sbr.rel (%p1727) target = $region64
        $region63: #{transformer_forward.1} parent=11 // pred_region
          _
        $region64: #{transformer_forward.1} parent=11 // pred_fallthru
          _
        // Predicated region
        $region65: #{transformer_forward.1} parent=11 // pred_check
          %p1730 = pneg %p558
        $region66: #{transformer_forward.1} parent=11 // pred_check_branch
          %1732 = sbr.rel (%p1730) target = $region68
        $region67: #{transformer_forward.1} parent=11 // pred_region
          _
        $region68: #{transformer_forward.1} parent=11 // pred_fallthru
          _
        // Predicated region
        $region69: #{transformer_forward.1} parent=11 // pred_check
          %p1733 = pneg %p579
        $region70: #{transformer_forward.1} parent=11 // pred_check_branch
          %1735 = sbr.rel (%p1733) target = $region72
        $region71: #{transformer_forward.1} parent=11 // pred_region
          _
        $region72: #{transformer_forward.1} parent=11 // pred_fallthru
          _
        // Predicated region
        $region73: #{transformer_forward.1} parent=11 // pred_check
          %p1736 = pneg %p600
        $region74: #{transformer_forward.1} parent=11 // pred_check_branch
          %1738 = sbr.rel (%p1736) target = $region76
        $region75: #{transformer_forward.1} parent=11 // pred_region
          _
        $region76: #{transformer_forward.1} parent=11 // pred_fallthru
          _
        // Predicated region
        $region77: #{transformer_forward.1} parent=11 // pred_check
          %p1739 = pneg %p621
        $region78: #{transformer_forward.1} parent=11 // pred_check_branch
          %1741 = sbr.rel (%p1739) target = $region80
        $region79: #{transformer_forward.1} parent=11 // pred_region
          _
        $region80: #{transformer_forward.1} parent=11 // pred_fallthru
          _
        // Predicated region
        $region81: #{transformer_forward.1} parent=11 // pred_check
          %p1742 = pneg %p642
        $region82: #{transformer_forward.1} parent=11 // pred_check_branch
          %1744 = sbr.rel (%p1742) target = $region84
        $region83: #{transformer_forward.1} parent=11 // pred_region
          _
        $region84: #{transformer_forward.1} parent=11 // pred_fallthru
          _
        // Predicated region
        $region85: #{transformer_forward.1} parent=11 // pred_check
          %p1745 = pneg %p663
        $region86: #{transformer_forward.1} parent=11 // pred_check_branch
          %1747 = sbr.rel (%p1745) target = $region88
        $region87: #{transformer_forward.1} parent=11 // pred_region
          _
        $region88: #{transformer_forward.1} parent=11 // pred_fallthru
          _
        // Predicated region
        $region89: #{transformer_forward.1} parent=11 // pred_check
          %p1748 = pneg %p684
        $region90: #{transformer_forward.1} parent=11 // pred_check_branch
          %1750 = sbr.rel (%p1748) target = $region92
        $region91: #{transformer_forward.1} parent=11 // pred_region
          _
        $region92: #{transformer_forward.1} parent=11 // pred_fallthru
          _
        // Predicated region
        $region93: #{transformer_forward.1} parent=11 // pred_check
          %p1751 = pneg %p705
        $region94: #{transformer_forward.1} parent=11 // pred_check_branch
          %1753 = sbr.rel (%p1751) target = $region96
        $region95: #{transformer_forward.1} parent=11 // pred_region
          _
        $region96: #{transformer_forward.1} parent=11 // pred_fallthru
          _
        // Predicated region
        $region97: #{transformer_forward.1} parent=11 // pred_check
          %p1754 = pneg %p726
        $region98: #{transformer_forward.1} parent=11 // pred_check_branch
          %1756 = sbr.rel (%p1754) target = $region100
        $region99: #{transformer_forward.1} parent=11 // pred_region
          _
        $region100: #{transformer_forward.1} parent=11 // pred_fallthru
          _
        // Predicated region
        $region101: #{transformer_forward.1} parent=11 // pred_check
          %p1757 = pneg %p747
        $region102: #{transformer_forward.1} parent=11 // pred_check_branch
          %1759 = sbr.rel (%p1757) target = $region104
        $region103: #{transformer_forward.1} parent=11 // pred_region
          _
        $region104: #{transformer_forward.1} parent=11 // pred_fallthru
          _
        // Predicated region
        $region105: #{transformer_forward.1} parent=11 // pred_check
          %p1760 = pneg %p768
        $region106: #{transformer_forward.1} parent=11 // pred_check_branch
          %1762 = sbr.rel (%p1760) target = $region108
        $region107: #{transformer_forward.1} parent=11 // pred_region
          _
        $region108: #{transformer_forward.1} parent=11 // pred_fallthru
          _
        // Predicated region
        $region109: #{transformer_forward.1} parent=11 // pred_check
          %p1763 = pneg %p789
        $region110: #{transformer_forward.1} parent=11 // pred_check_branch
          %1765 = sbr.rel (%p1763) target = $region112
        $region111: #{transformer_forward.1} parent=11 // pred_region
          _
        $region112: #{transformer_forward.1} parent=11 // pred_fallthru
          _
        // Predicated region
        $region113: #{transformer_forward.1} parent=11 // pred_check
          %p1766 = pneg %p810
        $region114: #{transformer_forward.1} parent=11 // pred_check_branch
          %1768 = sbr.rel (%p1766) target = $region116
        $region115: #{transformer_forward.1} parent=11 // pred_region
          _
        $region116: #{transformer_forward.1} parent=11 // pred_fallthru
          _
        // Predicated region
        $region117: #{transformer_forward.1} parent=11 // pred_check
          %p1769 = pneg %p831
        $region118: #{transformer_forward.1} parent=11 // pred_check_branch
          %1771 = sbr.rel (%p1769) target = $region120
        $region119: #{transformer_forward.1} parent=11 // pred_region
          _
        $region120: #{transformer_forward.1} parent=11 // pred_fallthru
          _
        // Predicated region
        $region121: #{transformer_forward.1} parent=11 // pred_check
          %p1772 = pneg %p852
        $region122: #{transformer_forward.1} parent=11 // pred_check_branch
          %1774 = sbr.rel (%p1772) target = $region124
        $region123: #{transformer_forward.1} parent=11 // pred_region
          _
        $region124: #{transformer_forward.1} parent=11 // pred_fallthru
          _
        // Predicated region
        $region125: #{transformer_forward.1} parent=11 // pred_check
          %p1775 = pneg %p873
        $region126: #{transformer_forward.1} parent=11 // pred_check_branch
          %1777 = sbr.rel (%p1775) target = $region128
        $region127: #{transformer_forward.1} parent=11 // pred_region
          _
        $region128: #{transformer_forward.1} parent=11 // pred_fallthru
          _
        // Predicated region
        $region129: #{transformer_forward.1} parent=11 // pred_check
          %p1778 = pneg %p894
        $region130: #{transformer_forward.1} parent=11 // pred_check_branch
          %1780 = sbr.rel (%p1778) target = $region132
        $region131: #{transformer_forward.1} parent=11 // pred_region
          _
        $region132: #{transformer_forward.1} parent=11 // pred_fallthru
          _
        // Predicated region
        $region133: #{transformer_forward.1} parent=11 // pred_check
          %p1781 = pneg %p915
        $region134: #{transformer_forward.1} parent=11 // pred_check_branch
          %1783 = sbr.rel (%p1781) target = $region136
        $region135: #{transformer_forward.1} parent=11 // pred_region
          _
        $region136: #{transformer_forward.1} parent=11 // pred_fallthru
          _
        // Predicated region
        $region137: #{transformer_forward.1} parent=11 // pred_check
          %p1784 = pneg %p936
        $region138: #{transformer_forward.1} parent=11 // pred_check_branch
          %1786 = sbr.rel (%p1784) target = $region140
        $region139: #{transformer_forward.1} parent=11 // pred_region
          _
        $region140: #{transformer_forward.1} parent=11 // pred_fallthru
          _
        // Predicated region
        $region141: #{transformer_forward.1} parent=11 // pred_check
          %p1787 = pneg %p957
        $region142: #{transformer_forward.1} parent=11 // pred_check_branch
          %1789 = sbr.rel (%p1787) target = $region144
        $region143: #{transformer_forward.1} parent=11 // pred_region
          %s1791 = ssub.s32 16, 16
          %1792 = vsyncadd [#allocation3], %s1791
          %s1794 = sshll.u32 [#allocation2], 4
          %s1795 = int_to_ptr.vmem [resolvable:$true] %s1794
          %1797 = dma.hbm_to_vmem [thread:$0]  %s73, 16, %s1795, [#allocation3]
        $region144: #{transformer_forward.1} parent=11 // pred_fallthru
          _
        // Predicated region
        $region145: #{transformer_forward.1} parent=11 // pred_check
          %p1798 = pneg %p978
        $region146: #{transformer_forward.1} parent=11 // pred_check_branch
          %1800 = sbr.rel (%p1798) target = $region148
        $region147: #{transformer_forward.1} parent=11 // pred_region
          %s1802 = ssub.s32 16, 16
          %1803 = vsyncadd [#allocation6], %s1802
          %s1805 = sshll.u32 [#allocation5], 4
          %s1806 = int_to_ptr.vmem [resolvable:$true] %s1805
          %1808 = dma.hbm_to_vmem [thread:$0]  %s75, 16, %s1806, [#allocation6]
        $region148: #{transformer_forward.1} parent=11 // pred_fallthru
          _
        // Predicated region
        $region149: #{transformer_forward.1} parent=11 // pred_check
          %p1809 = pneg %p999
        $region150: #{transformer_forward.1} parent=11 // pred_check_branch
          %1811 = sbr.rel (%p1809) target = $region152
        $region151: #{transformer_forward.1} parent=11 // pred_region
          %s1813 = ssub.s32 16, 16
          %1814 = vsyncadd [#allocation6], %s1813
          %s1816 = sshll.u32 [#allocation7], 4
          %s1817 = int_to_ptr.vmem [resolvable:$true] %s1816
          %1819 = dma.hbm_to_vmem [thread:$0]  %s77, 16, %s1817, [#allocation6]
        $region152: #{transformer_forward.1} parent=11 // pred_fallthru
          _
        // Predicated region
        $region153: #{transformer_forward.1} parent=11 // pred_check
          %p1820 = pneg %p1020
        $region154: #{transformer_forward.1} parent=11 // pred_check_branch
          %1822 = sbr.rel (%p1820) target = $region156
        $region155: #{transformer_forward.1} parent=11 // pred_region
          _
        $region156: #{transformer_forward.1} parent=11 // pred_fallthru
          _
        // Predicated region
        $region157: #{transformer_forward.1} parent=11 // pred_check
          %p1823 = pneg %p1041
        $region158: #{transformer_forward.1} parent=11 // pred_check_branch
          %1825 = sbr.rel (%p1823) target = $region160
        $region159: #{transformer_forward.1} parent=11 // pred_region
          _
        $region160: #{transformer_forward.1} parent=11 // pred_fallthru
          _
        // Predicated region
        $region161: #{transformer_forward.1} parent=11 // pred_check
          %p1826 = pneg %p1062
        $region162: #{transformer_forward.1} parent=11 // pred_check_branch
          %1828 = sbr.rel (%p1826) target = $region164
        $region163: #{transformer_forward.1} parent=11 // pred_region
          _
        $region164: #{transformer_forward.1} parent=11 // pred_fallthru
          _
        // Predicated region
        $region165: #{transformer_forward.1} parent=11 // pred_check
          %p1829 = pneg %p1083
        $region166: #{transformer_forward.1} parent=11 // pred_check_branch
          %1831 = sbr.rel (%p1829) target = $region168
        $region167: #{transformer_forward.1} parent=11 // pred_region
          _
        $region168: #{transformer_forward.1} parent=11 // pred_fallthru
          _
        // Predicated region
        $region169: #{transformer_forward.1} parent=11 // pred_check
          %p1832 = pneg %p1104
        $region170: #{transformer_forward.1} parent=11 // pred_check_branch
          %1834 = sbr.rel (%p1832) target = $region172
        $region171: #{transformer_forward.1} parent=11 // pred_region
          _
        $region172: #{transformer_forward.1} parent=11 // pred_fallthru
          _
        // Predicated region
        $region173: #{transformer_forward.1} parent=11 // pred_check
          %p1835 = pneg %p1125
        $region174: #{transformer_forward.1} parent=11 // pred_check_branch
          %1837 = sbr.rel (%p1835) target = $region176
        $region175: #{transformer_forward.1} parent=11 // pred_region
          %s1839 = ssub.s32 16, 16
          %1840 = vsyncadd [#allocation9], %s1839
          %s1842 = sshll.u32 [#allocation8], 4
          %s1843 = int_to_ptr.vmem [resolvable:$true] %s1842
          %1845 = dma.hbm_to_vmem [thread:$0]  %s89, 16, %s1843, [#allocation9]
        $region176: #{transformer_forward.1} parent=11 // pred_fallthru
          _
        // Predicated region
        $region177: #{transformer_forward.1} parent=11 // pred_check
          %p1846 = pneg %p1146
        $region178: #{transformer_forward.1} parent=11 // pred_check_branch
          %1848 = sbr.rel (%p1846) target = $region180
        $region179: #{transformer_forward.1} parent=11 // pred_region
          %s1850 = ssub.s32 16, 16
          %1851 = vsyncadd [#allocation9], %s1850
          %s1853 = sshll.u32 [#allocation10], 4
          %s1854 = int_to_ptr.vmem [resolvable:$true] %s1853
          %1856 = dma.hbm_to_vmem [thread:$0]  %s91, 16, %s1854, [#allocation9]
        $region180: #{transformer_forward.1} parent=11 // pred_fallthru
          _
        // Predicated region
        $region181: #{transformer_forward.1} parent=11 // pred_check
          %p1857 = pneg %p1167
        $region182: #{transformer_forward.1} parent=11 // pred_check_branch
          %1859 = sbr.rel (%p1857) target = $region184
        $region183: #{transformer_forward.1} parent=11 // pred_region
          %s1861 = ssub.s32 16, 16
          %1862 = vsyncadd [#allocation12], %s1861
          %s1864 = sshll.u32 [#allocation11], 4
          %s1865 = int_to_ptr.vmem [resolvable:$true] %s1864
          %1867 = dma.hbm_to_vmem [thread:$0]  %s93, 16, %s1865, [#allocation12]
        $region184: #{transformer_forward.1} parent=11 // pred_fallthru
          _
        // Predicated region
        $region185: #{transformer_forward.1} parent=11 // pred_check
          %p1868 = pneg %p1188
        $region186: #{transformer_forward.1} parent=11 // pred_check_branch
          %1870 = sbr.rel (%p1868) target = $region188
        $region187: #{transformer_forward.1} parent=11 // pred_region
          _
        $region188: #{transformer_forward.1} parent=11 // pred_fallthru
          _
        // Predicated region
        $region189: #{transformer_forward.1} parent=11 // pred_check
          %p1871 = pneg %p1209
        $region190: #{transformer_forward.1} parent=11 // pred_check_branch
          %1873 = sbr.rel (%p1871) target = $region192
        $region191: #{transformer_forward.1} parent=11 // pred_region
          %s1875 = ssub.s32 16, 16
          %1876 = vsyncadd [#allocation12], %s1875
          %s1878 = sshll.u32 [#allocation13], 4
          %s1879 = int_to_ptr.vmem [resolvable:$true] %s1878
          %1881 = dma.hbm_to_vmem [thread:$0]  %s97, 16, %s1879, [#allocation12]
        $region192: #{transformer_forward.1} parent=11 // pred_fallthru
          _
        // Predicated region
        $region193: #{transformer_forward.1} parent=11 // pred_check
          %p1882 = pneg %p1230
        $region194: #{transformer_forward.1} parent=11 // pred_check_branch
          %1884 = sbr.rel (%p1882) target = $region196
        $region195: #{transformer_forward.1} parent=11 // pred_region
          %s1886 = ssub.s32 16, 16
          %1887 = vsyncadd [#allocation15], %s1886
          %s1889 = sshll.u32 [#allocation14], 4
          %s1890 = int_to_ptr.vmem [resolvable:$true] %s1889
          %1892 = dma.hbm_to_vmem [thread:$0]  %s99, 16, %s1890, [#allocation15]
        $region196: #{transformer_forward.1} parent=11 // pred_fallthru
          _
        // Predicated region
        $region197: #{transformer_forward.1} parent=11 // pred_check
          %p1893 = pneg %p1251
        $region198: #{transformer_forward.1} parent=11 // pred_check_branch
          %1895 = sbr.rel (%p1893) target = $region200
        $region199: #{transformer_forward.1} parent=11 // pred_region
          %s1897 = ssub.s32 16, 16
          %1898 = vsyncadd [#allocation15], %s1897
          %s1900 = sshll.u32 [#allocation16], 4
          %s1901 = int_to_ptr.vmem [resolvable:$true] %s1900
          %1903 = dma.hbm_to_vmem [thread:$0]  %s101, 16, %s1901, [#allocation15]
        $region200: #{transformer_forward.1} parent=11 // pred_fallthru
          _
        // Predicated region
        $region201: #{transformer_forward.1} parent=11 // pred_check
          %p1904 = pneg %p1272
        $region202: #{transformer_forward.1} parent=11 // pred_check_branch
          %1906 = sbr.rel (%p1904) target = $region204
        $region203: #{transformer_forward.1} parent=11 // pred_region
          %s1908 = ssub.s32 16, 16
          %1909 = vsyncadd [#allocation18], %s1908
          %s1911 = sshll.u32 [#allocation17], 4
          %s1912 = int_to_ptr.vmem [resolvable:$true] %s1911
          %1914 = dma.hbm_to_vmem [thread:$0]  %s103, 16, %s1912, [#allocation18]
        $region204: #{transformer_forward.1} parent=11 // pred_fallthru
          _
        // Predicated region
        $region205: #{transformer_forward.1} parent=11 // pred_check
          %p1915 = pneg %p1293
        $region206: #{transformer_forward.1} parent=11 // pred_check_branch
          %1917 = sbr.rel (%p1915) target = $region208
        $region207: #{transformer_forward.1} parent=11 // pred_region
          _
        $region208: #{transformer_forward.1} parent=11 // pred_fallthru
          _
        // Predicated region
        $region209: #{transformer_forward.1} parent=11 // pred_check
          %p1918 = pneg %p1314
        $region210: #{transformer_forward.1} parent=11 // pred_check_branch
          %1920 = sbr.rel (%p1918) target = $region212
        $region211: #{transformer_forward.1} parent=11 // pred_region
          _
        $region212: #{transformer_forward.1} parent=11 // pred_fallthru
          _
        // Predicated region
        $region213: #{transformer_forward.1} parent=11 // pred_check
          %p1921 = pneg %p1335
        $region214: #{transformer_forward.1} parent=11 // pred_check_branch
          %1923 = sbr.rel (%p1921) target = $region216
        $region215: #{transformer_forward.1} parent=11 // pred_region
          _
        $region216: #{transformer_forward.1} parent=11 // pred_fallthru
          _
        // Predicated region
        $region217: #{transformer_forward.1} parent=11 // pred_check
          %p1924 = pneg %p1356
        $region218: #{transformer_forward.1} parent=11 // pred_check_branch
          %1926 = sbr.rel (%p1924) target = $region220
        $region219: #{transformer_forward.1} parent=11 // pred_region
          _
        $region220: #{transformer_forward.1} parent=11 // pred_fallthru
          _
        // Predicated region
        $region221: #{transformer_forward.1} parent=11 // pred_check
          %p1927 = pneg %p1377
        $region222: #{transformer_forward.1} parent=11 // pred_check_branch
          %1929 = sbr.rel (%p1927) target = $region224
        $region223: #{transformer_forward.1} parent=11 // pred_region
          %s1931 = ssub.s32 16, 16
          %1932 = vsyncadd [#allocation18], %s1931
          %s1934 = sshll.u32 [#allocation19], 4
          %s1935 = int_to_ptr.vmem [resolvable:$true] %s1934
          %1937 = dma.hbm_to_vmem [thread:$0]  %s113, 16, %s1935, [#allocation18]
        $region224: #{transformer_forward.1} parent=11 // pred_fallthru
          _
        // Predicated region
        $region225: #{transformer_forward.1} parent=11 // pred_check
          %p1938 = pneg %p1398
        $region226: #{transformer_forward.1} parent=11 // pred_check_branch
          %1940 = sbr.rel (%p1938) target = $region228
        $region227: #{transformer_forward.1} parent=11 // pred_region
          %s1942 = ssub.s32 16, 16
          %1943 = vsyncadd [#allocation21], %s1942
          %s1945 = sshll.u32 [#allocation20], 4
          %s1946 = int_to_ptr.vmem [resolvable:$true] %s1945
          %1948 = dma.hbm_to_vmem [thread:$0]  %s115, 16, %s1946, [#allocation21]
        $region228: #{transformer_forward.1} parent=11 // pred_fallthru
          _
        // Predicated region
        $region229: #{transformer_forward.1} parent=11 // pred_check
          %p1949 = pneg %p1419
        $region230: #{transformer_forward.1} parent=11 // pred_check_branch
          %1951 = sbr.rel (%p1949) target = $region232
        $region231: #{transformer_forward.1} parent=11 // pred_region
          %s1953 = ssub.s32 16, 16
          %1954 = vsyncadd [#allocation21], %s1953
          %s1956 = sshll.u32 [#allocation22], 4
          %s1957 = int_to_ptr.vmem [resolvable:$true] %s1956
          %1959 = dma.hbm_to_vmem [thread:$0]  %s117, 16, %s1957, [#allocation21]
        $region232: #{transformer_forward.1} parent=11 // pred_fallthru
          _
        // Predicated region
        $region233: #{transformer_forward.1} parent=11 // pred_check
          %p1960 = pneg %p1440
        $region234: #{transformer_forward.1} parent=11 // pred_check_branch
          %1962 = sbr.rel (%p1960) target = $region236
        $region235: #{transformer_forward.1} parent=11 // pred_region
          _
        $region236: #{transformer_forward.1} parent=11 // pred_fallthru
          _
        // Predicated region
        $region237: #{transformer_forward.1} parent=11 // pred_check
          %p1963 = pneg %p1461
        $region238: #{transformer_forward.1} parent=11 // pred_check_branch
          %1965 = sbr.rel (%p1963) target = $region240
        $region239: #{transformer_forward.1} parent=11 // pred_region
          %s1967 = ssub.s32 16, 16
          %1968 = vsyncadd [#allocation24], %s1967
          %s1970 = sshll.u32 [#allocation23], 4
          %s1971 = int_to_ptr.vmem [resolvable:$true] %s1970
          %1973 = dma.hbm_to_vmem [thread:$0]  %s121, 16, %s1971, [#allocation24]
        $region240: #{transformer_forward.1} parent=11 // pred_fallthru
          _
        // Predicated region
        $region241: #{transformer_forward.1} parent=11 // pred_check
          %p1974 = pneg %p1482
        $region242: #{transformer_forward.1} parent=11 // pred_check_branch
          %1976 = sbr.rel (%p1974) target = $region244
        $region243: #{transformer_forward.1} parent=11 // pred_region
          %s1978 = ssub.s32 16, 16
          %1979 = vsyncadd [#allocation24], %s1978
          %s1981 = sshll.u32 [#allocation25], 4
          %s1982 = int_to_ptr.vmem [resolvable:$true] %s1981
          %1984 = dma.hbm_to_vmem [thread:$0]  %s123, 16, %s1982, [#allocation24]
        $region244: #{transformer_forward.1} parent=11 // pred_fallthru
          _
        // Predicated region
        $region245: #{transformer_forward.1} parent=11 // pred_check
          %p1985 = pneg %p1503
        $region246: #{transformer_forward.1} parent=11 // pred_check_branch
          %1987 = sbr.rel (%p1985) target = $region248
        $region247: #{transformer_forward.1} parent=11 // pred_region
          %s1989 = ssub.s32 16, 16
          %1990 = vsyncadd [#allocation27], %s1989
          %s1992 = sshll.u32 [#allocation26], 4
          %s1993 = int_to_ptr.vmem [resolvable:$true] %s1992
          %1995 = dma.hbm_to_vmem [thread:$0]  %s125, 16, %s1993, [#allocation27]
        $region248: #{transformer_forward.1} parent=11 // pred_fallthru
          _
        // Predicated region
        $region249: #{transformer_forward.1} parent=11 // pred_check
          %p1996 = pneg %p1524
        $region250: #{transformer_forward.1} parent=11 // pred_check_branch
          %1998 = sbr.rel (%p1996) target = $region252
        $region251: #{transformer_forward.1} parent=11 // pred_region
          %s2000 = ssub.s32 16, 16
          %2001 = vsyncadd [#allocation27], %s2000
          %s2003 = sshll.u32 [#allocation28], 4
          %s2004 = int_to_ptr.vmem [resolvable:$true] %s2003
          %2006 = dma.hbm_to_vmem [thread:$0]  %s127, 16, %s2004, [#allocation27]
        $region252: #{transformer_forward.1} parent=11 // pred_fallthru
          _
        // Predicated region
        $region253: #{transformer_forward.1} parent=11 // pred_check
          %p2007 = pneg %p1545
        $region254: #{transformer_forward.1} parent=11 // pred_check_branch
          %2009 = sbr.rel (%p2007) target = $region256
        $region255: #{transformer_forward.1} parent=11 // pred_region
          _
        $region256: #{transformer_forward.1} parent=11 // pred_fallthru
          _
        // Predicated region
        $region257: #{transformer_forward.1} parent=11 // pred_check
          %p2010 = pneg %p1566
        $region258: #{transformer_forward.1} parent=11 // pred_check_branch
          %2012 = sbr.rel (%p2010) target = $region260
        $region259: #{transformer_forward.1} parent=11 // pred_region
          _
        $region260: #{transformer_forward.1} parent=11 // pred_fallthru
          _
        // Predicated region
        $region261: #{transformer_forward.1} parent=11 // pred_check
          %p2013 = pneg %p1587
        $region262: #{transformer_forward.1} parent=11 // pred_check_branch
          %2015 = sbr.rel (%p2013) target = $region264
        $region263: #{transformer_forward.1} parent=11 // pred_region
          _
        $region264: #{transformer_forward.1} parent=11 // pred_fallthru
          _
        // Predicated region
        $region265: #{transformer_forward.1} parent=11 // pred_check
          %p2016 = pneg %p1608
        $region266: #{transformer_forward.1} parent=11 // pred_check_branch
          %2018 = sbr.rel (%p2016) target = $region268
        $region267: #{transformer_forward.1} parent=11 // pred_region
          _
        $region268: #{transformer_forward.1} parent=11 // pred_fallthru
          _
        // Predicated region
        $region269: #{transformer_forward.1} parent=11 // pred_check
          %p2019 = pneg %p1629
        $region270: #{transformer_forward.1} parent=11 // pred_check_branch
          %2021 = sbr.rel (%p2019) target = $region272
        $region271: #{transformer_forward.1} parent=11 // pred_region
          %s2023 = ssub.s32 16, 16
          %2024 = vsyncadd [#allocation30], %s2023
          %s2026 = sshll.u32 [#allocation29], 4
          %s2027 = int_to_ptr.vmem [resolvable:$true] %s2026
          %2029 = dma.hbm_to_vmem [thread:$0]  %s137, 16, %s2027, [#allocation30]
        $region272: #{transformer_forward.1} parent=11 // pred_fallthru
          _
        // Predicated region
        $region273: #{transformer_forward.1} parent=11 // pred_check
          %p2030 = pneg %p1650
        $region274: #{transformer_forward.1} parent=11 // pred_check_branch
          %2032 = sbr.rel (%p2030) target = $region276
        $region275: #{transformer_forward.1} parent=11 // pred_region
          _
        $region276: #{transformer_forward.1} parent=11 // pred_fallthru
          _
      $region12: #{transformer_forward.1} parent=5 // pred_fallthru
        _
      %p2033 = scmp.lt.s32.totalorder %s160, 2
      // Predicated region
      $region277: #{transformer_forward.1} parent=5 // pred_check
        %p2034 = pneg %p2033
      $region278: #{transformer_forward.1} parent=5 // pred_check_branch
        %2036 = sbr.rel (%p2034) target = $region280
      $region279: #{transformer_forward.1} parent=5 // pred_region
        // Predicated region
        $region281: #{transformer_forward.1} parent=279 // pred_check
          %p2037 = pneg %p180
        $region282: #{transformer_forward.1} parent=279 // pred_check_branch
          %2039 = sbr.rel (%p2037) target = $region284
        $region283: #{transformer_forward.1} parent=279 // pred_region
          %p2040 = scmp.lt.s32.totalorder %s160, 1
          %s2041 = scalar_select %p2040, %s160, 1
          %s2042 = smul.addr %s2041, 8
          %s2043 = scalar_lea.vmem %s1, %s2042
        $region284: #{transformer_forward.1} parent=279 // pred_fallthru
          _
        // Predicated region
        $region285: #{transformer_forward.1} parent=279 // pred_check
          %p2044 = pneg %p206
        $region286: #{transformer_forward.1} parent=279 // pred_check_branch
          %2046 = sbr.rel (%p2044) target = $region288
        $region287: #{transformer_forward.1} parent=279 // pred_region
          %p2047 = scmp.lt.s32.totalorder %s160, 1
          %s2048 = scalar_select %p2047, %s160, 1
          %s2049 = smul.addr %s2048, 8
          %s2050 = scalar_lea.vmem %s3, %s2049
        $region288: #{transformer_forward.1} parent=279 // pred_fallthru
          _
        // Predicated region
        $region289: #{transformer_forward.1} parent=279 // pred_check
          %p2051 = pneg %p232
        $region290: #{transformer_forward.1} parent=279 // pred_check_branch
          %2053 = sbr.rel (%p2051) target = $region292
        $region291: #{transformer_forward.1} parent=279 // pred_region
          %p2054 = scmp.lt.s32.totalorder %s160, 1
          %s2055 = scalar_select %p2054, %s160, 1
          %s2056 = scalar_lea.vmem %s5, %s2055
        $region292: #{transformer_forward.1} parent=279 // pred_fallthru
          _
        // Predicated region
        $region293: #{transformer_forward.1} parent=279 // pred_check
          %p2057 = pneg %p258
        $region294: #{transformer_forward.1} parent=279 // pred_check_branch
          %2059 = sbr.rel (%p2057) target = $region296
        $region295: #{transformer_forward.1} parent=279 // pred_region
          %p2060 = scmp.lt.s32.totalorder %s160, 1
          %s2061 = scalar_select %p2060, %s160, 1
          %s2062 = smul.addr %s2061, 8
          %s2063 = scalar_lea.vmem %s7, %s2062
        $region296: #{transformer_forward.1} parent=279 // pred_fallthru
          _
      $region280: #{transformer_forward.1} parent=5 // pred_fallthru
        _
      %p2064 = scmp.le.s32.totalorder 1, %s160
      %p2065 = scmp.lt.s32.totalorder %s160, 3
      %p2066 = pnand %p2064, %p2065
      %p2067 = pneg %p2066
      // Predicated region
      $region297: #{transformer_forward.1} parent=5 // pred_check
        _
      $region298: #{transformer_forward.1} parent=5 // pred_check_branch
        %2069 = sbr.rel (%p2066) target = $region300
      $region299: #{transformer_forward.1} parent=5 // pred_region
        %s2070 = ssub.s32 %s160, 1
        // Predicated region
        $region301: #{transformer_forward.1} parent=299 // pred_check
          %p2071 = pneg %p957
        $region302: #{transformer_forward.1} parent=299 // pred_check_branch
          %2073 = sbr.rel (%p2071) target = $region304
        $region303: #{transformer_forward.1} parent=299 // pred_region
          %2074 = dma.done [#allocation3], 16
        $region304: #{transformer_forward.1} parent=299 // pred_fallthru
          _
        // Predicated region
        $region305: #{transformer_forward.1} parent=299 // pred_check
          %p2075 = pneg %p978
        $region306: #{transformer_forward.1} parent=299 // pred_check_branch
          %2077 = sbr.rel (%p2075) target = $region308
        $region307: #{transformer_forward.1} parent=299 // pred_region
          %2078 = dma.done [#allocation6], 16
        $region308: #{transformer_forward.1} parent=299 // pred_fallthru
          _
        // Predicated region
        $region309: #{transformer_forward.1} parent=299 // pred_check
          %p2079 = pneg %p999
        $region310: #{transformer_forward.1} parent=299 // pred_check_branch
          %2081 = sbr.rel (%p2079) target = $region312
        $region311: #{transformer_forward.1} parent=299 // pred_region
          %2082 = dma.done [#allocation6], 16
        $region312: #{transformer_forward.1} parent=299 // pred_fallthru
          _
        // Predicated region
        $region313: #{transformer_forward.1} parent=299 // pred_check
          %p2083 = pneg %p1125
        $region314: #{transformer_forward.1} parent=299 // pred_check_branch
          %2085 = sbr.rel (%p2083) target = $region316
        $region315: #{transformer_forward.1} parent=299 // pred_region
          %2086 = dma.done [#allocation9], 16
        $region316: #{transformer_forward.1} parent=299 // pred_fallthru
          _
        // Predicated region
        $region317: #{transformer_forward.1} parent=299 // pred_check
          %p2087 = pneg %p1146
        $region318: #{transformer_forward.1} parent=299 // pred_check_branch
          %2089 = sbr.rel (%p2087) target = $region320
        $region319: #{transformer_forward.1} parent=299 // pred_region
          %2090 = dma.done [#allocation9], 16
        $region320: #{transformer_forward.1} parent=299 // pred_fallthru
          _
        // Predicated region
        $region321: #{transformer_forward.1} parent=299 // pred_check
          %p2091 = pneg %p1167
        $region322: #{transformer_forward.1} parent=299 // pred_check_branch
          %2093 = sbr.rel (%p2091) target = $region324
        $region323: #{transformer_forward.1} parent=299 // pred_region
          %2094 = dma.done [#allocation12], 16
        $region324: #{transformer_forward.1} parent=299 // pred_fallthru
          _
        // Predicated region
        $region325: #{transformer_forward.1} parent=299 // pred_check
          %p2095 = pneg %p1209
        $region326: #{transformer_forward.1} parent=299 // pred_check_branch
          %2097 = sbr.rel (%p2095) target = $region328
        $region327: #{transformer_forward.1} parent=299 // pred_region
          %2098 = dma.done [#allocation12], 16
        $region328: #{transformer_forward.1} parent=299 // pred_fallthru
          _
        // Predicated region
        $region329: #{transformer_forward.1} parent=299 // pred_check
          %p2099 = pneg %p1230
        $region330: #{transformer_forward.1} parent=299 // pred_check_branch
          %2101 = sbr.rel (%p2099) target = $region332
        $region331: #{transformer_forward.1} parent=299 // pred_region
          %2102 = dma.done [#allocation15], 16
        $region332: #{transformer_forward.1} parent=299 // pred_fallthru
          _
        // Predicated region
        $region333: #{transformer_forward.1} parent=299 // pred_check
          %p2103 = pneg %p1251
        $region334: #{transformer_forward.1} parent=299 // pred_check_branch
          %2105 = sbr.rel (%p2103) target = $region336
        $region335: #{transformer_forward.1} parent=299 // pred_region
          %2106 = dma.done [#allocation15], 16
        $region336: #{transformer_forward.1} parent=299 // pred_fallthru
          _
        // Predicated region
        $region337: #{transformer_forward.1} parent=299 // pred_check
          %p2107 = pneg %p1272
        $region338: #{transformer_forward.1} parent=299 // pred_check_branch
          %2109 = sbr.rel (%p2107) target = $region340
        $region339: #{transformer_forward.1} parent=299 // pred_region
          %2110 = dma.done [#allocation18], 16
        $region340: #{transformer_forward.1} parent=299 // pred_fallthru
          _
        // Predicated region
        $region341: #{transformer_forward.1} parent=299 // pred_check
          %p2111 = pneg %p1377
        $region342: #{transformer_forward.1} parent=299 // pred_check_branch
          %2113 = sbr.rel (%p2111) target = $region344
        $region343: #{transformer_forward.1} parent=299 // pred_region
          %2114 = dma.done [#allocation18], 16
        $region344: #{transformer_forward.1} parent=299 // pred_fallthru
          _
        // Predicated region
        $region345: #{transformer_forward.1} parent=299 // pred_check
          %p2115 = pneg %p1398
        $region346: #{transformer_forward.1} parent=299 // pred_check_branch
          %2117 = sbr.rel (%p2115) target = $region348
        $region347: #{transformer_forward.1} parent=299 // pred_region
          %2118 = dma.done [#allocation21], 16
        $region348: #{transformer_forward.1} parent=299 // pred_fallthru
          _
        // Predicated region
        $region349: #{transformer_forward.1} parent=299 // pred_check
          %p2119 = pneg %p1419
        $region350: #{transformer_forward.1} parent=299 // pred_check_branch
          %2121 = sbr.rel (%p2119) target = $region352
        $region351: #{transformer_forward.1} parent=299 // pred_region
          %2122 = dma.done [#allocation21], 16
        $region352: #{transformer_forward.1} parent=299 // pred_fallthru
          _
        // Predicated region
        $region353: #{transformer_forward.1} parent=299 // pred_check
          %p2123 = pneg %p1461
        $region354: #{transformer_forward.1} parent=299 // pred_check_branch
          %2125 = sbr.rel (%p2123) target = $region356
        $region355: #{transformer_forward.1} parent=299 // pred_region
          %2126 = dma.done [#allocation24], 16
        $region356: #{transformer_forward.1} parent=299 // pred_fallthru
          _
        // Predicated region
        $region357: #{transformer_forward.1} parent=299 // pred_check
          %p2127 = pneg %p1482
        $region358: #{transformer_forward.1} parent=299 // pred_check_branch
          %2129 = sbr.rel (%p2127) target = $region360
        $region359: #{transformer_forward.1} parent=299 // pred_region
          %2130 = dma.done [#allocation24], 16
        $region360: #{transformer_forward.1} parent=299 // pred_fallthru
          _
        // Predicated region
        $region361: #{transformer_forward.1} parent=299 // pred_check
          %p2131 = pneg %p1503
        $region362: #{transformer_forward.1} parent=299 // pred_check_branch
          %2133 = sbr.rel (%p2131) target = $region364
        $region363: #{transformer_forward.1} parent=299 // pred_region
          %2134 = dma.done [#allocation27], 16
        $region364: #{transformer_forward.1} parent=299 // pred_fallthru
          _
        // Predicated region
        $region365: #{transformer_forward.1} parent=299 // pred_check
          %p2135 = pneg %p1524
        $region366: #{transformer_forward.1} parent=299 // pred_check_branch
          %2137 = sbr.rel (%p2135) target = $region368
        $region367: #{transformer_forward.1} parent=299 // pred_region
          %2138 = dma.done [#allocation27], 16
        $region368: #{transformer_forward.1} parent=299 // pred_fallthru
          _
        // Predicated region
        $region369: #{transformer_forward.1} parent=299 // pred_check
          %p2139 = pneg %p1629
        $region370: #{transformer_forward.1} parent=299 // pred_check_branch
          %2141 = sbr.rel (%p2139) target = $region372
        $region371: #{transformer_forward.1} parent=299 // pred_region
          %2142 = dma.done [#allocation30], 16
        $region372: #{transformer_forward.1} parent=299 // pred_fallthru
          _
        %p2143 = scmp.lt.s32.totalorder %s165, 1
        %s2144 = scalar_select %p2143, %s165, 1
        %s2145 = smul.addr %s2144, 8
        %s2146 = scalar_lea.vmem %s1, %s2145
        %p2147 = pneg %p186
        %p2148 = pneg %p183
        %p2149 = scmp.lt.s32.totalorder %s165, 1
        %s2150 = scalar_select %p2149, %s165, 1
        %s2151 = smul.addr %s2150, 8
        %s2152 = scalar_lea.vmem %s3, %s2151
        %p2153 = pneg %p212
        %p2154 = pneg %p209
        %p2155 = scmp.lt.s32.totalorder %s165, 1
        %s2156 = scalar_select %p2155, %s165, 1
        %s2157 = scalar_lea.vmem %s5, %s2156
        %p2158 = pneg %p238
        %p2159 = pneg %p235
        %p2160 = scmp.lt.s32.totalorder %s165, 1
        %s2161 = scalar_select %p2160, %s165, 1
        %s2162 = smul.addr %s2161, 8
        %s2163 = scalar_lea.vmem %s7, %s2162
        %p2164 = pneg %p264
        %p2165 = pneg %p261
        %p2166 = pneg %p285
        %p2167 = pneg %p282
        %p2168 = pneg %p306
        %p2169 = pneg %p303
        %p2170 = pneg %p327
        %p2171 = pneg %p324
        %p2172 = pneg %p348
        %p2173 = pneg %p345
        %p2174 = pneg %p369
        %p2175 = pneg %p366
        %p2176 = pneg %p390
        %p2177 = pneg %p387
        %p2178 = pneg %p411
        %p2179 = pneg %p408
        %p2180 = pneg %p432
        %p2181 = pneg %p429
        %p2182 = pneg %p453
        %p2183 = pneg %p450
        %p2184 = pneg %p474
        %p2185 = pneg %p471
        %p2186 = pneg %p495
        %p2187 = pneg %p492
        %p2188 = pneg %p516
        %p2189 = pneg %p513
        %p2190 = pneg %p537
        %p2191 = pneg %p534
        %p2192 = pneg %p558
        %p2193 = pneg %p555
        %p2194 = pneg %p579
        %p2195 = pneg %p576
        %p2196 = pneg %p600
        %p2197 = pneg %p597
        %p2198 = pneg %p621
        %p2199 = pneg %p618
        %p2200 = pneg %p642
        %p2201 = pneg %p639
        %p2202 = pneg %p663
        %p2203 = pneg %p660
        %p2204 = pneg %p684
        %p2205 = pneg %p681
        %p2206 = pneg %p705
        %p2207 = pneg %p702
        %p2208 = pneg %p726
        %p2209 = pneg %p723
        %p2210 = pneg %p747
        %p2211 = pneg %p744
        %p2212 = pneg %p768
        %p2213 = pneg %p765
        %p2214 = pneg %p789
        %p2215 = pneg %p786
        %p2216 = pneg %p810
        %p2217 = pneg %p807
        %p2218 = pneg %p831
        %p2219 = pneg %p828
        %p2220 = pneg %p852
        %p2221 = pneg %p849
        %p2222 = pneg %p873
        %p2223 = pneg %p870
        %p2224 = pneg %p894
        %p2225 = pneg %p891
        %p2226 = pneg %p915
        %p2227 = pneg %p912
        %p2228 = pneg %p936
        %p2229 = pneg %p933
        %p2230 = pneg %p957
        %p2231 = pneg %p954
        %p2232 = pneg %p978
        %p2233 = pneg %p975
        %p2234 = pneg %p999
        %p2235 = pneg %p996
        %p2236 = pneg %p1020
        %p2237 = pneg %p1017
        %p2238 = pneg %p1041
        %p2239 = pneg %p1038
        %p2240 = pneg %p1062
        %p2241 = pneg %p1059
        %p2242 = pneg %p1083
        %p2243 = pneg %p1080
        %p2244 = pneg %p1104
        %p2245 = pneg %p1101
        %p2246 = pneg %p1125
        %p2247 = pneg %p1122
        %p2248 = pneg %p1146
        %p2249 = pneg %p1143
        %p2250 = pneg %p1167
        %p2251 = pneg %p1164
        %p2252 = pneg %p1188
        %p2253 = pneg %p1185
        %p2254 = pneg %p1209
        %p2255 = pneg %p1206
        %p2256 = pneg %p1230
        %p2257 = pneg %p1227
        %p2258 = pneg %p1251
        %p2259 = pneg %p1248
        %p2260 = pneg %p1272
        %p2261 = pneg %p1269
        %p2262 = pneg %p1293
        %p2263 = pneg %p1290
        %p2264 = pneg %p1314
        %p2265 = pneg %p1311
        %p2266 = pneg %p1335
        %p2267 = pneg %p1332
        %p2268 = pneg %p1356
        %p2269 = pneg %p1353
        %p2270 = pneg %p1377
        %p2271 = pneg %p1374
        %p2272 = pneg %p1398
        %p2273 = pneg %p1395
        %p2274 = pneg %p1419
        %p2275 = pneg %p1416
        %p2276 = pneg %p1440
        %p2277 = pneg %p1437
        %p2278 = pneg %p1461
        %p2279 = pneg %p1458
        %p2280 = pneg %p1482
        %p2281 = pneg %p1479
        %p2282 = pneg %p1503
        %p2283 = pneg %p1500
        %p2284 = pneg %p1524
        %p2285 = pneg %p1521
        %p2286 = pneg %p1545
        %p2287 = pneg %p1542
        %p2288 = pneg %p1566
        %p2289 = pneg %p1563
        %p2290 = pneg %p1587
        %p2291 = pneg %p1584
        %p2292 = pneg %p1608
        %p2293 = pneg %p1605
        %p2294 = pneg %p1629
        %p2295 = pneg %p1626
        %p2296 = pneg %p1650
        %p2297 = pneg %p1647
        %p2298 = pneg %p1676
        %p2299 = pneg %p1673
        %s2300 = sand.u32 %s1663, 1
        %s2301 = scalar_lea.sflag [#allocation4], %s2300
        %s2302 = sand.u32 %s1663, 1
        %s2303 = smul.addr %s2302, 8
        %s2304 = scalar_lea.vmem [#allocation31], %s2303
        %p2305 = scmp.lt.s32.totalorder %s165, 1
        %s2306 = scalar_select %p2305, %s165, 1
        %s2307 = smul.addr %s2306, 8
        %s2308 = scalar_lea.vmem %s1, %s2307
        %p2309 = scmp.lt.s32.totalorder %s165, 1
        %s2310 = scalar_select %p2309, %s165, 1
        %s2311 = smul.addr %s2310, 8
        %s2312 = scalar_lea.vmem %s3, %s2311
        %p2313 = scmp.lt.s32.totalorder %s165, 1
        %s2314 = scalar_select %p2313, %s165, 1
        %s2315 = scalar_lea.vmem %s5, %s2314
        %p2316 = scmp.lt.s32.totalorder %s165, 1
        %s2317 = scalar_select %p2316, %s165, 1
        %s2318 = smul.addr %s2317, 8
        %s2319 = scalar_lea.vmem %s7, %s2318
        %v2321 = vld [vmem:[%s9] sm:$0x1]
        %v2322 = vld [vmem:[%s11] sm:$0x1]
        %v2323 = vld [vmem:[%s13] sm:$0x1]
        %v2324 = vld [vmem:[%s13 + $0x1] sm:$0x1]
        %v2325 = vld [vmem:[%s13 + $0x2] sm:$0x1]
        %v2326 = vld [vmem:[%s13 + $0x3] sm:$0x1]
        %v2327 = vld [vmem:[%s15] sm:$0x1]
        %v2328 = vld [vmem:[%s17] sm:$0x1]
        %v2329 = vld [vmem:[%s17 + $0x1] sm:$0x1]
        %v2330 = vld [vmem:[%s17 + $0x2] sm:$0x1]
        %v2331 = vld [vmem:[%s17 + $0x3] sm:$0x1]
        %v2332 = vld [vmem:[%s19] sm:$0xf]
        %v2333 = vld [vmem:[%s19 + $0x4] sm:$0xf]
        %v2334 = vld [vmem:[%s19 + $0x8] sm:$0xf]
        %v2335 = vld [vmem:[%s19 + $0xc] sm:$0xf]
        %v2336 = vld [vmem:[%s19 + $0x10] sm:$0xf]
        %v2337 = vld [vmem:[%s19 + $0x14] sm:$0xf]
        %v2338 = vld [vmem:[%s19 + $0x18] sm:$0xf]
        %v2339 = vld [vmem:[%s19 + $0x1c] sm:$0xf]
        %v2340 = vld [vmem:[%s19 + $0x20] sm:$0xf]
        %v2341 = vld [vmem:[%s19 + $0x24] sm:$0xf]
        %v2342 = vld [vmem:[%s19 + $0x28] sm:$0xf]
        %v2343 = vld [vmem:[%s19 + $0x2c] sm:$0xf]
        %v2344 = vld [vmem:[%s19 + $0x30] sm:$0xf]
        %v2345 = vld [vmem:[%s19 + $0x34] sm:$0xf]
        %v2346 = vld [vmem:[%s19 + $0x38] sm:$0xf]
        %v2347 = vld [vmem:[%s19 + $0x3c] sm:$0xf]
        %v2348 = vld [vmem:[%s21] sm:$0xf]
        %v2349 = vld [vmem:[%s21 + $0x4] sm:$0xf]
        %v2350 = vld [vmem:[%s21 + $0x8] sm:$0xf]
        %v2351 = vld [vmem:[%s21 + $0xc] sm:$0xf]
        %v2352 = vld [vmem:[%s23] sm:$0xf]
        %v2353 = vld [vmem:[%s23 + $0x4] sm:$0xf]
        %v2354 = vld [vmem:[%s23 + $0x8] sm:$0xf]
        %v2355 = vld [vmem:[%s23 + $0xc] sm:$0xf]
        %v2356 = vld [vmem:[%s23 + $0x10] sm:$0xf]
        %v2357 = vld [vmem:[%s23 + $0x14] sm:$0xf]
        %v2358 = vld [vmem:[%s23 + $0x18] sm:$0xf]
        %v2359 = vld [vmem:[%s23 + $0x1c] sm:$0xf]
        %v2360 = vld [vmem:[%s23 + $0x20] sm:$0xf]
        %v2361 = vld [vmem:[%s23 + $0x24] sm:$0xf]
        %v2362 = vld [vmem:[%s23 + $0x28] sm:$0xf]
        %v2363 = vld [vmem:[%s23 + $0x2c] sm:$0xf]
        %v2364 = vld [vmem:[%s23 + $0x30] sm:$0xf]
        %v2365 = vld [vmem:[%s23 + $0x34] sm:$0xf]
        %v2366 = vld [vmem:[%s23 + $0x38] sm:$0xf]
        %v2367 = vld [vmem:[%s23 + $0x3c] sm:$0xf]
        %v2368 = vld [vmem:[%s25] sm:$0x1]
        %v2369 = vld [vmem:[%s27] sm:$0x1]
        %v2370 = vld [vmem:[%s29] sm:$0x1]
        %v2371 = vld [vmem:[%s31] sm:$0x1]
        %v2372 = vld [vmem:[%s33] sm:$0x1]
        %v2373 = vld [vmem:[%s35] sm:$0x1]
        %v2374 = vld [vmem:[%s37] sm:$0x1]
        %v2375 = vld [vmem:[%s39] sm:$0x1]
        %v2376 = vld [vmem:[%s39 + $0x1] sm:$0x1]
        %v2377 = vld [vmem:[%s39 + $0x2] sm:$0x1]
        %v2378 = vld [vmem:[%s39 + $0x3] sm:$0x1]
        %v2379 = vld [vmem:[%s41] sm:$0xf]
        %v2380 = vld [vmem:[%s41 + $0x4] sm:$0xf]
        %v2381 = vld [vmem:[%s41 + $0x8] sm:$0xf]
        %v2382 = vld [vmem:[%s41 + $0xc] sm:$0xf]
        %v2383 = vld [vmem:[%s43] sm:$0xf]
        %v2384 = vld [vmem:[%s43 + $0x4] sm:$0xf]
        %v2385 = vld [vmem:[%s43 + $0x8] sm:$0xf]
        %v2386 = vld [vmem:[%s43 + $0xc] sm:$0xf]
        %v2387 = vld [vmem:[%s43 + $0x10] sm:$0xf]
        %v2388 = vld [vmem:[%s43 + $0x14] sm:$0xf]
        %v2389 = vld [vmem:[%s43 + $0x18] sm:$0xf]
        %v2390 = vld [vmem:[%s43 + $0x1c] sm:$0xf]
        %v2391 = vld [vmem:[%s43 + $0x20] sm:$0xf]
        %v2392 = vld [vmem:[%s43 + $0x24] sm:$0xf]
        %v2393 = vld [vmem:[%s43 + $0x28] sm:$0xf]
        %v2394 = vld [vmem:[%s43 + $0x2c] sm:$0xf]
        %v2395 = vld [vmem:[%s43 + $0x30] sm:$0xf]
        %v2396 = vld [vmem:[%s43 + $0x34] sm:$0xf]
        %v2397 = vld [vmem:[%s43 + $0x38] sm:$0xf]
        %v2398 = vld [vmem:[%s43 + $0x3c] sm:$0xf]
        %v2399 = vld [vmem:[%s45] sm:$0xf]
        %v2400 = vld [vmem:[%s45 + $0x4] sm:$0xf]
        %v2401 = vld [vmem:[%s45 + $0x8] sm:$0xf]
        %v2402 = vld [vmem:[%s45 + $0xc] sm:$0xf]
        %v2403 = vld [vmem:[%s47] sm:$0xf]
        %v2404 = vld [vmem:[%s47 + $0x4] sm:$0xf]
        %v2405 = vld [vmem:[%s47 + $0x8] sm:$0xf]
        %v2406 = vld [vmem:[%s47 + $0xc] sm:$0xf]
        %v2407 = vld [vmem:[%s47 + $0x10] sm:$0xf]
        %v2408 = vld [vmem:[%s47 + $0x14] sm:$0xf]
        %v2409 = vld [vmem:[%s47 + $0x18] sm:$0xf]
        %v2410 = vld [vmem:[%s47 + $0x1c] sm:$0xf]
        %v2411 = vld [vmem:[%s49] sm:$0x1]
        %v2412 = vld [vmem:[%s51] sm:$0x1]
        %v2413 = vld [vmem:[%s53] sm:$0x1]
        %v2414 = vld [vmem:[%s53 + $0x1] sm:$0x1]
        %v2415 = vld [vmem:[%s53 + $0x2] sm:$0x1]
        %v2416 = vld [vmem:[%s53 + $0x3] sm:$0x1]
        %v2417 = vld [vmem:[%s55] sm:$0x1]
        %v2418 = vld [vmem:[%s57] sm:$0x1]
        %v2419 = vld [vmem:[%s57 + $0x1] sm:$0x1]
        %v2420 = vld [vmem:[%s57 + $0x2] sm:$0x1]
        %v2421 = vld [vmem:[%s57 + $0x3] sm:$0x1]
        %v2422 = vld [vmem:[%s59] sm:$0xf]
        %v2423 = vld [vmem:[%s59 + $0x4] sm:$0xf]
        %v2424 = vld [vmem:[%s59 + $0x8] sm:$0xf]
        %v2425 = vld [vmem:[%s59 + $0xc] sm:$0xf]
        %v2426 = vld [vmem:[%s59 + $0x10] sm:$0xf]
        %v2427 = vld [vmem:[%s59 + $0x14] sm:$0xf]
        %v2428 = vld [vmem:[%s59 + $0x18] sm:$0xf]
        %v2429 = vld [vmem:[%s59 + $0x1c] sm:$0xf]
        %v2430 = vld [vmem:[%s59 + $0x20] sm:$0xf]
        %v2431 = vld [vmem:[%s59 + $0x24] sm:$0xf]
        %v2432 = vld [vmem:[%s59 + $0x28] sm:$0xf]
        %v2433 = vld [vmem:[%s59 + $0x2c] sm:$0xf]
        %v2434 = vld [vmem:[%s59 + $0x30] sm:$0xf]
        %v2435 = vld [vmem:[%s59 + $0x34] sm:$0xf]
        %v2436 = vld [vmem:[%s59 + $0x38] sm:$0xf]
        %v2437 = vld [vmem:[%s59 + $0x3c] sm:$0xf]
        %v2438 = vld [vmem:[%s61] sm:$0xf]
        %v2439 = vld [vmem:[%s61 + $0x4] sm:$0xf]
        %v2440 = vld [vmem:[%s61 + $0x8] sm:$0xf]
        %v2441 = vld [vmem:[%s61 + $0xc] sm:$0xf]
        %v2442 = vld [vmem:[%s63] sm:$0xf]
        %v2443 = vld [vmem:[%s63 + $0x4] sm:$0xf]
        %v2444 = vld [vmem:[%s63 + $0x8] sm:$0xf]
        %v2445 = vld [vmem:[%s63 + $0xc] sm:$0xf]
        %v2446 = vld [vmem:[%s63 + $0x10] sm:$0xf]
        %v2447 = vld [vmem:[%s63 + $0x14] sm:$0xf]
        %v2448 = vld [vmem:[%s63 + $0x18] sm:$0xf]
        %v2449 = vld [vmem:[%s63 + $0x1c] sm:$0xf]
        %v2450 = vld [vmem:[%s63 + $0x20] sm:$0xf]
        %v2451 = vld [vmem:[%s63 + $0x24] sm:$0xf]
        %v2452 = vld [vmem:[%s63 + $0x28] sm:$0xf]
        %v2453 = vld [vmem:[%s63 + $0x2c] sm:$0xf]
        %v2454 = vld [vmem:[%s63 + $0x30] sm:$0xf]
        %v2455 = vld [vmem:[%s63 + $0x34] sm:$0xf]
        %v2456 = vld [vmem:[%s63 + $0x38] sm:$0xf]
        %v2457 = vld [vmem:[%s63 + $0x3c] sm:$0xf]
        %v2458 = vld [vmem:[%s65] sm:$0x1]
        %v2459 = vld [vmem:[%s67] sm:$0x1]
        %v2460 = vld [vmem:[%s69] sm:$0x1]
        %v2461 = vld [vmem:[%s71] sm:$0x1]
        %v2462 = vld [vmem:[#allocation2] sm:$0x1]
        %v2463 = vld [vmem:[#allocation5] sm:$0x1]
        %v2464 = vld [vmem:[#allocation7] sm:$0x1]
        %v2465 = vld [vmem:[%s79] sm:$0x1]
        %v2466 = vld [vmem:[%s79 + $0x1] sm:$0x1]
        %v2467 = vld [vmem:[%s79 + $0x2] sm:$0x1]
        %v2468 = vld [vmem:[%s79 + $0x3] sm:$0x1]
        %v2469 = vld [vmem:[%s81] sm:$0xf]
        %v2470 = vld [vmem:[%s81 + $0x4] sm:$0xf]
        %v2471 = vld [vmem:[%s81 + $0x8] sm:$0xf]
        %v2472 = vld [vmem:[%s81 + $0xc] sm:$0xf]
        %v2473 = vld [vmem:[%s83] sm:$0xf]
        %v2474 = vld [vmem:[%s83 + $0x4] sm:$0xf]
        %v2475 = vld [vmem:[%s83 + $0x8] sm:$0xf]
        %v2476 = vld [vmem:[%s83 + $0xc] sm:$0xf]
        %v2477 = vld [vmem:[%s83 + $0x10] sm:$0xf]
        %v2478 = vld [vmem:[%s83 + $0x14] sm:$0xf]
        %v2479 = vld [vmem:[%s83 + $0x18] sm:$0xf]
        %v2480 = vld [vmem:[%s83 + $0x1c] sm:$0xf]
        %v2481 = vld [vmem:[%s83 + $0x20] sm:$0xf]
        %v2482 = vld [vmem:[%s83 + $0x24] sm:$0xf]
        %v2483 = vld [vmem:[%s83 + $0x28] sm:$0xf]
        %v2484 = vld [vmem:[%s83 + $0x2c] sm:$0xf]
        %v2485 = vld [vmem:[%s83 + $0x30] sm:$0xf]
        %v2486 = vld [vmem:[%s83 + $0x34] sm:$0xf]
        %v2487 = vld [vmem:[%s83 + $0x38] sm:$0xf]
        %v2488 = vld [vmem:[%s83 + $0x3c] sm:$0xf]
        %v2489 = vld [vmem:[%s85] sm:$0xf]
        %v2490 = vld [vmem:[%s85 + $0x4] sm:$0xf]
        %v2491 = vld [vmem:[%s85 + $0x8] sm:$0xf]
        %v2492 = vld [vmem:[%s85 + $0xc] sm:$0xf]
        %v2493 = vld [vmem:[%s87] sm:$0xf]
        %v2494 = vld [vmem:[%s87 + $0x4] sm:$0xf]
        %v2495 = vld [vmem:[%s87 + $0x8] sm:$0xf]
        %v2496 = vld [vmem:[%s87 + $0xc] sm:$0xf]
        %v2497 = vld [vmem:[%s87 + $0x10] sm:$0xf]
        %v2498 = vld [vmem:[%s87 + $0x14] sm:$0xf]
        %v2499 = vld [vmem:[%s87 + $0x18] sm:$0xf]
        %v2500 = vld [vmem:[%s87 + $0x1c] sm:$0xf]
        %v2501 = vld [vmem:[#allocation8] sm:$0x1]
        %v2502 = vld [vmem:[#allocation10] sm:$0x1]
        %v2503 = vld [vmem:[#allocation11] sm:$0x1]
        %v2504 = vld [vmem:[%s95] sm:$0x1]
        %v2505 = vld [vmem:[%s95 + $0x1] sm:$0x1]
        %v2506 = vld [vmem:[%s95 + $0x2] sm:$0x1]
        %v2507 = vld [vmem:[%s95 + $0x3] sm:$0x1]
        %v2508 = vld [vmem:[#allocation13] sm:$0x1]
        %v2509 = vld [vmem:[#allocation14] sm:$0x1]
        %v2510 = vld [vmem:[#allocation16] sm:$0x1]
        %v2511 = vld [vmem:[#allocation17] sm:$0x1]
        %v2512 = vld [vmem:[%s105] sm:$0xf]
        %v2513 = vld [vmem:[%s105 + $0x4] sm:$0xf]
        %v2514 = vld [vmem:[%s105 + $0x8] sm:$0xf]
        %v2515 = vld [vmem:[%s105 + $0xc] sm:$0xf]
        %v2516 = vld [vmem:[%s107] sm:$0xf]
        %v2517 = vld [vmem:[%s107 + $0x4] sm:$0xf]
        %v2518 = vld [vmem:[%s107 + $0x8] sm:$0xf]
        %v2519 = vld [vmem:[%s107 + $0xc] sm:$0xf]
        %v2520 = vld [vmem:[%s107 + $0x10] sm:$0xf]
        %v2521 = vld [vmem:[%s107 + $0x14] sm:$0xf]
        %v2522 = vld [vmem:[%s107 + $0x18] sm:$0xf]
        %v2523 = vld [vmem:[%s107 + $0x1c] sm:$0xf]
        %v2524 = vld [vmem:[%s109] sm:$0xf]
        %v2525 = vld [vmem:[%s109 + $0x4] sm:$0xf]
        %v2526 = vld [vmem:[%s109 + $0x8] sm:$0xf]
        %v2527 = vld [vmem:[%s109 + $0xc] sm:$0xf]
        %v2528 = vld [vmem:[%s111] sm:$0xf]
        %v2529 = vld [vmem:[%s111 + $0x4] sm:$0xf]
        %v2530 = vld [vmem:[%s111 + $0x8] sm:$0xf]
        %v2531 = vld [vmem:[%s111 + $0xc] sm:$0xf]
        %v2532 = vld [vmem:[%s111 + $0x10] sm:$0xf]
        %v2533 = vld [vmem:[%s111 + $0x14] sm:$0xf]
        %v2534 = vld [vmem:[%s111 + $0x18] sm:$0xf]
        %v2535 = vld [vmem:[%s111 + $0x1c] sm:$0xf]
        %v2536 = vld [vmem:[%s111 + $0x20] sm:$0xf]
        %v2537 = vld [vmem:[%s111 + $0x24] sm:$0xf]
        %v2538 = vld [vmem:[%s111 + $0x28] sm:$0xf]
        %v2539 = vld [vmem:[%s111 + $0x2c] sm:$0xf]
        %v2540 = vld [vmem:[%s111 + $0x30] sm:$0xf]
        %v2541 = vld [vmem:[%s111 + $0x34] sm:$0xf]
        %v2542 = vld [vmem:[%s111 + $0x38] sm:$0xf]
        %v2543 = vld [vmem:[%s111 + $0x3c] sm:$0xf]
        %v2544 = vld [vmem:[#allocation19] sm:$0x1]
        %v2545 = vld [vmem:[#allocation20] sm:$0x1]
        %v2546 = vld [vmem:[#allocation22] sm:$0x1]
        %v2547 = vld [vmem:[%s119] sm:$0x1]
        %v2548 = vld [vmem:[%s119 + $0x1] sm:$0x1]
        %v2549 = vld [vmem:[%s119 + $0x2] sm:$0x1]
        %v2550 = vld [vmem:[%s119 + $0x3] sm:$0x1]
        %v2551 = vld [vmem:[#allocation23] sm:$0x1]
        %v2552 = vld [vmem:[#allocation25] sm:$0x1]
        %v2553 = vld [vmem:[#allocation26] sm:$0x1]
        %v2554 = vld [vmem:[#allocation28] sm:$0x1]
        %v2555 = vld [vmem:[%s129] sm:$0xf]
        %v2556 = vld [vmem:[%s129 + $0x4] sm:$0xf]
        %v2557 = vld [vmem:[%s129 + $0x8] sm:$0xf]
        %v2558 = vld [vmem:[%s129 + $0xc] sm:$0xf]
        %v2559 = vld [vmem:[%s131] sm:$0xf]
        %v2560 = vld [vmem:[%s131 + $0x4] sm:$0xf]
        %v2561 = vld [vmem:[%s131 + $0x8] sm:$0xf]
        %v2562 = vld [vmem:[%s131 + $0xc] sm:$0xf]
        %v2563 = vld [vmem:[%s131 + $0x10] sm:$0xf]
        %v2564 = vld [vmem:[%s131 + $0x14] sm:$0xf]
        %v2565 = vld [vmem:[%s131 + $0x18] sm:$0xf]
        %v2566 = vld [vmem:[%s131 + $0x1c] sm:$0xf]
        %v2567 = vld [vmem:[%s133] sm:$0xf]
        %v2568 = vld [vmem:[%s133 + $0x4] sm:$0xf]
        %v2569 = vld [vmem:[%s133 + $0x8] sm:$0xf]
        %v2570 = vld [vmem:[%s133 + $0xc] sm:$0xf]
        %v2571 = vld [vmem:[%s135] sm:$0xf]
        %v2572 = vld [vmem:[%s135 + $0x4] sm:$0xf]
        %v2573 = vld [vmem:[%s135 + $0x8] sm:$0xf]
        %v2574 = vld [vmem:[%s135 + $0xc] sm:$0xf]
        %v2575 = vld [vmem:[%s135 + $0x10] sm:$0xf]
        %v2576 = vld [vmem:[%s135 + $0x14] sm:$0xf]
        %v2577 = vld [vmem:[%s135 + $0x18] sm:$0xf]
        %v2578 = vld [vmem:[%s135 + $0x1c] sm:$0xf]
        %v2579 = vld [vmem:[%s135 + $0x20] sm:$0xf]
        %v2580 = vld [vmem:[%s135 + $0x24] sm:$0xf]
        %v2581 = vld [vmem:[%s135 + $0x28] sm:$0xf]
        %v2582 = vld [vmem:[%s135 + $0x2c] sm:$0xf]
        %v2583 = vld [vmem:[%s135 + $0x30] sm:$0xf]
        %v2584 = vld [vmem:[%s135 + $0x34] sm:$0xf]
        %v2585 = vld [vmem:[%s135 + $0x38] sm:$0xf]
        %v2586 = vld [vmem:[%s135 + $0x3c] sm:$0xf]
        %v2587 = vld [vmem:[#allocation29] sm:$0x1]
        %v2588 = vld [vmem:[%s139] sm:$0xf]
        %v2589 = vld [vmem:[%s139 + $0x4] sm:$0xf]
        %v2590 = vld [vmem:[%s139 + $0x8] sm:$0xf]
        %v2591 = vld [vmem:[%s139 + $0xc] sm:$0xf]
        %v2592 = vlaneseq
        %v2593 = vshrl.u32 %v2592, 7
        %v2594 = vlaneseq
        %v2595 = vand.u32 %v2594, 127
        %vm2596 = vcmp.ge.s32.totalorder %v2593, %v2595
        %v2597 = vld [vmem:[%s2308] sm:$0xff]
        %v2598 = vld [vmem:[%s2312] sm:$0xff]
        %v2599 = vld [vmem:[%s2315] sm:$0x1]
        %v2600 = vld [vmem:[%s2319] sm:$0xff]
        %vm2601 = vcmp.gt.f32.partialorder %v2600, 0.5
        %v2602 = vsel %vm2601, 1, 0
        %2603 = vset.pattern.permute.xlu0 0
        %2604 = vperm.xlu0 %2603, %v2602
        %v2605 = vpop.permute.xlu0 %2604
        %vm2606 = vcmp.eq.s32.totalorder %v2605, 1
        %vm2607 = vmand %vm2596, %vm2606
        %v2608 = vsel %vm2607, 0.0, -1e+09
        %v2609 = vpack.c.bf16 %v2597, %v2597
        %v2614 = vlaneseq
        %v2615 = vshrl.u32 %v2614, 7
        %v2616 = vsub.s32 0, %v2615
        %v2617 = vrot.slane %v2504, %v2616
        %v2618 = vlaneseq
        %v2619 = vshrl.u32 %v2618, 7
        %v2620 = vsub.s32 0, %v2619
        %v2621 = vrot.slane %v2505, %v2620
        %v2622 = vlaneseq
        %v2623 = vshrl.u32 %v2622, 7
        %v2624 = vsub.s32 0, %v2623
        %v2625 = vrot.slane %v2506, %v2624
        %v2626 = vlaneseq
        %v2627 = vshrl.u32 %v2626, 7
        %v2628 = vsub.s32 0, %v2627
        %v2629 = vrot.slane %v2507, %v2628
        %v2638 = vunpack.c.l.b16 %v2528
        %v2639 = vunpack.c.l.b16 %v2529
        %v2640 = vunpack.c.l.b16 %v2530
        %v2641 = vunpack.c.l.b16 %v2531
        %v2642 = vpack.c.b16 %v2639, %v2638
        %v2643 = vpack.c.b16 %v2641, %v2640
        %vm2646 = vcmask 261120
        %v2648 = vsel %vm2646, %v2609, 0
        %2650 = vmatprep.subr.bf16.mxu0 0
        %2651 = vmatpush1.bf16.msra.mxu0 0
        %2652 = vmatprep.subr.bf16.mxu0 0
        %2653 = vmatpush1.bf16.msra.mxu0 0
        %2654 = vmatprep.subr.bf16.mxu0 0
        %2655 = vmatpush1.bf16.msra.mxu0 0
        %2656 = vmatprep.subr.bf16.mxu0 0
        %2657 = vmatpush1.bf16.msra.mxu0 0
        %2658 = vmatprep.subr.bf16.mxu0 0
        %2659 = vmatpush1.bf16.msra.mxu0 0
        %2660 = vmatprep.subr.bf16.mxu0 0
        %2661 = vmatpush1.bf16.msra.mxu0 0
        %2662 = vmatprep.subr.bf16.mxu0 0
        %2663 = vmatpush1.bf16.msra.mxu0 %v2643
        %2664 = vmatprep.subr.bf16.mxu0 0
        %2665 = vmatpush1.bf16.msra.mxu0 %v2642
        %2666 = vmatprep.subr.bf16.mxu0 0
        %2667 = vmatpush2.bf16.msra.mxu0 0
        %2668 = vmatprep.subr.bf16.mxu0 0
        %2669 = vmatpush2.bf16.msra.mxu0 0
        %2670 = vmatprep.subr.bf16.mxu0 0
        %2671 = vmatpush2.bf16.msra.mxu0 0
        %2672 = vmatprep.subr.bf16.mxu0 0
        %2673 = vmatpush2.bf16.msra.mxu0 0
        %2674 = vmatprep.subr.bf16.mxu0 0
        %2675 = vmatpush2.bf16.msra.mxu0 0
        %2676 = vmatprep.subr.bf16.mxu0 0
        %2677 = vmatpush2.bf16.msra.mxu0 0
        %2678 = vmatprep.subr.bf16.mxu0 0
        %2679 = vmatpush2.bf16.msra.mxu0 0
        %2680 = vmatprep.subr.bf16.mxu0 0
        %2681 = vmatpush2.bf16.msra.mxu0 0
        %2682 = vmatprep.mubr.bf16.mxu0 0
        %2683 = vmatmul.mubr.bf16.gmra.mxu0 %v2648
        %v2684 = vpop.f32.mrf.mxu0
        %v2685 = vadd.f32 %v2617, %v2684
        %v2686 = vpop.f32.mrf.mxu0
        %v2687 = vpop.f32.mrf.mxu0
        %v2688 = vpop.f32.mrf.mxu0
        %2689 = vdwg.mxu0
        %v2694 = vunpack.c.l.b16 %v2532
        %v2695 = vunpack.c.l.b16 %v2533
        %v2696 = vunpack.c.l.b16 %v2534
        %v2697 = vunpack.c.l.b16 %v2535
        %v2698 = vpack.c.b16 %v2695, %v2694
        %v2699 = vpack.c.b16 %v2697, %v2696
        %2702 = vmatprep.subr.bf16.mxu0 0
        %2703 = vmatpush1.bf16.msra.mxu0 0
        %2704 = vmatprep.subr.bf16.mxu0 0
        %2705 = vmatpush1.bf16.msra.mxu0 0
        %2706 = vmatprep.subr.bf16.mxu0 0
        %2707 = vmatpush1.bf16.msra.mxu0 0
        %2708 = vmatprep.subr.bf16.mxu0 0
        %2709 = vmatpush1.bf16.msra.mxu0 0
        %2710 = vmatprep.subr.bf16.mxu0 0
        %2711 = vmatpush1.bf16.msra.mxu0 0
        %2712 = vmatprep.subr.bf16.mxu0 0
        %2713 = vmatpush1.bf16.msra.mxu0 0
        %2714 = vmatprep.subr.bf16.mxu0 0
        %2715 = vmatpush1.bf16.msra.mxu0 %v2699
        %2716 = vmatprep.subr.bf16.mxu0 0
        %2717 = vmatpush1.bf16.msra.mxu0 %v2698
        %2718 = vmatprep.subr.bf16.mxu0 0
        %2719 = vmatpush2.bf16.msra.mxu0 0
        %2720 = vmatprep.subr.bf16.mxu0 0
        %2721 = vmatpush2.bf16.msra.mxu0 0
        %2722 = vmatprep.subr.bf16.mxu0 0
        %2723 = vmatpush2.bf16.msra.mxu0 0
        %2724 = vmatprep.subr.bf16.mxu0 0
        %2725 = vmatpush2.bf16.msra.mxu0 0
        %2726 = vmatprep.subr.bf16.mxu0 0
        %2727 = vmatpush2.bf16.msra.mxu0 0
        %2728 = vmatprep.subr.bf16.mxu0 0
        %2729 = vmatpush2.bf16.msra.mxu0 0
        %2730 = vmatprep.subr.bf16.mxu0 0
        %2731 = vmatpush2.bf16.msra.mxu0 0
        %2732 = vmatprep.subr.bf16.mxu0 0
        %2733 = vmatpush2.bf16.msra.mxu0 0
        %2734 = vmatprep.mubr.bf16.mxu0 0
        %2735 = vmatmul.mubr.bf16.gmra.mxu0 %v2648
        %v2736 = vpop.f32.mrf.mxu0
        %v2737 = vadd.f32 %v2621, %v2736
        %v2738 = vpop.f32.mrf.mxu0
        %v2739 = vpop.f32.mrf.mxu0
        %v2740 = vpop.f32.mrf.mxu0
        %2741 = vdwg.mxu0
        %v2746 = vunpack.c.l.b16 %v2536
        %v2747 = vunpack.c.l.b16 %v2537
        %v2748 = vunpack.c.l.b16 %v2538
        %v2749 = vunpack.c.l.b16 %v2539
        %v2750 = vpack.c.b16 %v2747, %v2746
        %v2751 = vpack.c.b16 %v2749, %v2748
        %2754 = vmatprep.subr.bf16.mxu0 0
        %2755 = vmatpush1.bf16.msra.mxu0 0
        %2756 = vmatprep.subr.bf16.mxu0 0
        %2757 = vmatpush1.bf16.msra.mxu0 0
        %2758 = vmatprep.subr.bf16.mxu0 0
        %2759 = vmatpush1.bf16.msra.mxu0 0
        %2760 = vmatprep.subr.bf16.mxu0 0
        %2761 = vmatpush1.bf16.msra.mxu0 0
        %2762 = vmatprep.subr.bf16.mxu0 0
        %2763 = vmatpush1.bf16.msra.mxu0 0
        %2764 = vmatprep.subr.bf16.mxu0 0
        %2765 = vmatpush1.bf16.msra.mxu0 0
        %2766 = vmatprep.subr.bf16.mxu0 0
        %2767 = vmatpush1.bf16.msra.mxu0 %v2751
        %2768 = vmatprep.subr.bf16.mxu0 0
        %2769 = vmatpush1.bf16.msra.mxu0 %v2750
        %2770 = vmatprep.subr.bf16.mxu0 0
        %2771 = vmatpush2.bf16.msra.mxu0 0
        %2772 = vmatprep.subr.bf16.mxu0 0
        %2773 = vmatpush2.bf16.msra.mxu0 0
        %2774 = vmatprep.subr.bf16.mxu0 0
        %2775 = vmatpush2.bf16.msra.mxu0 0
        %2776 = vmatprep.subr.bf16.mxu0 0
        %2777 = vmatpush2.bf16.msra.mxu0 0
        %2778 = vmatprep.subr.bf16.mxu0 0
        %2779 = vmatpush2.bf16.msra.mxu0 0
        %2780 = vmatprep.subr.bf16.mxu0 0
        %2781 = vmatpush2.bf16.msra.mxu0 0
        %2782 = vmatprep.subr.bf16.mxu0 0
        %2783 = vmatpush2.bf16.msra.mxu0 0
        %2784 = vmatprep.subr.bf16.mxu0 0
        %2785 = vmatpush2.bf16.msra.mxu0 0
        %2786 = vmatprep.mubr.bf16.mxu0 0
        %2787 = vmatmul.mubr.bf16.gmra.mxu0 %v2648
        %v2788 = vpop.f32.mrf.mxu0
        %v2789 = vadd.f32 %v2625, %v2788
        %v2790 = vpop.f32.mrf.mxu0
        %v2791 = vpop.f32.mrf.mxu0
        %v2792 = vpop.f32.mrf.mxu0
        %2793 = vdwg.mxu0
        %v2798 = vunpack.c.l.b16 %v2540
        %v2799 = vunpack.c.l.b16 %v2541
        %v2800 = vunpack.c.l.b16 %v2542
        %v2801 = vunpack.c.l.b16 %v2543
        %v2802 = vpack.c.b16 %v2799, %v2798
        %v2803 = vpack.c.b16 %v2801, %v2800
        %2806 = vmatprep.subr.bf16.mxu0 0
        %2807 = vmatpush1.bf16.msra.mxu0 0
        %2808 = vmatprep.subr.bf16.mxu0 0
        %2809 = vmatpush1.bf16.msra.mxu0 0
        %2810 = vmatprep.subr.bf16.mxu0 0
        %2811 = vmatpush1.bf16.msra.mxu0 0
        %2812 = vmatprep.subr.bf16.mxu0 0
        %2813 = vmatpush1.bf16.msra.mxu0 0
        %2814 = vmatprep.subr.bf16.mxu0 0
        %2815 = vmatpush1.bf16.msra.mxu0 0
        %2816 = vmatprep.subr.bf16.mxu0 0
        %2817 = vmatpush1.bf16.msra.mxu0 0
        %2818 = vmatprep.subr.bf16.mxu0 0
        %2819 = vmatpush1.bf16.msra.mxu0 %v2803
        %2820 = vmatprep.subr.bf16.mxu0 0
        %2821 = vmatpush1.bf16.msra.mxu0 %v2802
        %2822 = vmatprep.subr.bf16.mxu0 0
        %2823 = vmatpush2.bf16.msra.mxu0 0
        %2824 = vmatprep.subr.bf16.mxu0 0
        %2825 = vmatpush2.bf16.msra.mxu0 0
        %2826 = vmatprep.subr.bf16.mxu0 0
        %2827 = vmatpush2.bf16.msra.mxu0 0
        %2828 = vmatprep.subr.bf16.mxu0 0
        %2829 = vmatpush2.bf16.msra.mxu0 0
        %2830 = vmatprep.subr.bf16.mxu0 0
        %2831 = vmatpush2.bf16.msra.mxu0 0
        %2832 = vmatprep.subr.bf16.mxu0 0
        %2833 = vmatpush2.bf16.msra.mxu0 0
        %2834 = vmatprep.subr.bf16.mxu0 0
        %2835 = vmatpush2.bf16.msra.mxu0 0
        %2836 = vmatprep.subr.bf16.mxu0 0
        %2837 = vmatpush2.bf16.msra.mxu0 0
        %2838 = vmatprep.mubr.bf16.mxu0 0
        %2839 = vmatmul.mubr.bf16.gmra.mxu0 %v2648
        %v2840 = vpop.f32.mrf.mxu0
        %v2841 = vadd.f32 %v2629, %v2840
        %v2842 = vpop.f32.mrf.mxu0
        %v2843 = vpop.f32.mrf.mxu0
        %v2844 = vpop.f32.mrf.mxu0
        %2845 = vdwg.mxu0
        %v2846 = vpack.c.bf16 %v2685, %v2685
        %v2847 = vpack.c.bf16 %v2737, %v2737
        %v2848 = vpack.c.bf16 %v2789, %v2789
        %v2849 = vpack.c.bf16 %v2841, %v2841
        %v2851 = vlaneseq
        %v2852 = vshrl.u32 %v2851, 7
        %v2853 = vsub.s32 0, %v2852
        %v2854 = vrot.slane %v2599, %v2853
        %2857 = vrot.lane.b32.xlu0 %v2846, 120
        %v2858 = vpop.permute.xlu0 %2857
        %vm2859 = vcmask 64512
        %v2861 = vsel %vm2859, %v2846, 0
        %v2864 = vsel %vm2859, %v2858, 0
        %2866 = vmatprep.subr.bf16.mxu0 0
        %2867 = vmatpush1.bf16.xpose.msra.mxu0 0
        %2868 = vmatprep.subr.bf16.mxu0 0
        %2869 = vmatpush1.bf16.xpose.msra.mxu0 0
        %2870 = vmatprep.subr.bf16.mxu0 0
        %2871 = vmatpush1.bf16.xpose.msra.mxu0 0
        %2872 = vmatprep.subr.bf16.mxu0 0
        %2873 = vmatpush1.bf16.xpose.msra.mxu0 0
        %2874 = vmatprep.subr.bf16.mxu0 0
        %2875 = vmatpush1.bf16.xpose.msra.mxu0 0
        %2876 = vmatprep.subr.bf16.mxu0 0
        %2877 = vmatpush1.bf16.xpose.msra.mxu0 0
        %2878 = vmatprep.subr.bf16.mxu0 0
        %2879 = vmatpush1.bf16.xpose.msra.mxu0 0
        %2880 = vmatprep.subr.bf16.mxu0 0
        %2881 = vmatpush1.bf16.xpose.msra.mxu0 %v2864
        %2882 = vmatprep.subr.bf16.mxu0 0
        %2883 = vmatpush2.bf16.xpose.msra.mxu0 0
        %2884 = vmatprep.subr.bf16.mxu0 0
        %2885 = vmatpush2.bf16.xpose.msra.mxu0 0
        %2886 = vmatprep.subr.bf16.mxu0 0
        %2887 = vmatpush2.bf16.xpose.msra.mxu0 0
        %2888 = vmatprep.subr.bf16.mxu0 0
        %2889 = vmatpush2.bf16.xpose.msra.mxu0 0
        %2890 = vmatprep.subr.bf16.mxu0 0
        %2891 = vmatpush2.bf16.xpose.msra.mxu0 0
        %2892 = vmatprep.subr.bf16.mxu0 0
        %2893 = vmatpush2.bf16.xpose.msra.mxu0 0
        %2894 = vmatprep.subr.bf16.mxu0 0
        %2895 = vmatpush2.bf16.xpose.msra.mxu0 0
        %2896 = vmatprep.subr.bf16.mxu0 0
        %2897 = vmatpush2.bf16.xpose.msra.mxu0 0
        %2898 = vmatprep.mubr.bf16.mxu0 0
        %2899 = vmatmul.mubr.bf16.gmra.mxu0 %v2861
        %v2900 = vpop.f32.mrf.mxu0
        %v2901 = vadd.f32 %v2854, %v2900
        %v2902 = vpop.f32.mrf.mxu0
        %v2903 = vpop.f32.mrf.mxu0
        %v2904 = vpop.f32.mrf.mxu0
        %2905 = vdwg.mxu0
        %2907 = vrot.lane.b32.xlu0 %v2847, 120
        %v2908 = vpop.permute.xlu0 %2907
        %v2910 = vsel %vm2859, %v2847, 0
        %v2913 = vsel %vm2859, %v2908, 0
        %2915 = vmatprep.subr.bf16.mxu0 0
        %2916 = vmatpush1.bf16.xpose.msra.mxu0 0
        %2917 = vmatprep.subr.bf16.mxu0 0
        %2918 = vmatpush1.bf16.xpose.msra.mxu0 0
        %2919 = vmatprep.subr.bf16.mxu0 0
        %2920 = vmatpush1.bf16.xpose.msra.mxu0 0
        %2921 = vmatprep.subr.bf16.mxu0 0
        %2922 = vmatpush1.bf16.xpose.msra.mxu0 0
        %2923 = vmatprep.subr.bf16.mxu0 0
        %2924 = vmatpush1.bf16.xpose.msra.mxu0 0
        %2925 = vmatprep.subr.bf16.mxu0 0
        %2926 = vmatpush1.bf16.xpose.msra.mxu0 0
        %2927 = vmatprep.subr.bf16.mxu0 0
        %2928 = vmatpush1.bf16.xpose.msra.mxu0 0
        %2929 = vmatprep.subr.bf16.mxu0 0
        %2930 = vmatpush1.bf16.xpose.msra.mxu0 %v2913
        %2931 = vmatprep.subr.bf16.mxu0 0
        %2932 = vmatpush2.bf16.xpose.msra.mxu0 0
        %2933 = vmatprep.subr.bf16.mxu0 0
        %2934 = vmatpush2.bf16.xpose.msra.mxu0 0
        %2935 = vmatprep.subr.bf16.mxu0 0
        %2936 = vmatpush2.bf16.xpose.msra.mxu0 0
        %2937 = vmatprep.subr.bf16.mxu0 0
        %2938 = vmatpush2.bf16.xpose.msra.mxu0 0
        %2939 = vmatprep.subr.bf16.mxu0 0
        %2940 = vmatpush2.bf16.xpose.msra.mxu0 0
        %2941 = vmatprep.subr.bf16.mxu0 0
        %2942 = vmatpush2.bf16.xpose.msra.mxu0 0
        %2943 = vmatprep.subr.bf16.mxu0 0
        %2944 = vmatpush2.bf16.xpose.msra.mxu0 0
        %2945 = vmatprep.subr.bf16.mxu0 0
        %2946 = vmatpush2.bf16.xpose.msra.mxu0 0
        %2947 = vmatprep.mubr.bf16.mxu0 0
        %2948 = vmatmul.mubr.bf16.gmra.mxu0 %v2910
        %v2949 = vpop.f32.mrf.mxu0
        %v2950 = vadd.f32 %v2854, %v2949
        %v2951 = vpop.f32.mrf.mxu0
        %v2952 = vpop.f32.mrf.mxu0
        %v2953 = vpop.f32.mrf.mxu0
        %2954 = vdwg.mxu0
        %2956 = vrot.lane.b32.xlu0 %v2848, 120
        %v2957 = vpop.permute.xlu0 %2956
        %v2959 = vsel %vm2859, %v2848, 0
        %v2962 = vsel %vm2859, %v2957, 0
        %2964 = vmatprep.subr.bf16.mxu0 0
        %2965 = vmatpush1.bf16.xpose.msra.mxu0 0
        %2966 = vmatprep.subr.bf16.mxu0 0
        %2967 = vmatpush1.bf16.xpose.msra.mxu0 0
        %2968 = vmatprep.subr.bf16.mxu0 0
        %2969 = vmatpush1.bf16.xpose.msra.mxu0 0
        %2970 = vmatprep.subr.bf16.mxu0 0
        %2971 = vmatpush1.bf16.xpose.msra.mxu0 0
        %2972 = vmatprep.subr.bf16.mxu0 0
        %2973 = vmatpush1.bf16.xpose.msra.mxu0 0
        %2974 = vmatprep.subr.bf16.mxu0 0
        %2975 = vmatpush1.bf16.xpose.msra.mxu0 0
        %2976 = vmatprep.subr.bf16.mxu0 0
        %2977 = vmatpush1.bf16.xpose.msra.mxu0 0
        %2978 = vmatprep.subr.bf16.mxu0 0
        %2979 = vmatpush1.bf16.xpose.msra.mxu0 %v2962
        %2980 = vmatprep.subr.bf16.mxu0 0
        %2981 = vmatpush2.bf16.xpose.msra.mxu0 0
        %2982 = vmatprep.subr.bf16.mxu0 0
        %2983 = vmatpush2.bf16.xpose.msra.mxu0 0
        %2984 = vmatprep.subr.bf16.mxu0 0
        %2985 = vmatpush2.bf16.xpose.msra.mxu0 0
        %2986 = vmatprep.subr.bf16.mxu0 0
        %2987 = vmatpush2.bf16.xpose.msra.mxu0 0
        %2988 = vmatprep.subr.bf16.mxu0 0
        %2989 = vmatpush2.bf16.xpose.msra.mxu0 0
        %2990 = vmatprep.subr.bf16.mxu0 0
        %2991 = vmatpush2.bf16.xpose.msra.mxu0 0
        %2992 = vmatprep.subr.bf16.mxu0 0
        %2993 = vmatpush2.bf16.xpose.msra.mxu0 0
        %2994 = vmatprep.subr.bf16.mxu0 0
        %2995 = vmatpush2.bf16.xpose.msra.mxu0 0
        %2996 = vmatprep.mubr.bf16.mxu0 0
        %2997 = vmatmul.mubr.bf16.gmra.mxu0 %v2959
        %v2998 = vpop.f32.mrf.mxu0
        %v2999 = vadd.f32 %v2854, %v2998
        %v3000 = vpop.f32.mrf.mxu0
        %v3001 = vpop.f32.mrf.mxu0
        %v3002 = vpop.f32.mrf.mxu0
        %3003 = vdwg.mxu0
        %3005 = vrot.lane.b32.xlu0 %v2849, 120
        %v3006 = vpop.permute.xlu0 %3005
        %v3008 = vsel %vm2859, %v2849, 0
        %v3011 = vsel %vm2859, %v3006, 0
        %3013 = vmatprep.subr.bf16.mxu0 0
        %3014 = vmatpush1.bf16.xpose.msra.mxu0 0
        %3015 = vmatprep.subr.bf16.mxu0 0
        %3016 = vmatpush1.bf16.xpose.msra.mxu0 0
        %3017 = vmatprep.subr.bf16.mxu0 0
        %3018 = vmatpush1.bf16.xpose.msra.mxu0 0
        %3019 = vmatprep.subr.bf16.mxu0 0
        %3020 = vmatpush1.bf16.xpose.msra.mxu0 0
        %3021 = vmatprep.subr.bf16.mxu0 0
        %3022 = vmatpush1.bf16.xpose.msra.mxu0 0
        %3023 = vmatprep.subr.bf16.mxu0 0
        %3024 = vmatpush1.bf16.xpose.msra.mxu0 0
        %3025 = vmatprep.subr.bf16.mxu0 0
        %3026 = vmatpush1.bf16.xpose.msra.mxu0 0
        %3027 = vmatprep.subr.bf16.mxu0 0
        %3028 = vmatpush1.bf16.xpose.msra.mxu0 %v3011
        %3029 = vmatprep.subr.bf16.mxu0 0
        %3030 = vmatpush2.bf16.xpose.msra.mxu0 0
        %3031 = vmatprep.subr.bf16.mxu0 0
        %3032 = vmatpush2.bf16.xpose.msra.mxu0 0
        %3033 = vmatprep.subr.bf16.mxu0 0
        %3034 = vmatpush2.bf16.xpose.msra.mxu0 0
        %3035 = vmatprep.subr.bf16.mxu0 0
        %3036 = vmatpush2.bf16.xpose.msra.mxu0 0
        %3037 = vmatprep.subr.bf16.mxu0 0
        %3038 = vmatpush2.bf16.xpose.msra.mxu0 0
        %3039 = vmatprep.subr.bf16.mxu0 0
        %3040 = vmatpush2.bf16.xpose.msra.mxu0 0
        %3041 = vmatprep.subr.bf16.mxu0 0
        %3042 = vmatpush2.bf16.xpose.msra.mxu0 0
        %3043 = vmatprep.subr.bf16.mxu0 0
        %3044 = vmatpush2.bf16.xpose.msra.mxu0 0
        %3045 = vmatprep.mubr.bf16.mxu0 0
        %3046 = vmatmul.mubr.bf16.gmra.mxu0 %v3008
        %v3047 = vpop.f32.mrf.mxu0
        %v3048 = vadd.f32 %v2854, %v3047
        %v3049 = vpop.f32.mrf.mxu0
        %v3050 = vpop.f32.mrf.mxu0
        %v3051 = vpop.f32.mrf.mxu0
        %3052 = vdwg.mxu0
        %v3053 = vsel %vm2859, %v2901, -inf
        %3054 = vmax.xlane.f32.xlu0 %v3053
        %v3055 = vpop.xlane.xlu0 %3054
        %v3056 = vsel %vm2859, %v2950, -inf
        %3057 = vmax.xlane.f32.xlu0 %v3056
        %v3058 = vpop.xlane.xlu0 %3057
        %v3059 = vsel %vm2859, %v2999, -inf
        %3060 = vmax.xlane.f32.xlu0 %v3059
        %v3061 = vpop.xlane.xlu0 %3060
        %v3062 = vsel %vm2859, %v3048, -inf
        %3063 = vmax.xlane.f32.xlu0 %v3062
        %v3064 = vpop.xlane.xlu0 %3063
        %v3065 = vsub.f32 %v2901, %v3055
        %v3066 = vsub.f32 %v2950, %v3058
        %v3067 = vsub.f32 %v2999, %v3061
        %v3068 = vsub.f32 %v3048, %v3064
        %v3069 = vmul.f32 %v3065, 1.442695
        %v3070 = vpow.pop %v3069
        %v3071 = vmul.f32 %v3066, 1.442695
        %v3072 = vpow.pop %v3071
        %v3073 = vmul.f32 %v3067, 1.442695
        %v3074 = vpow.pop %v3073
        %v3075 = vmul.f32 %v3068, 1.442695
        %v3076 = vpow.pop %v3075
        %v3077 = vsel %vm2859, %v3070, 0.0
        %3078 = vadd.xlane.f32.xlu0 %v3077
        %v3079 = vpop.xlane.xlu0 %3078
        %v3080 = vsel %vm2859, %v3072, 0.0
        %3081 = vadd.xlane.f32.xlu0 %v3080
        %v3082 = vpop.xlane.xlu0 %3081
        %v3083 = vsel %vm2859, %v3074, 0.0
        %3084 = vadd.xlane.f32.xlu0 %v3083
        %v3085 = vpop.xlane.xlu0 %3084
        %v3086 = vsel %vm2859, %v3076, 0.0
        %3087 = vadd.xlane.f32.xlu0 %v3086
        %v3088 = vpop.xlane.xlu0 %3087
        %v3089 = vrcp.pop %v3079
        %v3090 = vrcp.pop %v3082
        %v3091 = vrcp.pop %v3085
        %v3092 = vrcp.pop %v3088
        %v3093 = vmul.f32 %v3070, %v3089
        %v3094 = vmul.f32 %v3072, %v3090
        %v3095 = vmul.f32 %v3074, %v3091
        %v3096 = vmul.f32 %v3076, %v3092
        %v3097 = vpack.c.bf16 %v3093, %v3093
        %v3098 = vpack.c.bf16 %v3094, %v3094
        %v3099 = vpack.c.bf16 %v3095, %v3095
        %v3100 = vpack.c.bf16 %v3096, %v3096
        %3101 = vrot.lane.b32.xlu0 %v2846, 112
        %v3102 = vpop.permute.xlu0 %3101
        %v3104 = vsel %vm2859, %v3097, 0
        %vm3106 = vcmask 1043456
        %v3108 = vsel %vm3106, %v3102, 0
        %3110 = vmatprep.subr.bf16.mxu0 0
        %3111 = vmatpush1.bf16.msra.mxu0 0
        %3112 = vmatprep.subr.bf16.mxu0 0
        %3113 = vmatpush1.bf16.msra.mxu0 0
        %3114 = vmatprep.subr.bf16.mxu0 0
        %3115 = vmatpush1.bf16.msra.mxu0 0
        %3116 = vmatprep.subr.bf16.mxu0 0
        %3117 = vmatpush1.bf16.msra.mxu0 0
        %3118 = vmatprep.subr.bf16.mxu0 0
        %3119 = vmatpush1.bf16.msra.mxu0 0
        %3120 = vmatprep.subr.bf16.mxu0 0
        %3121 = vmatpush1.bf16.msra.mxu0 0
        %3122 = vmatprep.subr.bf16.mxu0 0
        %3123 = vmatpush1.bf16.msra.mxu0 0
        %3124 = vmatprep.subr.bf16.mxu0 0
        %3125 = vmatpush1.bf16.msra.mxu0 %v3108
        %3126 = vmatprep.subr.bf16.mxu0 0
        %3127 = vmatpush2.bf16.msra.mxu0 0
        %3128 = vmatprep.subr.bf16.mxu0 0
        %3129 = vmatpush2.bf16.msra.mxu0 0
        %3130 = vmatprep.subr.bf16.mxu0 0
        %3131 = vmatpush2.bf16.msra.mxu0 0
        %3132 = vmatprep.subr.bf16.mxu0 0
        %3133 = vmatpush2.bf16.msra.mxu0 0
        %3134 = vmatprep.subr.bf16.mxu0 0
        %3135 = vmatpush2.bf16.msra.mxu0 0
        %3136 = vmatprep.subr.bf16.mxu0 0
        %3137 = vmatpush2.bf16.msra.mxu0 0
        %3138 = vmatprep.subr.bf16.mxu0 0
        %3139 = vmatpush2.bf16.msra.mxu0 0
        %3140 = vmatprep.subr.bf16.mxu0 0
        %3141 = vmatpush2.bf16.msra.mxu0 0
        %3142 = vmatprep.mubr.bf16.mxu0 0
        %3143 = vmatmul.mubr.bf16.gmra.mxu0 %v3104
        %v3144 = vpop.f32.mrf.mxu0
        %v3145 = vadd.f32 0.0, %v3144
        %v3146 = vpop.f32.mrf.mxu0
        %v3147 = vpop.f32.mrf.mxu0
        %v3148 = vpop.f32.mrf.mxu0
        %3149 = vdwg.mxu0
        %3150 = vrot.lane.b32.xlu0 %v2847, 112
        %v3151 = vpop.permute.xlu0 %3150
        %v3153 = vsel %vm2859, %v3098, 0
        %v3156 = vsel %vm3106, %v3151, 0
        %3158 = vmatprep.subr.bf16.mxu0 0
        %3159 = vmatpush1.bf16.msra.mxu0 0
        %3160 = vmatprep.subr.bf16.mxu0 0
        %3161 = vmatpush1.bf16.msra.mxu0 0
        %3162 = vmatprep.subr.bf16.mxu0 0
        %3163 = vmatpush1.bf16.msra.mxu0 0
        %3164 = vmatprep.subr.bf16.mxu0 0
        %3165 = vmatpush1.bf16.msra.mxu0 0
        %3166 = vmatprep.subr.bf16.mxu0 0
        %3167 = vmatpush1.bf16.msra.mxu0 0
        %3168 = vmatprep.subr.bf16.mxu0 0
        %3169 = vmatpush1.bf16.msra.mxu0 0
        %3170 = vmatprep.subr.bf16.mxu0 0
        %3171 = vmatpush1.bf16.msra.mxu0 0
        %3172 = vmatprep.subr.bf16.mxu0 0
        %3173 = vmatpush1.bf16.msra.mxu0 %v3156
        %3174 = vmatprep.subr.bf16.mxu0 0
        %3175 = vmatpush2.bf16.msra.mxu0 0
        %3176 = vmatprep.subr.bf16.mxu0 0
        %3177 = vmatpush2.bf16.msra.mxu0 0
        %3178 = vmatprep.subr.bf16.mxu0 0
        %3179 = vmatpush2.bf16.msra.mxu0 0
        %3180 = vmatprep.subr.bf16.mxu0 0
        %3181 = vmatpush2.bf16.msra.mxu0 0
        %3182 = vmatprep.subr.bf16.mxu0 0
        %3183 = vmatpush2.bf16.msra.mxu0 0
        %3184 = vmatprep.subr.bf16.mxu0 0
        %3185 = vmatpush2.bf16.msra.mxu0 0
        %3186 = vmatprep.subr.bf16.mxu0 0
        %3187 = vmatpush2.bf16.msra.mxu0 0
        %3188 = vmatprep.subr.bf16.mxu0 0
        %3189 = vmatpush2.bf16.msra.mxu0 0
        %3190 = vmatprep.mubr.bf16.mxu0 0
        %3191 = vmatmul.mubr.bf16.gmra.mxu0 %v3153
        %v3192 = vpop.f32.mrf.mxu0
        %v3193 = vadd.f32 0.0, %v3192
        %v3194 = vpop.f32.mrf.mxu0
        %v3195 = vpop.f32.mrf.mxu0
        %v3196 = vpop.f32.mrf.mxu0
        %3197 = vdwg.mxu0
        %3198 = vrot.lane.b32.xlu0 %v2848, 112
        %v3199 = vpop.permute.xlu0 %3198
        %v3201 = vsel %vm2859, %v3099, 0
        %v3204 = vsel %vm3106, %v3199, 0
        %3206 = vmatprep.subr.bf16.mxu0 0
        %3207 = vmatpush1.bf16.msra.mxu0 0
        %3208 = vmatprep.subr.bf16.mxu0 0
        %3209 = vmatpush1.bf16.msra.mxu0 0
        %3210 = vmatprep.subr.bf16.mxu0 0
        %3211 = vmatpush1.bf16.msra.mxu0 0
        %3212 = vmatprep.subr.bf16.mxu0 0
        %3213 = vmatpush1.bf16.msra.mxu0 0
        %3214 = vmatprep.subr.bf16.mxu0 0
        %3215 = vmatpush1.bf16.msra.mxu0 0
        %3216 = vmatprep.subr.bf16.mxu0 0
        %3217 = vmatpush1.bf16.msra.mxu0 0
        %3218 = vmatprep.subr.bf16.mxu0 0
        %3219 = vmatpush1.bf16.msra.mxu0 0
        %3220 = vmatprep.subr.bf16.mxu0 0
        %3221 = vmatpush1.bf16.msra.mxu0 %v3204
        %3222 = vmatprep.subr.bf16.mxu0 0
        %3223 = vmatpush2.bf16.msra.mxu0 0
        %3224 = vmatprep.subr.bf16.mxu0 0
        %3225 = vmatpush2.bf16.msra.mxu0 0
        %3226 = vmatprep.subr.bf16.mxu0 0
        %3227 = vmatpush2.bf16.msra.mxu0 0
        %3228 = vmatprep.subr.bf16.mxu0 0
        %3229 = vmatpush2.bf16.msra.mxu0 0
        %3230 = vmatprep.subr.bf16.mxu0 0
        %3231 = vmatpush2.bf16.msra.mxu0 0
        %3232 = vmatprep.subr.bf16.mxu0 0
        %3233 = vmatpush2.bf16.msra.mxu0 0
        %3234 = vmatprep.subr.bf16.mxu0 0
        %3235 = vmatpush2.bf16.msra.mxu0 0
        %3236 = vmatprep.subr.bf16.mxu0 0
        %3237 = vmatpush2.bf16.msra.mxu0 0
        %3238 = vmatprep.mubr.bf16.mxu0 0
        %3239 = vmatmul.mubr.bf16.gmra.mxu0 %v3201
        %v3240 = vpop.f32.mrf.mxu0
        %v3241 = vadd.f32 0.0, %v3240
        %v3242 = vpop.f32.mrf.mxu0
        %v3243 = vpop.f32.mrf.mxu0
        %v3244 = vpop.f32.mrf.mxu0
        %3245 = vdwg.mxu0
        %3246 = vrot.lane.b32.xlu0 %v2849, 112
        %v3247 = vpop.permute.xlu0 %3246
        %v3249 = vsel %vm2859, %v3100, 0
        %v3252 = vsel %vm3106, %v3247, 0
        %3254 = vmatprep.subr.bf16.mxu0 0
        %3255 = vmatpush1.bf16.msra.mxu0 0
        %3256 = vmatprep.subr.bf16.mxu0 0
        %3257 = vmatpush1.bf16.msra.mxu0 0
        %3258 = vmatprep.subr.bf16.mxu0 0
        %3259 = vmatpush1.bf16.msra.mxu0 0
        %3260 = vmatprep.subr.bf16.mxu0 0
        %3261 = vmatpush1.bf16.msra.mxu0 0
        %3262 = vmatprep.subr.bf16.mxu0 0
        %3263 = vmatpush1.bf16.msra.mxu0 0
        %3264 = vmatprep.subr.bf16.mxu0 0
        %3265 = vmatpush1.bf16.msra.mxu0 0
        %3266 = vmatprep.subr.bf16.mxu0 0
        %3267 = vmatpush1.bf16.msra.mxu0 0
        %3268 = vmatprep.subr.bf16.mxu0 0
        %3269 = vmatpush1.bf16.msra.mxu0 %v3252
        %3270 = vmatprep.subr.bf16.mxu0 0
        %3271 = vmatpush2.bf16.msra.mxu0 0
        %3272 = vmatprep.subr.bf16.mxu0 0
        %3273 = vmatpush2.bf16.msra.mxu0 0
        %3274 = vmatprep.subr.bf16.mxu0 0
        %3275 = vmatpush2.bf16.msra.mxu0 0
        %3276 = vmatprep.subr.bf16.mxu0 0
        %3277 = vmatpush2.bf16.msra.mxu0 0
        %3278 = vmatprep.subr.bf16.mxu0 0
        %3279 = vmatpush2.bf16.msra.mxu0 0
        %3280 = vmatprep.subr.bf16.mxu0 0
        %3281 = vmatpush2.bf16.msra.mxu0 0
        %3282 = vmatprep.subr.bf16.mxu0 0
        %3283 = vmatpush2.bf16.msra.mxu0 0
        %3284 = vmatprep.subr.bf16.mxu0 0
        %3285 = vmatpush2.bf16.msra.mxu0 0
        %3286 = vmatprep.mubr.bf16.mxu0 0
        %3287 = vmatmul.mubr.bf16.gmra.mxu0 %v3249
        %v3288 = vpop.f32.mrf.mxu0
        %v3289 = vadd.f32 0.0, %v3288
        %v3290 = vpop.f32.mrf.mxu0
        %v3291 = vpop.f32.mrf.mxu0
        %v3292 = vpop.f32.mrf.mxu0
        %3293 = vdwg.mxu0
        %v3294 = vpack.c.bf16 %v3145, %v3145
        %v3295 = vpack.c.bf16 %v3193, %v3193
        %v3296 = vpack.c.bf16 %v3241, %v3241
        %v3297 = vpack.c.bf16 %v3289, %v3289
        %v3299 = vsel %vm2859, %v3294, 0
        %v3302 = vsel %vm3106, %v2524, 0
        %3304 = vmatprep.subr.bf16.mxu0 0
        %3305 = vmatpush1.bf16.msra.mxu0 0
        %3306 = vmatprep.subr.bf16.mxu0 0
        %3307 = vmatpush1.bf16.msra.mxu0 0
        %3308 = vmatprep.subr.bf16.mxu0 0
        %3309 = vmatpush1.bf16.msra.mxu0 0
        %3310 = vmatprep.subr.bf16.mxu0 0
        %3311 = vmatpush1.bf16.msra.mxu0 0
        %3312 = vmatprep.subr.bf16.mxu0 0
        %3313 = vmatpush1.bf16.msra.mxu0 0
        %3314 = vmatprep.subr.bf16.mxu0 0
        %3315 = vmatpush1.bf16.msra.mxu0 0
        %3316 = vmatprep.subr.bf16.mxu0 0
        %3317 = vmatpush1.bf16.msra.mxu0 0
        %3318 = vmatprep.subr.bf16.mxu0 0
        %3319 = vmatpush1.bf16.msra.mxu0 %v3302
        %3320 = vmatprep.subr.bf16.mxu0 0
        %3321 = vmatpush2.bf16.msra.mxu0 0
        %3322 = vmatprep.subr.bf16.mxu0 0
        %3323 = vmatpush2.bf16.msra.mxu0 0
        %3324 = vmatprep.subr.bf16.mxu0 0
        %3325 = vmatpush2.bf16.msra.mxu0 0
        %3326 = vmatprep.subr.bf16.mxu0 0
        %3327 = vmatpush2.bf16.msra.mxu0 0
        %3328 = vmatprep.subr.bf16.mxu0 0
        %3329 = vmatpush2.bf16.msra.mxu0 0
        %3330 = vmatprep.subr.bf16.mxu0 0
        %3331 = vmatpush2.bf16.msra.mxu0 0
        %3332 = vmatprep.subr.bf16.mxu0 0
        %3333 = vmatpush2.bf16.msra.mxu0 0
        %3334 = vmatprep.subr.bf16.mxu0 0
        %3335 = vmatpush2.bf16.msra.mxu0 0
        %3336 = vmatprep.mubr.bf16.mxu0 0
        %3337 = vmatmul.mubr.bf16.gmra.mxu0 %v3299
        %v3338 = vpop.f32.mrf.mxu0
        %v3339 = vadd.f32 0.0, %v3338
        %v3340 = vpop.f32.mrf.mxu0
        %v3341 = vpop.f32.mrf.mxu0
        %v3342 = vpop.f32.mrf.mxu0
        %3343 = vdwg.mxu0
        %v3345 = vsel %vm2859, %v3295, 0
        %v3348 = vsel %vm3106, %v2525, 0
        %3350 = vmatprep.subr.bf16.mxu0 0
        %3351 = vmatpush1.bf16.msra.mxu0 0
        %3352 = vmatprep.subr.bf16.mxu0 0
        %3353 = vmatpush1.bf16.msra.mxu0 0
        %3354 = vmatprep.subr.bf16.mxu0 0
        %3355 = vmatpush1.bf16.msra.mxu0 0
        %3356 = vmatprep.subr.bf16.mxu0 0
        %3357 = vmatpush1.bf16.msra.mxu0 0
        %3358 = vmatprep.subr.bf16.mxu0 0
        %3359 = vmatpush1.bf16.msra.mxu0 0
        %3360 = vmatprep.subr.bf16.mxu0 0
        %3361 = vmatpush1.bf16.msra.mxu0 0
        %3362 = vmatprep.subr.bf16.mxu0 0
        %3363 = vmatpush1.bf16.msra.mxu0 0
        %3364 = vmatprep.subr.bf16.mxu0 0
        %3365 = vmatpush1.bf16.msra.mxu0 %v3348
        %3366 = vmatprep.subr.bf16.mxu0 0
        %3367 = vmatpush2.bf16.msra.mxu0 0
        %3368 = vmatprep.subr.bf16.mxu0 0
        %3369 = vmatpush2.bf16.msra.mxu0 0
        %3370 = vmatprep.subr.bf16.mxu0 0
        %3371 = vmatpush2.bf16.msra.mxu0 0
        %3372 = vmatprep.subr.bf16.mxu0 0
        %3373 = vmatpush2.bf16.msra.mxu0 0
        %3374 = vmatprep.subr.bf16.mxu0 0
        %3375 = vmatpush2.bf16.msra.mxu0 0
        %3376 = vmatprep.subr.bf16.mxu0 0
        %3377 = vmatpush2.bf16.msra.mxu0 0
        %3378 = vmatprep.subr.bf16.mxu0 0
        %3379 = vmatpush2.bf16.msra.mxu0 0
        %3380 = vmatprep.subr.bf16.mxu0 0
        %3381 = vmatpush2.bf16.msra.mxu0 0
        %3382 = vmatprep.mubr.bf16.mxu0 0
        %3383 = vmatmul.mubr.bf16.gmra.mxu0 %v3345
        %v3384 = vpop.f32.mrf.mxu0
        %v3385 = vadd.f32 0.0, %v3384
        %v3386 = vpop.f32.mrf.mxu0
        %v3387 = vpop.f32.mrf.mxu0
        %v3388 = vpop.f32.mrf.mxu0
        %3389 = vdwg.mxu0
        %v3391 = vsel %vm2859, %v3296, 0
        %v3394 = vsel %vm3106, %v2526, 0
        %3396 = vmatprep.subr.bf16.mxu0 0
        %3397 = vmatpush1.bf16.msra.mxu0 0
        %3398 = vmatprep.subr.bf16.mxu0 0
        %3399 = vmatpush1.bf16.msra.mxu0 0
        %3400 = vmatprep.subr.bf16.mxu0 0
        %3401 = vmatpush1.bf16.msra.mxu0 0
        %3402 = vmatprep.subr.bf16.mxu0 0
        %3403 = vmatpush1.bf16.msra.mxu0 0
        %3404 = vmatprep.subr.bf16.mxu0 0
        %3405 = vmatpush1.bf16.msra.mxu0 0
        %3406 = vmatprep.subr.bf16.mxu0 0
        %3407 = vmatpush1.bf16.msra.mxu0 0
        %3408 = vmatprep.subr.bf16.mxu0 0
        %3409 = vmatpush1.bf16.msra.mxu0 0
        %3410 = vmatprep.subr.bf16.mxu0 0
        %3411 = vmatpush1.bf16.msra.mxu0 %v3394
        %3412 = vmatprep.subr.bf16.mxu0 0
        %3413 = vmatpush2.bf16.msra.mxu0 0
        %3414 = vmatprep.subr.bf16.mxu0 0
        %3415 = vmatpush2.bf16.msra.mxu0 0
        %3416 = vmatprep.subr.bf16.mxu0 0
        %3417 = vmatpush2.bf16.msra.mxu0 0
        %3418 = vmatprep.subr.bf16.mxu0 0
        %3419 = vmatpush2.bf16.msra.mxu0 0
        %3420 = vmatprep.subr.bf16.mxu0 0
        %3421 = vmatpush2.bf16.msra.mxu0 0
        %3422 = vmatprep.subr.bf16.mxu0 0
        %3423 = vmatpush2.bf16.msra.mxu0 0
        %3424 = vmatprep.subr.bf16.mxu0 0
        %3425 = vmatpush2.bf16.msra.mxu0 0
        %3426 = vmatprep.subr.bf16.mxu0 0
        %3427 = vmatpush2.bf16.msra.mxu0 0
        %3428 = vmatprep.mubr.bf16.mxu0 0
        %3429 = vmatmul.mubr.bf16.gmra.mxu0 %v3391
        %v3430 = vpop.f32.mrf.mxu0
        %v3431 = vadd.f32 0.0, %v3430
        %v3432 = vpop.f32.mrf.mxu0
        %v3433 = vpop.f32.mrf.mxu0
        %v3434 = vpop.f32.mrf.mxu0
        %3435 = vdwg.mxu0
        %v3437 = vsel %vm2859, %v3297, 0
        %v3440 = vsel %vm3106, %v2527, 0
        %3442 = vmatprep.subr.bf16.mxu0 0
        %3443 = vmatpush1.bf16.msra.mxu0 0
        %3444 = vmatprep.subr.bf16.mxu0 0
        %3445 = vmatpush1.bf16.msra.mxu0 0
        %3446 = vmatprep.subr.bf16.mxu0 0
        %3447 = vmatpush1.bf16.msra.mxu0 0
        %3448 = vmatprep.subr.bf16.mxu0 0
        %3449 = vmatpush1.bf16.msra.mxu0 0
        %3450 = vmatprep.subr.bf16.mxu0 0
        %3451 = vmatpush1.bf16.msra.mxu0 0
        %3452 = vmatprep.subr.bf16.mxu0 0
        %3453 = vmatpush1.bf16.msra.mxu0 0
        %3454 = vmatprep.subr.bf16.mxu0 0
        %3455 = vmatpush1.bf16.msra.mxu0 0
        %3456 = vmatprep.subr.bf16.mxu0 0
        %3457 = vmatpush1.bf16.msra.mxu0 %v3440
        %3458 = vmatprep.subr.bf16.mxu0 0
        %3459 = vmatpush2.bf16.msra.mxu0 0
        %3460 = vmatprep.subr.bf16.mxu0 0
        %3461 = vmatpush2.bf16.msra.mxu0 0
        %3462 = vmatprep.subr.bf16.mxu0 0
        %3463 = vmatpush2.bf16.msra.mxu0 0
        %3464 = vmatprep.subr.bf16.mxu0 0
        %3465 = vmatpush2.bf16.msra.mxu0 0
        %3466 = vmatprep.subr.bf16.mxu0 0
        %3467 = vmatpush2.bf16.msra.mxu0 0
        %3468 = vmatprep.subr.bf16.mxu0 0
        %3469 = vmatpush2.bf16.msra.mxu0 0
        %3470 = vmatprep.subr.bf16.mxu0 0
        %3471 = vmatpush2.bf16.msra.mxu0 0
        %3472 = vmatprep.subr.bf16.mxu0 0
        %3473 = vmatpush2.bf16.msra.mxu0 0
        %3474 = vmatprep.mubr.bf16.mxu0 0
        %3475 = vmatmul.mubr.bf16.gmra.mxu0 %v3437
        %v3476 = vpop.f32.mrf.mxu0
        %v3477 = vadd.f32 0.0, %v3476
        %v3478 = vpop.f32.mrf.mxu0
        %v3479 = vpop.f32.mrf.mxu0
        %v3480 = vpop.f32.mrf.mxu0
        %3481 = vdwg.mxu0
        %v3482 = vsel %vm2646, %v3339, 0.0
        %v3483 = vsel %vm2646, %v3385, 0.0
        %v3484 = vadd.f32 %v3482, %v3483
        %v3485 = vsel %vm2646, %v3431, 0.0
        %v3486 = vadd.f32 %v3484, %v3485
        %v3487 = vsel %vm2646, %v3477, 0.0
        %v3488 = vadd.f32 %v3486, %v3487
        %v3489 = vadd.f32 %v2597, %v3488
        %v3491 = vlaneseq
        %v3492 = vshrl.u32 %v3491, 7
        %v3493 = vsub.s32 0, %v3492
        %v3494 = vrot.slane %v2503, %v3493
        %v3496 = vadd.f32 %v3489, %v3494
        %v3497 = vsel %vm2646, %v3496, 0.0
        %3498 = vadd.xlane.f32.xlu0 %v3497
        %v3499 = vpop.xlane.xlu0 %3498
        %v3500 = vrcp.pop 32.0
        %v3501 = vmul.f32 %v3499, %v3500
        %v3502 = vsub.f32 %v3496, %v3501
        %v3503 = vmul.f32 %v3502, %v3502
        %v3504 = vsel %vm2646, %v3503, 0.0
        %3505 = vadd.xlane.f32.xlu0 %v3504
        %v3506 = vpop.xlane.xlu0 %3505
        %v3507 = vmul.f32 %v3506, %v3500
        %v3508 = vadd.f32 %v3507, 1e-05
        %v3509 = vrsqrt.pop %v3508
        %v3510 = vmul.f32 %v3502, %v3509
        %v3512 = vlaneseq
        %v3513 = vshrl.u32 %v3512, 7
        %v3514 = vsub.s32 0, %v3513
        %v3515 = vrot.slane %v2509, %v3514
        %v3517 = vmul.f32 %v3510, %v3515
        %v3519 = vlaneseq
        %v3520 = vshrl.u32 %v3519, 7
        %v3521 = vsub.s32 0, %v3520
        %v3522 = vrot.slane %v2508, %v3521
        %v3524 = vadd.f32 %v3517, %v3522
        %v3525 = vpack.c.bf16 %v3524, %v3524
        %v3527 = vlaneseq
        %v3528 = vshrl.u32 %v3527, 7
        %v3529 = vsub.s32 0, %v3528
        %v3530 = vrot.slane %v2501, %v3529
        %v3536 = vunpack.c.l.b16 %v2512
        %v3537 = vunpack.c.l.b16 %v2513
        %v3538 = vunpack.c.l.b16 %v2514
        %v3539 = vunpack.c.l.b16 %v2515
        %v3540 = vpack.c.b16 %v3537, %v3536
        %v3541 = vpack.c.b16 %v3539, %v3538
        %v3545 = vsel %vm2646, %v3525, 0
        %3547 = vmatprep.subr.bf16.mxu0 0
        %3548 = vmatpush1.bf16.msra.mxu0 0
        %3549 = vmatprep.subr.bf16.mxu0 0
        %3550 = vmatpush1.bf16.msra.mxu0 0
        %3551 = vmatprep.subr.bf16.mxu0 0
        %3552 = vmatpush1.bf16.msra.mxu0 0
        %3553 = vmatprep.subr.bf16.mxu0 0
        %3554 = vmatpush1.bf16.msra.mxu0 0
        %3555 = vmatprep.subr.bf16.mxu0 0
        %3556 = vmatpush1.bf16.msra.mxu0 0
        %3557 = vmatprep.subr.bf16.mxu0 0
        %3558 = vmatpush1.bf16.msra.mxu0 0
        %3559 = vmatprep.subr.bf16.mxu0 0
        %3560 = vmatpush1.bf16.msra.mxu0 %v3541
        %3561 = vmatprep.subr.bf16.mxu0 0
        %3562 = vmatpush1.bf16.msra.mxu0 %v3540
        %3563 = vmatprep.subr.bf16.mxu0 0
        %3564 = vmatpush2.bf16.msra.mxu0 0
        %3565 = vmatprep.subr.bf16.mxu0 0
        %3566 = vmatpush2.bf16.msra.mxu0 0
        %3567 = vmatprep.subr.bf16.mxu0 0
        %3568 = vmatpush2.bf16.msra.mxu0 0
        %3569 = vmatprep.subr.bf16.mxu0 0
        %3570 = vmatpush2.bf16.msra.mxu0 0
        %3571 = vmatprep.subr.bf16.mxu0 0
        %3572 = vmatpush2.bf16.msra.mxu0 0
        %3573 = vmatprep.subr.bf16.mxu0 0
        %3574 = vmatpush2.bf16.msra.mxu0 0
        %3575 = vmatprep.subr.bf16.mxu0 0
        %3576 = vmatpush2.bf16.msra.mxu0 0
        %3577 = vmatprep.subr.bf16.mxu0 0
        %3578 = vmatpush2.bf16.msra.mxu0 0
        %3579 = vmatprep.mubr.bf16.mxu0 0
        %3580 = vmatmul.mubr.bf16.gmra.mxu0 %v3545
        %v3581 = vpop.f32.mrf.mxu0
        %v3582 = vadd.f32 %v3530, %v3581
        %v3583 = vpop.f32.mrf.mxu0
        %v3584 = vpop.f32.mrf.mxu0
        %v3585 = vpop.f32.mrf.mxu0
        %3586 = vdwg.mxu0
        %v3587 = vmax.f32 %v3582, 0.0
        %v3588 = vpack.c.bf16 %v3587, %v3587
        %v3590 = vlaneseq
        %v3591 = vshrl.u32 %v3590, 7
        %v3592 = vsub.s32 0, %v3591
        %v3593 = vrot.slane %v2502, %v3592
        %v3603 = vunpack.c.l.b16 %v2516
        %v3604 = vunpack.c.l.b16 %v2517
        %v3605 = vunpack.c.l.b16 %v2518
        %v3606 = vunpack.c.l.b16 %v2519
        %v3607 = vunpack.c.l.b16 %v2520
        %v3608 = vunpack.c.l.b16 %v2521
        %v3609 = vunpack.c.l.b16 %v2522
        %v3610 = vunpack.c.l.b16 %v2523
        %v3611 = vpack.c.b16 %v3604, %v3603
        %v3612 = vpack.c.b16 %v3606, %v3605
        %v3613 = vpack.c.b16 %v3608, %v3607
        %v3614 = vpack.c.b16 %v3610, %v3609
        %vm3619 = vcmask 523264
        %v3621 = vsel %vm3619, %v3588, 0
        %3623 = vmatprep.subr.bf16.mxu0 0
        %3624 = vmatpush1.bf16.msra.mxu0 0
        %3625 = vmatprep.subr.bf16.mxu0 0
        %3626 = vmatpush1.bf16.msra.mxu0 0
        %3627 = vmatprep.subr.bf16.mxu0 0
        %3628 = vmatpush1.bf16.msra.mxu0 0
        %3629 = vmatprep.subr.bf16.mxu0 0
        %3630 = vmatpush1.bf16.msra.mxu0 0
        %3631 = vmatprep.subr.bf16.mxu0 0
        %3632 = vmatpush1.bf16.msra.mxu0 %v3614
        %3633 = vmatprep.subr.bf16.mxu0 0
        %3634 = vmatpush1.bf16.msra.mxu0 %v3613
        %3635 = vmatprep.subr.bf16.mxu0 0
        %3636 = vmatpush1.bf16.msra.mxu0 %v3612
        %3637 = vmatprep.subr.bf16.mxu0 0
        %3638 = vmatpush1.bf16.msra.mxu0 %v3611
        %3639 = vmatprep.subr.bf16.mxu0 0
        %3640 = vmatpush2.bf16.msra.mxu0 0
        %3641 = vmatprep.subr.bf16.mxu0 0
        %3642 = vmatpush2.bf16.msra.mxu0 0
        %3643 = vmatprep.subr.bf16.mxu0 0
        %3644 = vmatpush2.bf16.msra.mxu0 0
        %3645 = vmatprep.subr.bf16.mxu0 0
        %3646 = vmatpush2.bf16.msra.mxu0 0
        %3647 = vmatprep.subr.bf16.mxu0 0
        %3648 = vmatpush2.bf16.msra.mxu0 0
        %3649 = vmatprep.subr.bf16.mxu0 0
        %3650 = vmatpush2.bf16.msra.mxu0 0
        %3651 = vmatprep.subr.bf16.mxu0 0
        %3652 = vmatpush2.bf16.msra.mxu0 0
        %3653 = vmatprep.subr.bf16.mxu0 0
        %3654 = vmatpush2.bf16.msra.mxu0 0
        %3655 = vmatprep.mubr.bf16.mxu0 0
        %3656 = vmatmul.mubr.bf16.gmra.mxu0 %v3621
        %v3657 = vpop.f32.mrf.mxu0
        %v3658 = vadd.f32 %v3593, %v3657
        %v3659 = vpop.f32.mrf.mxu0
        %v3660 = vpop.f32.mrf.mxu0
        %v3661 = vpop.f32.mrf.mxu0
        %3662 = vdwg.mxu0
        %v3663 = vadd.f32 %v3524, %v3658
        %v3664 = vsel %vm2646, %v3663, 0.0
        %3665 = vadd.xlane.f32.xlu0 %v3664
        %v3666 = vpop.xlane.xlu0 %3665
        %v3667 = vmul.f32 %v3666, %v3500
        %v3668 = vsub.f32 %v3663, %v3667
        %v3669 = vmul.f32 %v3668, %v3668
        %v3670 = vsel %vm2646, %v3669, 0.0
        %3671 = vadd.xlane.f32.xlu0 %v3670
        %v3672 = vpop.xlane.xlu0 %3671
        %v3673 = vmul.f32 %v3672, %v3500
        %v3674 = vadd.f32 %v3673, 1e-05
        %v3675 = vrsqrt.pop %v3674
        %v3676 = vmul.f32 %v3668, %v3675
        %v3678 = vlaneseq
        %v3679 = vshrl.u32 %v3678, 7
        %v3680 = vsub.s32 0, %v3679
        %v3681 = vrot.slane %v2511, %v3680
        %v3683 = vmul.f32 %v3676, %v3681
        %v3685 = vlaneseq
        %v3686 = vshrl.u32 %v3685, 7
        %v3687 = vsub.s32 0, %v3686
        %v3688 = vrot.slane %v2510, %v3687
        %v3690 = vadd.f32 %v3683, %v3688
        %v3691 = vpack.c.bf16 %v3690, %v3690
        %v3696 = vlaneseq
        %v3697 = vshrl.u32 %v3696, 7
        %v3698 = vsub.s32 0, %v3697
        %v3699 = vrot.slane %v2547, %v3698
        %v3700 = vlaneseq
        %v3701 = vshrl.u32 %v3700, 7
        %v3702 = vsub.s32 0, %v3701
        %v3703 = vrot.slane %v2548, %v3702
        %v3704 = vlaneseq
        %v3705 = vshrl.u32 %v3704, 7
        %v3706 = vsub.s32 0, %v3705
        %v3707 = vrot.slane %v2549, %v3706
        %v3708 = vlaneseq
        %v3709 = vshrl.u32 %v3708, 7
        %v3710 = vsub.s32 0, %v3709
        %v3711 = vrot.slane %v2550, %v3710
        %v3720 = vunpack.c.l.b16 %v2571
        %v3721 = vunpack.c.l.b16 %v2572
        %v3722 = vunpack.c.l.b16 %v2573
        %v3723 = vunpack.c.l.b16 %v2574
        %v3724 = vpack.c.b16 %v3721, %v3720
        %v3725 = vpack.c.b16 %v3723, %v3722
        %v3729 = vsel %vm2646, %v3691, 0
        %3731 = vmatprep.subr.bf16.mxu0 0
        %3732 = vmatpush1.bf16.msra.mxu0 0
        %3733 = vmatprep.subr.bf16.mxu0 0
        %3734 = vmatpush1.bf16.msra.mxu0 0
        %3735 = vmatprep.subr.bf16.mxu0 0
        %3736 = vmatpush1.bf16.msra.mxu0 0
        %3737 = vmatprep.subr.bf16.mxu0 0
        %3738 = vmatpush1.bf16.msra.mxu0 0
        %3739 = vmatprep.subr.bf16.mxu0 0
        %3740 = vmatpush1.bf16.msra.mxu0 0
        %3741 = vmatprep.subr.bf16.mxu0 0
        %3742 = vmatpush1.bf16.msra.mxu0 0
        %3743 = vmatprep.subr.bf16.mxu0 0
        %3744 = vmatpush1.bf16.msra.mxu0 %v3725
        %3745 = vmatprep.subr.bf16.mxu0 0
        %3746 = vmatpush1.bf16.msra.mxu0 %v3724
        %3747 = vmatprep.subr.bf16.mxu0 0
        %3748 = vmatpush2.bf16.msra.mxu0 0
        %3749 = vmatprep.subr.bf16.mxu0 0
        %3750 = vmatpush2.bf16.msra.mxu0 0
        %3751 = vmatprep.subr.bf16.mxu0 0
        %3752 = vmatpush2.bf16.msra.mxu0 0
        %3753 = vmatprep.subr.bf16.mxu0 0
        %3754 = vmatpush2.bf16.msra.mxu0 0
        %3755 = vmatprep.subr.bf16.mxu0 0
        %3756 = vmatpush2.bf16.msra.mxu0 0
        %3757 = vmatprep.subr.bf16.mxu0 0
        %3758 = vmatpush2.bf16.msra.mxu0 0
        %3759 = vmatprep.subr.bf16.mxu0 0
        %3760 = vmatpush2.bf16.msra.mxu0 0
        %3761 = vmatprep.subr.bf16.mxu0 0
        %3762 = vmatpush2.bf16.msra.mxu0 0
        %3763 = vmatprep.mubr.bf16.mxu0 0
        %3764 = vmatmul.mubr.bf16.gmra.mxu0 %v3729
        %v3765 = vpop.f32.mrf.mxu0
        %v3766 = vadd.f32 %v3699, %v3765
        %v3767 = vpop.f32.mrf.mxu0
        %v3768 = vpop.f32.mrf.mxu0
        %v3769 = vpop.f32.mrf.mxu0
        %3770 = vdwg.mxu0
        %v3775 = vunpack.c.l.b16 %v2575
        %v3776 = vunpack.c.l.b16 %v2576
        %v3777 = vunpack.c.l.b16 %v2577
        %v3778 = vunpack.c.l.b16 %v2578
        %v3779 = vpack.c.b16 %v3776, %v3775
        %v3780 = vpack.c.b16 %v3778, %v3777
        %3783 = vmatprep.subr.bf16.mxu0 0
        %3784 = vmatpush1.bf16.msra.mxu0 0
        %3785 = vmatprep.subr.bf16.mxu0 0
        %3786 = vmatpush1.bf16.msra.mxu0 0
        %3787 = vmatprep.subr.bf16.mxu0 0
        %3788 = vmatpush1.bf16.msra.mxu0 0
        %3789 = vmatprep.subr.bf16.mxu0 0
        %3790 = vmatpush1.bf16.msra.mxu0 0
        %3791 = vmatprep.subr.bf16.mxu0 0
        %3792 = vmatpush1.bf16.msra.mxu0 0
        %3793 = vmatprep.subr.bf16.mxu0 0
        %3794 = vmatpush1.bf16.msra.mxu0 0
        %3795 = vmatprep.subr.bf16.mxu0 0
        %3796 = vmatpush1.bf16.msra.mxu0 %v3780
        %3797 = vmatprep.subr.bf16.mxu0 0
        %3798 = vmatpush1.bf16.msra.mxu0 %v3779
        %3799 = vmatprep.subr.bf16.mxu0 0
        %3800 = vmatpush2.bf16.msra.mxu0 0
        %3801 = vmatprep.subr.bf16.mxu0 0
        %3802 = vmatpush2.bf16.msra.mxu0 0
        %3803 = vmatprep.subr.bf16.mxu0 0
        %3804 = vmatpush2.bf16.msra.mxu0 0
        %3805 = vmatprep.subr.bf16.mxu0 0
        %3806 = vmatpush2.bf16.msra.mxu0 0
        %3807 = vmatprep.subr.bf16.mxu0 0
        %3808 = vmatpush2.bf16.msra.mxu0 0
        %3809 = vmatprep.subr.bf16.mxu0 0
        %3810 = vmatpush2.bf16.msra.mxu0 0
        %3811 = vmatprep.subr.bf16.mxu0 0
        %3812 = vmatpush2.bf16.msra.mxu0 0
        %3813 = vmatprep.subr.bf16.mxu0 0
        %3814 = vmatpush2.bf16.msra.mxu0 0
        %3815 = vmatprep.mubr.bf16.mxu0 0
        %3816 = vmatmul.mubr.bf16.gmra.mxu0 %v3729
        %v3817 = vpop.f32.mrf.mxu0
        %v3818 = vadd.f32 %v3703, %v3817
        %v3819 = vpop.f32.mrf.mxu0
        %v3820 = vpop.f32.mrf.mxu0
        %v3821 = vpop.f32.mrf.mxu0
        %3822 = vdwg.mxu0
        %v3827 = vunpack.c.l.b16 %v2579
        %v3828 = vunpack.c.l.b16 %v2580
        %v3829 = vunpack.c.l.b16 %v2581
        %v3830 = vunpack.c.l.b16 %v2582
        %v3831 = vpack.c.b16 %v3828, %v3827
        %v3832 = vpack.c.b16 %v3830, %v3829
        %3835 = vmatprep.subr.bf16.mxu0 0
        %3836 = vmatpush1.bf16.msra.mxu0 0
        %3837 = vmatprep.subr.bf16.mxu0 0
        %3838 = vmatpush1.bf16.msra.mxu0 0
        %3839 = vmatprep.subr.bf16.mxu0 0
        %3840 = vmatpush1.bf16.msra.mxu0 0
        %3841 = vmatprep.subr.bf16.mxu0 0
        %3842 = vmatpush1.bf16.msra.mxu0 0
        %3843 = vmatprep.subr.bf16.mxu0 0
        %3844 = vmatpush1.bf16.msra.mxu0 0
        %3845 = vmatprep.subr.bf16.mxu0 0
        %3846 = vmatpush1.bf16.msra.mxu0 0
        %3847 = vmatprep.subr.bf16.mxu0 0
        %3848 = vmatpush1.bf16.msra.mxu0 %v3832
        %3849 = vmatprep.subr.bf16.mxu0 0
        %3850 = vmatpush1.bf16.msra.mxu0 %v3831
        %3851 = vmatprep.subr.bf16.mxu0 0
        %3852 = vmatpush2.bf16.msra.mxu0 0
        %3853 = vmatprep.subr.bf16.mxu0 0
        %3854 = vmatpush2.bf16.msra.mxu0 0
        %3855 = vmatprep.subr.bf16.mxu0 0
        %3856 = vmatpush2.bf16.msra.mxu0 0
        %3857 = vmatprep.subr.bf16.mxu0 0
        %3858 = vmatpush2.bf16.msra.mxu0 0
        %3859 = vmatprep.subr.bf16.mxu0 0
        %3860 = vmatpush2.bf16.msra.mxu0 0
        %3861 = vmatprep.subr.bf16.mxu0 0
        %3862 = vmatpush2.bf16.msra.mxu0 0
        %3863 = vmatprep.subr.bf16.mxu0 0
        %3864 = vmatpush2.bf16.msra.mxu0 0
        %3865 = vmatprep.subr.bf16.mxu0 0
        %3866 = vmatpush2.bf16.msra.mxu0 0
        %3867 = vmatprep.mubr.bf16.mxu0 0
        %3868 = vmatmul.mubr.bf16.gmra.mxu0 %v3729
        %v3869 = vpop.f32.mrf.mxu0
        %v3870 = vadd.f32 %v3707, %v3869
        %v3871 = vpop.f32.mrf.mxu0
        %v3872 = vpop.f32.mrf.mxu0
        %v3873 = vpop.f32.mrf.mxu0
        %3874 = vdwg.mxu0
        %v3879 = vunpack.c.l.b16 %v2583
        %v3880 = vunpack.c.l.b16 %v2584
        %v3881 = vunpack.c.l.b16 %v2585
        %v3882 = vunpack.c.l.b16 %v2586
        %v3883 = vpack.c.b16 %v3880, %v3879
        %v3884 = vpack.c.b16 %v3882, %v3881
        %3887 = vmatprep.subr.bf16.mxu0 0
        %3888 = vmatpush1.bf16.msra.mxu0 0
        %3889 = vmatprep.subr.bf16.mxu0 0
        %3890 = vmatpush1.bf16.msra.mxu0 0
        %3891 = vmatprep.subr.bf16.mxu0 0
        %3892 = vmatpush1.bf16.msra.mxu0 0
        %3893 = vmatprep.subr.bf16.mxu0 0
        %3894 = vmatpush1.bf16.msra.mxu0 0
        %3895 = vmatprep.subr.bf16.mxu0 0
        %3896 = vmatpush1.bf16.msra.mxu0 0
        %3897 = vmatprep.subr.bf16.mxu0 0
        %3898 = vmatpush1.bf16.msra.mxu0 0
        %3899 = vmatprep.subr.bf16.mxu0 0
        %3900 = vmatpush1.bf16.msra.mxu0 %v3884
        %3901 = vmatprep.subr.bf16.mxu0 0
        %3902 = vmatpush1.bf16.msra.mxu0 %v3883
        %3903 = vmatprep.subr.bf16.mxu0 0
        %3904 = vmatpush2.bf16.msra.mxu0 0
        %3905 = vmatprep.subr.bf16.mxu0 0
        %3906 = vmatpush2.bf16.msra.mxu0 0
        %3907 = vmatprep.subr.bf16.mxu0 0
        %3908 = vmatpush2.bf16.msra.mxu0 0
        %3909 = vmatprep.subr.bf16.mxu0 0
        %3910 = vmatpush2.bf16.msra.mxu0 0
        %3911 = vmatprep.subr.bf16.mxu0 0
        %3912 = vmatpush2.bf16.msra.mxu0 0
        %3913 = vmatprep.subr.bf16.mxu0 0
        %3914 = vmatpush2.bf16.msra.mxu0 0
        %3915 = vmatprep.subr.bf16.mxu0 0
        %3916 = vmatpush2.bf16.msra.mxu0 0
        %3917 = vmatprep.subr.bf16.mxu0 0
        %3918 = vmatpush2.bf16.msra.mxu0 0
        %3919 = vmatprep.mubr.bf16.mxu0 0
        %3920 = vmatmul.mubr.bf16.gmra.mxu0 %v3729
        %v3921 = vpop.f32.mrf.mxu0
        %v3922 = vadd.f32 %v3711, %v3921
        %v3923 = vpop.f32.mrf.mxu0
        %v3924 = vpop.f32.mrf.mxu0
        %v3925 = vpop.f32.mrf.mxu0
        %3926 = vdwg.mxu0
        %v3927 = vpack.c.bf16 %v3766, %v3766
        %v3928 = vpack.c.bf16 %v3818, %v3818
        %v3929 = vpack.c.bf16 %v3870, %v3870
        %v3930 = vpack.c.bf16 %v3922, %v3922
        %3932 = vrot.lane.b32.xlu0 %v3927, 120
        %v3933 = vpop.permute.xlu0 %3932
        %v3935 = vsel %vm2859, %v3927, 0
        %v3938 = vsel %vm2859, %v3933, 0
        %3940 = vmatprep.subr.bf16.mxu0 0
        %3941 = vmatpush1.bf16.xpose.msra.mxu0 0
        %3942 = vmatprep.subr.bf16.mxu0 0
        %3943 = vmatpush1.bf16.xpose.msra.mxu0 0
        %3944 = vmatprep.subr.bf16.mxu0 0
        %3945 = vmatpush1.bf16.xpose.msra.mxu0 0
        %3946 = vmatprep.subr.bf16.mxu0 0
        %3947 = vmatpush1.bf16.xpose.msra.mxu0 0
        %3948 = vmatprep.subr.bf16.mxu0 0
        %3949 = vmatpush1.bf16.xpose.msra.mxu0 0
        %3950 = vmatprep.subr.bf16.mxu0 0
        %3951 = vmatpush1.bf16.xpose.msra.mxu0 0
        %3952 = vmatprep.subr.bf16.mxu0 0
        %3953 = vmatpush1.bf16.xpose.msra.mxu0 0
        %3954 = vmatprep.subr.bf16.mxu0 0
        %3955 = vmatpush1.bf16.xpose.msra.mxu0 %v3938
        %3956 = vmatprep.subr.bf16.mxu0 0
        %3957 = vmatpush2.bf16.xpose.msra.mxu0 0
        %3958 = vmatprep.subr.bf16.mxu0 0
        %3959 = vmatpush2.bf16.xpose.msra.mxu0 0
        %3960 = vmatprep.subr.bf16.mxu0 0
        %3961 = vmatpush2.bf16.xpose.msra.mxu0 0
        %3962 = vmatprep.subr.bf16.mxu0 0
        %3963 = vmatpush2.bf16.xpose.msra.mxu0 0
        %3964 = vmatprep.subr.bf16.mxu0 0
        %3965 = vmatpush2.bf16.xpose.msra.mxu0 0
        %3966 = vmatprep.subr.bf16.mxu0 0
        %3967 = vmatpush2.bf16.xpose.msra.mxu0 0
        %3968 = vmatprep.subr.bf16.mxu0 0
        %3969 = vmatpush2.bf16.xpose.msra.mxu0 0
        %3970 = vmatprep.subr.bf16.mxu0 0
        %3971 = vmatpush2.bf16.xpose.msra.mxu0 0
        %3972 = vmatprep.mubr.bf16.mxu0 0
        %3973 = vmatmul.mubr.bf16.gmra.mxu0 %v3935
        %v3974 = vpop.f32.mrf.mxu0
        %v3975 = vadd.f32 %v2854, %v3974
        %v3976 = vpop.f32.mrf.mxu0
        %v3977 = vpop.f32.mrf.mxu0
        %v3978 = vpop.f32.mrf.mxu0
        %3979 = vdwg.mxu0
        %3981 = vrot.lane.b32.xlu0 %v3928, 120
        %v3982 = vpop.permute.xlu0 %3981
        %v3984 = vsel %vm2859, %v3928, 0
        %v3987 = vsel %vm2859, %v3982, 0
        %3989 = vmatprep.subr.bf16.mxu0 0
        %3990 = vmatpush1.bf16.xpose.msra.mxu0 0
        %3991 = vmatprep.subr.bf16.mxu0 0
        %3992 = vmatpush1.bf16.xpose.msra.mxu0 0
        %3993 = vmatprep.subr.bf16.mxu0 0
        %3994 = vmatpush1.bf16.xpose.msra.mxu0 0
        %3995 = vmatprep.subr.bf16.mxu0 0
        %3996 = vmatpush1.bf16.xpose.msra.mxu0 0
        %3997 = vmatprep.subr.bf16.mxu0 0
        %3998 = vmatpush1.bf16.xpose.msra.mxu0 0
        %3999 = vmatprep.subr.bf16.mxu0 0
        %4000 = vmatpush1.bf16.xpose.msra.mxu0 0
        %4001 = vmatprep.subr.bf16.mxu0 0
        %4002 = vmatpush1.bf16.xpose.msra.mxu0 0
        %4003 = vmatprep.subr.bf16.mxu0 0
        %4004 = vmatpush1.bf16.xpose.msra.mxu0 %v3987
        %4005 = vmatprep.subr.bf16.mxu0 0
        %4006 = vmatpush2.bf16.xpose.msra.mxu0 0
        %4007 = vmatprep.subr.bf16.mxu0 0
        %4008 = vmatpush2.bf16.xpose.msra.mxu0 0
        %4009 = vmatprep.subr.bf16.mxu0 0
        %4010 = vmatpush2.bf16.xpose.msra.mxu0 0
        %4011 = vmatprep.subr.bf16.mxu0 0
        %4012 = vmatpush2.bf16.xpose.msra.mxu0 0
        %4013 = vmatprep.subr.bf16.mxu0 0
        %4014 = vmatpush2.bf16.xpose.msra.mxu0 0
        %4015 = vmatprep.subr.bf16.mxu0 0
        %4016 = vmatpush2.bf16.xpose.msra.mxu0 0
        %4017 = vmatprep.subr.bf16.mxu0 0
        %4018 = vmatpush2.bf16.xpose.msra.mxu0 0
        %4019 = vmatprep.subr.bf16.mxu0 0
        %4020 = vmatpush2.bf16.xpose.msra.mxu0 0
        %4021 = vmatprep.mubr.bf16.mxu0 0
        %4022 = vmatmul.mubr.bf16.gmra.mxu0 %v3984
        %v4023 = vpop.f32.mrf.mxu0
        %v4024 = vadd.f32 %v2854, %v4023
        %v4025 = vpop.f32.mrf.mxu0
        %v4026 = vpop.f32.mrf.mxu0
        %v4027 = vpop.f32.mrf.mxu0
        %4028 = vdwg.mxu0
        %4030 = vrot.lane.b32.xlu0 %v3929, 120
        %v4031 = vpop.permute.xlu0 %4030
        %v4033 = vsel %vm2859, %v3929, 0
        %v4036 = vsel %vm2859, %v4031, 0
        %4038 = vmatprep.subr.bf16.mxu0 0
        %4039 = vmatpush1.bf16.xpose.msra.mxu0 0
        %4040 = vmatprep.subr.bf16.mxu0 0
        %4041 = vmatpush1.bf16.xpose.msra.mxu0 0
        %4042 = vmatprep.subr.bf16.mxu0 0
        %4043 = vmatpush1.bf16.xpose.msra.mxu0 0
        %4044 = vmatprep.subr.bf16.mxu0 0
        %4045 = vmatpush1.bf16.xpose.msra.mxu0 0
        %4046 = vmatprep.subr.bf16.mxu0 0
        %4047 = vmatpush1.bf16.xpose.msra.mxu0 0
        %4048 = vmatprep.subr.bf16.mxu0 0
        %4049 = vmatpush1.bf16.xpose.msra.mxu0 0
        %4050 = vmatprep.subr.bf16.mxu0 0
        %4051 = vmatpush1.bf16.xpose.msra.mxu0 0
        %4052 = vmatprep.subr.bf16.mxu0 0
        %4053 = vmatpush1.bf16.xpose.msra.mxu0 %v4036
        %4054 = vmatprep.subr.bf16.mxu0 0
        %4055 = vmatpush2.bf16.xpose.msra.mxu0 0
        %4056 = vmatprep.subr.bf16.mxu0 0
        %4057 = vmatpush2.bf16.xpose.msra.mxu0 0
        %4058 = vmatprep.subr.bf16.mxu0 0
        %4059 = vmatpush2.bf16.xpose.msra.mxu0 0
        %4060 = vmatprep.subr.bf16.mxu0 0
        %4061 = vmatpush2.bf16.xpose.msra.mxu0 0
        %4062 = vmatprep.subr.bf16.mxu0 0
        %4063 = vmatpush2.bf16.xpose.msra.mxu0 0
        %4064 = vmatprep.subr.bf16.mxu0 0
        %4065 = vmatpush2.bf16.xpose.msra.mxu0 0
        %4066 = vmatprep.subr.bf16.mxu0 0
        %4067 = vmatpush2.bf16.xpose.msra.mxu0 0
        %4068 = vmatprep.subr.bf16.mxu0 0
        %4069 = vmatpush2.bf16.xpose.msra.mxu0 0
        %4070 = vmatprep.mubr.bf16.mxu0 0
        %4071 = vmatmul.mubr.bf16.gmra.mxu0 %v4033
        %v4072 = vpop.f32.mrf.mxu0
        %v4073 = vadd.f32 %v2854, %v4072
        %v4074 = vpop.f32.mrf.mxu0
        %v4075 = vpop.f32.mrf.mxu0
        %v4076 = vpop.f32.mrf.mxu0
        %4077 = vdwg.mxu0
        %4079 = vrot.lane.b32.xlu0 %v3930, 120
        %v4080 = vpop.permute.xlu0 %4079
        %v4082 = vsel %vm2859, %v3930, 0
        %v4085 = vsel %vm2859, %v4080, 0
        %4087 = vmatprep.subr.bf16.mxu0 0
        %4088 = vmatpush1.bf16.xpose.msra.mxu0 0
        %4089 = vmatprep.subr.bf16.mxu0 0
        %4090 = vmatpush1.bf16.xpose.msra.mxu0 0
        %4091 = vmatprep.subr.bf16.mxu0 0
        %4092 = vmatpush1.bf16.xpose.msra.mxu0 0
        %4093 = vmatprep.subr.bf16.mxu0 0
        %4094 = vmatpush1.bf16.xpose.msra.mxu0 0
        %4095 = vmatprep.subr.bf16.mxu0 0
        %4096 = vmatpush1.bf16.xpose.msra.mxu0 0
        %4097 = vmatprep.subr.bf16.mxu0 0
        %4098 = vmatpush1.bf16.xpose.msra.mxu0 0
        %4099 = vmatprep.subr.bf16.mxu0 0
        %4100 = vmatpush1.bf16.xpose.msra.mxu0 0
        %4101 = vmatprep.subr.bf16.mxu0 0
        %4102 = vmatpush1.bf16.xpose.msra.mxu0 %v4085
        %4103 = vmatprep.subr.bf16.mxu0 0
        %4104 = vmatpush2.bf16.xpose.msra.mxu0 0
        %4105 = vmatprep.subr.bf16.mxu0 0
        %4106 = vmatpush2.bf16.xpose.msra.mxu0 0
        %4107 = vmatprep.subr.bf16.mxu0 0
        %4108 = vmatpush2.bf16.xpose.msra.mxu0 0
        %4109 = vmatprep.subr.bf16.mxu0 0
        %4110 = vmatpush2.bf16.xpose.msra.mxu0 0
        %4111 = vmatprep.subr.bf16.mxu0 0
        %4112 = vmatpush2.bf16.xpose.msra.mxu0 0
        %4113 = vmatprep.subr.bf16.mxu0 0
        %4114 = vmatpush2.bf16.xpose.msra.mxu0 0
        %4115 = vmatprep.subr.bf16.mxu0 0
        %4116 = vmatpush2.bf16.xpose.msra.mxu0 0
        %4117 = vmatprep.subr.bf16.mxu0 0
        %4118 = vmatpush2.bf16.xpose.msra.mxu0 0
        %4119 = vmatprep.mubr.bf16.mxu0 0
        %4120 = vmatmul.mubr.bf16.gmra.mxu0 %v4082
        %v4121 = vpop.f32.mrf.mxu0
        %v4122 = vadd.f32 %v2854, %v4121
        %v4123 = vpop.f32.mrf.mxu0
        %v4124 = vpop.f32.mrf.mxu0
        %v4125 = vpop.f32.mrf.mxu0
        %4126 = vdwg.mxu0
        %v4127 = vsel %vm2859, %v3975, -inf
        %4128 = vmax.xlane.f32.xlu0 %v4127
        %v4129 = vpop.xlane.xlu0 %4128
        %v4130 = vsel %vm2859, %v4024, -inf
        %4131 = vmax.xlane.f32.xlu0 %v4130
        %v4132 = vpop.xlane.xlu0 %4131
        %v4133 = vsel %vm2859, %v4073, -inf
        %4134 = vmax.xlane.f32.xlu0 %v4133
        %v4135 = vpop.xlane.xlu0 %4134
        %v4136 = vsel %vm2859, %v4122, -inf
        %4137 = vmax.xlane.f32.xlu0 %v4136
        %v4138 = vpop.xlane.xlu0 %4137
        %v4139 = vsub.f32 %v3975, %v4129
        %v4140 = vsub.f32 %v4024, %v4132
        %v4141 = vsub.f32 %v4073, %v4135
        %v4142 = vsub.f32 %v4122, %v4138
        %v4143 = vmul.f32 %v4139, 1.442695
        %v4144 = vpow.pop %v4143
        %v4145 = vmul.f32 %v4140, 1.442695
        %v4146 = vpow.pop %v4145
        %v4147 = vmul.f32 %v4141, 1.442695
        %v4148 = vpow.pop %v4147
        %v4149 = vmul.f32 %v4142, 1.442695
        %v4150 = vpow.pop %v4149
        %v4151 = vsel %vm2859, %v4144, 0.0
        %4152 = vadd.xlane.f32.xlu0 %v4151
        %v4153 = vpop.xlane.xlu0 %4152
        %v4154 = vsel %vm2859, %v4146, 0.0
        %4155 = vadd.xlane.f32.xlu0 %v4154
        %v4156 = vpop.xlane.xlu0 %4155
        %v4157 = vsel %vm2859, %v4148, 0.0
        %4158 = vadd.xlane.f32.xlu0 %v4157
        %v4159 = vpop.xlane.xlu0 %4158
        %v4160 = vsel %vm2859, %v4150, 0.0
        %4161 = vadd.xlane.f32.xlu0 %v4160
        %v4162 = vpop.xlane.xlu0 %4161
        %v4163 = vrcp.pop %v4153
        %v4164 = vrcp.pop %v4156
        %v4165 = vrcp.pop %v4159
        %v4166 = vrcp.pop %v4162
        %v4167 = vmul.f32 %v4144, %v4163
        %v4168 = vmul.f32 %v4146, %v4164
        %v4169 = vmul.f32 %v4148, %v4165
        %v4170 = vmul.f32 %v4150, %v4166
        %v4171 = vpack.c.bf16 %v4167, %v4167
        %v4172 = vpack.c.bf16 %v4168, %v4168
        %v4173 = vpack.c.bf16 %v4169, %v4169
        %v4174 = vpack.c.bf16 %v4170, %v4170
        %4175 = vrot.lane.b32.xlu0 %v3927, 112
        %v4176 = vpop.permute.xlu0 %4175
        %v4178 = vsel %vm2859, %v4171, 0
        %v4181 = vsel %vm3106, %v4176, 0
        %4183 = vmatprep.subr.bf16.mxu0 0
        %4184 = vmatpush1.bf16.msra.mxu0 0
        %4185 = vmatprep.subr.bf16.mxu0 0
        %4186 = vmatpush1.bf16.msra.mxu0 0
        %4187 = vmatprep.subr.bf16.mxu0 0
        %4188 = vmatpush1.bf16.msra.mxu0 0
        %4189 = vmatprep.subr.bf16.mxu0 0
        %4190 = vmatpush1.bf16.msra.mxu0 0
        %4191 = vmatprep.subr.bf16.mxu0 0
        %4192 = vmatpush1.bf16.msra.mxu0 0
        %4193 = vmatprep.subr.bf16.mxu0 0
        %4194 = vmatpush1.bf16.msra.mxu0 0
        %4195 = vmatprep.subr.bf16.mxu0 0
        %4196 = vmatpush1.bf16.msra.mxu0 0
        %4197 = vmatprep.subr.bf16.mxu0 0
        %4198 = vmatpush1.bf16.msra.mxu0 %v4181
        %4199 = vmatprep.subr.bf16.mxu0 0
        %4200 = vmatpush2.bf16.msra.mxu0 0
        %4201 = vmatprep.subr.bf16.mxu0 0
        %4202 = vmatpush2.bf16.msra.mxu0 0
        %4203 = vmatprep.subr.bf16.mxu0 0
        %4204 = vmatpush2.bf16.msra.mxu0 0
        %4205 = vmatprep.subr.bf16.mxu0 0
        %4206 = vmatpush2.bf16.msra.mxu0 0
        %4207 = vmatprep.subr.bf16.mxu0 0
        %4208 = vmatpush2.bf16.msra.mxu0 0
        %4209 = vmatprep.subr.bf16.mxu0 0
        %4210 = vmatpush2.bf16.msra.mxu0 0
        %4211 = vmatprep.subr.bf16.mxu0 0
        %4212 = vmatpush2.bf16.msra.mxu0 0
        %4213 = vmatprep.subr.bf16.mxu0 0
        %4214 = vmatpush2.bf16.msra.mxu0 0
        %4215 = vmatprep.mubr.bf16.mxu0 0
        %4216 = vmatmul.mubr.bf16.gmra.mxu0 %v4178
        %v4217 = vpop.f32.mrf.mxu0
        %v4218 = vadd.f32 0.0, %v4217
        %v4219 = vpop.f32.mrf.mxu0
        %v4220 = vpop.f32.mrf.mxu0
        %v4221 = vpop.f32.mrf.mxu0
        %4222 = vdwg.mxu0
        %4223 = vrot.lane.b32.xlu0 %v3928, 112
        %v4224 = vpop.permute.xlu0 %4223
        %v4226 = vsel %vm2859, %v4172, 0
        %v4229 = vsel %vm3106, %v4224, 0
        %4231 = vmatprep.subr.bf16.mxu0 0
        %4232 = vmatpush1.bf16.msra.mxu0 0
        %4233 = vmatprep.subr.bf16.mxu0 0
        %4234 = vmatpush1.bf16.msra.mxu0 0
        %4235 = vmatprep.subr.bf16.mxu0 0
        %4236 = vmatpush1.bf16.msra.mxu0 0
        %4237 = vmatprep.subr.bf16.mxu0 0
        %4238 = vmatpush1.bf16.msra.mxu0 0
        %4239 = vmatprep.subr.bf16.mxu0 0
        %4240 = vmatpush1.bf16.msra.mxu0 0
        %4241 = vmatprep.subr.bf16.mxu0 0
        %4242 = vmatpush1.bf16.msra.mxu0 0
        %4243 = vmatprep.subr.bf16.mxu0 0
        %4244 = vmatpush1.bf16.msra.mxu0 0
        %4245 = vmatprep.subr.bf16.mxu0 0
        %4246 = vmatpush1.bf16.msra.mxu0 %v4229
        %4247 = vmatprep.subr.bf16.mxu0 0
        %4248 = vmatpush2.bf16.msra.mxu0 0
        %4249 = vmatprep.subr.bf16.mxu0 0
        %4250 = vmatpush2.bf16.msra.mxu0 0
        %4251 = vmatprep.subr.bf16.mxu0 0
        %4252 = vmatpush2.bf16.msra.mxu0 0
        %4253 = vmatprep.subr.bf16.mxu0 0
        %4254 = vmatpush2.bf16.msra.mxu0 0
        %4255 = vmatprep.subr.bf16.mxu0 0
        %4256 = vmatpush2.bf16.msra.mxu0 0
        %4257 = vmatprep.subr.bf16.mxu0 0
        %4258 = vmatpush2.bf16.msra.mxu0 0
        %4259 = vmatprep.subr.bf16.mxu0 0
        %4260 = vmatpush2.bf16.msra.mxu0 0
        %4261 = vmatprep.subr.bf16.mxu0 0
        %4262 = vmatpush2.bf16.msra.mxu0 0
        %4263 = vmatprep.mubr.bf16.mxu0 0
        %4264 = vmatmul.mubr.bf16.gmra.mxu0 %v4226
        %v4265 = vpop.f32.mrf.mxu0
        %v4266 = vadd.f32 0.0, %v4265
        %v4267 = vpop.f32.mrf.mxu0
        %v4268 = vpop.f32.mrf.mxu0
        %v4269 = vpop.f32.mrf.mxu0
        %4270 = vdwg.mxu0
        %4271 = vrot.lane.b32.xlu0 %v3929, 112
        %v4272 = vpop.permute.xlu0 %4271
        %v4274 = vsel %vm2859, %v4173, 0
        %v4277 = vsel %vm3106, %v4272, 0
        %4279 = vmatprep.subr.bf16.mxu0 0
        %4280 = vmatpush1.bf16.msra.mxu0 0
        %4281 = vmatprep.subr.bf16.mxu0 0
        %4282 = vmatpush1.bf16.msra.mxu0 0
        %4283 = vmatprep.subr.bf16.mxu0 0
        %4284 = vmatpush1.bf16.msra.mxu0 0
        %4285 = vmatprep.subr.bf16.mxu0 0
        %4286 = vmatpush1.bf16.msra.mxu0 0
        %4287 = vmatprep.subr.bf16.mxu0 0
        %4288 = vmatpush1.bf16.msra.mxu0 0
        %4289 = vmatprep.subr.bf16.mxu0 0
        %4290 = vmatpush1.bf16.msra.mxu0 0
        %4291 = vmatprep.subr.bf16.mxu0 0
        %4292 = vmatpush1.bf16.msra.mxu0 0
        %4293 = vmatprep.subr.bf16.mxu0 0
        %4294 = vmatpush1.bf16.msra.mxu0 %v4277
        %4295 = vmatprep.subr.bf16.mxu0 0
        %4296 = vmatpush2.bf16.msra.mxu0 0
        %4297 = vmatprep.subr.bf16.mxu0 0
        %4298 = vmatpush2.bf16.msra.mxu0 0
        %4299 = vmatprep.subr.bf16.mxu0 0
        %4300 = vmatpush2.bf16.msra.mxu0 0
        %4301 = vmatprep.subr.bf16.mxu0 0
        %4302 = vmatpush2.bf16.msra.mxu0 0
        %4303 = vmatprep.subr.bf16.mxu0 0
        %4304 = vmatpush2.bf16.msra.mxu0 0
        %4305 = vmatprep.subr.bf16.mxu0 0
        %4306 = vmatpush2.bf16.msra.mxu0 0
        %4307 = vmatprep.subr.bf16.mxu0 0
        %4308 = vmatpush2.bf16.msra.mxu0 0
        %4309 = vmatprep.subr.bf16.mxu0 0
        %4310 = vmatpush2.bf16.msra.mxu0 0
        %4311 = vmatprep.mubr.bf16.mxu0 0
        %4312 = vmatmul.mubr.bf16.gmra.mxu0 %v4274
        %v4313 = vpop.f32.mrf.mxu0
        %v4314 = vadd.f32 0.0, %v4313
        %v4315 = vpop.f32.mrf.mxu0
        %v4316 = vpop.f32.mrf.mxu0
        %v4317 = vpop.f32.mrf.mxu0
        %4318 = vdwg.mxu0
        %4319 = vrot.lane.b32.xlu0 %v3930, 112
        %v4320 = vpop.permute.xlu0 %4319
        %v4322 = vsel %vm2859, %v4174, 0
        %v4325 = vsel %vm3106, %v4320, 0
        %4327 = vmatprep.subr.bf16.mxu0 0
        %4328 = vmatpush1.bf16.msra.mxu0 0
        %4329 = vmatprep.subr.bf16.mxu0 0
        %4330 = vmatpush1.bf16.msra.mxu0 0
        %4331 = vmatprep.subr.bf16.mxu0 0
        %4332 = vmatpush1.bf16.msra.mxu0 0
        %4333 = vmatprep.subr.bf16.mxu0 0
        %4334 = vmatpush1.bf16.msra.mxu0 0
        %4335 = vmatprep.subr.bf16.mxu0 0
        %4336 = vmatpush1.bf16.msra.mxu0 0
        %4337 = vmatprep.subr.bf16.mxu0 0
        %4338 = vmatpush1.bf16.msra.mxu0 0
        %4339 = vmatprep.subr.bf16.mxu0 0
        %4340 = vmatpush1.bf16.msra.mxu0 0
        %4341 = vmatprep.subr.bf16.mxu0 0
        %4342 = vmatpush1.bf16.msra.mxu0 %v4325
        %4343 = vmatprep.subr.bf16.mxu0 0
        %4344 = vmatpush2.bf16.msra.mxu0 0
        %4345 = vmatprep.subr.bf16.mxu0 0
        %4346 = vmatpush2.bf16.msra.mxu0 0
        %4347 = vmatprep.subr.bf16.mxu0 0
        %4348 = vmatpush2.bf16.msra.mxu0 0
        %4349 = vmatprep.subr.bf16.mxu0 0
        %4350 = vmatpush2.bf16.msra.mxu0 0
        %4351 = vmatprep.subr.bf16.mxu0 0
        %4352 = vmatpush2.bf16.msra.mxu0 0
        %4353 = vmatprep.subr.bf16.mxu0 0
        %4354 = vmatpush2.bf16.msra.mxu0 0
        %4355 = vmatprep.subr.bf16.mxu0 0
        %4356 = vmatpush2.bf16.msra.mxu0 0
        %4357 = vmatprep.subr.bf16.mxu0 0
        %4358 = vmatpush2.bf16.msra.mxu0 0
        %4359 = vmatprep.mubr.bf16.mxu0 0
        %4360 = vmatmul.mubr.bf16.gmra.mxu0 %v4322
        %v4361 = vpop.f32.mrf.mxu0
        %v4362 = vadd.f32 0.0, %v4361
        %v4363 = vpop.f32.mrf.mxu0
        %v4364 = vpop.f32.mrf.mxu0
        %v4365 = vpop.f32.mrf.mxu0
        %4366 = vdwg.mxu0
        %v4367 = vpack.c.bf16 %v4218, %v4218
        %v4368 = vpack.c.bf16 %v4266, %v4266
        %v4369 = vpack.c.bf16 %v4314, %v4314
        %v4370 = vpack.c.bf16 %v4362, %v4362
        %v4372 = vsel %vm2859, %v4367, 0
        %v4375 = vsel %vm3106, %v2567, 0
        %4377 = vmatprep.subr.bf16.mxu0 0
        %4378 = vmatpush1.bf16.msra.mxu0 0
        %4379 = vmatprep.subr.bf16.mxu0 0
        %4380 = vmatpush1.bf16.msra.mxu0 0
        %4381 = vmatprep.subr.bf16.mxu0 0
        %4382 = vmatpush1.bf16.msra.mxu0 0
        %4383 = vmatprep.subr.bf16.mxu0 0
        %4384 = vmatpush1.bf16.msra.mxu0 0
        %4385 = vmatprep.subr.bf16.mxu0 0
        %4386 = vmatpush1.bf16.msra.mxu0 0
        %4387 = vmatprep.subr.bf16.mxu0 0
        %4388 = vmatpush1.bf16.msra.mxu0 0
        %4389 = vmatprep.subr.bf16.mxu0 0
        %4390 = vmatpush1.bf16.msra.mxu0 0
        %4391 = vmatprep.subr.bf16.mxu0 0
        %4392 = vmatpush1.bf16.msra.mxu0 %v4375
        %4393 = vmatprep.subr.bf16.mxu0 0
        %4394 = vmatpush2.bf16.msra.mxu0 0
        %4395 = vmatprep.subr.bf16.mxu0 0
        %4396 = vmatpush2.bf16.msra.mxu0 0
        %4397 = vmatprep.subr.bf16.mxu0 0
        %4398 = vmatpush2.bf16.msra.mxu0 0
        %4399 = vmatprep.subr.bf16.mxu0 0
        %4400 = vmatpush2.bf16.msra.mxu0 0
        %4401 = vmatprep.subr.bf16.mxu0 0
        %4402 = vmatpush2.bf16.msra.mxu0 0
        %4403 = vmatprep.subr.bf16.mxu0 0
        %4404 = vmatpush2.bf16.msra.mxu0 0
        %4405 = vmatprep.subr.bf16.mxu0 0
        %4406 = vmatpush2.bf16.msra.mxu0 0
        %4407 = vmatprep.subr.bf16.mxu0 0
        %4408 = vmatpush2.bf16.msra.mxu0 0
        %4409 = vmatprep.mubr.bf16.mxu0 0
        %4410 = vmatmul.mubr.bf16.gmra.mxu0 %v4372
        %v4411 = vpop.f32.mrf.mxu0
        %v4412 = vadd.f32 0.0, %v4411
        %v4413 = vpop.f32.mrf.mxu0
        %v4414 = vpop.f32.mrf.mxu0
        %v4415 = vpop.f32.mrf.mxu0
        %4416 = vdwg.mxu0
        %v4418 = vsel %vm2859, %v4368, 0
        %v4421 = vsel %vm3106, %v2568, 0
        %4423 = vmatprep.subr.bf16.mxu0 0
        %4424 = vmatpush1.bf16.msra.mxu0 0
        %4425 = vmatprep.subr.bf16.mxu0 0
        %4426 = vmatpush1.bf16.msra.mxu0 0
        %4427 = vmatprep.subr.bf16.mxu0 0
        %4428 = vmatpush1.bf16.msra.mxu0 0
        %4429 = vmatprep.subr.bf16.mxu0 0
        %4430 = vmatpush1.bf16.msra.mxu0 0
        %4431 = vmatprep.subr.bf16.mxu0 0
        %4432 = vmatpush1.bf16.msra.mxu0 0
        %4433 = vmatprep.subr.bf16.mxu0 0
        %4434 = vmatpush1.bf16.msra.mxu0 0
        %4435 = vmatprep.subr.bf16.mxu0 0
        %4436 = vmatpush1.bf16.msra.mxu0 0
        %4437 = vmatprep.subr.bf16.mxu0 0
        %4438 = vmatpush1.bf16.msra.mxu0 %v4421
        %4439 = vmatprep.subr.bf16.mxu0 0
        %4440 = vmatpush2.bf16.msra.mxu0 0
        %4441 = vmatprep.subr.bf16.mxu0 0
        %4442 = vmatpush2.bf16.msra.mxu0 0
        %4443 = vmatprep.subr.bf16.mxu0 0
        %4444 = vmatpush2.bf16.msra.mxu0 0
        %4445 = vmatprep.subr.bf16.mxu0 0
        %4446 = vmatpush2.bf16.msra.mxu0 0
        %4447 = vmatprep.subr.bf16.mxu0 0
        %4448 = vmatpush2.bf16.msra.mxu0 0
        %4449 = vmatprep.subr.bf16.mxu0 0
        %4450 = vmatpush2.bf16.msra.mxu0 0
        %4451 = vmatprep.subr.bf16.mxu0 0
        %4452 = vmatpush2.bf16.msra.mxu0 0
        %4453 = vmatprep.subr.bf16.mxu0 0
        %4454 = vmatpush2.bf16.msra.mxu0 0
        %4455 = vmatprep.mubr.bf16.mxu0 0
        %4456 = vmatmul.mubr.bf16.gmra.mxu0 %v4418
        %v4457 = vpop.f32.mrf.mxu0
        %v4458 = vadd.f32 0.0, %v4457
        %v4459 = vpop.f32.mrf.mxu0
        %v4460 = vpop.f32.mrf.mxu0
        %v4461 = vpop.f32.mrf.mxu0
        %4462 = vdwg.mxu0
        %v4464 = vsel %vm2859, %v4369, 0
        %v4467 = vsel %vm3106, %v2569, 0
        %4469 = vmatprep.subr.bf16.mxu0 0
        %4470 = vmatpush1.bf16.msra.mxu0 0
        %4471 = vmatprep.subr.bf16.mxu0 0
        %4472 = vmatpush1.bf16.msra.mxu0 0
        %4473 = vmatprep.subr.bf16.mxu0 0
        %4474 = vmatpush1.bf16.msra.mxu0 0
        %4475 = vmatprep.subr.bf16.mxu0 0
        %4476 = vmatpush1.bf16.msra.mxu0 0
        %4477 = vmatprep.subr.bf16.mxu0 0
        %4478 = vmatpush1.bf16.msra.mxu0 0
        %4479 = vmatprep.subr.bf16.mxu0 0
        %4480 = vmatpush1.bf16.msra.mxu0 0
        %4481 = vmatprep.subr.bf16.mxu0 0
        %4482 = vmatpush1.bf16.msra.mxu0 0
        %4483 = vmatprep.subr.bf16.mxu0 0
        %4484 = vmatpush1.bf16.msra.mxu0 %v4467
        %4485 = vmatprep.subr.bf16.mxu0 0
        %4486 = vmatpush2.bf16.msra.mxu0 0
        %4487 = vmatprep.subr.bf16.mxu0 0
        %4488 = vmatpush2.bf16.msra.mxu0 0
        %4489 = vmatprep.subr.bf16.mxu0 0
        %4490 = vmatpush2.bf16.msra.mxu0 0
        %4491 = vmatprep.subr.bf16.mxu0 0
        %4492 = vmatpush2.bf16.msra.mxu0 0
        %4493 = vmatprep.subr.bf16.mxu0 0
        %4494 = vmatpush2.bf16.msra.mxu0 0
        %4495 = vmatprep.subr.bf16.mxu0 0
        %4496 = vmatpush2.bf16.msra.mxu0 0
        %4497 = vmatprep.subr.bf16.mxu0 0
        %4498 = vmatpush2.bf16.msra.mxu0 0
        %4499 = vmatprep.subr.bf16.mxu0 0
        %4500 = vmatpush2.bf16.msra.mxu0 0
        %4501 = vmatprep.mubr.bf16.mxu0 0
        %4502 = vmatmul.mubr.bf16.gmra.mxu0 %v4464
        %v4503 = vpop.f32.mrf.mxu0
        %v4504 = vadd.f32 0.0, %v4503
        %v4505 = vpop.f32.mrf.mxu0
        %v4506 = vpop.f32.mrf.mxu0
        %v4507 = vpop.f32.mrf.mxu0
        %4508 = vdwg.mxu0
        %v4510 = vsel %vm2859, %v4370, 0
        %v4513 = vsel %vm3106, %v2570, 0
        %4515 = vmatprep.subr.bf16.mxu0 0
        %4516 = vmatpush1.bf16.msra.mxu0 0
        %4517 = vmatprep.subr.bf16.mxu0 0
        %4518 = vmatpush1.bf16.msra.mxu0 0
        %4519 = vmatprep.subr.bf16.mxu0 0
        %4520 = vmatpush1.bf16.msra.mxu0 0
        %4521 = vmatprep.subr.bf16.mxu0 0
        %4522 = vmatpush1.bf16.msra.mxu0 0
        %4523 = vmatprep.subr.bf16.mxu0 0
        %4524 = vmatpush1.bf16.msra.mxu0 0
        %4525 = vmatprep.subr.bf16.mxu0 0
        %4526 = vmatpush1.bf16.msra.mxu0 0
        %4527 = vmatprep.subr.bf16.mxu0 0
        %4528 = vmatpush1.bf16.msra.mxu0 0
        %4529 = vmatprep.subr.bf16.mxu0 0
        %4530 = vmatpush1.bf16.msra.mxu0 %v4513
        %4531 = vmatprep.subr.bf16.mxu0 0
        %4532 = vmatpush2.bf16.msra.mxu0 0
        %4533 = vmatprep.subr.bf16.mxu0 0
        %4534 = vmatpush2.bf16.msra.mxu0 0
        %4535 = vmatprep.subr.bf16.mxu0 0
        %4536 = vmatpush2.bf16.msra.mxu0 0
        %4537 = vmatprep.subr.bf16.mxu0 0
        %4538 = vmatpush2.bf16.msra.mxu0 0
        %4539 = vmatprep.subr.bf16.mxu0 0
        %4540 = vmatpush2.bf16.msra.mxu0 0
        %4541 = vmatprep.subr.bf16.mxu0 0
        %4542 = vmatpush2.bf16.msra.mxu0 0
        %4543 = vmatprep.subr.bf16.mxu0 0
        %4544 = vmatpush2.bf16.msra.mxu0 0
        %4545 = vmatprep.subr.bf16.mxu0 0
        %4546 = vmatpush2.bf16.msra.mxu0 0
        %4547 = vmatprep.mubr.bf16.mxu0 0
        %4548 = vmatmul.mubr.bf16.gmra.mxu0 %v4510
        %v4549 = vpop.f32.mrf.mxu0
        %v4550 = vadd.f32 0.0, %v4549
        %v4551 = vpop.f32.mrf.mxu0
        %v4552 = vpop.f32.mrf.mxu0
        %v4553 = vpop.f32.mrf.mxu0
        %4554 = vdwg.mxu0
        %v4555 = vsel %vm2646, %v4412, 0.0
        %v4556 = vsel %vm2646, %v4458, 0.0
        %v4557 = vadd.f32 %v4555, %v4556
        %v4558 = vsel %vm2646, %v4504, 0.0
        %v4559 = vadd.f32 %v4557, %v4558
        %v4560 = vsel %vm2646, %v4550, 0.0
        %v4561 = vadd.f32 %v4559, %v4560
        %v4562 = vadd.f32 %v3690, %v4561
        %v4564 = vlaneseq
        %v4565 = vshrl.u32 %v4564, 7
        %v4566 = vsub.s32 0, %v4565
        %v4567 = vrot.slane %v2546, %v4566
        %v4569 = vadd.f32 %v4562, %v4567
        %v4570 = vsel %vm2646, %v4569, 0.0
        %4571 = vadd.xlane.f32.xlu0 %v4570
        %v4572 = vpop.xlane.xlu0 %4571
        %v4573 = vmul.f32 %v4572, %v3500
        %v4574 = vsub.f32 %v4569, %v4573
        %v4575 = vmul.f32 %v4574, %v4574
        %v4576 = vsel %vm2646, %v4575, 0.0
        %4577 = vadd.xlane.f32.xlu0 %v4576
        %v4578 = vpop.xlane.xlu0 %4577
        %v4579 = vmul.f32 %v4578, %v3500
        %v4580 = vadd.f32 %v4579, 1e-05
        %v4581 = vrsqrt.pop %v4580
        %v4582 = vmul.f32 %v4574, %v4581
        %v4584 = vlaneseq
        %v4585 = vshrl.u32 %v4584, 7
        %v4586 = vsub.s32 0, %v4585
        %v4587 = vrot.slane %v2552, %v4586
        %v4589 = vmul.f32 %v4582, %v4587
        %v4591 = vlaneseq
        %v4592 = vshrl.u32 %v4591, 7
        %v4593 = vsub.s32 0, %v4592
        %v4594 = vrot.slane %v2551, %v4593
        %v4596 = vadd.f32 %v4589, %v4594
        %v4597 = vpack.c.bf16 %v4596, %v4596
        %v4599 = vlaneseq
        %v4600 = vshrl.u32 %v4599, 7
        %v4601 = vsub.s32 0, %v4600
        %v4602 = vrot.slane %v2544, %v4601
        %v4608 = vunpack.c.l.b16 %v2555
        %v4609 = vunpack.c.l.b16 %v2556
        %v4610 = vunpack.c.l.b16 %v2557
        %v4611 = vunpack.c.l.b16 %v2558
        %v4612 = vpack.c.b16 %v4609, %v4608
        %v4613 = vpack.c.b16 %v4611, %v4610
        %v4617 = vsel %vm2646, %v4597, 0
        %4619 = vmatprep.subr.bf16.mxu0 0
        %4620 = vmatpush1.bf16.msra.mxu0 0
        %4621 = vmatprep.subr.bf16.mxu0 0
        %4622 = vmatpush1.bf16.msra.mxu0 0
        %4623 = vmatprep.subr.bf16.mxu0 0
        %4624 = vmatpush1.bf16.msra.mxu0 0
        %4625 = vmatprep.subr.bf16.mxu0 0
        %4626 = vmatpush1.bf16.msra.mxu0 0
        %4627 = vmatprep.subr.bf16.mxu0 0
        %4628 = vmatpush1.bf16.msra.mxu0 0
        %4629 = vmatprep.subr.bf16.mxu0 0
        %4630 = vmatpush1.bf16.msra.mxu0 0
        %4631 = vmatprep.subr.bf16.mxu0 0
        %4632 = vmatpush1.bf16.msra.mxu0 %v4613
        %4633 = vmatprep.subr.bf16.mxu0 0
        %4634 = vmatpush1.bf16.msra.mxu0 %v4612
        %4635 = vmatprep.subr.bf16.mxu0 0
        %4636 = vmatpush2.bf16.msra.mxu0 0
        %4637 = vmatprep.subr.bf16.mxu0 0
        %4638 = vmatpush2.bf16.msra.mxu0 0
        %4639 = vmatprep.subr.bf16.mxu0 0
        %4640 = vmatpush2.bf16.msra.mxu0 0
        %4641 = vmatprep.subr.bf16.mxu0 0
        %4642 = vmatpush2.bf16.msra.mxu0 0
        %4643 = vmatprep.subr.bf16.mxu0 0
        %4644 = vmatpush2.bf16.msra.mxu0 0
        %4645 = vmatprep.subr.bf16.mxu0 0
        %4646 = vmatpush2.bf16.msra.mxu0 0
        %4647 = vmatprep.subr.bf16.mxu0 0
        %4648 = vmatpush2.bf16.msra.mxu0 0
        %4649 = vmatprep.subr.bf16.mxu0 0
        %4650 = vmatpush2.bf16.msra.mxu0 0
        %4651 = vmatprep.mubr.bf16.mxu0 0
        %4652 = vmatmul.mubr.bf16.gmra.mxu0 %v4617
        %v4653 = vpop.f32.mrf.mxu0
        %v4654 = vadd.f32 %v4602, %v4653
        %v4655 = vpop.f32.mrf.mxu0
        %v4656 = vpop.f32.mrf.mxu0
        %v4657 = vpop.f32.mrf.mxu0
        %4658 = vdwg.mxu0
        %v4659 = vmax.f32 %v4654, 0.0
        %v4660 = vpack.c.bf16 %v4659, %v4659
        %v4662 = vlaneseq
        %v4663 = vshrl.u32 %v4662, 7
        %v4664 = vsub.s32 0, %v4663
        %v4665 = vrot.slane %v2545, %v4664
        %v4675 = vunpack.c.l.b16 %v2559
        %v4676 = vunpack.c.l.b16 %v2560
        %v4677 = vunpack.c.l.b16 %v2561
        %v4678 = vunpack.c.l.b16 %v2562
        %v4679 = vunpack.c.l.b16 %v2563
        %v4680 = vunpack.c.l.b16 %v2564
        %v4681 = vunpack.c.l.b16 %v2565
        %v4682 = vunpack.c.l.b16 %v2566
        %v4683 = vpack.c.b16 %v4676, %v4675
        %v4684 = vpack.c.b16 %v4678, %v4677
        %v4685 = vpack.c.b16 %v4680, %v4679
        %v4686 = vpack.c.b16 %v4682, %v4681
        %v4692 = vsel %vm3619, %v4660, 0
        %4694 = vmatprep.subr.bf16.mxu0 0
        %4695 = vmatpush1.bf16.msra.mxu0 0
        %4696 = vmatprep.subr.bf16.mxu0 0
        %4697 = vmatpush1.bf16.msra.mxu0 0
        %4698 = vmatprep.subr.bf16.mxu0 0
        %4699 = vmatpush1.bf16.msra.mxu0 0
        %4700 = vmatprep.subr.bf16.mxu0 0
        %4701 = vmatpush1.bf16.msra.mxu0 0
        %4702 = vmatprep.subr.bf16.mxu0 0
        %4703 = vmatpush1.bf16.msra.mxu0 %v4686
        %4704 = vmatprep.subr.bf16.mxu0 0
        %4705 = vmatpush1.bf16.msra.mxu0 %v4685
        %4706 = vmatprep.subr.bf16.mxu0 0
        %4707 = vmatpush1.bf16.msra.mxu0 %v4684
        %4708 = vmatprep.subr.bf16.mxu0 0
        %4709 = vmatpush1.bf16.msra.mxu0 %v4683
        %4710 = vmatprep.subr.bf16.mxu0 0
        %4711 = vmatpush2.bf16.msra.mxu0 0
        %4712 = vmatprep.subr.bf16.mxu0 0
        %4713 = vmatpush2.bf16.msra.mxu0 0
        %4714 = vmatprep.subr.bf16.mxu0 0
        %4715 = vmatpush2.bf16.msra.mxu0 0
        %4716 = vmatprep.subr.bf16.mxu0 0
        %4717 = vmatpush2.bf16.msra.mxu0 0
        %4718 = vmatprep.subr.bf16.mxu0 0
        %4719 = vmatpush2.bf16.msra.mxu0 0
        %4720 = vmatprep.subr.bf16.mxu0 0
        %4721 = vmatpush2.bf16.msra.mxu0 0
        %4722 = vmatprep.subr.bf16.mxu0 0
        %4723 = vmatpush2.bf16.msra.mxu0 0
        %4724 = vmatprep.subr.bf16.mxu0 0
        %4725 = vmatpush2.bf16.msra.mxu0 0
        %4726 = vmatprep.mubr.bf16.mxu0 0
        %4727 = vmatmul.mubr.bf16.gmra.mxu0 %v4692
        %v4728 = vpop.f32.mrf.mxu0
        %v4729 = vadd.f32 %v4665, %v4728
        %v4730 = vpop.f32.mrf.mxu0
        %v4731 = vpop.f32.mrf.mxu0
        %v4732 = vpop.f32.mrf.mxu0
        %4733 = vdwg.mxu0
        %v4734 = vadd.f32 %v4596, %v4729
        %v4735 = vsel %vm2646, %v4734, 0.0
        %4736 = vadd.xlane.f32.xlu0 %v4735
        %v4737 = vpop.xlane.xlu0 %4736
        %v4738 = vmul.f32 %v4737, %v3500
        %v4739 = vsub.f32 %v4734, %v4738
        %v4740 = vmul.f32 %v4739, %v4739
        %v4741 = vsel %vm2646, %v4740, 0.0
        %4742 = vadd.xlane.f32.xlu0 %v4741
        %v4743 = vpop.xlane.xlu0 %4742
        %v4744 = vmul.f32 %v4743, %v3500
        %v4745 = vadd.f32 %v4744, 1e-05
        %v4746 = vrsqrt.pop %v4745
        %v4747 = vmul.f32 %v4739, %v4746
        %v4749 = vlaneseq
        %v4750 = vshrl.u32 %v4749, 7
        %v4751 = vsub.s32 0, %v4750
        %v4752 = vrot.slane %v2554, %v4751
        %v4754 = vmul.f32 %v4747, %v4752
        %v4756 = vlaneseq
        %v4757 = vshrl.u32 %v4756, 7
        %v4758 = vsub.s32 0, %v4757
        %v4759 = vrot.slane %v2553, %v4758
        %v4761 = vadd.f32 %v4754, %v4759
        %v4762 = vpack.c.bf16 %v2598, %v2598
        %v4767 = vlaneseq
        %v4768 = vshrl.u32 %v4767, 7
        %v4769 = vsub.s32 0, %v4768
        %v4770 = vrot.slane %v2375, %v4769
        %v4771 = vlaneseq
        %v4772 = vshrl.u32 %v4771, 7
        %v4773 = vsub.s32 0, %v4772
        %v4774 = vrot.slane %v2376, %v4773
        %v4775 = vlaneseq
        %v4776 = vshrl.u32 %v4775, 7
        %v4777 = vsub.s32 0, %v4776
        %v4778 = vrot.slane %v2377, %v4777
        %v4779 = vlaneseq
        %v4780 = vshrl.u32 %v4779, 7
        %v4781 = vsub.s32 0, %v4780
        %v4782 = vrot.slane %v2378, %v4781
        %v4791 = vunpack.c.l.b16 %v2383
        %v4792 = vunpack.c.l.b16 %v2384
        %v4793 = vunpack.c.l.b16 %v2385
        %v4794 = vunpack.c.l.b16 %v2386
        %v4795 = vpack.c.b16 %v4792, %v4791
        %v4796 = vpack.c.b16 %v4794, %v4793
        %v4800 = vsel %vm2646, %v4762, 0
        %4802 = vmatprep.subr.bf16.mxu0 0
        %4803 = vmatpush1.bf16.msra.mxu0 0
        %4804 = vmatprep.subr.bf16.mxu0 0
        %4805 = vmatpush1.bf16.msra.mxu0 0
        %4806 = vmatprep.subr.bf16.mxu0 0
        %4807 = vmatpush1.bf16.msra.mxu0 0
        %4808 = vmatprep.subr.bf16.mxu0 0
        %4809 = vmatpush1.bf16.msra.mxu0 0
        %4810 = vmatprep.subr.bf16.mxu0 0
        %4811 = vmatpush1.bf16.msra.mxu0 0
        %4812 = vmatprep.subr.bf16.mxu0 0
        %4813 = vmatpush1.bf16.msra.mxu0 0
        %4814 = vmatprep.subr.bf16.mxu0 0
        %4815 = vmatpush1.bf16.msra.mxu0 %v4796
        %4816 = vmatprep.subr.bf16.mxu0 0
        %4817 = vmatpush1.bf16.msra.mxu0 %v4795
        %4818 = vmatprep.subr.bf16.mxu0 0
        %4819 = vmatpush2.bf16.msra.mxu0 0
        %4820 = vmatprep.subr.bf16.mxu0 0
        %4821 = vmatpush2.bf16.msra.mxu0 0
        %4822 = vmatprep.subr.bf16.mxu0 0
        %4823 = vmatpush2.bf16.msra.mxu0 0
        %4824 = vmatprep.subr.bf16.mxu0 0
        %4825 = vmatpush2.bf16.msra.mxu0 0
        %4826 = vmatprep.subr.bf16.mxu0 0
        %4827 = vmatpush2.bf16.msra.mxu0 0
        %4828 = vmatprep.subr.bf16.mxu0 0
        %4829 = vmatpush2.bf16.msra.mxu0 0
        %4830 = vmatprep.subr.bf16.mxu0 0
        %4831 = vmatpush2.bf16.msra.mxu0 0
        %4832 = vmatprep.subr.bf16.mxu0 0
        %4833 = vmatpush2.bf16.msra.mxu0 0
        %4834 = vmatprep.mubr.bf16.mxu0 0
        %4835 = vmatmul.mubr.bf16.gmra.mxu0 %v4800
        %v4836 = vpop.f32.mrf.mxu0
        %v4837 = vadd.f32 %v4770, %v4836
        %v4838 = vpop.f32.mrf.mxu0
        %v4839 = vpop.f32.mrf.mxu0
        %v4840 = vpop.f32.mrf.mxu0
        %4841 = vdwg.mxu0
        %v4846 = vunpack.c.l.b16 %v2387
        %v4847 = vunpack.c.l.b16 %v2388
        %v4848 = vunpack.c.l.b16 %v2389
        %v4849 = vunpack.c.l.b16 %v2390
        %v4850 = vpack.c.b16 %v4847, %v4846
        %v4851 = vpack.c.b16 %v4849, %v4848
        %4854 = vmatprep.subr.bf16.mxu0 0
        %4855 = vmatpush1.bf16.msra.mxu0 0
        %4856 = vmatprep.subr.bf16.mxu0 0
        %4857 = vmatpush1.bf16.msra.mxu0 0
        %4858 = vmatprep.subr.bf16.mxu0 0
        %4859 = vmatpush1.bf16.msra.mxu0 0
        %4860 = vmatprep.subr.bf16.mxu0 0
        %4861 = vmatpush1.bf16.msra.mxu0 0
        %4862 = vmatprep.subr.bf16.mxu0 0
        %4863 = vmatpush1.bf16.msra.mxu0 0
        %4864 = vmatprep.subr.bf16.mxu0 0
        %4865 = vmatpush1.bf16.msra.mxu0 0
        %4866 = vmatprep.subr.bf16.mxu0 0
        %4867 = vmatpush1.bf16.msra.mxu0 %v4851
        %4868 = vmatprep.subr.bf16.mxu0 0
        %4869 = vmatpush1.bf16.msra.mxu0 %v4850
        %4870 = vmatprep.subr.bf16.mxu0 0
        %4871 = vmatpush2.bf16.msra.mxu0 0
        %4872 = vmatprep.subr.bf16.mxu0 0
        %4873 = vmatpush2.bf16.msra.mxu0 0
        %4874 = vmatprep.subr.bf16.mxu0 0
        %4875 = vmatpush2.bf16.msra.mxu0 0
        %4876 = vmatprep.subr.bf16.mxu0 0
        %4877 = vmatpush2.bf16.msra.mxu0 0
        %4878 = vmatprep.subr.bf16.mxu0 0
        %4879 = vmatpush2.bf16.msra.mxu0 0
        %4880 = vmatprep.subr.bf16.mxu0 0
        %4881 = vmatpush2.bf16.msra.mxu0 0
        %4882 = vmatprep.subr.bf16.mxu0 0
        %4883 = vmatpush2.bf16.msra.mxu0 0
        %4884 = vmatprep.subr.bf16.mxu0 0
        %4885 = vmatpush2.bf16.msra.mxu0 0
        %4886 = vmatprep.mubr.bf16.mxu0 0
        %4887 = vmatmul.mubr.bf16.gmra.mxu0 %v4800
        %v4888 = vpop.f32.mrf.mxu0
        %v4889 = vadd.f32 %v4774, %v4888
        %v4890 = vpop.f32.mrf.mxu0
        %v4891 = vpop.f32.mrf.mxu0
        %v4892 = vpop.f32.mrf.mxu0
        %4893 = vdwg.mxu0
        %v4898 = vunpack.c.l.b16 %v2391
        %v4899 = vunpack.c.l.b16 %v2392
        %v4900 = vunpack.c.l.b16 %v2393
        %v4901 = vunpack.c.l.b16 %v2394
        %v4902 = vpack.c.b16 %v4899, %v4898
        %v4903 = vpack.c.b16 %v4901, %v4900
        %4906 = vmatprep.subr.bf16.mxu0 0
        %4907 = vmatpush1.bf16.msra.mxu0 0
        %4908 = vmatprep.subr.bf16.mxu0 0
        %4909 = vmatpush1.bf16.msra.mxu0 0
        %4910 = vmatprep.subr.bf16.mxu0 0
        %4911 = vmatpush1.bf16.msra.mxu0 0
        %4912 = vmatprep.subr.bf16.mxu0 0
        %4913 = vmatpush1.bf16.msra.mxu0 0
        %4914 = vmatprep.subr.bf16.mxu0 0
        %4915 = vmatpush1.bf16.msra.mxu0 0
        %4916 = vmatprep.subr.bf16.mxu0 0
        %4917 = vmatpush1.bf16.msra.mxu0 0
        %4918 = vmatprep.subr.bf16.mxu0 0
        %4919 = vmatpush1.bf16.msra.mxu0 %v4903
        %4920 = vmatprep.subr.bf16.mxu0 0
        %4921 = vmatpush1.bf16.msra.mxu0 %v4902
        %4922 = vmatprep.subr.bf16.mxu0 0
        %4923 = vmatpush2.bf16.msra.mxu0 0
        %4924 = vmatprep.subr.bf16.mxu0 0
        %4925 = vmatpush2.bf16.msra.mxu0 0
        %4926 = vmatprep.subr.bf16.mxu0 0
        %4927 = vmatpush2.bf16.msra.mxu0 0
        %4928 = vmatprep.subr.bf16.mxu0 0
        %4929 = vmatpush2.bf16.msra.mxu0 0
        %4930 = vmatprep.subr.bf16.mxu0 0
        %4931 = vmatpush2.bf16.msra.mxu0 0
        %4932 = vmatprep.subr.bf16.mxu0 0
        %4933 = vmatpush2.bf16.msra.mxu0 0
        %4934 = vmatprep.subr.bf16.mxu0 0
        %4935 = vmatpush2.bf16.msra.mxu0 0
        %4936 = vmatprep.subr.bf16.mxu0 0
        %4937 = vmatpush2.bf16.msra.mxu0 0
        %4938 = vmatprep.mubr.bf16.mxu0 0
        %4939 = vmatmul.mubr.bf16.gmra.mxu0 %v4800
        %v4940 = vpop.f32.mrf.mxu0
        %v4941 = vadd.f32 %v4778, %v4940
        %v4942 = vpop.f32.mrf.mxu0
        %v4943 = vpop.f32.mrf.mxu0
        %v4944 = vpop.f32.mrf.mxu0
        %4945 = vdwg.mxu0
        %v4950 = vunpack.c.l.b16 %v2395
        %v4951 = vunpack.c.l.b16 %v2396
        %v4952 = vunpack.c.l.b16 %v2397
        %v4953 = vunpack.c.l.b16 %v2398
        %v4954 = vpack.c.b16 %v4951, %v4950
        %v4955 = vpack.c.b16 %v4953, %v4952
        %4958 = vmatprep.subr.bf16.mxu0 0
        %4959 = vmatpush1.bf16.msra.mxu0 0
        %4960 = vmatprep.subr.bf16.mxu0 0
        %4961 = vmatpush1.bf16.msra.mxu0 0
        %4962 = vmatprep.subr.bf16.mxu0 0
        %4963 = vmatpush1.bf16.msra.mxu0 0
        %4964 = vmatprep.subr.bf16.mxu0 0
        %4965 = vmatpush1.bf16.msra.mxu0 0
        %4966 = vmatprep.subr.bf16.mxu0 0
        %4967 = vmatpush1.bf16.msra.mxu0 0
        %4968 = vmatprep.subr.bf16.mxu0 0
        %4969 = vmatpush1.bf16.msra.mxu0 0
        %4970 = vmatprep.subr.bf16.mxu0 0
        %4971 = vmatpush1.bf16.msra.mxu0 %v4955
        %4972 = vmatprep.subr.bf16.mxu0 0
        %4973 = vmatpush1.bf16.msra.mxu0 %v4954
        %4974 = vmatprep.subr.bf16.mxu0 0
        %4975 = vmatpush2.bf16.msra.mxu0 0
        %4976 = vmatprep.subr.bf16.mxu0 0
        %4977 = vmatpush2.bf16.msra.mxu0 0
        %4978 = vmatprep.subr.bf16.mxu0 0
        %4979 = vmatpush2.bf16.msra.mxu0 0
        %4980 = vmatprep.subr.bf16.mxu0 0
        %4981 = vmatpush2.bf16.msra.mxu0 0
        %4982 = vmatprep.subr.bf16.mxu0 0
        %4983 = vmatpush2.bf16.msra.mxu0 0
        %4984 = vmatprep.subr.bf16.mxu0 0
        %4985 = vmatpush2.bf16.msra.mxu0 0
        %4986 = vmatprep.subr.bf16.mxu0 0
        %4987 = vmatpush2.bf16.msra.mxu0 0
        %4988 = vmatprep.subr.bf16.mxu0 0
        %4989 = vmatpush2.bf16.msra.mxu0 0
        %4990 = vmatprep.mubr.bf16.mxu0 0
        %4991 = vmatmul.mubr.bf16.gmra.mxu0 %v4800
        %v4992 = vpop.f32.mrf.mxu0
        %v4993 = vadd.f32 %v4782, %v4992
        %v4994 = vpop.f32.mrf.mxu0
        %v4995 = vpop.f32.mrf.mxu0
        %v4996 = vpop.f32.mrf.mxu0
        %4997 = vdwg.mxu0
        %v4998 = vpack.c.bf16 %v4837, %v4837
        %v4999 = vpack.c.bf16 %v4889, %v4889
        %v5000 = vpack.c.bf16 %v4941, %v4941
        %v5001 = vpack.c.bf16 %v4993, %v4993
        %5003 = vrot.lane.b32.xlu0 %v4998, 120
        %v5004 = vpop.permute.xlu0 %5003
        %v5006 = vsel %vm2859, %v4998, 0
        %v5009 = vsel %vm2859, %v5004, 0
        %5011 = vmatprep.subr.bf16.mxu0 0
        %5012 = vmatpush1.bf16.xpose.msra.mxu0 0
        %5013 = vmatprep.subr.bf16.mxu0 0
        %5014 = vmatpush1.bf16.xpose.msra.mxu0 0
        %5015 = vmatprep.subr.bf16.mxu0 0
        %5016 = vmatpush1.bf16.xpose.msra.mxu0 0
        %5017 = vmatprep.subr.bf16.mxu0 0
        %5018 = vmatpush1.bf16.xpose.msra.mxu0 0
        %5019 = vmatprep.subr.bf16.mxu0 0
        %5020 = vmatpush1.bf16.xpose.msra.mxu0 0
        %5021 = vmatprep.subr.bf16.mxu0 0
        %5022 = vmatpush1.bf16.xpose.msra.mxu0 0
        %5023 = vmatprep.subr.bf16.mxu0 0
        %5024 = vmatpush1.bf16.xpose.msra.mxu0 0
        %5025 = vmatprep.subr.bf16.mxu0 0
        %5026 = vmatpush1.bf16.xpose.msra.mxu0 %v5009
        %5027 = vmatprep.subr.bf16.mxu0 0
        %5028 = vmatpush2.bf16.xpose.msra.mxu0 0
        %5029 = vmatprep.subr.bf16.mxu0 0
        %5030 = vmatpush2.bf16.xpose.msra.mxu0 0
        %5031 = vmatprep.subr.bf16.mxu0 0
        %5032 = vmatpush2.bf16.xpose.msra.mxu0 0
        %5033 = vmatprep.subr.bf16.mxu0 0
        %5034 = vmatpush2.bf16.xpose.msra.mxu0 0
        %5035 = vmatprep.subr.bf16.mxu0 0
        %5036 = vmatpush2.bf16.xpose.msra.mxu0 0
        %5037 = vmatprep.subr.bf16.mxu0 0
        %5038 = vmatpush2.bf16.xpose.msra.mxu0 0
        %5039 = vmatprep.subr.bf16.mxu0 0
        %5040 = vmatpush2.bf16.xpose.msra.mxu0 0
        %5041 = vmatprep.subr.bf16.mxu0 0
        %5042 = vmatpush2.bf16.xpose.msra.mxu0 0
        %5043 = vmatprep.mubr.bf16.mxu0 0
        %5044 = vmatmul.mubr.bf16.gmra.mxu0 %v5006
        %v5045 = vpop.f32.mrf.mxu0
        %v5046 = vadd.f32 %v2608, %v5045
        %v5047 = vpop.f32.mrf.mxu0
        %v5048 = vpop.f32.mrf.mxu0
        %v5049 = vpop.f32.mrf.mxu0
        %5050 = vdwg.mxu0
        %5052 = vrot.lane.b32.xlu0 %v4999, 120
        %v5053 = vpop.permute.xlu0 %5052
        %v5055 = vsel %vm2859, %v4999, 0
        %v5058 = vsel %vm2859, %v5053, 0
        %5060 = vmatprep.subr.bf16.mxu0 0
        %5061 = vmatpush1.bf16.xpose.msra.mxu0 0
        %5062 = vmatprep.subr.bf16.mxu0 0
        %5063 = vmatpush1.bf16.xpose.msra.mxu0 0
        %5064 = vmatprep.subr.bf16.mxu0 0
        %5065 = vmatpush1.bf16.xpose.msra.mxu0 0
        %5066 = vmatprep.subr.bf16.mxu0 0
        %5067 = vmatpush1.bf16.xpose.msra.mxu0 0
        %5068 = vmatprep.subr.bf16.mxu0 0
        %5069 = vmatpush1.bf16.xpose.msra.mxu0 0
        %5070 = vmatprep.subr.bf16.mxu0 0
        %5071 = vmatpush1.bf16.xpose.msra.mxu0 0
        %5072 = vmatprep.subr.bf16.mxu0 0
        %5073 = vmatpush1.bf16.xpose.msra.mxu0 0
        %5074 = vmatprep.subr.bf16.mxu0 0
        %5075 = vmatpush1.bf16.xpose.msra.mxu0 %v5058
        %5076 = vmatprep.subr.bf16.mxu0 0
        %5077 = vmatpush2.bf16.xpose.msra.mxu0 0
        %5078 = vmatprep.subr.bf16.mxu0 0
        %5079 = vmatpush2.bf16.xpose.msra.mxu0 0
        %5080 = vmatprep.subr.bf16.mxu0 0
        %5081 = vmatpush2.bf16.xpose.msra.mxu0 0
        %5082 = vmatprep.subr.bf16.mxu0 0
        %5083 = vmatpush2.bf16.xpose.msra.mxu0 0
        %5084 = vmatprep.subr.bf16.mxu0 0
        %5085 = vmatpush2.bf16.xpose.msra.mxu0 0
        %5086 = vmatprep.subr.bf16.mxu0 0
        %5087 = vmatpush2.bf16.xpose.msra.mxu0 0
        %5088 = vmatprep.subr.bf16.mxu0 0
        %5089 = vmatpush2.bf16.xpose.msra.mxu0 0
        %5090 = vmatprep.subr.bf16.mxu0 0
        %5091 = vmatpush2.bf16.xpose.msra.mxu0 0
        %5092 = vmatprep.mubr.bf16.mxu0 0
        %5093 = vmatmul.mubr.bf16.gmra.mxu0 %v5055
        %v5094 = vpop.f32.mrf.mxu0
        %v5095 = vadd.f32 %v2608, %v5094
        %v5096 = vpop.f32.mrf.mxu0
        %v5097 = vpop.f32.mrf.mxu0
        %v5098 = vpop.f32.mrf.mxu0
        %5099 = vdwg.mxu0
        %5101 = vrot.lane.b32.xlu0 %v5000, 120
        %v5102 = vpop.permute.xlu0 %5101
        %v5104 = vsel %vm2859, %v5000, 0
        %v5107 = vsel %vm2859, %v5102, 0
        %5109 = vmatprep.subr.bf16.mxu0 0
        %5110 = vmatpush1.bf16.xpose.msra.mxu0 0
        %5111 = vmatprep.subr.bf16.mxu0 0
        %5112 = vmatpush1.bf16.xpose.msra.mxu0 0
        %5113 = vmatprep.subr.bf16.mxu0 0
        %5114 = vmatpush1.bf16.xpose.msra.mxu0 0
        %5115 = vmatprep.subr.bf16.mxu0 0
        %5116 = vmatpush1.bf16.xpose.msra.mxu0 0
        %5117 = vmatprep.subr.bf16.mxu0 0
        %5118 = vmatpush1.bf16.xpose.msra.mxu0 0
        %5119 = vmatprep.subr.bf16.mxu0 0
        %5120 = vmatpush1.bf16.xpose.msra.mxu0 0
        %5121 = vmatprep.subr.bf16.mxu0 0
        %5122 = vmatpush1.bf16.xpose.msra.mxu0 0
        %5123 = vmatprep.subr.bf16.mxu0 0
        %5124 = vmatpush1.bf16.xpose.msra.mxu0 %v5107
        %5125 = vmatprep.subr.bf16.mxu0 0
        %5126 = vmatpush2.bf16.xpose.msra.mxu0 0
        %5127 = vmatprep.subr.bf16.mxu0 0
        %5128 = vmatpush2.bf16.xpose.msra.mxu0 0
        %5129 = vmatprep.subr.bf16.mxu0 0
        %5130 = vmatpush2.bf16.xpose.msra.mxu0 0
        %5131 = vmatprep.subr.bf16.mxu0 0
        %5132 = vmatpush2.bf16.xpose.msra.mxu0 0
        %5133 = vmatprep.subr.bf16.mxu0 0
        %5134 = vmatpush2.bf16.xpose.msra.mxu0 0
        %5135 = vmatprep.subr.bf16.mxu0 0
        %5136 = vmatpush2.bf16.xpose.msra.mxu0 0
        %5137 = vmatprep.subr.bf16.mxu0 0
        %5138 = vmatpush2.bf16.xpose.msra.mxu0 0
        %5139 = vmatprep.subr.bf16.mxu0 0
        %5140 = vmatpush2.bf16.xpose.msra.mxu0 0
        %5141 = vmatprep.mubr.bf16.mxu0 0
        %5142 = vmatmul.mubr.bf16.gmra.mxu0 %v5104
        %v5143 = vpop.f32.mrf.mxu0
        %v5144 = vadd.f32 %v2608, %v5143
        %v5145 = vpop.f32.mrf.mxu0
        %v5146 = vpop.f32.mrf.mxu0
        %v5147 = vpop.f32.mrf.mxu0
        %5148 = vdwg.mxu0
        %5150 = vrot.lane.b32.xlu0 %v5001, 120
        %v5151 = vpop.permute.xlu0 %5150
        %v5153 = vsel %vm2859, %v5001, 0
        %v5156 = vsel %vm2859, %v5151, 0
        %5158 = vmatprep.subr.bf16.mxu0 0
        %5159 = vmatpush1.bf16.xpose.msra.mxu0 0
        %5160 = vmatprep.subr.bf16.mxu0 0
        %5161 = vmatpush1.bf16.xpose.msra.mxu0 0
        %5162 = vmatprep.subr.bf16.mxu0 0
        %5163 = vmatpush1.bf16.xpose.msra.mxu0 0
        %5164 = vmatprep.subr.bf16.mxu0 0
        %5165 = vmatpush1.bf16.xpose.msra.mxu0 0
        %5166 = vmatprep.subr.bf16.mxu0 0
        %5167 = vmatpush1.bf16.xpose.msra.mxu0 0
        %5168 = vmatprep.subr.bf16.mxu0 0
        %5169 = vmatpush1.bf16.xpose.msra.mxu0 0
        %5170 = vmatprep.subr.bf16.mxu0 0
        %5171 = vmatpush1.bf16.xpose.msra.mxu0 0
        %5172 = vmatprep.subr.bf16.mxu0 0
        %5173 = vmatpush1.bf16.xpose.msra.mxu0 %v5156
        %5174 = vmatprep.subr.bf16.mxu0 0
        %5175 = vmatpush2.bf16.xpose.msra.mxu0 0
        %5176 = vmatprep.subr.bf16.mxu0 0
        %5177 = vmatpush2.bf16.xpose.msra.mxu0 0
        %5178 = vmatprep.subr.bf16.mxu0 0
        %5179 = vmatpush2.bf16.xpose.msra.mxu0 0
        %5180 = vmatprep.subr.bf16.mxu0 0
        %5181 = vmatpush2.bf16.xpose.msra.mxu0 0
        %5182 = vmatprep.subr.bf16.mxu0 0
        %5183 = vmatpush2.bf16.xpose.msra.mxu0 0
        %5184 = vmatprep.subr.bf16.mxu0 0
        %5185 = vmatpush2.bf16.xpose.msra.mxu0 0
        %5186 = vmatprep.subr.bf16.mxu0 0
        %5187 = vmatpush2.bf16.xpose.msra.mxu0 0
        %5188 = vmatprep.subr.bf16.mxu0 0
        %5189 = vmatpush2.bf16.xpose.msra.mxu0 0
        %5190 = vmatprep.mubr.bf16.mxu0 0
        %5191 = vmatmul.mubr.bf16.gmra.mxu0 %v5153
        %v5192 = vpop.f32.mrf.mxu0
        %v5193 = vadd.f32 %v2608, %v5192
        %v5194 = vpop.f32.mrf.mxu0
        %v5195 = vpop.f32.mrf.mxu0
        %v5196 = vpop.f32.mrf.mxu0
        %5197 = vdwg.mxu0
        %v5198 = vsel %vm2859, %v5046, -inf
        %5199 = vmax.xlane.f32.xlu0 %v5198
        %v5200 = vpop.xlane.xlu0 %5199
        %v5201 = vsel %vm2859, %v5095, -inf
        %5202 = vmax.xlane.f32.xlu0 %v5201
        %v5203 = vpop.xlane.xlu0 %5202
        %v5204 = vsel %vm2859, %v5144, -inf
        %5205 = vmax.xlane.f32.xlu0 %v5204
        %v5206 = vpop.xlane.xlu0 %5205
        %v5207 = vsel %vm2859, %v5193, -inf
        %5208 = vmax.xlane.f32.xlu0 %v5207
        %v5209 = vpop.xlane.xlu0 %5208
        %v5210 = vsub.f32 %v5046, %v5200
        %v5211 = vsub.f32 %v5095, %v5203
        %v5212 = vsub.f32 %v5144, %v5206
        %v5213 = vsub.f32 %v5193, %v5209
        %v5214 = vmul.f32 %v5210, 1.442695
        %v5215 = vpow.pop %v5214
        %v5216 = vmul.f32 %v5211, 1.442695
        %v5217 = vpow.pop %v5216
        %v5218 = vmul.f32 %v5212, 1.442695
        %v5219 = vpow.pop %v5218
        %v5220 = vmul.f32 %v5213, 1.442695
        %v5221 = vpow.pop %v5220
        %v5222 = vsel %vm2859, %v5215, 0.0
        %5223 = vadd.xlane.f32.xlu0 %v5222
        %v5224 = vpop.xlane.xlu0 %5223
        %v5225 = vsel %vm2859, %v5217, 0.0
        %5226 = vadd.xlane.f32.xlu0 %v5225
        %v5227 = vpop.xlane.xlu0 %5226
        %v5228 = vsel %vm2859, %v5219, 0.0
        %5229 = vadd.xlane.f32.xlu0 %v5228
        %v5230 = vpop.xlane.xlu0 %5229
        %v5231 = vsel %vm2859, %v5221, 0.0
        %5232 = vadd.xlane.f32.xlu0 %v5231
        %v5233 = vpop.xlane.xlu0 %5232
        %v5234 = vrcp.pop %v5224
        %v5235 = vrcp.pop %v5227
        %v5236 = vrcp.pop %v5230
        %v5237 = vrcp.pop %v5233
        %v5238 = vmul.f32 %v5215, %v5234
        %v5239 = vmul.f32 %v5217, %v5235
        %v5240 = vmul.f32 %v5219, %v5236
        %v5241 = vmul.f32 %v5221, %v5237
        %v5242 = vpack.c.bf16 %v5238, %v5238
        %v5243 = vpack.c.bf16 %v5239, %v5239
        %v5244 = vpack.c.bf16 %v5240, %v5240
        %v5245 = vpack.c.bf16 %v5241, %v5241
        %5246 = vrot.lane.b32.xlu0 %v4998, 112
        %v5247 = vpop.permute.xlu0 %5246
        %v5249 = vsel %vm2859, %v5242, 0
        %v5252 = vsel %vm3106, %v5247, 0
        %5254 = vmatprep.subr.bf16.mxu0 0
        %5255 = vmatpush1.bf16.msra.mxu0 0
        %5256 = vmatprep.subr.bf16.mxu0 0
        %5257 = vmatpush1.bf16.msra.mxu0 0
        %5258 = vmatprep.subr.bf16.mxu0 0
        %5259 = vmatpush1.bf16.msra.mxu0 0
        %5260 = vmatprep.subr.bf16.mxu0 0
        %5261 = vmatpush1.bf16.msra.mxu0 0
        %5262 = vmatprep.subr.bf16.mxu0 0
        %5263 = vmatpush1.bf16.msra.mxu0 0
        %5264 = vmatprep.subr.bf16.mxu0 0
        %5265 = vmatpush1.bf16.msra.mxu0 0
        %5266 = vmatprep.subr.bf16.mxu0 0
        %5267 = vmatpush1.bf16.msra.mxu0 0
        %5268 = vmatprep.subr.bf16.mxu0 0
        %5269 = vmatpush1.bf16.msra.mxu0 %v5252
        %5270 = vmatprep.subr.bf16.mxu0 0
        %5271 = vmatpush2.bf16.msra.mxu0 0
        %5272 = vmatprep.subr.bf16.mxu0 0
        %5273 = vmatpush2.bf16.msra.mxu0 0
        %5274 = vmatprep.subr.bf16.mxu0 0
        %5275 = vmatpush2.bf16.msra.mxu0 0
        %5276 = vmatprep.subr.bf16.mxu0 0
        %5277 = vmatpush2.bf16.msra.mxu0 0
        %5278 = vmatprep.subr.bf16.mxu0 0
        %5279 = vmatpush2.bf16.msra.mxu0 0
        %5280 = vmatprep.subr.bf16.mxu0 0
        %5281 = vmatpush2.bf16.msra.mxu0 0
        %5282 = vmatprep.subr.bf16.mxu0 0
        %5283 = vmatpush2.bf16.msra.mxu0 0
        %5284 = vmatprep.subr.bf16.mxu0 0
        %5285 = vmatpush2.bf16.msra.mxu0 0
        %5286 = vmatprep.mubr.bf16.mxu0 0
        %5287 = vmatmul.mubr.bf16.gmra.mxu0 %v5249
        %v5288 = vpop.f32.mrf.mxu0
        %v5289 = vadd.f32 0.0, %v5288
        %v5290 = vpop.f32.mrf.mxu0
        %v5291 = vpop.f32.mrf.mxu0
        %v5292 = vpop.f32.mrf.mxu0
        %5293 = vdwg.mxu0
        %5294 = vrot.lane.b32.xlu0 %v4999, 112
        %v5295 = vpop.permute.xlu0 %5294
        %v5297 = vsel %vm2859, %v5243, 0
        %v5300 = vsel %vm3106, %v5295, 0
        %5302 = vmatprep.subr.bf16.mxu0 0
        %5303 = vmatpush1.bf16.msra.mxu0 0
        %5304 = vmatprep.subr.bf16.mxu0 0
        %5305 = vmatpush1.bf16.msra.mxu0 0
        %5306 = vmatprep.subr.bf16.mxu0 0
        %5307 = vmatpush1.bf16.msra.mxu0 0
        %5308 = vmatprep.subr.bf16.mxu0 0
        %5309 = vmatpush1.bf16.msra.mxu0 0
        %5310 = vmatprep.subr.bf16.mxu0 0
        %5311 = vmatpush1.bf16.msra.mxu0 0
        %5312 = vmatprep.subr.bf16.mxu0 0
        %5313 = vmatpush1.bf16.msra.mxu0 0
        %5314 = vmatprep.subr.bf16.mxu0 0
        %5315 = vmatpush1.bf16.msra.mxu0 0
        %5316 = vmatprep.subr.bf16.mxu0 0
        %5317 = vmatpush1.bf16.msra.mxu0 %v5300
        %5318 = vmatprep.subr.bf16.mxu0 0
        %5319 = vmatpush2.bf16.msra.mxu0 0
        %5320 = vmatprep.subr.bf16.mxu0 0
        %5321 = vmatpush2.bf16.msra.mxu0 0
        %5322 = vmatprep.subr.bf16.mxu0 0
        %5323 = vmatpush2.bf16.msra.mxu0 0
        %5324 = vmatprep.subr.bf16.mxu0 0
        %5325 = vmatpush2.bf16.msra.mxu0 0
        %5326 = vmatprep.subr.bf16.mxu0 0
        %5327 = vmatpush2.bf16.msra.mxu0 0
        %5328 = vmatprep.subr.bf16.mxu0 0
        %5329 = vmatpush2.bf16.msra.mxu0 0
        %5330 = vmatprep.subr.bf16.mxu0 0
        %5331 = vmatpush2.bf16.msra.mxu0 0
        %5332 = vmatprep.subr.bf16.mxu0 0
        %5333 = vmatpush2.bf16.msra.mxu0 0
        %5334 = vmatprep.mubr.bf16.mxu0 0
        %5335 = vmatmul.mubr.bf16.gmra.mxu0 %v5297
        %v5336 = vpop.f32.mrf.mxu0
        %v5337 = vadd.f32 0.0, %v5336
        %v5338 = vpop.f32.mrf.mxu0
        %v5339 = vpop.f32.mrf.mxu0
        %v5340 = vpop.f32.mrf.mxu0
        %5341 = vdwg.mxu0
        %5342 = vrot.lane.b32.xlu0 %v5000, 112
        %v5343 = vpop.permute.xlu0 %5342
        %v5345 = vsel %vm2859, %v5244, 0
        %v5348 = vsel %vm3106, %v5343, 0
        %5350 = vmatprep.subr.bf16.mxu0 0
        %5351 = vmatpush1.bf16.msra.mxu0 0
        %5352 = vmatprep.subr.bf16.mxu0 0
        %5353 = vmatpush1.bf16.msra.mxu0 0
        %5354 = vmatprep.subr.bf16.mxu0 0
        %5355 = vmatpush1.bf16.msra.mxu0 0
        %5356 = vmatprep.subr.bf16.mxu0 0
        %5357 = vmatpush1.bf16.msra.mxu0 0
        %5358 = vmatprep.subr.bf16.mxu0 0
        %5359 = vmatpush1.bf16.msra.mxu0 0
        %5360 = vmatprep.subr.bf16.mxu0 0
        %5361 = vmatpush1.bf16.msra.mxu0 0
        %5362 = vmatprep.subr.bf16.mxu0 0
        %5363 = vmatpush1.bf16.msra.mxu0 0
        %5364 = vmatprep.subr.bf16.mxu0 0
        %5365 = vmatpush1.bf16.msra.mxu0 %v5348
        %5366 = vmatprep.subr.bf16.mxu0 0
        %5367 = vmatpush2.bf16.msra.mxu0 0
        %5368 = vmatprep.subr.bf16.mxu0 0
        %5369 = vmatpush2.bf16.msra.mxu0 0
        %5370 = vmatprep.subr.bf16.mxu0 0
        %5371 = vmatpush2.bf16.msra.mxu0 0
        %5372 = vmatprep.subr.bf16.mxu0 0
        %5373 = vmatpush2.bf16.msra.mxu0 0
        %5374 = vmatprep.subr.bf16.mxu0 0
        %5375 = vmatpush2.bf16.msra.mxu0 0
        %5376 = vmatprep.subr.bf16.mxu0 0
        %5377 = vmatpush2.bf16.msra.mxu0 0
        %5378 = vmatprep.subr.bf16.mxu0 0
        %5379 = vmatpush2.bf16.msra.mxu0 0
        %5380 = vmatprep.subr.bf16.mxu0 0
        %5381 = vmatpush2.bf16.msra.mxu0 0
        %5382 = vmatprep.mubr.bf16.mxu0 0
        %5383 = vmatmul.mubr.bf16.gmra.mxu0 %v5345
        %v5384 = vpop.f32.mrf.mxu0
        %v5385 = vadd.f32 0.0, %v5384
        %v5386 = vpop.f32.mrf.mxu0
        %v5387 = vpop.f32.mrf.mxu0
        %v5388 = vpop.f32.mrf.mxu0
        %5389 = vdwg.mxu0
        %5390 = vrot.lane.b32.xlu0 %v5001, 112
        %v5391 = vpop.permute.xlu0 %5390
        %v5393 = vsel %vm2859, %v5245, 0
        %v5396 = vsel %vm3106, %v5391, 0
        %5398 = vmatprep.subr.bf16.mxu0 0
        %5399 = vmatpush1.bf16.msra.mxu0 0
        %5400 = vmatprep.subr.bf16.mxu0 0
        %5401 = vmatpush1.bf16.msra.mxu0 0
        %5402 = vmatprep.subr.bf16.mxu0 0
        %5403 = vmatpush1.bf16.msra.mxu0 0
        %5404 = vmatprep.subr.bf16.mxu0 0
        %5405 = vmatpush1.bf16.msra.mxu0 0
        %5406 = vmatprep.subr.bf16.mxu0 0
        %5407 = vmatpush1.bf16.msra.mxu0 0
        %5408 = vmatprep.subr.bf16.mxu0 0
        %5409 = vmatpush1.bf16.msra.mxu0 0
        %5410 = vmatprep.subr.bf16.mxu0 0
        %5411 = vmatpush1.bf16.msra.mxu0 0
        %5412 = vmatprep.subr.bf16.mxu0 0
        %5413 = vmatpush1.bf16.msra.mxu0 %v5396
        %5414 = vmatprep.subr.bf16.mxu0 0
        %5415 = vmatpush2.bf16.msra.mxu0 0
        %5416 = vmatprep.subr.bf16.mxu0 0
        %5417 = vmatpush2.bf16.msra.mxu0 0
        %5418 = vmatprep.subr.bf16.mxu0 0
        %5419 = vmatpush2.bf16.msra.mxu0 0
        %5420 = vmatprep.subr.bf16.mxu0 0
        %5421 = vmatpush2.bf16.msra.mxu0 0
        %5422 = vmatprep.subr.bf16.mxu0 0
        %5423 = vmatpush2.bf16.msra.mxu0 0
        %5424 = vmatprep.subr.bf16.mxu0 0
        %5425 = vmatpush2.bf16.msra.mxu0 0
        %5426 = vmatprep.subr.bf16.mxu0 0
        %5427 = vmatpush2.bf16.msra.mxu0 0
        %5428 = vmatprep.subr.bf16.mxu0 0
        %5429 = vmatpush2.bf16.msra.mxu0 0
        %5430 = vmatprep.mubr.bf16.mxu0 0
        %5431 = vmatmul.mubr.bf16.gmra.mxu0 %v5393
        %v5432 = vpop.f32.mrf.mxu0
        %v5433 = vadd.f32 0.0, %v5432
        %v5434 = vpop.f32.mrf.mxu0
        %v5435 = vpop.f32.mrf.mxu0
        %v5436 = vpop.f32.mrf.mxu0
        %5437 = vdwg.mxu0
        %v5438 = vpack.c.bf16 %v5289, %v5289
        %v5439 = vpack.c.bf16 %v5337, %v5337
        %v5440 = vpack.c.bf16 %v5385, %v5385
        %v5441 = vpack.c.bf16 %v5433, %v5433
        %v5443 = vsel %vm2859, %v5438, 0
        %v5446 = vsel %vm3106, %v2379, 0
        %5448 = vmatprep.subr.bf16.mxu0 0
        %5449 = vmatpush1.bf16.msra.mxu0 0
        %5450 = vmatprep.subr.bf16.mxu0 0
        %5451 = vmatpush1.bf16.msra.mxu0 0
        %5452 = vmatprep.subr.bf16.mxu0 0
        %5453 = vmatpush1.bf16.msra.mxu0 0
        %5454 = vmatprep.subr.bf16.mxu0 0
        %5455 = vmatpush1.bf16.msra.mxu0 0
        %5456 = vmatprep.subr.bf16.mxu0 0
        %5457 = vmatpush1.bf16.msra.mxu0 0
        %5458 = vmatprep.subr.bf16.mxu0 0
        %5459 = vmatpush1.bf16.msra.mxu0 0
        %5460 = vmatprep.subr.bf16.mxu0 0
        %5461 = vmatpush1.bf16.msra.mxu0 0
        %5462 = vmatprep.subr.bf16.mxu0 0
        %5463 = vmatpush1.bf16.msra.mxu0 %v5446
        %5464 = vmatprep.subr.bf16.mxu0 0
        %5465 = vmatpush2.bf16.msra.mxu0 0
        %5466 = vmatprep.subr.bf16.mxu0 0
        %5467 = vmatpush2.bf16.msra.mxu0 0
        %5468 = vmatprep.subr.bf16.mxu0 0
        %5469 = vmatpush2.bf16.msra.mxu0 0
        %5470 = vmatprep.subr.bf16.mxu0 0
        %5471 = vmatpush2.bf16.msra.mxu0 0
        %5472 = vmatprep.subr.bf16.mxu0 0
        %5473 = vmatpush2.bf16.msra.mxu0 0
        %5474 = vmatprep.subr.bf16.mxu0 0
        %5475 = vmatpush2.bf16.msra.mxu0 0
        %5476 = vmatprep.subr.bf16.mxu0 0
        %5477 = vmatpush2.bf16.msra.mxu0 0
        %5478 = vmatprep.subr.bf16.mxu0 0
        %5479 = vmatpush2.bf16.msra.mxu0 0
        %5480 = vmatprep.mubr.bf16.mxu0 0
        %5481 = vmatmul.mubr.bf16.gmra.mxu0 %v5443
        %v5482 = vpop.f32.mrf.mxu0
        %v5483 = vadd.f32 0.0, %v5482
        %v5484 = vpop.f32.mrf.mxu0
        %v5485 = vpop.f32.mrf.mxu0
        %v5486 = vpop.f32.mrf.mxu0
        %5487 = vdwg.mxu0
        %v5489 = vsel %vm2859, %v5439, 0
        %v5492 = vsel %vm3106, %v2380, 0
        %5494 = vmatprep.subr.bf16.mxu0 0
        %5495 = vmatpush1.bf16.msra.mxu0 0
        %5496 = vmatprep.subr.bf16.mxu0 0
        %5497 = vmatpush1.bf16.msra.mxu0 0
        %5498 = vmatprep.subr.bf16.mxu0 0
        %5499 = vmatpush1.bf16.msra.mxu0 0
        %5500 = vmatprep.subr.bf16.mxu0 0
        %5501 = vmatpush1.bf16.msra.mxu0 0
        %5502 = vmatprep.subr.bf16.mxu0 0
        %5503 = vmatpush1.bf16.msra.mxu0 0
        %5504 = vmatprep.subr.bf16.mxu0 0
        %5505 = vmatpush1.bf16.msra.mxu0 0
        %5506 = vmatprep.subr.bf16.mxu0 0
        %5507 = vmatpush1.bf16.msra.mxu0 0
        %5508 = vmatprep.subr.bf16.mxu0 0
        %5509 = vmatpush1.bf16.msra.mxu0 %v5492
        %5510 = vmatprep.subr.bf16.mxu0 0
        %5511 = vmatpush2.bf16.msra.mxu0 0
        %5512 = vmatprep.subr.bf16.mxu0 0
        %5513 = vmatpush2.bf16.msra.mxu0 0
        %5514 = vmatprep.subr.bf16.mxu0 0
        %5515 = vmatpush2.bf16.msra.mxu0 0
        %5516 = vmatprep.subr.bf16.mxu0 0
        %5517 = vmatpush2.bf16.msra.mxu0 0
        %5518 = vmatprep.subr.bf16.mxu0 0
        %5519 = vmatpush2.bf16.msra.mxu0 0
        %5520 = vmatprep.subr.bf16.mxu0 0
        %5521 = vmatpush2.bf16.msra.mxu0 0
        %5522 = vmatprep.subr.bf16.mxu0 0
        %5523 = vmatpush2.bf16.msra.mxu0 0
        %5524 = vmatprep.subr.bf16.mxu0 0
        %5525 = vmatpush2.bf16.msra.mxu0 0
        %5526 = vmatprep.mubr.bf16.mxu0 0
        %5527 = vmatmul.mubr.bf16.gmra.mxu0 %v5489
        %v5528 = vpop.f32.mrf.mxu0
        %v5529 = vadd.f32 0.0, %v5528
        %v5530 = vpop.f32.mrf.mxu0
        %v5531 = vpop.f32.mrf.mxu0
        %v5532 = vpop.f32.mrf.mxu0
        %5533 = vdwg.mxu0
        %v5535 = vsel %vm2859, %v5440, 0
        %v5538 = vsel %vm3106, %v2381, 0
        %5540 = vmatprep.subr.bf16.mxu0 0
        %5541 = vmatpush1.bf16.msra.mxu0 0
        %5542 = vmatprep.subr.bf16.mxu0 0
        %5543 = vmatpush1.bf16.msra.mxu0 0
        %5544 = vmatprep.subr.bf16.mxu0 0
        %5545 = vmatpush1.bf16.msra.mxu0 0
        %5546 = vmatprep.subr.bf16.mxu0 0
        %5547 = vmatpush1.bf16.msra.mxu0 0
        %5548 = vmatprep.subr.bf16.mxu0 0
        %5549 = vmatpush1.bf16.msra.mxu0 0
        %5550 = vmatprep.subr.bf16.mxu0 0
        %5551 = vmatpush1.bf16.msra.mxu0 0
        %5552 = vmatprep.subr.bf16.mxu0 0
        %5553 = vmatpush1.bf16.msra.mxu0 0
        %5554 = vmatprep.subr.bf16.mxu0 0
        %5555 = vmatpush1.bf16.msra.mxu0 %v5538
        %5556 = vmatprep.subr.bf16.mxu0 0
        %5557 = vmatpush2.bf16.msra.mxu0 0
        %5558 = vmatprep.subr.bf16.mxu0 0
        %5559 = vmatpush2.bf16.msra.mxu0 0
        %5560 = vmatprep.subr.bf16.mxu0 0
        %5561 = vmatpush2.bf16.msra.mxu0 0
        %5562 = vmatprep.subr.bf16.mxu0 0
        %5563 = vmatpush2.bf16.msra.mxu0 0
        %5564 = vmatprep.subr.bf16.mxu0 0
        %5565 = vmatpush2.bf16.msra.mxu0 0
        %5566 = vmatprep.subr.bf16.mxu0 0
        %5567 = vmatpush2.bf16.msra.mxu0 0
        %5568 = vmatprep.subr.bf16.mxu0 0
        %5569 = vmatpush2.bf16.msra.mxu0 0
        %5570 = vmatprep.subr.bf16.mxu0 0
        %5571 = vmatpush2.bf16.msra.mxu0 0
        %5572 = vmatprep.mubr.bf16.mxu0 0
        %5573 = vmatmul.mubr.bf16.gmra.mxu0 %v5535
        %v5574 = vpop.f32.mrf.mxu0
        %v5575 = vadd.f32 0.0, %v5574
        %v5576 = vpop.f32.mrf.mxu0
        %v5577 = vpop.f32.mrf.mxu0
        %v5578 = vpop.f32.mrf.mxu0
        %5579 = vdwg.mxu0
        %v5581 = vsel %vm2859, %v5441, 0
        %v5584 = vsel %vm3106, %v2382, 0
        %5586 = vmatprep.subr.bf16.mxu0 0
        %5587 = vmatpush1.bf16.msra.mxu0 0
        %5588 = vmatprep.subr.bf16.mxu0 0
        %5589 = vmatpush1.bf16.msra.mxu0 0
        %5590 = vmatprep.subr.bf16.mxu0 0
        %5591 = vmatpush1.bf16.msra.mxu0 0
        %5592 = vmatprep.subr.bf16.mxu0 0
        %5593 = vmatpush1.bf16.msra.mxu0 0
        %5594 = vmatprep.subr.bf16.mxu0 0
        %5595 = vmatpush1.bf16.msra.mxu0 0
        %5596 = vmatprep.subr.bf16.mxu0 0
        %5597 = vmatpush1.bf16.msra.mxu0 0
        %5598 = vmatprep.subr.bf16.mxu0 0
        %5599 = vmatpush1.bf16.msra.mxu0 0
        %5600 = vmatprep.subr.bf16.mxu0 0
        %5601 = vmatpush1.bf16.msra.mxu0 %v5584
        %5602 = vmatprep.subr.bf16.mxu0 0
        %5603 = vmatpush2.bf16.msra.mxu0 0
        %5604 = vmatprep.subr.bf16.mxu0 0
        %5605 = vmatpush2.bf16.msra.mxu0 0
        %5606 = vmatprep.subr.bf16.mxu0 0
        %5607 = vmatpush2.bf16.msra.mxu0 0
        %5608 = vmatprep.subr.bf16.mxu0 0
        %5609 = vmatpush2.bf16.msra.mxu0 0
        %5610 = vmatprep.subr.bf16.mxu0 0
        %5611 = vmatpush2.bf16.msra.mxu0 0
        %5612 = vmatprep.subr.bf16.mxu0 0
        %5613 = vmatpush2.bf16.msra.mxu0 0
        %5614 = vmatprep.subr.bf16.mxu0 0
        %5615 = vmatpush2.bf16.msra.mxu0 0
        %5616 = vmatprep.subr.bf16.mxu0 0
        %5617 = vmatpush2.bf16.msra.mxu0 0
        %5618 = vmatprep.mubr.bf16.mxu0 0
        %5619 = vmatmul.mubr.bf16.gmra.mxu0 %v5581
        %v5620 = vpop.f32.mrf.mxu0
        %v5621 = vadd.f32 0.0, %v5620
        %v5622 = vpop.f32.mrf.mxu0
        %v5623 = vpop.f32.mrf.mxu0
        %v5624 = vpop.f32.mrf.mxu0
        %5625 = vdwg.mxu0
        %v5626 = vsel %vm2646, %v5483, 0.0
        %v5627 = vsel %vm2646, %v5529, 0.0
        %v5628 = vadd.f32 %v5626, %v5627
        %v5629 = vsel %vm2646, %v5575, 0.0
        %v5630 = vadd.f32 %v5628, %v5629
        %v5631 = vsel %vm2646, %v5621, 0.0
        %v5632 = vadd.f32 %v5630, %v5631
        %v5633 = vadd.f32 %v2598, %v5632
        %v5635 = vlaneseq
        %v5636 = vshrl.u32 %v5635, 7
        %v5637 = vsub.s32 0, %v5636
        %v5638 = vrot.slane %v2374, %v5637
        %v5640 = vadd.f32 %v5633, %v5638
        %v5641 = vsel %vm2646, %v5640, 0.0
        %5642 = vadd.xlane.f32.xlu0 %v5641
        %v5643 = vpop.xlane.xlu0 %5642
        %v5644 = vmul.f32 %v5643, %v3500
        %v5645 = vsub.f32 %v5640, %v5644
        %v5646 = vmul.f32 %v5645, %v5645
        %v5647 = vsel %vm2646, %v5646, 0.0
        %5648 = vadd.xlane.f32.xlu0 %v5647
        %v5649 = vpop.xlane.xlu0 %5648
        %v5650 = vmul.f32 %v5649, %v3500
        %v5651 = vadd.f32 %v5650, 1e-05
        %v5652 = vrsqrt.pop %v5651
        %v5653 = vmul.f32 %v5645, %v5652
        %v5655 = vlaneseq
        %v5656 = vshrl.u32 %v5655, 7
        %v5657 = vsub.s32 0, %v5656
        %v5658 = vrot.slane %v2369, %v5657
        %v5660 = vmul.f32 %v5653, %v5658
        %v5662 = vlaneseq
        %v5663 = vshrl.u32 %v5662, 7
        %v5664 = vsub.s32 0, %v5663
        %v5665 = vrot.slane %v2368, %v5664
        %v5667 = vadd.f32 %v5660, %v5665
        %v5668 = vpack.c.bf16 %v5667, %v5667
        %v5673 = vlaneseq
        %v5674 = vshrl.u32 %v5673, 7
        %v5675 = vsub.s32 0, %v5674
        %v5676 = vrot.slane %v2328, %v5675
        %v5677 = vlaneseq
        %v5678 = vshrl.u32 %v5677, 7
        %v5679 = vsub.s32 0, %v5678
        %v5680 = vrot.slane %v2329, %v5679
        %v5681 = vlaneseq
        %v5682 = vshrl.u32 %v5681, 7
        %v5683 = vsub.s32 0, %v5682
        %v5684 = vrot.slane %v2330, %v5683
        %v5685 = vlaneseq
        %v5686 = vshrl.u32 %v5685, 7
        %v5687 = vsub.s32 0, %v5686
        %v5688 = vrot.slane %v2331, %v5687
        %v5697 = vunpack.c.l.b16 %v2352
        %v5698 = vunpack.c.l.b16 %v2353
        %v5699 = vunpack.c.l.b16 %v2354
        %v5700 = vunpack.c.l.b16 %v2355
        %v5701 = vpack.c.b16 %v5698, %v5697
        %v5702 = vpack.c.b16 %v5700, %v5699
        %v5706 = vsel %vm2646, %v5668, 0
        %5708 = vmatprep.subr.bf16.mxu0 0
        %5709 = vmatpush1.bf16.msra.mxu0 0
        %5710 = vmatprep.subr.bf16.mxu0 0
        %5711 = vmatpush1.bf16.msra.mxu0 0
        %5712 = vmatprep.subr.bf16.mxu0 0
        %5713 = vmatpush1.bf16.msra.mxu0 0
        %5714 = vmatprep.subr.bf16.mxu0 0
        %5715 = vmatpush1.bf16.msra.mxu0 0
        %5716 = vmatprep.subr.bf16.mxu0 0
        %5717 = vmatpush1.bf16.msra.mxu0 0
        %5718 = vmatprep.subr.bf16.mxu0 0
        %5719 = vmatpush1.bf16.msra.mxu0 0
        %5720 = vmatprep.subr.bf16.mxu0 0
        %5721 = vmatpush1.bf16.msra.mxu0 %v5702
        %5722 = vmatprep.subr.bf16.mxu0 0
        %5723 = vmatpush1.bf16.msra.mxu0 %v5701
        %5724 = vmatprep.subr.bf16.mxu0 0
        %5725 = vmatpush2.bf16.msra.mxu0 0
        %5726 = vmatprep.subr.bf16.mxu0 0
        %5727 = vmatpush2.bf16.msra.mxu0 0
        %5728 = vmatprep.subr.bf16.mxu0 0
        %5729 = vmatpush2.bf16.msra.mxu0 0
        %5730 = vmatprep.subr.bf16.mxu0 0
        %5731 = vmatpush2.bf16.msra.mxu0 0
        %5732 = vmatprep.subr.bf16.mxu0 0
        %5733 = vmatpush2.bf16.msra.mxu0 0
        %5734 = vmatprep.subr.bf16.mxu0 0
        %5735 = vmatpush2.bf16.msra.mxu0 0
        %5736 = vmatprep.subr.bf16.mxu0 0
        %5737 = vmatpush2.bf16.msra.mxu0 0
        %5738 = vmatprep.subr.bf16.mxu0 0
        %5739 = vmatpush2.bf16.msra.mxu0 0
        %5740 = vmatprep.mubr.bf16.mxu0 0
        %5741 = vmatmul.mubr.bf16.gmra.mxu0 %v5706
        %v5742 = vpop.f32.mrf.mxu0
        %v5743 = vadd.f32 %v5676, %v5742
        %v5744 = vpop.f32.mrf.mxu0
        %v5745 = vpop.f32.mrf.mxu0
        %v5746 = vpop.f32.mrf.mxu0
        %5747 = vdwg.mxu0
        %v5752 = vunpack.c.l.b16 %v2356
        %v5753 = vunpack.c.l.b16 %v2357
        %v5754 = vunpack.c.l.b16 %v2358
        %v5755 = vunpack.c.l.b16 %v2359
        %v5756 = vpack.c.b16 %v5753, %v5752
        %v5757 = vpack.c.b16 %v5755, %v5754
        %5760 = vmatprep.subr.bf16.mxu0 0
        %5761 = vmatpush1.bf16.msra.mxu0 0
        %5762 = vmatprep.subr.bf16.mxu0 0
        %5763 = vmatpush1.bf16.msra.mxu0 0
        %5764 = vmatprep.subr.bf16.mxu0 0
        %5765 = vmatpush1.bf16.msra.mxu0 0
        %5766 = vmatprep.subr.bf16.mxu0 0
        %5767 = vmatpush1.bf16.msra.mxu0 0
        %5768 = vmatprep.subr.bf16.mxu0 0
        %5769 = vmatpush1.bf16.msra.mxu0 0
        %5770 = vmatprep.subr.bf16.mxu0 0
        %5771 = vmatpush1.bf16.msra.mxu0 0
        %5772 = vmatprep.subr.bf16.mxu0 0
        %5773 = vmatpush1.bf16.msra.mxu0 %v5757
        %5774 = vmatprep.subr.bf16.mxu0 0
        %5775 = vmatpush1.bf16.msra.mxu0 %v5756
        %5776 = vmatprep.subr.bf16.mxu0 0
        %5777 = vmatpush2.bf16.msra.mxu0 0
        %5778 = vmatprep.subr.bf16.mxu0 0
        %5779 = vmatpush2.bf16.msra.mxu0 0
        %5780 = vmatprep.subr.bf16.mxu0 0
        %5781 = vmatpush2.bf16.msra.mxu0 0
        %5782 = vmatprep.subr.bf16.mxu0 0
        %5783 = vmatpush2.bf16.msra.mxu0 0
        %5784 = vmatprep.subr.bf16.mxu0 0
        %5785 = vmatpush2.bf16.msra.mxu0 0
        %5786 = vmatprep.subr.bf16.mxu0 0
        %5787 = vmatpush2.bf16.msra.mxu0 0
        %5788 = vmatprep.subr.bf16.mxu0 0
        %5789 = vmatpush2.bf16.msra.mxu0 0
        %5790 = vmatprep.subr.bf16.mxu0 0
        %5791 = vmatpush2.bf16.msra.mxu0 0
        %5792 = vmatprep.mubr.bf16.mxu0 0
        %5793 = vmatmul.mubr.bf16.gmra.mxu0 %v5706
        %v5794 = vpop.f32.mrf.mxu0
        %v5795 = vadd.f32 %v5680, %v5794
        %v5796 = vpop.f32.mrf.mxu0
        %v5797 = vpop.f32.mrf.mxu0
        %v5798 = vpop.f32.mrf.mxu0
        %5799 = vdwg.mxu0
        %v5804 = vunpack.c.l.b16 %v2360
        %v5805 = vunpack.c.l.b16 %v2361
        %v5806 = vunpack.c.l.b16 %v2362
        %v5807 = vunpack.c.l.b16 %v2363
        %v5808 = vpack.c.b16 %v5805, %v5804
        %v5809 = vpack.c.b16 %v5807, %v5806
        %5812 = vmatprep.subr.bf16.mxu0 0
        %5813 = vmatpush1.bf16.msra.mxu0 0
        %5814 = vmatprep.subr.bf16.mxu0 0
        %5815 = vmatpush1.bf16.msra.mxu0 0
        %5816 = vmatprep.subr.bf16.mxu0 0
        %5817 = vmatpush1.bf16.msra.mxu0 0
        %5818 = vmatprep.subr.bf16.mxu0 0
        %5819 = vmatpush1.bf16.msra.mxu0 0
        %5820 = vmatprep.subr.bf16.mxu0 0
        %5821 = vmatpush1.bf16.msra.mxu0 0
        %5822 = vmatprep.subr.bf16.mxu0 0
        %5823 = vmatpush1.bf16.msra.mxu0 0
        %5824 = vmatprep.subr.bf16.mxu0 0
        %5825 = vmatpush1.bf16.msra.mxu0 %v5809
        %5826 = vmatprep.subr.bf16.mxu0 0
        %5827 = vmatpush1.bf16.msra.mxu0 %v5808
        %5828 = vmatprep.subr.bf16.mxu0 0
        %5829 = vmatpush2.bf16.msra.mxu0 0
        %5830 = vmatprep.subr.bf16.mxu0 0
        %5831 = vmatpush2.bf16.msra.mxu0 0
        %5832 = vmatprep.subr.bf16.mxu0 0
        %5833 = vmatpush2.bf16.msra.mxu0 0
        %5834 = vmatprep.subr.bf16.mxu0 0
        %5835 = vmatpush2.bf16.msra.mxu0 0
        %5836 = vmatprep.subr.bf16.mxu0 0
        %5837 = vmatpush2.bf16.msra.mxu0 0
        %5838 = vmatprep.subr.bf16.mxu0 0
        %5839 = vmatpush2.bf16.msra.mxu0 0
        %5840 = vmatprep.subr.bf16.mxu0 0
        %5841 = vmatpush2.bf16.msra.mxu0 0
        %5842 = vmatprep.subr.bf16.mxu0 0
        %5843 = vmatpush2.bf16.msra.mxu0 0
        %5844 = vmatprep.mubr.bf16.mxu0 0
        %5845 = vmatmul.mubr.bf16.gmra.mxu0 %v5706
        %v5846 = vpop.f32.mrf.mxu0
        %v5847 = vadd.f32 %v5684, %v5846
        %v5848 = vpop.f32.mrf.mxu0
        %v5849 = vpop.f32.mrf.mxu0
        %v5850 = vpop.f32.mrf.mxu0
        %5851 = vdwg.mxu0
        %v5856 = vunpack.c.l.b16 %v2364
        %v5857 = vunpack.c.l.b16 %v2365
        %v5858 = vunpack.c.l.b16 %v2366
        %v5859 = vunpack.c.l.b16 %v2367
        %v5860 = vpack.c.b16 %v5857, %v5856
        %v5861 = vpack.c.b16 %v5859, %v5858
        %5864 = vmatprep.subr.bf16.mxu0 0
        %5865 = vmatpush1.bf16.msra.mxu0 0
        %5866 = vmatprep.subr.bf16.mxu0 0
        %5867 = vmatpush1.bf16.msra.mxu0 0
        %5868 = vmatprep.subr.bf16.mxu0 0
        %5869 = vmatpush1.bf16.msra.mxu0 0
        %5870 = vmatprep.subr.bf16.mxu0 0
        %5871 = vmatpush1.bf16.msra.mxu0 0
        %5872 = vmatprep.subr.bf16.mxu0 0
        %5873 = vmatpush1.bf16.msra.mxu0 0
        %5874 = vmatprep.subr.bf16.mxu0 0
        %5875 = vmatpush1.bf16.msra.mxu0 0
        %5876 = vmatprep.subr.bf16.mxu0 0
        %5877 = vmatpush1.bf16.msra.mxu0 %v5861
        %5878 = vmatprep.subr.bf16.mxu0 0
        %5879 = vmatpush1.bf16.msra.mxu0 %v5860
        %5880 = vmatprep.subr.bf16.mxu0 0
        %5881 = vmatpush2.bf16.msra.mxu0 0
        %5882 = vmatprep.subr.bf16.mxu0 0
        %5883 = vmatpush2.bf16.msra.mxu0 0
        %5884 = vmatprep.subr.bf16.mxu0 0
        %5885 = vmatpush2.bf16.msra.mxu0 0
        %5886 = vmatprep.subr.bf16.mxu0 0
        %5887 = vmatpush2.bf16.msra.mxu0 0
        %5888 = vmatprep.subr.bf16.mxu0 0
        %5889 = vmatpush2.bf16.msra.mxu0 0
        %5890 = vmatprep.subr.bf16.mxu0 0
        %5891 = vmatpush2.bf16.msra.mxu0 0
        %5892 = vmatprep.subr.bf16.mxu0 0
        %5893 = vmatpush2.bf16.msra.mxu0 0
        %5894 = vmatprep.subr.bf16.mxu0 0
        %5895 = vmatpush2.bf16.msra.mxu0 0
        %5896 = vmatprep.mubr.bf16.mxu0 0
        %5897 = vmatmul.mubr.bf16.gmra.mxu0 %v5706
        %v5898 = vpop.f32.mrf.mxu0
        %v5899 = vadd.f32 %v5688, %v5898
        %v5900 = vpop.f32.mrf.mxu0
        %v5901 = vpop.f32.mrf.mxu0
        %v5902 = vpop.f32.mrf.mxu0
        %5903 = vdwg.mxu0
        %v5904 = vpack.c.bf16 %v4761, %v4761
        %v5909 = vlaneseq
        %v5910 = vshrl.u32 %v5909, 7
        %v5911 = vsub.s32 0, %v5910
        %v5912 = vrot.slane %v2323, %v5911
        %v5913 = vlaneseq
        %v5914 = vshrl.u32 %v5913, 7
        %v5915 = vsub.s32 0, %v5914
        %v5916 = vrot.slane %v2324, %v5915
        %v5917 = vlaneseq
        %v5918 = vshrl.u32 %v5917, 7
        %v5919 = vsub.s32 0, %v5918
        %v5920 = vrot.slane %v2325, %v5919
        %v5921 = vlaneseq
        %v5922 = vshrl.u32 %v5921, 7
        %v5923 = vsub.s32 0, %v5922
        %v5924 = vrot.slane %v2326, %v5923
        %v5933 = vunpack.c.l.b16 %v2332
        %v5934 = vunpack.c.l.b16 %v2333
        %v5935 = vunpack.c.l.b16 %v2334
        %v5936 = vunpack.c.l.b16 %v2335
        %v5937 = vpack.c.b16 %v5934, %v5933
        %v5938 = vpack.c.b16 %v5936, %v5935
        %v5942 = vsel %vm2646, %v5904, 0
        %5944 = vmatprep.subr.bf16.mxu0 0
        %5945 = vmatpush1.bf16.msra.mxu0 0
        %5946 = vmatprep.subr.bf16.mxu0 0
        %5947 = vmatpush1.bf16.msra.mxu0 0
        %5948 = vmatprep.subr.bf16.mxu0 0
        %5949 = vmatpush1.bf16.msra.mxu0 0
        %5950 = vmatprep.subr.bf16.mxu0 0
        %5951 = vmatpush1.bf16.msra.mxu0 0
        %5952 = vmatprep.subr.bf16.mxu0 0
        %5953 = vmatpush1.bf16.msra.mxu0 0
        %5954 = vmatprep.subr.bf16.mxu0 0
        %5955 = vmatpush1.bf16.msra.mxu0 0
        %5956 = vmatprep.subr.bf16.mxu0 0
        %5957 = vmatpush1.bf16.msra.mxu0 %v5938
        %5958 = vmatprep.subr.bf16.mxu0 0
        %5959 = vmatpush1.bf16.msra.mxu0 %v5937
        %5960 = vmatprep.subr.bf16.mxu0 0
        %5961 = vmatpush2.bf16.msra.mxu0 0
        %5962 = vmatprep.subr.bf16.mxu0 0
        %5963 = vmatpush2.bf16.msra.mxu0 0
        %5964 = vmatprep.subr.bf16.mxu0 0
        %5965 = vmatpush2.bf16.msra.mxu0 0
        %5966 = vmatprep.subr.bf16.mxu0 0
        %5967 = vmatpush2.bf16.msra.mxu0 0
        %5968 = vmatprep.subr.bf16.mxu0 0
        %5969 = vmatpush2.bf16.msra.mxu0 0
        %5970 = vmatprep.subr.bf16.mxu0 0
        %5971 = vmatpush2.bf16.msra.mxu0 0
        %5972 = vmatprep.subr.bf16.mxu0 0
        %5973 = vmatpush2.bf16.msra.mxu0 0
        %5974 = vmatprep.subr.bf16.mxu0 0
        %5975 = vmatpush2.bf16.msra.mxu0 0
        %5976 = vmatprep.mubr.bf16.mxu0 0
        %5977 = vmatmul.mubr.bf16.gmra.mxu0 %v5942
        %v5978 = vpop.f32.mrf.mxu0
        %v5979 = vadd.f32 %v5912, %v5978
        %v5980 = vpop.f32.mrf.mxu0
        %v5981 = vpop.f32.mrf.mxu0
        %v5982 = vpop.f32.mrf.mxu0
        %5983 = vdwg.mxu0
        %v5988 = vunpack.c.l.b16 %v2336
        %v5989 = vunpack.c.l.b16 %v2337
        %v5990 = vunpack.c.l.b16 %v2338
        %v5991 = vunpack.c.l.b16 %v2339
        %v5992 = vpack.c.b16 %v5989, %v5988
        %v5993 = vpack.c.b16 %v5991, %v5990
        %5996 = vmatprep.subr.bf16.mxu0 0
        %5997 = vmatpush1.bf16.msra.mxu0 0
        %5998 = vmatprep.subr.bf16.mxu0 0
        %5999 = vmatpush1.bf16.msra.mxu0 0
        %6000 = vmatprep.subr.bf16.mxu0 0
        %6001 = vmatpush1.bf16.msra.mxu0 0
        %6002 = vmatprep.subr.bf16.mxu0 0
        %6003 = vmatpush1.bf16.msra.mxu0 0
        %6004 = vmatprep.subr.bf16.mxu0 0
        %6005 = vmatpush1.bf16.msra.mxu0 0
        %6006 = vmatprep.subr.bf16.mxu0 0
        %6007 = vmatpush1.bf16.msra.mxu0 0
        %6008 = vmatprep.subr.bf16.mxu0 0
        %6009 = vmatpush1.bf16.msra.mxu0 %v5993
        %6010 = vmatprep.subr.bf16.mxu0 0
        %6011 = vmatpush1.bf16.msra.mxu0 %v5992
        %6012 = vmatprep.subr.bf16.mxu0 0
        %6013 = vmatpush2.bf16.msra.mxu0 0
        %6014 = vmatprep.subr.bf16.mxu0 0
        %6015 = vmatpush2.bf16.msra.mxu0 0
        %6016 = vmatprep.subr.bf16.mxu0 0
        %6017 = vmatpush2.bf16.msra.mxu0 0
        %6018 = vmatprep.subr.bf16.mxu0 0
        %6019 = vmatpush2.bf16.msra.mxu0 0
        %6020 = vmatprep.subr.bf16.mxu0 0
        %6021 = vmatpush2.bf16.msra.mxu0 0
        %6022 = vmatprep.subr.bf16.mxu0 0
        %6023 = vmatpush2.bf16.msra.mxu0 0
        %6024 = vmatprep.subr.bf16.mxu0 0
        %6025 = vmatpush2.bf16.msra.mxu0 0
        %6026 = vmatprep.subr.bf16.mxu0 0
        %6027 = vmatpush2.bf16.msra.mxu0 0
        %6028 = vmatprep.mubr.bf16.mxu0 0
        %6029 = vmatmul.mubr.bf16.gmra.mxu0 %v5942
        %v6030 = vpop.f32.mrf.mxu0
        %v6031 = vadd.f32 %v5916, %v6030
        %v6032 = vpop.f32.mrf.mxu0
        %v6033 = vpop.f32.mrf.mxu0
        %v6034 = vpop.f32.mrf.mxu0
        %6035 = vdwg.mxu0
        %v6040 = vunpack.c.l.b16 %v2340
        %v6041 = vunpack.c.l.b16 %v2341
        %v6042 = vunpack.c.l.b16 %v2342
        %v6043 = vunpack.c.l.b16 %v2343
        %v6044 = vpack.c.b16 %v6041, %v6040
        %v6045 = vpack.c.b16 %v6043, %v6042
        %6048 = vmatprep.subr.bf16.mxu0 0
        %6049 = vmatpush1.bf16.msra.mxu0 0
        %6050 = vmatprep.subr.bf16.mxu0 0
        %6051 = vmatpush1.bf16.msra.mxu0 0
        %6052 = vmatprep.subr.bf16.mxu0 0
        %6053 = vmatpush1.bf16.msra.mxu0 0
        %6054 = vmatprep.subr.bf16.mxu0 0
        %6055 = vmatpush1.bf16.msra.mxu0 0
        %6056 = vmatprep.subr.bf16.mxu0 0
        %6057 = vmatpush1.bf16.msra.mxu0 0
        %6058 = vmatprep.subr.bf16.mxu0 0
        %6059 = vmatpush1.bf16.msra.mxu0 0
        %6060 = vmatprep.subr.bf16.mxu0 0
        %6061 = vmatpush1.bf16.msra.mxu0 %v6045
        %6062 = vmatprep.subr.bf16.mxu0 0
        %6063 = vmatpush1.bf16.msra.mxu0 %v6044
        %6064 = vmatprep.subr.bf16.mxu0 0
        %6065 = vmatpush2.bf16.msra.mxu0 0
        %6066 = vmatprep.subr.bf16.mxu0 0
        %6067 = vmatpush2.bf16.msra.mxu0 0
        %6068 = vmatprep.subr.bf16.mxu0 0
        %6069 = vmatpush2.bf16.msra.mxu0 0
        %6070 = vmatprep.subr.bf16.mxu0 0
        %6071 = vmatpush2.bf16.msra.mxu0 0
        %6072 = vmatprep.subr.bf16.mxu0 0
        %6073 = vmatpush2.bf16.msra.mxu0 0
        %6074 = vmatprep.subr.bf16.mxu0 0
        %6075 = vmatpush2.bf16.msra.mxu0 0
        %6076 = vmatprep.subr.bf16.mxu0 0
        %6077 = vmatpush2.bf16.msra.mxu0 0
        %6078 = vmatprep.subr.bf16.mxu0 0
        %6079 = vmatpush2.bf16.msra.mxu0 0
        %6080 = vmatprep.mubr.bf16.mxu0 0
        %6081 = vmatmul.mubr.bf16.gmra.mxu0 %v5942
        %v6082 = vpop.f32.mrf.mxu0
        %v6083 = vadd.f32 %v5920, %v6082
        %v6084 = vpop.f32.mrf.mxu0
        %v6085 = vpop.f32.mrf.mxu0
        %v6086 = vpop.f32.mrf.mxu0
        %6087 = vdwg.mxu0
        %v6092 = vunpack.c.l.b16 %v2344
        %v6093 = vunpack.c.l.b16 %v2345
        %v6094 = vunpack.c.l.b16 %v2346
        %v6095 = vunpack.c.l.b16 %v2347
        %v6096 = vpack.c.b16 %v6093, %v6092
        %v6097 = vpack.c.b16 %v6095, %v6094
        %6100 = vmatprep.subr.bf16.mxu0 0
        %6101 = vmatpush1.bf16.msra.mxu0 0
        %6102 = vmatprep.subr.bf16.mxu0 0
        %6103 = vmatpush1.bf16.msra.mxu0 0
        %6104 = vmatprep.subr.bf16.mxu0 0
        %6105 = vmatpush1.bf16.msra.mxu0 0
        %6106 = vmatprep.subr.bf16.mxu0 0
        %6107 = vmatpush1.bf16.msra.mxu0 0
        %6108 = vmatprep.subr.bf16.mxu0 0
        %6109 = vmatpush1.bf16.msra.mxu0 0
        %6110 = vmatprep.subr.bf16.mxu0 0
        %6111 = vmatpush1.bf16.msra.mxu0 0
        %6112 = vmatprep.subr.bf16.mxu0 0
        %6113 = vmatpush1.bf16.msra.mxu0 %v6097
        %6114 = vmatprep.subr.bf16.mxu0 0
        %6115 = vmatpush1.bf16.msra.mxu0 %v6096
        %6116 = vmatprep.subr.bf16.mxu0 0
        %6117 = vmatpush2.bf16.msra.mxu0 0
        %6118 = vmatprep.subr.bf16.mxu0 0
        %6119 = vmatpush2.bf16.msra.mxu0 0
        %6120 = vmatprep.subr.bf16.mxu0 0
        %6121 = vmatpush2.bf16.msra.mxu0 0
        %6122 = vmatprep.subr.bf16.mxu0 0
        %6123 = vmatpush2.bf16.msra.mxu0 0
        %6124 = vmatprep.subr.bf16.mxu0 0
        %6125 = vmatpush2.bf16.msra.mxu0 0
        %6126 = vmatprep.subr.bf16.mxu0 0
        %6127 = vmatpush2.bf16.msra.mxu0 0
        %6128 = vmatprep.subr.bf16.mxu0 0
        %6129 = vmatpush2.bf16.msra.mxu0 0
        %6130 = vmatprep.subr.bf16.mxu0 0
        %6131 = vmatpush2.bf16.msra.mxu0 0
        %6132 = vmatprep.mubr.bf16.mxu0 0
        %6133 = vmatmul.mubr.bf16.gmra.mxu0 %v5942
        %v6134 = vpop.f32.mrf.mxu0
        %v6135 = vadd.f32 %v5924, %v6134
        %v6136 = vpop.f32.mrf.mxu0
        %v6137 = vpop.f32.mrf.mxu0
        %v6138 = vpop.f32.mrf.mxu0
        %6139 = vdwg.mxu0
        %v6140 = vpack.c.bf16 %v5743, %v5743
        %v6141 = vpack.c.bf16 %v5795, %v5795
        %v6142 = vpack.c.bf16 %v5847, %v5847
        %v6143 = vpack.c.bf16 %v5899, %v5899
        %v6144 = vpack.c.bf16 %v5979, %v5979
        %v6145 = vpack.c.bf16 %v6031, %v6031
        %v6146 = vpack.c.bf16 %v6083, %v6083
        %v6147 = vpack.c.bf16 %v6135, %v6135
        %v6149 = vsel %vm2859, %v6140, 0
        %v6152 = vsel %vm2859, %v6144, 0
        %6154 = vmatprep.subr.bf16.mxu0 0
        %6155 = vmatpush1.bf16.xpose.msra.mxu0 0
        %6156 = vmatprep.subr.bf16.mxu0 0
        %6157 = vmatpush1.bf16.xpose.msra.mxu0 0
        %6158 = vmatprep.subr.bf16.mxu0 0
        %6159 = vmatpush1.bf16.xpose.msra.mxu0 0
        %6160 = vmatprep.subr.bf16.mxu0 0
        %6161 = vmatpush1.bf16.xpose.msra.mxu0 0
        %6162 = vmatprep.subr.bf16.mxu0 0
        %6163 = vmatpush1.bf16.xpose.msra.mxu0 0
        %6164 = vmatprep.subr.bf16.mxu0 0
        %6165 = vmatpush1.bf16.xpose.msra.mxu0 0
        %6166 = vmatprep.subr.bf16.mxu0 0
        %6167 = vmatpush1.bf16.xpose.msra.mxu0 0
        %6168 = vmatprep.subr.bf16.mxu0 0
        %6169 = vmatpush1.bf16.xpose.msra.mxu0 %v6152
        %6170 = vmatprep.subr.bf16.mxu0 0
        %6171 = vmatpush2.bf16.xpose.msra.mxu0 0
        %6172 = vmatprep.subr.bf16.mxu0 0
        %6173 = vmatpush2.bf16.xpose.msra.mxu0 0
        %6174 = vmatprep.subr.bf16.mxu0 0
        %6175 = vmatpush2.bf16.xpose.msra.mxu0 0
        %6176 = vmatprep.subr.bf16.mxu0 0
        %6177 = vmatpush2.bf16.xpose.msra.mxu0 0
        %6178 = vmatprep.subr.bf16.mxu0 0
        %6179 = vmatpush2.bf16.xpose.msra.mxu0 0
        %6180 = vmatprep.subr.bf16.mxu0 0
        %6181 = vmatpush2.bf16.xpose.msra.mxu0 0
        %6182 = vmatprep.subr.bf16.mxu0 0
        %6183 = vmatpush2.bf16.xpose.msra.mxu0 0
        %6184 = vmatprep.subr.bf16.mxu0 0
        %6185 = vmatpush2.bf16.xpose.msra.mxu0 0
        %6186 = vmatprep.mubr.bf16.mxu0 0
        %6187 = vmatmul.mubr.bf16.gmra.mxu0 %v6149
        %v6188 = vpop.f32.mrf.mxu0
        %v6189 = vadd.f32 %v2854, %v6188
        %v6190 = vpop.f32.mrf.mxu0
        %v6191 = vpop.f32.mrf.mxu0
        %v6192 = vpop.f32.mrf.mxu0
        %6193 = vdwg.mxu0
        %v6195 = vsel %vm2859, %v6141, 0
        %v6198 = vsel %vm2859, %v6145, 0
        %6200 = vmatprep.subr.bf16.mxu0 0
        %6201 = vmatpush1.bf16.xpose.msra.mxu0 0
        %6202 = vmatprep.subr.bf16.mxu0 0
        %6203 = vmatpush1.bf16.xpose.msra.mxu0 0
        %6204 = vmatprep.subr.bf16.mxu0 0
        %6205 = vmatpush1.bf16.xpose.msra.mxu0 0
        %6206 = vmatprep.subr.bf16.mxu0 0
        %6207 = vmatpush1.bf16.xpose.msra.mxu0 0
        %6208 = vmatprep.subr.bf16.mxu0 0
        %6209 = vmatpush1.bf16.xpose.msra.mxu0 0
        %6210 = vmatprep.subr.bf16.mxu0 0
        %6211 = vmatpush1.bf16.xpose.msra.mxu0 0
        %6212 = vmatprep.subr.bf16.mxu0 0
        %6213 = vmatpush1.bf16.xpose.msra.mxu0 0
        %6214 = vmatprep.subr.bf16.mxu0 0
        %6215 = vmatpush1.bf16.xpose.msra.mxu0 %v6198
        %6216 = vmatprep.subr.bf16.mxu0 0
        %6217 = vmatpush2.bf16.xpose.msra.mxu0 0
        %6218 = vmatprep.subr.bf16.mxu0 0
        %6219 = vmatpush2.bf16.xpose.msra.mxu0 0
        %6220 = vmatprep.subr.bf16.mxu0 0
        %6221 = vmatpush2.bf16.xpose.msra.mxu0 0
        %6222 = vmatprep.subr.bf16.mxu0 0
        %6223 = vmatpush2.bf16.xpose.msra.mxu0 0
        %6224 = vmatprep.subr.bf16.mxu0 0
        %6225 = vmatpush2.bf16.xpose.msra.mxu0 0
        %6226 = vmatprep.subr.bf16.mxu0 0
        %6227 = vmatpush2.bf16.xpose.msra.mxu0 0
        %6228 = vmatprep.subr.bf16.mxu0 0
        %6229 = vmatpush2.bf16.xpose.msra.mxu0 0
        %6230 = vmatprep.subr.bf16.mxu0 0
        %6231 = vmatpush2.bf16.xpose.msra.mxu0 0
        %6232 = vmatprep.mubr.bf16.mxu0 0
        %6233 = vmatmul.mubr.bf16.gmra.mxu0 %v6195
        %v6234 = vpop.f32.mrf.mxu0
        %v6235 = vadd.f32 %v2854, %v6234
        %v6236 = vpop.f32.mrf.mxu0
        %v6237 = vpop.f32.mrf.mxu0
        %v6238 = vpop.f32.mrf.mxu0
        %6239 = vdwg.mxu0
        %v6241 = vsel %vm2859, %v6142, 0
        %v6244 = vsel %vm2859, %v6146, 0
        %6246 = vmatprep.subr.bf16.mxu0 0
        %6247 = vmatpush1.bf16.xpose.msra.mxu0 0
        %6248 = vmatprep.subr.bf16.mxu0 0
        %6249 = vmatpush1.bf16.xpose.msra.mxu0 0
        %6250 = vmatprep.subr.bf16.mxu0 0
        %6251 = vmatpush1.bf16.xpose.msra.mxu0 0
        %6252 = vmatprep.subr.bf16.mxu0 0
        %6253 = vmatpush1.bf16.xpose.msra.mxu0 0
        %6254 = vmatprep.subr.bf16.mxu0 0
        %6255 = vmatpush1.bf16.xpose.msra.mxu0 0
        %6256 = vmatprep.subr.bf16.mxu0 0
        %6257 = vmatpush1.bf16.xpose.msra.mxu0 0
        %6258 = vmatprep.subr.bf16.mxu0 0
        %6259 = vmatpush1.bf16.xpose.msra.mxu0 0
        %6260 = vmatprep.subr.bf16.mxu0 0
        %6261 = vmatpush1.bf16.xpose.msra.mxu0 %v6244
        %6262 = vmatprep.subr.bf16.mxu0 0
        %6263 = vmatpush2.bf16.xpose.msra.mxu0 0
        %6264 = vmatprep.subr.bf16.mxu0 0
        %6265 = vmatpush2.bf16.xpose.msra.mxu0 0
        %6266 = vmatprep.subr.bf16.mxu0 0
        %6267 = vmatpush2.bf16.xpose.msra.mxu0 0
        %6268 = vmatprep.subr.bf16.mxu0 0
        %6269 = vmatpush2.bf16.xpose.msra.mxu0 0
        %6270 = vmatprep.subr.bf16.mxu0 0
        %6271 = vmatpush2.bf16.xpose.msra.mxu0 0
        %6272 = vmatprep.subr.bf16.mxu0 0
        %6273 = vmatpush2.bf16.xpose.msra.mxu0 0
        %6274 = vmatprep.subr.bf16.mxu0 0
        %6275 = vmatpush2.bf16.xpose.msra.mxu0 0
        %6276 = vmatprep.subr.bf16.mxu0 0
        %6277 = vmatpush2.bf16.xpose.msra.mxu0 0
        %6278 = vmatprep.mubr.bf16.mxu0 0
        %6279 = vmatmul.mubr.bf16.gmra.mxu0 %v6241
        %v6280 = vpop.f32.mrf.mxu0
        %v6281 = vadd.f32 %v2854, %v6280
        %v6282 = vpop.f32.mrf.mxu0
        %v6283 = vpop.f32.mrf.mxu0
        %v6284 = vpop.f32.mrf.mxu0
        %6285 = vdwg.mxu0
        %v6287 = vsel %vm2859, %v6143, 0
        %v6290 = vsel %vm2859, %v6147, 0
        %6292 = vmatprep.subr.bf16.mxu0 0
        %6293 = vmatpush1.bf16.xpose.msra.mxu0 0
        %6294 = vmatprep.subr.bf16.mxu0 0
        %6295 = vmatpush1.bf16.xpose.msra.mxu0 0
        %6296 = vmatprep.subr.bf16.mxu0 0
        %6297 = vmatpush1.bf16.xpose.msra.mxu0 0
        %6298 = vmatprep.subr.bf16.mxu0 0
        %6299 = vmatpush1.bf16.xpose.msra.mxu0 0
        %6300 = vmatprep.subr.bf16.mxu0 0
        %6301 = vmatpush1.bf16.xpose.msra.mxu0 0
        %6302 = vmatprep.subr.bf16.mxu0 0
        %6303 = vmatpush1.bf16.xpose.msra.mxu0 0
        %6304 = vmatprep.subr.bf16.mxu0 0
        %6305 = vmatpush1.bf16.xpose.msra.mxu0 0
        %6306 = vmatprep.subr.bf16.mxu0 0
        %6307 = vmatpush1.bf16.xpose.msra.mxu0 %v6290
        %6308 = vmatprep.subr.bf16.mxu0 0
        %6309 = vmatpush2.bf16.xpose.msra.mxu0 0
        %6310 = vmatprep.subr.bf16.mxu0 0
        %6311 = vmatpush2.bf16.xpose.msra.mxu0 0
        %6312 = vmatprep.subr.bf16.mxu0 0
        %6313 = vmatpush2.bf16.xpose.msra.mxu0 0
        %6314 = vmatprep.subr.bf16.mxu0 0
        %6315 = vmatpush2.bf16.xpose.msra.mxu0 0
        %6316 = vmatprep.subr.bf16.mxu0 0
        %6317 = vmatpush2.bf16.xpose.msra.mxu0 0
        %6318 = vmatprep.subr.bf16.mxu0 0
        %6319 = vmatpush2.bf16.xpose.msra.mxu0 0
        %6320 = vmatprep.subr.bf16.mxu0 0
        %6321 = vmatpush2.bf16.xpose.msra.mxu0 0
        %6322 = vmatprep.subr.bf16.mxu0 0
        %6323 = vmatpush2.bf16.xpose.msra.mxu0 0
        %6324 = vmatprep.mubr.bf16.mxu0 0
        %6325 = vmatmul.mubr.bf16.gmra.mxu0 %v6287
        %v6326 = vpop.f32.mrf.mxu0
        %v6327 = vadd.f32 %v2854, %v6326
        %v6328 = vpop.f32.mrf.mxu0
        %v6329 = vpop.f32.mrf.mxu0
        %v6330 = vpop.f32.mrf.mxu0
        %6331 = vdwg.mxu0
        %v6332 = vsel %vm2859, %v6189, -inf
        %6333 = vmax.xlane.f32.xlu0 %v6332
        %v6334 = vpop.xlane.xlu0 %6333
        %v6335 = vsel %vm2859, %v6235, -inf
        %6336 = vmax.xlane.f32.xlu0 %v6335
        %v6337 = vpop.xlane.xlu0 %6336
        %v6338 = vsel %vm2859, %v6281, -inf
        %6339 = vmax.xlane.f32.xlu0 %v6338
        %v6340 = vpop.xlane.xlu0 %6339
        %v6341 = vsel %vm2859, %v6327, -inf
        %6342 = vmax.xlane.f32.xlu0 %v6341
        %v6343 = vpop.xlane.xlu0 %6342
        %v6344 = vsub.f32 %v6189, %v6334
        %v6345 = vsub.f32 %v6235, %v6337
        %v6346 = vsub.f32 %v6281, %v6340
        %v6347 = vsub.f32 %v6327, %v6343
        %v6348 = vmul.f32 %v6344, 1.442695
        %v6349 = vpow.pop %v6348
        %v6350 = vmul.f32 %v6345, 1.442695
        %v6351 = vpow.pop %v6350
        %v6352 = vmul.f32 %v6346, 1.442695
        %v6353 = vpow.pop %v6352
        %v6354 = vmul.f32 %v6347, 1.442695
        %v6355 = vpow.pop %v6354
        %v6356 = vsel %vm2859, %v6349, 0.0
        %6357 = vadd.xlane.f32.xlu0 %v6356
        %v6358 = vpop.xlane.xlu0 %6357
        %v6359 = vsel %vm2859, %v6351, 0.0
        %6360 = vadd.xlane.f32.xlu0 %v6359
        %v6361 = vpop.xlane.xlu0 %6360
        %v6362 = vsel %vm2859, %v6353, 0.0
        %6363 = vadd.xlane.f32.xlu0 %v6362
        %v6364 = vpop.xlane.xlu0 %6363
        %v6365 = vsel %vm2859, %v6355, 0.0
        %6366 = vadd.xlane.f32.xlu0 %v6365
        %v6367 = vpop.xlane.xlu0 %6366
        %v6368 = vrcp.pop %v6358
        %v6369 = vrcp.pop %v6361
        %v6370 = vrcp.pop %v6364
        %v6371 = vrcp.pop %v6367
        %v6372 = vmul.f32 %v6349, %v6368
        %v6373 = vmul.f32 %v6351, %v6369
        %v6374 = vmul.f32 %v6353, %v6370
        %v6375 = vmul.f32 %v6355, %v6371
        %v6376 = vpack.c.bf16 %v6372, %v6372
        %v6377 = vpack.c.bf16 %v6373, %v6373
        %v6378 = vpack.c.bf16 %v6374, %v6374
        %v6379 = vpack.c.bf16 %v6375, %v6375
        %6381 = vrot.lane.b32.xlu0 %v6144, 120
        %v6382 = vpop.permute.xlu0 %6381
        %v6384 = vsel %vm2859, %v6376, 0
        %v6387 = vsel %vm3106, %v6382, 0
        %6389 = vmatprep.subr.bf16.mxu0 0
        %6390 = vmatpush1.bf16.msra.mxu0 0
        %6391 = vmatprep.subr.bf16.mxu0 0
        %6392 = vmatpush1.bf16.msra.mxu0 0
        %6393 = vmatprep.subr.bf16.mxu0 0
        %6394 = vmatpush1.bf16.msra.mxu0 0
        %6395 = vmatprep.subr.bf16.mxu0 0
        %6396 = vmatpush1.bf16.msra.mxu0 0
        %6397 = vmatprep.subr.bf16.mxu0 0
        %6398 = vmatpush1.bf16.msra.mxu0 0
        %6399 = vmatprep.subr.bf16.mxu0 0
        %6400 = vmatpush1.bf16.msra.mxu0 0
        %6401 = vmatprep.subr.bf16.mxu0 0
        %6402 = vmatpush1.bf16.msra.mxu0 0
        %6403 = vmatprep.subr.bf16.mxu0 0
        %6404 = vmatpush1.bf16.msra.mxu0 %v6387
        %6405 = vmatprep.subr.bf16.mxu0 0
        %6406 = vmatpush2.bf16.msra.mxu0 0
        %6407 = vmatprep.subr.bf16.mxu0 0
        %6408 = vmatpush2.bf16.msra.mxu0 0
        %6409 = vmatprep.subr.bf16.mxu0 0
        %6410 = vmatpush2.bf16.msra.mxu0 0
        %6411 = vmatprep.subr.bf16.mxu0 0
        %6412 = vmatpush2.bf16.msra.mxu0 0
        %6413 = vmatprep.subr.bf16.mxu0 0
        %6414 = vmatpush2.bf16.msra.mxu0 0
        %6415 = vmatprep.subr.bf16.mxu0 0
        %6416 = vmatpush2.bf16.msra.mxu0 0
        %6417 = vmatprep.subr.bf16.mxu0 0
        %6418 = vmatpush2.bf16.msra.mxu0 0
        %6419 = vmatprep.subr.bf16.mxu0 0
        %6420 = vmatpush2.bf16.msra.mxu0 0
        %6421 = vmatprep.mubr.bf16.mxu0 0
        %6422 = vmatmul.mubr.bf16.gmra.mxu0 %v6384
        %v6423 = vpop.f32.mrf.mxu0
        %v6424 = vadd.f32 0.0, %v6423
        %v6425 = vpop.f32.mrf.mxu0
        %v6426 = vpop.f32.mrf.mxu0
        %v6427 = vpop.f32.mrf.mxu0
        %6428 = vdwg.mxu0
        %6430 = vrot.lane.b32.xlu0 %v6145, 120
        %v6431 = vpop.permute.xlu0 %6430
        %v6433 = vsel %vm2859, %v6377, 0
        %v6436 = vsel %vm3106, %v6431, 0
        %6438 = vmatprep.subr.bf16.mxu0 0
        %6439 = vmatpush1.bf16.msra.mxu0 0
        %6440 = vmatprep.subr.bf16.mxu0 0
        %6441 = vmatpush1.bf16.msra.mxu0 0
        %6442 = vmatprep.subr.bf16.mxu0 0
        %6443 = vmatpush1.bf16.msra.mxu0 0
        %6444 = vmatprep.subr.bf16.mxu0 0
        %6445 = vmatpush1.bf16.msra.mxu0 0
        %6446 = vmatprep.subr.bf16.mxu0 0
        %6447 = vmatpush1.bf16.msra.mxu0 0
        %6448 = vmatprep.subr.bf16.mxu0 0
        %6449 = vmatpush1.bf16.msra.mxu0 0
        %6450 = vmatprep.subr.bf16.mxu0 0
        %6451 = vmatpush1.bf16.msra.mxu0 0
        %6452 = vmatprep.subr.bf16.mxu0 0
        %6453 = vmatpush1.bf16.msra.mxu0 %v6436
        %6454 = vmatprep.subr.bf16.mxu0 0
        %6455 = vmatpush2.bf16.msra.mxu0 0
        %6456 = vmatprep.subr.bf16.mxu0 0
        %6457 = vmatpush2.bf16.msra.mxu0 0
        %6458 = vmatprep.subr.bf16.mxu0 0
        %6459 = vmatpush2.bf16.msra.mxu0 0
        %6460 = vmatprep.subr.bf16.mxu0 0
        %6461 = vmatpush2.bf16.msra.mxu0 0
        %6462 = vmatprep.subr.bf16.mxu0 0
        %6463 = vmatpush2.bf16.msra.mxu0 0
        %6464 = vmatprep.subr.bf16.mxu0 0
        %6465 = vmatpush2.bf16.msra.mxu0 0
        %6466 = vmatprep.subr.bf16.mxu0 0
        %6467 = vmatpush2.bf16.msra.mxu0 0
        %6468 = vmatprep.subr.bf16.mxu0 0
        %6469 = vmatpush2.bf16.msra.mxu0 0
        %6470 = vmatprep.mubr.bf16.mxu0 0
        %6471 = vmatmul.mubr.bf16.gmra.mxu0 %v6433
        %v6472 = vpop.f32.mrf.mxu0
        %v6473 = vadd.f32 0.0, %v6472
        %v6474 = vpop.f32.mrf.mxu0
        %v6475 = vpop.f32.mrf.mxu0
        %v6476 = vpop.f32.mrf.mxu0
        %6477 = vdwg.mxu0
        %6479 = vrot.lane.b32.xlu0 %v6146, 120
        %v6480 = vpop.permute.xlu0 %6479
        %v6482 = vsel %vm2859, %v6378, 0
        %v6485 = vsel %vm3106, %v6480, 0
        %6487 = vmatprep.subr.bf16.mxu0 0
        %6488 = vmatpush1.bf16.msra.mxu0 0
        %6489 = vmatprep.subr.bf16.mxu0 0
        %6490 = vmatpush1.bf16.msra.mxu0 0
        %6491 = vmatprep.subr.bf16.mxu0 0
        %6492 = vmatpush1.bf16.msra.mxu0 0
        %6493 = vmatprep.subr.bf16.mxu0 0
        %6494 = vmatpush1.bf16.msra.mxu0 0
        %6495 = vmatprep.subr.bf16.mxu0 0
        %6496 = vmatpush1.bf16.msra.mxu0 0
        %6497 = vmatprep.subr.bf16.mxu0 0
        %6498 = vmatpush1.bf16.msra.mxu0 0
        %6499 = vmatprep.subr.bf16.mxu0 0
        %6500 = vmatpush1.bf16.msra.mxu0 0
        %6501 = vmatprep.subr.bf16.mxu0 0
        %6502 = vmatpush1.bf16.msra.mxu0 %v6485
        %6503 = vmatprep.subr.bf16.mxu0 0
        %6504 = vmatpush2.bf16.msra.mxu0 0
        %6505 = vmatprep.subr.bf16.mxu0 0
        %6506 = vmatpush2.bf16.msra.mxu0 0
        %6507 = vmatprep.subr.bf16.mxu0 0
        %6508 = vmatpush2.bf16.msra.mxu0 0
        %6509 = vmatprep.subr.bf16.mxu0 0
        %6510 = vmatpush2.bf16.msra.mxu0 0
        %6511 = vmatprep.subr.bf16.mxu0 0
        %6512 = vmatpush2.bf16.msra.mxu0 0
        %6513 = vmatprep.subr.bf16.mxu0 0
        %6514 = vmatpush2.bf16.msra.mxu0 0
        %6515 = vmatprep.subr.bf16.mxu0 0
        %6516 = vmatpush2.bf16.msra.mxu0 0
        %6517 = vmatprep.subr.bf16.mxu0 0
        %6518 = vmatpush2.bf16.msra.mxu0 0
        %6519 = vmatprep.mubr.bf16.mxu0 0
        %6520 = vmatmul.mubr.bf16.gmra.mxu0 %v6482
        %v6521 = vpop.f32.mrf.mxu0
        %v6522 = vadd.f32 0.0, %v6521
        %v6523 = vpop.f32.mrf.mxu0
        %v6524 = vpop.f32.mrf.mxu0
        %v6525 = vpop.f32.mrf.mxu0
        %6526 = vdwg.mxu0
        %6528 = vrot.lane.b32.xlu0 %v6147, 120
        %v6529 = vpop.permute.xlu0 %6528
        %v6531 = vsel %vm2859, %v6379, 0
        %v6534 = vsel %vm3106, %v6529, 0
        %6536 = vmatprep.subr.bf16.mxu0 0
        %6537 = vmatpush1.bf16.msra.mxu0 0
        %6538 = vmatprep.subr.bf16.mxu0 0
        %6539 = vmatpush1.bf16.msra.mxu0 0
        %6540 = vmatprep.subr.bf16.mxu0 0
        %6541 = vmatpush1.bf16.msra.mxu0 0
        %6542 = vmatprep.subr.bf16.mxu0 0
        %6543 = vmatpush1.bf16.msra.mxu0 0
        %6544 = vmatprep.subr.bf16.mxu0 0
        %6545 = vmatpush1.bf16.msra.mxu0 0
        %6546 = vmatprep.subr.bf16.mxu0 0
        %6547 = vmatpush1.bf16.msra.mxu0 0
        %6548 = vmatprep.subr.bf16.mxu0 0
        %6549 = vmatpush1.bf16.msra.mxu0 0
        %6550 = vmatprep.subr.bf16.mxu0 0
        %6551 = vmatpush1.bf16.msra.mxu0 %v6534
        %6552 = vmatprep.subr.bf16.mxu0 0
        %6553 = vmatpush2.bf16.msra.mxu0 0
        %6554 = vmatprep.subr.bf16.mxu0 0
        %6555 = vmatpush2.bf16.msra.mxu0 0
        %6556 = vmatprep.subr.bf16.mxu0 0
        %6557 = vmatpush2.bf16.msra.mxu0 0
        %6558 = vmatprep.subr.bf16.mxu0 0
        %6559 = vmatpush2.bf16.msra.mxu0 0
        %6560 = vmatprep.subr.bf16.mxu0 0
        %6561 = vmatpush2.bf16.msra.mxu0 0
        %6562 = vmatprep.subr.bf16.mxu0 0
        %6563 = vmatpush2.bf16.msra.mxu0 0
        %6564 = vmatprep.subr.bf16.mxu0 0
        %6565 = vmatpush2.bf16.msra.mxu0 0
        %6566 = vmatprep.subr.bf16.mxu0 0
        %6567 = vmatpush2.bf16.msra.mxu0 0
        %6568 = vmatprep.mubr.bf16.mxu0 0
        %6569 = vmatmul.mubr.bf16.gmra.mxu0 %v6531
        %v6570 = vpop.f32.mrf.mxu0
        %v6571 = vadd.f32 0.0, %v6570
        %v6572 = vpop.f32.mrf.mxu0
        %v6573 = vpop.f32.mrf.mxu0
        %v6574 = vpop.f32.mrf.mxu0
        %6575 = vdwg.mxu0
        %v6576 = vpack.c.bf16 %v6424, %v6424
        %v6577 = vpack.c.bf16 %v6473, %v6473
        %v6578 = vpack.c.bf16 %v6522, %v6522
        %v6579 = vpack.c.bf16 %v6571, %v6571
        %v6581 = vsel %vm2859, %v6576, 0
        %v6584 = vsel %vm3106, %v2348, 0
        %6586 = vmatprep.subr.bf16.mxu0 0
        %6587 = vmatpush1.bf16.msra.mxu0 0
        %6588 = vmatprep.subr.bf16.mxu0 0
        %6589 = vmatpush1.bf16.msra.mxu0 0
        %6590 = vmatprep.subr.bf16.mxu0 0
        %6591 = vmatpush1.bf16.msra.mxu0 0
        %6592 = vmatprep.subr.bf16.mxu0 0
        %6593 = vmatpush1.bf16.msra.mxu0 0
        %6594 = vmatprep.subr.bf16.mxu0 0
        %6595 = vmatpush1.bf16.msra.mxu0 0
        %6596 = vmatprep.subr.bf16.mxu0 0
        %6597 = vmatpush1.bf16.msra.mxu0 0
        %6598 = vmatprep.subr.bf16.mxu0 0
        %6599 = vmatpush1.bf16.msra.mxu0 0
        %6600 = vmatprep.subr.bf16.mxu0 0
        %6601 = vmatpush1.bf16.msra.mxu0 %v6584
        %6602 = vmatprep.subr.bf16.mxu0 0
        %6603 = vmatpush2.bf16.msra.mxu0 0
        %6604 = vmatprep.subr.bf16.mxu0 0
        %6605 = vmatpush2.bf16.msra.mxu0 0
        %6606 = vmatprep.subr.bf16.mxu0 0
        %6607 = vmatpush2.bf16.msra.mxu0 0
        %6608 = vmatprep.subr.bf16.mxu0 0
        %6609 = vmatpush2.bf16.msra.mxu0 0
        %6610 = vmatprep.subr.bf16.mxu0 0
        %6611 = vmatpush2.bf16.msra.mxu0 0
        %6612 = vmatprep.subr.bf16.mxu0 0
        %6613 = vmatpush2.bf16.msra.mxu0 0
        %6614 = vmatprep.subr.bf16.mxu0 0
        %6615 = vmatpush2.bf16.msra.mxu0 0
        %6616 = vmatprep.subr.bf16.mxu0 0
        %6617 = vmatpush2.bf16.msra.mxu0 0
        %6618 = vmatprep.mubr.bf16.mxu0 0
        %6619 = vmatmul.mubr.bf16.gmra.mxu0 %v6581
        %v6620 = vpop.f32.mrf.mxu0
        %v6621 = vadd.f32 0.0, %v6620
        %v6622 = vpop.f32.mrf.mxu0
        %v6623 = vpop.f32.mrf.mxu0
        %v6624 = vpop.f32.mrf.mxu0
        %6625 = vdwg.mxu0
        %v6627 = vsel %vm2859, %v6577, 0
        %v6630 = vsel %vm3106, %v2349, 0
        %6632 = vmatprep.subr.bf16.mxu0 0
        %6633 = vmatpush1.bf16.msra.mxu0 0
        %6634 = vmatprep.subr.bf16.mxu0 0
        %6635 = vmatpush1.bf16.msra.mxu0 0
        %6636 = vmatprep.subr.bf16.mxu0 0
        %6637 = vmatpush1.bf16.msra.mxu0 0
        %6638 = vmatprep.subr.bf16.mxu0 0
        %6639 = vmatpush1.bf16.msra.mxu0 0
        %6640 = vmatprep.subr.bf16.mxu0 0
        %6641 = vmatpush1.bf16.msra.mxu0 0
        %6642 = vmatprep.subr.bf16.mxu0 0
        %6643 = vmatpush1.bf16.msra.mxu0 0
        %6644 = vmatprep.subr.bf16.mxu0 0
        %6645 = vmatpush1.bf16.msra.mxu0 0
        %6646 = vmatprep.subr.bf16.mxu0 0
        %6647 = vmatpush1.bf16.msra.mxu0 %v6630
        %6648 = vmatprep.subr.bf16.mxu0 0
        %6649 = vmatpush2.bf16.msra.mxu0 0
        %6650 = vmatprep.subr.bf16.mxu0 0
        %6651 = vmatpush2.bf16.msra.mxu0 0
        %6652 = vmatprep.subr.bf16.mxu0 0
        %6653 = vmatpush2.bf16.msra.mxu0 0
        %6654 = vmatprep.subr.bf16.mxu0 0
        %6655 = vmatpush2.bf16.msra.mxu0 0
        %6656 = vmatprep.subr.bf16.mxu0 0
        %6657 = vmatpush2.bf16.msra.mxu0 0
        %6658 = vmatprep.subr.bf16.mxu0 0
        %6659 = vmatpush2.bf16.msra.mxu0 0
        %6660 = vmatprep.subr.bf16.mxu0 0
        %6661 = vmatpush2.bf16.msra.mxu0 0
        %6662 = vmatprep.subr.bf16.mxu0 0
        %6663 = vmatpush2.bf16.msra.mxu0 0
        %6664 = vmatprep.mubr.bf16.mxu0 0
        %6665 = vmatmul.mubr.bf16.gmra.mxu0 %v6627
        %v6666 = vpop.f32.mrf.mxu0
        %v6667 = vadd.f32 0.0, %v6666
        %v6668 = vpop.f32.mrf.mxu0
        %v6669 = vpop.f32.mrf.mxu0
        %v6670 = vpop.f32.mrf.mxu0
        %6671 = vdwg.mxu0
        %v6673 = vsel %vm2859, %v6578, 0
        %v6676 = vsel %vm3106, %v2350, 0
        %6678 = vmatprep.subr.bf16.mxu0 0
        %6679 = vmatpush1.bf16.msra.mxu0 0
        %6680 = vmatprep.subr.bf16.mxu0 0
        %6681 = vmatpush1.bf16.msra.mxu0 0
        %6682 = vmatprep.subr.bf16.mxu0 0
        %6683 = vmatpush1.bf16.msra.mxu0 0
        %6684 = vmatprep.subr.bf16.mxu0 0
        %6685 = vmatpush1.bf16.msra.mxu0 0
        %6686 = vmatprep.subr.bf16.mxu0 0
        %6687 = vmatpush1.bf16.msra.mxu0 0
        %6688 = vmatprep.subr.bf16.mxu0 0
        %6689 = vmatpush1.bf16.msra.mxu0 0
        %6690 = vmatprep.subr.bf16.mxu0 0
        %6691 = vmatpush1.bf16.msra.mxu0 0
        %6692 = vmatprep.subr.bf16.mxu0 0
        %6693 = vmatpush1.bf16.msra.mxu0 %v6676
        %6694 = vmatprep.subr.bf16.mxu0 0
        %6695 = vmatpush2.bf16.msra.mxu0 0
        %6696 = vmatprep.subr.bf16.mxu0 0
        %6697 = vmatpush2.bf16.msra.mxu0 0
        %6698 = vmatprep.subr.bf16.mxu0 0
        %6699 = vmatpush2.bf16.msra.mxu0 0
        %6700 = vmatprep.subr.bf16.mxu0 0
        %6701 = vmatpush2.bf16.msra.mxu0 0
        %6702 = vmatprep.subr.bf16.mxu0 0
        %6703 = vmatpush2.bf16.msra.mxu0 0
        %6704 = vmatprep.subr.bf16.mxu0 0
        %6705 = vmatpush2.bf16.msra.mxu0 0
        %6706 = vmatprep.subr.bf16.mxu0 0
        %6707 = vmatpush2.bf16.msra.mxu0 0
        %6708 = vmatprep.subr.bf16.mxu0 0
        %6709 = vmatpush2.bf16.msra.mxu0 0
        %6710 = vmatprep.mubr.bf16.mxu0 0
        %6711 = vmatmul.mubr.bf16.gmra.mxu0 %v6673
        %v6712 = vpop.f32.mrf.mxu0
        %v6713 = vadd.f32 0.0, %v6712
        %v6714 = vpop.f32.mrf.mxu0
        %v6715 = vpop.f32.mrf.mxu0
        %v6716 = vpop.f32.mrf.mxu0
        %6717 = vdwg.mxu0
        %v6719 = vsel %vm2859, %v6579, 0
        %v6722 = vsel %vm3106, %v2351, 0
        %6724 = vmatprep.subr.bf16.mxu0 0
        %6725 = vmatpush1.bf16.msra.mxu0 0
        %6726 = vmatprep.subr.bf16.mxu0 0
        %6727 = vmatpush1.bf16.msra.mxu0 0
        %6728 = vmatprep.subr.bf16.mxu0 0
        %6729 = vmatpush1.bf16.msra.mxu0 0
        %6730 = vmatprep.subr.bf16.mxu0 0
        %6731 = vmatpush1.bf16.msra.mxu0 0
        %6732 = vmatprep.subr.bf16.mxu0 0
        %6733 = vmatpush1.bf16.msra.mxu0 0
        %6734 = vmatprep.subr.bf16.mxu0 0
        %6735 = vmatpush1.bf16.msra.mxu0 0
        %6736 = vmatprep.subr.bf16.mxu0 0
        %6737 = vmatpush1.bf16.msra.mxu0 0
        %6738 = vmatprep.subr.bf16.mxu0 0
        %6739 = vmatpush1.bf16.msra.mxu0 %v6722
        %6740 = vmatprep.subr.bf16.mxu0 0
        %6741 = vmatpush2.bf16.msra.mxu0 0
        %6742 = vmatprep.subr.bf16.mxu0 0
        %6743 = vmatpush2.bf16.msra.mxu0 0
        %6744 = vmatprep.subr.bf16.mxu0 0
        %6745 = vmatpush2.bf16.msra.mxu0 0
        %6746 = vmatprep.subr.bf16.mxu0 0
        %6747 = vmatpush2.bf16.msra.mxu0 0
        %6748 = vmatprep.subr.bf16.mxu0 0
        %6749 = vmatpush2.bf16.msra.mxu0 0
        %6750 = vmatprep.subr.bf16.mxu0 0
        %6751 = vmatpush2.bf16.msra.mxu0 0
        %6752 = vmatprep.subr.bf16.mxu0 0
        %6753 = vmatpush2.bf16.msra.mxu0 0
        %6754 = vmatprep.subr.bf16.mxu0 0
        %6755 = vmatpush2.bf16.msra.mxu0 0
        %6756 = vmatprep.mubr.bf16.mxu0 0
        %6757 = vmatmul.mubr.bf16.gmra.mxu0 %v6719
        %v6758 = vpop.f32.mrf.mxu0
        %v6759 = vadd.f32 0.0, %v6758
        %v6760 = vpop.f32.mrf.mxu0
        %v6761 = vpop.f32.mrf.mxu0
        %v6762 = vpop.f32.mrf.mxu0
        %6763 = vdwg.mxu0
        %v6764 = vsel %vm2646, %v6621, 0.0
        %v6765 = vsel %vm2646, %v6667, 0.0
        %v6766 = vadd.f32 %v6764, %v6765
        %v6767 = vsel %vm2646, %v6713, 0.0
        %v6768 = vadd.f32 %v6766, %v6767
        %v6769 = vsel %vm2646, %v6759, 0.0
        %v6770 = vadd.f32 %v6768, %v6769
        %v6771 = vadd.f32 %v5667, %v6770
        %v6773 = vlaneseq
        %v6774 = vshrl.u32 %v6773, 7
        %v6775 = vsub.s32 0, %v6774
        %v6776 = vrot.slane %v2327, %v6775
        %v6778 = vadd.f32 %v6771, %v6776
        %v6779 = vsel %vm2646, %v6778, 0.0
        %6780 = vadd.xlane.f32.xlu0 %v6779
        %v6781 = vpop.xlane.xlu0 %6780
        %v6782 = vmul.f32 %v6781, %v3500
        %v6783 = vsub.f32 %v6778, %v6782
        %v6784 = vmul.f32 %v6783, %v6783
        %v6785 = vsel %vm2646, %v6784, 0.0
        %6786 = vadd.xlane.f32.xlu0 %v6785
        %v6787 = vpop.xlane.xlu0 %6786
        %v6788 = vmul.f32 %v6787, %v3500
        %v6789 = vadd.f32 %v6788, 1e-05
        %v6790 = vrsqrt.pop %v6789
        %v6791 = vmul.f32 %v6783, %v6790
        %v6793 = vlaneseq
        %v6794 = vshrl.u32 %v6793, 7
        %v6795 = vsub.s32 0, %v6794
        %v6796 = vrot.slane %v2371, %v6795
        %v6798 = vmul.f32 %v6791, %v6796
        %v6800 = vlaneseq
        %v6801 = vshrl.u32 %v6800, 7
        %v6802 = vsub.s32 0, %v6801
        %v6803 = vrot.slane %v2370, %v6802
        %v6805 = vadd.f32 %v6798, %v6803
        %v6806 = vpack.c.bf16 %v6805, %v6805
        %v6808 = vlaneseq
        %v6809 = vshrl.u32 %v6808, 7
        %v6810 = vsub.s32 0, %v6809
        %v6811 = vrot.slane %v2321, %v6810
        %v6817 = vunpack.c.l.b16 %v2399
        %v6818 = vunpack.c.l.b16 %v2400
        %v6819 = vunpack.c.l.b16 %v2401
        %v6820 = vunpack.c.l.b16 %v2402
        %v6821 = vpack.c.b16 %v6818, %v6817
        %v6822 = vpack.c.b16 %v6820, %v6819
        %v6826 = vsel %vm2646, %v6806, 0
        %6828 = vmatprep.subr.bf16.mxu0 0
        %6829 = vmatpush1.bf16.msra.mxu0 0
        %6830 = vmatprep.subr.bf16.mxu0 0
        %6831 = vmatpush1.bf16.msra.mxu0 0
        %6832 = vmatprep.subr.bf16.mxu0 0
        %6833 = vmatpush1.bf16.msra.mxu0 0
        %6834 = vmatprep.subr.bf16.mxu0 0
        %6835 = vmatpush1.bf16.msra.mxu0 0
        %6836 = vmatprep.subr.bf16.mxu0 0
        %6837 = vmatpush1.bf16.msra.mxu0 0
        %6838 = vmatprep.subr.bf16.mxu0 0
        %6839 = vmatpush1.bf16.msra.mxu0 0
        %6840 = vmatprep.subr.bf16.mxu0 0
        %6841 = vmatpush1.bf16.msra.mxu0 %v6822
        %6842 = vmatprep.subr.bf16.mxu0 0
        %6843 = vmatpush1.bf16.msra.mxu0 %v6821
        %6844 = vmatprep.subr.bf16.mxu0 0
        %6845 = vmatpush2.bf16.msra.mxu0 0
        %6846 = vmatprep.subr.bf16.mxu0 0
        %6847 = vmatpush2.bf16.msra.mxu0 0
        %6848 = vmatprep.subr.bf16.mxu0 0
        %6849 = vmatpush2.bf16.msra.mxu0 0
        %6850 = vmatprep.subr.bf16.mxu0 0
        %6851 = vmatpush2.bf16.msra.mxu0 0
        %6852 = vmatprep.subr.bf16.mxu0 0
        %6853 = vmatpush2.bf16.msra.mxu0 0
        %6854 = vmatprep.subr.bf16.mxu0 0
        %6855 = vmatpush2.bf16.msra.mxu0 0
        %6856 = vmatprep.subr.bf16.mxu0 0
        %6857 = vmatpush2.bf16.msra.mxu0 0
        %6858 = vmatprep.subr.bf16.mxu0 0
        %6859 = vmatpush2.bf16.msra.mxu0 0
        %6860 = vmatprep.mubr.bf16.mxu0 0
        %6861 = vmatmul.mubr.bf16.gmra.mxu0 %v6826
        %v6862 = vpop.f32.mrf.mxu0
        %v6863 = vadd.f32 %v6811, %v6862
        %v6864 = vpop.f32.mrf.mxu0
        %v6865 = vpop.f32.mrf.mxu0
        %v6866 = vpop.f32.mrf.mxu0
        %6867 = vdwg.mxu0
        %v6868 = vmax.f32 %v6863, 0.0
        %v6869 = vpack.c.bf16 %v6868, %v6868
        %v6871 = vlaneseq
        %v6872 = vshrl.u32 %v6871, 7
        %v6873 = vsub.s32 0, %v6872
        %v6874 = vrot.slane %v2322, %v6873
        %v6884 = vunpack.c.l.b16 %v2403
        %v6885 = vunpack.c.l.b16 %v2404
        %v6886 = vunpack.c.l.b16 %v2405
        %v6887 = vunpack.c.l.b16 %v2406
        %v6888 = vunpack.c.l.b16 %v2407
        %v6889 = vunpack.c.l.b16 %v2408
        %v6890 = vunpack.c.l.b16 %v2409
        %v6891 = vunpack.c.l.b16 %v2410
        %v6892 = vpack.c.b16 %v6885, %v6884
        %v6893 = vpack.c.b16 %v6887, %v6886
        %v6894 = vpack.c.b16 %v6889, %v6888
        %v6895 = vpack.c.b16 %v6891, %v6890
        %v6901 = vsel %vm3619, %v6869, 0
        %6903 = vmatprep.subr.bf16.mxu0 0
        %6904 = vmatpush1.bf16.msra.mxu0 0
        %6905 = vmatprep.subr.bf16.mxu0 0
        %6906 = vmatpush1.bf16.msra.mxu0 0
        %6907 = vmatprep.subr.bf16.mxu0 0
        %6908 = vmatpush1.bf16.msra.mxu0 0
        %6909 = vmatprep.subr.bf16.mxu0 0
        %6910 = vmatpush1.bf16.msra.mxu0 0
        %6911 = vmatprep.subr.bf16.mxu0 0
        %6912 = vmatpush1.bf16.msra.mxu0 %v6895
        %6913 = vmatprep.subr.bf16.mxu0 0
        %6914 = vmatpush1.bf16.msra.mxu0 %v6894
        %6915 = vmatprep.subr.bf16.mxu0 0
        %6916 = vmatpush1.bf16.msra.mxu0 %v6893
        %6917 = vmatprep.subr.bf16.mxu0 0
        %6918 = vmatpush1.bf16.msra.mxu0 %v6892
        %6919 = vmatprep.subr.bf16.mxu0 0
        %6920 = vmatpush2.bf16.msra.mxu0 0
        %6921 = vmatprep.subr.bf16.mxu0 0
        %6922 = vmatpush2.bf16.msra.mxu0 0
        %6923 = vmatprep.subr.bf16.mxu0 0
        %6924 = vmatpush2.bf16.msra.mxu0 0
        %6925 = vmatprep.subr.bf16.mxu0 0
        %6926 = vmatpush2.bf16.msra.mxu0 0
        %6927 = vmatprep.subr.bf16.mxu0 0
        %6928 = vmatpush2.bf16.msra.mxu0 0
        %6929 = vmatprep.subr.bf16.mxu0 0
        %6930 = vmatpush2.bf16.msra.mxu0 0
        %6931 = vmatprep.subr.bf16.mxu0 0
        %6932 = vmatpush2.bf16.msra.mxu0 0
        %6933 = vmatprep.subr.bf16.mxu0 0
        %6934 = vmatpush2.bf16.msra.mxu0 0
        %6935 = vmatprep.mubr.bf16.mxu0 0
        %6936 = vmatmul.mubr.bf16.gmra.mxu0 %v6901
        %v6937 = vpop.f32.mrf.mxu0
        %v6938 = vadd.f32 %v6874, %v6937
        %v6939 = vpop.f32.mrf.mxu0
        %v6940 = vpop.f32.mrf.mxu0
        %v6941 = vpop.f32.mrf.mxu0
        %6942 = vdwg.mxu0
        %v6943 = vadd.f32 %v6805, %v6938
        %v6944 = vsel %vm2646, %v6943, 0.0
        %6945 = vadd.xlane.f32.xlu0 %v6944
        %v6946 = vpop.xlane.xlu0 %6945
        %v6947 = vmul.f32 %v6946, %v3500
        %v6948 = vsub.f32 %v6943, %v6947
        %v6949 = vmul.f32 %v6948, %v6948
        %v6950 = vsel %vm2646, %v6949, 0.0
        %6951 = vadd.xlane.f32.xlu0 %v6950
        %v6952 = vpop.xlane.xlu0 %6951
        %v6953 = vmul.f32 %v6952, %v3500
        %v6954 = vadd.f32 %v6953, 1e-05
        %v6955 = vrsqrt.pop %v6954
        %v6956 = vmul.f32 %v6948, %v6955
        %v6958 = vlaneseq
        %v6959 = vshrl.u32 %v6958, 7
        %v6960 = vsub.s32 0, %v6959
        %v6961 = vrot.slane %v2373, %v6960
        %v6963 = vmul.f32 %v6956, %v6961
        %v6965 = vlaneseq
        %v6966 = vshrl.u32 %v6965, 7
        %v6967 = vsub.s32 0, %v6966
        %v6968 = vrot.slane %v2372, %v6967
        %v6970 = vadd.f32 %v6963, %v6968
        %v6971 = vpack.c.bf16 %v6970, %v6970
        %v6976 = vlaneseq
        %v6977 = vshrl.u32 %v6976, 7
        %v6978 = vsub.s32 0, %v6977
        %v6979 = vrot.slane %v2465, %v6978
        %v6980 = vlaneseq
        %v6981 = vshrl.u32 %v6980, 7
        %v6982 = vsub.s32 0, %v6981
        %v6983 = vrot.slane %v2466, %v6982
        %v6984 = vlaneseq
        %v6985 = vshrl.u32 %v6984, 7
        %v6986 = vsub.s32 0, %v6985
        %v6987 = vrot.slane %v2467, %v6986
        %v6988 = vlaneseq
        %v6989 = vshrl.u32 %v6988, 7
        %v6990 = vsub.s32 0, %v6989
        %v6991 = vrot.slane %v2468, %v6990
        %v7000 = vunpack.c.l.b16 %v2473
        %v7001 = vunpack.c.l.b16 %v2474
        %v7002 = vunpack.c.l.b16 %v2475
        %v7003 = vunpack.c.l.b16 %v2476
        %v7004 = vpack.c.b16 %v7001, %v7000
        %v7005 = vpack.c.b16 %v7003, %v7002
        %v7009 = vsel %vm2646, %v6971, 0
        %7011 = vmatprep.subr.bf16.mxu0 0
        %7012 = vmatpush1.bf16.msra.mxu0 0
        %7013 = vmatprep.subr.bf16.mxu0 0
        %7014 = vmatpush1.bf16.msra.mxu0 0
        %7015 = vmatprep.subr.bf16.mxu0 0
        %7016 = vmatpush1.bf16.msra.mxu0 0
        %7017 = vmatprep.subr.bf16.mxu0 0
        %7018 = vmatpush1.bf16.msra.mxu0 0
        %7019 = vmatprep.subr.bf16.mxu0 0
        %7020 = vmatpush1.bf16.msra.mxu0 0
        %7021 = vmatprep.subr.bf16.mxu0 0
        %7022 = vmatpush1.bf16.msra.mxu0 0
        %7023 = vmatprep.subr.bf16.mxu0 0
        %7024 = vmatpush1.bf16.msra.mxu0 %v7005
        %7025 = vmatprep.subr.bf16.mxu0 0
        %7026 = vmatpush1.bf16.msra.mxu0 %v7004
        %7027 = vmatprep.subr.bf16.mxu0 0
        %7028 = vmatpush2.bf16.msra.mxu0 0
        %7029 = vmatprep.subr.bf16.mxu0 0
        %7030 = vmatpush2.bf16.msra.mxu0 0
        %7031 = vmatprep.subr.bf16.mxu0 0
        %7032 = vmatpush2.bf16.msra.mxu0 0
        %7033 = vmatprep.subr.bf16.mxu0 0
        %7034 = vmatpush2.bf16.msra.mxu0 0
        %7035 = vmatprep.subr.bf16.mxu0 0
        %7036 = vmatpush2.bf16.msra.mxu0 0
        %7037 = vmatprep.subr.bf16.mxu0 0
        %7038 = vmatpush2.bf16.msra.mxu0 0
        %7039 = vmatprep.subr.bf16.mxu0 0
        %7040 = vmatpush2.bf16.msra.mxu0 0
        %7041 = vmatprep.subr.bf16.mxu0 0
        %7042 = vmatpush2.bf16.msra.mxu0 0
        %7043 = vmatprep.mubr.bf16.mxu0 0
        %7044 = vmatmul.mubr.bf16.gmra.mxu0 %v7009
        %v7045 = vpop.f32.mrf.mxu0
        %v7046 = vadd.f32 %v6979, %v7045
        %v7047 = vpop.f32.mrf.mxu0
        %v7048 = vpop.f32.mrf.mxu0
        %v7049 = vpop.f32.mrf.mxu0
        %7050 = vdwg.mxu0
        %v7055 = vunpack.c.l.b16 %v2477
        %v7056 = vunpack.c.l.b16 %v2478
        %v7057 = vunpack.c.l.b16 %v2479
        %v7058 = vunpack.c.l.b16 %v2480
        %v7059 = vpack.c.b16 %v7056, %v7055
        %v7060 = vpack.c.b16 %v7058, %v7057
        %7063 = vmatprep.subr.bf16.mxu0 0
        %7064 = vmatpush1.bf16.msra.mxu0 0
        %7065 = vmatprep.subr.bf16.mxu0 0
        %7066 = vmatpush1.bf16.msra.mxu0 0
        %7067 = vmatprep.subr.bf16.mxu0 0
        %7068 = vmatpush1.bf16.msra.mxu0 0
        %7069 = vmatprep.subr.bf16.mxu0 0
        %7070 = vmatpush1.bf16.msra.mxu0 0
        %7071 = vmatprep.subr.bf16.mxu0 0
        %7072 = vmatpush1.bf16.msra.mxu0 0
        %7073 = vmatprep.subr.bf16.mxu0 0
        %7074 = vmatpush1.bf16.msra.mxu0 0
        %7075 = vmatprep.subr.bf16.mxu0 0
        %7076 = vmatpush1.bf16.msra.mxu0 %v7060
        %7077 = vmatprep.subr.bf16.mxu0 0
        %7078 = vmatpush1.bf16.msra.mxu0 %v7059
        %7079 = vmatprep.subr.bf16.mxu0 0
        %7080 = vmatpush2.bf16.msra.mxu0 0
        %7081 = vmatprep.subr.bf16.mxu0 0
        %7082 = vmatpush2.bf16.msra.mxu0 0
        %7083 = vmatprep.subr.bf16.mxu0 0
        %7084 = vmatpush2.bf16.msra.mxu0 0
        %7085 = vmatprep.subr.bf16.mxu0 0
        %7086 = vmatpush2.bf16.msra.mxu0 0
        %7087 = vmatprep.subr.bf16.mxu0 0
        %7088 = vmatpush2.bf16.msra.mxu0 0
        %7089 = vmatprep.subr.bf16.mxu0 0
        %7090 = vmatpush2.bf16.msra.mxu0 0
        %7091 = vmatprep.subr.bf16.mxu0 0
        %7092 = vmatpush2.bf16.msra.mxu0 0
        %7093 = vmatprep.subr.bf16.mxu0 0
        %7094 = vmatpush2.bf16.msra.mxu0 0
        %7095 = vmatprep.mubr.bf16.mxu0 0
        %7096 = vmatmul.mubr.bf16.gmra.mxu0 %v7009
        %v7097 = vpop.f32.mrf.mxu0
        %v7098 = vadd.f32 %v6983, %v7097
        %v7099 = vpop.f32.mrf.mxu0
        %v7100 = vpop.f32.mrf.mxu0
        %v7101 = vpop.f32.mrf.mxu0
        %7102 = vdwg.mxu0
        %v7107 = vunpack.c.l.b16 %v2481
        %v7108 = vunpack.c.l.b16 %v2482
        %v7109 = vunpack.c.l.b16 %v2483
        %v7110 = vunpack.c.l.b16 %v2484
        %v7111 = vpack.c.b16 %v7108, %v7107
        %v7112 = vpack.c.b16 %v7110, %v7109
        %7115 = vmatprep.subr.bf16.mxu0 0
        %7116 = vmatpush1.bf16.msra.mxu0 0
        %7117 = vmatprep.subr.bf16.mxu0 0
        %7118 = vmatpush1.bf16.msra.mxu0 0
        %7119 = vmatprep.subr.bf16.mxu0 0
        %7120 = vmatpush1.bf16.msra.mxu0 0
        %7121 = vmatprep.subr.bf16.mxu0 0
        %7122 = vmatpush1.bf16.msra.mxu0 0
        %7123 = vmatprep.subr.bf16.mxu0 0
        %7124 = vmatpush1.bf16.msra.mxu0 0
        %7125 = vmatprep.subr.bf16.mxu0 0
        %7126 = vmatpush1.bf16.msra.mxu0 0
        %7127 = vmatprep.subr.bf16.mxu0 0
        %7128 = vmatpush1.bf16.msra.mxu0 %v7112
        %7129 = vmatprep.subr.bf16.mxu0 0
        %7130 = vmatpush1.bf16.msra.mxu0 %v7111
        %7131 = vmatprep.subr.bf16.mxu0 0
        %7132 = vmatpush2.bf16.msra.mxu0 0
        %7133 = vmatprep.subr.bf16.mxu0 0
        %7134 = vmatpush2.bf16.msra.mxu0 0
        %7135 = vmatprep.subr.bf16.mxu0 0
        %7136 = vmatpush2.bf16.msra.mxu0 0
        %7137 = vmatprep.subr.bf16.mxu0 0
        %7138 = vmatpush2.bf16.msra.mxu0 0
        %7139 = vmatprep.subr.bf16.mxu0 0
        %7140 = vmatpush2.bf16.msra.mxu0 0
        %7141 = vmatprep.subr.bf16.mxu0 0
        %7142 = vmatpush2.bf16.msra.mxu0 0
        %7143 = vmatprep.subr.bf16.mxu0 0
        %7144 = vmatpush2.bf16.msra.mxu0 0
        %7145 = vmatprep.subr.bf16.mxu0 0
        %7146 = vmatpush2.bf16.msra.mxu0 0
        %7147 = vmatprep.mubr.bf16.mxu0 0
        %7148 = vmatmul.mubr.bf16.gmra.mxu0 %v7009
        %v7149 = vpop.f32.mrf.mxu0
        %v7150 = vadd.f32 %v6987, %v7149
        %v7151 = vpop.f32.mrf.mxu0
        %v7152 = vpop.f32.mrf.mxu0
        %v7153 = vpop.f32.mrf.mxu0
        %7154 = vdwg.mxu0
        %v7159 = vunpack.c.l.b16 %v2485
        %v7160 = vunpack.c.l.b16 %v2486
        %v7161 = vunpack.c.l.b16 %v2487
        %v7162 = vunpack.c.l.b16 %v2488
        %v7163 = vpack.c.b16 %v7160, %v7159
        %v7164 = vpack.c.b16 %v7162, %v7161
        %7167 = vmatprep.subr.bf16.mxu0 0
        %7168 = vmatpush1.bf16.msra.mxu0 0
        %7169 = vmatprep.subr.bf16.mxu0 0
        %7170 = vmatpush1.bf16.msra.mxu0 0
        %7171 = vmatprep.subr.bf16.mxu0 0
        %7172 = vmatpush1.bf16.msra.mxu0 0
        %7173 = vmatprep.subr.bf16.mxu0 0
        %7174 = vmatpush1.bf16.msra.mxu0 0
        %7175 = vmatprep.subr.bf16.mxu0 0
        %7176 = vmatpush1.bf16.msra.mxu0 0
        %7177 = vmatprep.subr.bf16.mxu0 0
        %7178 = vmatpush1.bf16.msra.mxu0 0
        %7179 = vmatprep.subr.bf16.mxu0 0
        %7180 = vmatpush1.bf16.msra.mxu0 %v7164
        %7181 = vmatprep.subr.bf16.mxu0 0
        %7182 = vmatpush1.bf16.msra.mxu0 %v7163
        %7183 = vmatprep.subr.bf16.mxu0 0
        %7184 = vmatpush2.bf16.msra.mxu0 0
        %7185 = vmatprep.subr.bf16.mxu0 0
        %7186 = vmatpush2.bf16.msra.mxu0 0
        %7187 = vmatprep.subr.bf16.mxu0 0
        %7188 = vmatpush2.bf16.msra.mxu0 0
        %7189 = vmatprep.subr.bf16.mxu0 0
        %7190 = vmatpush2.bf16.msra.mxu0 0
        %7191 = vmatprep.subr.bf16.mxu0 0
        %7192 = vmatpush2.bf16.msra.mxu0 0
        %7193 = vmatprep.subr.bf16.mxu0 0
        %7194 = vmatpush2.bf16.msra.mxu0 0
        %7195 = vmatprep.subr.bf16.mxu0 0
        %7196 = vmatpush2.bf16.msra.mxu0 0
        %7197 = vmatprep.subr.bf16.mxu0 0
        %7198 = vmatpush2.bf16.msra.mxu0 0
        %7199 = vmatprep.mubr.bf16.mxu0 0
        %7200 = vmatmul.mubr.bf16.gmra.mxu0 %v7009
        %v7201 = vpop.f32.mrf.mxu0
        %v7202 = vadd.f32 %v6991, %v7201
        %v7203 = vpop.f32.mrf.mxu0
        %v7204 = vpop.f32.mrf.mxu0
        %v7205 = vpop.f32.mrf.mxu0
        %7206 = vdwg.mxu0
        %v7207 = vpack.c.bf16 %v7046, %v7046
        %v7208 = vpack.c.bf16 %v7098, %v7098
        %v7209 = vpack.c.bf16 %v7150, %v7150
        %v7210 = vpack.c.bf16 %v7202, %v7202
        %7212 = vrot.lane.b32.xlu0 %v7207, 120
        %v7213 = vpop.permute.xlu0 %7212
        %v7215 = vsel %vm2859, %v7207, 0
        %v7218 = vsel %vm2859, %v7213, 0
        %7220 = vmatprep.subr.bf16.mxu0 0
        %7221 = vmatpush1.bf16.xpose.msra.mxu0 0
        %7222 = vmatprep.subr.bf16.mxu0 0
        %7223 = vmatpush1.bf16.xpose.msra.mxu0 0
        %7224 = vmatprep.subr.bf16.mxu0 0
        %7225 = vmatpush1.bf16.xpose.msra.mxu0 0
        %7226 = vmatprep.subr.bf16.mxu0 0
        %7227 = vmatpush1.bf16.xpose.msra.mxu0 0
        %7228 = vmatprep.subr.bf16.mxu0 0
        %7229 = vmatpush1.bf16.xpose.msra.mxu0 0
        %7230 = vmatprep.subr.bf16.mxu0 0
        %7231 = vmatpush1.bf16.xpose.msra.mxu0 0
        %7232 = vmatprep.subr.bf16.mxu0 0
        %7233 = vmatpush1.bf16.xpose.msra.mxu0 0
        %7234 = vmatprep.subr.bf16.mxu0 0
        %7235 = vmatpush1.bf16.xpose.msra.mxu0 %v7218
        %7236 = vmatprep.subr.bf16.mxu0 0
        %7237 = vmatpush2.bf16.xpose.msra.mxu0 0
        %7238 = vmatprep.subr.bf16.mxu0 0
        %7239 = vmatpush2.bf16.xpose.msra.mxu0 0
        %7240 = vmatprep.subr.bf16.mxu0 0
        %7241 = vmatpush2.bf16.xpose.msra.mxu0 0
        %7242 = vmatprep.subr.bf16.mxu0 0
        %7243 = vmatpush2.bf16.xpose.msra.mxu0 0
        %7244 = vmatprep.subr.bf16.mxu0 0
        %7245 = vmatpush2.bf16.xpose.msra.mxu0 0
        %7246 = vmatprep.subr.bf16.mxu0 0
        %7247 = vmatpush2.bf16.xpose.msra.mxu0 0
        %7248 = vmatprep.subr.bf16.mxu0 0
        %7249 = vmatpush2.bf16.xpose.msra.mxu0 0
        %7250 = vmatprep.subr.bf16.mxu0 0
        %7251 = vmatpush2.bf16.xpose.msra.mxu0 0
        %7252 = vmatprep.mubr.bf16.mxu0 0
        %7253 = vmatmul.mubr.bf16.gmra.mxu0 %v7215
        %v7254 = vpop.f32.mrf.mxu0
        %v7255 = vadd.f32 %v2608, %v7254
        %v7256 = vpop.f32.mrf.mxu0
        %v7257 = vpop.f32.mrf.mxu0
        %v7258 = vpop.f32.mrf.mxu0
        %7259 = vdwg.mxu0
        %7261 = vrot.lane.b32.xlu0 %v7208, 120
        %v7262 = vpop.permute.xlu0 %7261
        %v7264 = vsel %vm2859, %v7208, 0
        %v7267 = vsel %vm2859, %v7262, 0
        %7269 = vmatprep.subr.bf16.mxu0 0
        %7270 = vmatpush1.bf16.xpose.msra.mxu0 0
        %7271 = vmatprep.subr.bf16.mxu0 0
        %7272 = vmatpush1.bf16.xpose.msra.mxu0 0
        %7273 = vmatprep.subr.bf16.mxu0 0
        %7274 = vmatpush1.bf16.xpose.msra.mxu0 0
        %7275 = vmatprep.subr.bf16.mxu0 0
        %7276 = vmatpush1.bf16.xpose.msra.mxu0 0
        %7277 = vmatprep.subr.bf16.mxu0 0
        %7278 = vmatpush1.bf16.xpose.msra.mxu0 0
        %7279 = vmatprep.subr.bf16.mxu0 0
        %7280 = vmatpush1.bf16.xpose.msra.mxu0 0
        %7281 = vmatprep.subr.bf16.mxu0 0
        %7282 = vmatpush1.bf16.xpose.msra.mxu0 0
        %7283 = vmatprep.subr.bf16.mxu0 0
        %7284 = vmatpush1.bf16.xpose.msra.mxu0 %v7267
        %7285 = vmatprep.subr.bf16.mxu0 0
        %7286 = vmatpush2.bf16.xpose.msra.mxu0 0
        %7287 = vmatprep.subr.bf16.mxu0 0
        %7288 = vmatpush2.bf16.xpose.msra.mxu0 0
        %7289 = vmatprep.subr.bf16.mxu0 0
        %7290 = vmatpush2.bf16.xpose.msra.mxu0 0
        %7291 = vmatprep.subr.bf16.mxu0 0
        %7292 = vmatpush2.bf16.xpose.msra.mxu0 0
        %7293 = vmatprep.subr.bf16.mxu0 0
        %7294 = vmatpush2.bf16.xpose.msra.mxu0 0
        %7295 = vmatprep.subr.bf16.mxu0 0
        %7296 = vmatpush2.bf16.xpose.msra.mxu0 0
        %7297 = vmatprep.subr.bf16.mxu0 0
        %7298 = vmatpush2.bf16.xpose.msra.mxu0 0
        %7299 = vmatprep.subr.bf16.mxu0 0
        %7300 = vmatpush2.bf16.xpose.msra.mxu0 0
        %7301 = vmatprep.mubr.bf16.mxu0 0
        %7302 = vmatmul.mubr.bf16.gmra.mxu0 %v7264
        %v7303 = vpop.f32.mrf.mxu0
        %v7304 = vadd.f32 %v2608, %v7303
        %v7305 = vpop.f32.mrf.mxu0
        %v7306 = vpop.f32.mrf.mxu0
        %v7307 = vpop.f32.mrf.mxu0
        %7308 = vdwg.mxu0
        %7310 = vrot.lane.b32.xlu0 %v7209, 120
        %v7311 = vpop.permute.xlu0 %7310
        %v7313 = vsel %vm2859, %v7209, 0
        %v7316 = vsel %vm2859, %v7311, 0
        %7318 = vmatprep.subr.bf16.mxu0 0
        %7319 = vmatpush1.bf16.xpose.msra.mxu0 0
        %7320 = vmatprep.subr.bf16.mxu0 0
        %7321 = vmatpush1.bf16.xpose.msra.mxu0 0
        %7322 = vmatprep.subr.bf16.mxu0 0
        %7323 = vmatpush1.bf16.xpose.msra.mxu0 0
        %7324 = vmatprep.subr.bf16.mxu0 0
        %7325 = vmatpush1.bf16.xpose.msra.mxu0 0
        %7326 = vmatprep.subr.bf16.mxu0 0
        %7327 = vmatpush1.bf16.xpose.msra.mxu0 0
        %7328 = vmatprep.subr.bf16.mxu0 0
        %7329 = vmatpush1.bf16.xpose.msra.mxu0 0
        %7330 = vmatprep.subr.bf16.mxu0 0
        %7331 = vmatpush1.bf16.xpose.msra.mxu0 0
        %7332 = vmatprep.subr.bf16.mxu0 0
        %7333 = vmatpush1.bf16.xpose.msra.mxu0 %v7316
        %7334 = vmatprep.subr.bf16.mxu0 0
        %7335 = vmatpush2.bf16.xpose.msra.mxu0 0
        %7336 = vmatprep.subr.bf16.mxu0 0
        %7337 = vmatpush2.bf16.xpose.msra.mxu0 0
        %7338 = vmatprep.subr.bf16.mxu0 0
        %7339 = vmatpush2.bf16.xpose.msra.mxu0 0
        %7340 = vmatprep.subr.bf16.mxu0 0
        %7341 = vmatpush2.bf16.xpose.msra.mxu0 0
        %7342 = vmatprep.subr.bf16.mxu0 0
        %7343 = vmatpush2.bf16.xpose.msra.mxu0 0
        %7344 = vmatprep.subr.bf16.mxu0 0
        %7345 = vmatpush2.bf16.xpose.msra.mxu0 0
        %7346 = vmatprep.subr.bf16.mxu0 0
        %7347 = vmatpush2.bf16.xpose.msra.mxu0 0
        %7348 = vmatprep.subr.bf16.mxu0 0
        %7349 = vmatpush2.bf16.xpose.msra.mxu0 0
        %7350 = vmatprep.mubr.bf16.mxu0 0
        %7351 = vmatmul.mubr.bf16.gmra.mxu0 %v7313
        %v7352 = vpop.f32.mrf.mxu0
        %v7353 = vadd.f32 %v2608, %v7352
        %v7354 = vpop.f32.mrf.mxu0
        %v7355 = vpop.f32.mrf.mxu0
        %v7356 = vpop.f32.mrf.mxu0
        %7357 = vdwg.mxu0
        %7359 = vrot.lane.b32.xlu0 %v7210, 120
        %v7360 = vpop.permute.xlu0 %7359
        %v7362 = vsel %vm2859, %v7210, 0
        %v7365 = vsel %vm2859, %v7360, 0
        %7367 = vmatprep.subr.bf16.mxu0 0
        %7368 = vmatpush1.bf16.xpose.msra.mxu0 0
        %7369 = vmatprep.subr.bf16.mxu0 0
        %7370 = vmatpush1.bf16.xpose.msra.mxu0 0
        %7371 = vmatprep.subr.bf16.mxu0 0
        %7372 = vmatpush1.bf16.xpose.msra.mxu0 0
        %7373 = vmatprep.subr.bf16.mxu0 0
        %7374 = vmatpush1.bf16.xpose.msra.mxu0 0
        %7375 = vmatprep.subr.bf16.mxu0 0
        %7376 = vmatpush1.bf16.xpose.msra.mxu0 0
        %7377 = vmatprep.subr.bf16.mxu0 0
        %7378 = vmatpush1.bf16.xpose.msra.mxu0 0
        %7379 = vmatprep.subr.bf16.mxu0 0
        %7380 = vmatpush1.bf16.xpose.msra.mxu0 0
        %7381 = vmatprep.subr.bf16.mxu0 0
        %7382 = vmatpush1.bf16.xpose.msra.mxu0 %v7365
        %7383 = vmatprep.subr.bf16.mxu0 0
        %7384 = vmatpush2.bf16.xpose.msra.mxu0 0
        %7385 = vmatprep.subr.bf16.mxu0 0
        %7386 = vmatpush2.bf16.xpose.msra.mxu0 0
        %7387 = vmatprep.subr.bf16.mxu0 0
        %7388 = vmatpush2.bf16.xpose.msra.mxu0 0
        %7389 = vmatprep.subr.bf16.mxu0 0
        %7390 = vmatpush2.bf16.xpose.msra.mxu0 0
        %7391 = vmatprep.subr.bf16.mxu0 0
        %7392 = vmatpush2.bf16.xpose.msra.mxu0 0
        %7393 = vmatprep.subr.bf16.mxu0 0
        %7394 = vmatpush2.bf16.xpose.msra.mxu0 0
        %7395 = vmatprep.subr.bf16.mxu0 0
        %7396 = vmatpush2.bf16.xpose.msra.mxu0 0
        %7397 = vmatprep.subr.bf16.mxu0 0
        %7398 = vmatpush2.bf16.xpose.msra.mxu0 0
        %7399 = vmatprep.mubr.bf16.mxu0 0
        %7400 = vmatmul.mubr.bf16.gmra.mxu0 %v7362
        %v7401 = vpop.f32.mrf.mxu0
        %v7402 = vadd.f32 %v2608, %v7401
        %v7403 = vpop.f32.mrf.mxu0
        %v7404 = vpop.f32.mrf.mxu0
        %v7405 = vpop.f32.mrf.mxu0
        %7406 = vdwg.mxu0
        %v7407 = vsel %vm2859, %v7255, -inf
        %7408 = vmax.xlane.f32.xlu0 %v7407
        %v7409 = vpop.xlane.xlu0 %7408
        %v7410 = vsel %vm2859, %v7304, -inf
        %7411 = vmax.xlane.f32.xlu0 %v7410
        %v7412 = vpop.xlane.xlu0 %7411
        %v7413 = vsel %vm2859, %v7353, -inf
        %7414 = vmax.xlane.f32.xlu0 %v7413
        %v7415 = vpop.xlane.xlu0 %7414
        %v7416 = vsel %vm2859, %v7402, -inf
        %7417 = vmax.xlane.f32.xlu0 %v7416
        %v7418 = vpop.xlane.xlu0 %7417
        %v7419 = vsub.f32 %v7255, %v7409
        %v7420 = vsub.f32 %v7304, %v7412
        %v7421 = vsub.f32 %v7353, %v7415
        %v7422 = vsub.f32 %v7402, %v7418
        %v7423 = vmul.f32 %v7419, 1.442695
        %v7424 = vpow.pop %v7423
        %v7425 = vmul.f32 %v7420, 1.442695
        %v7426 = vpow.pop %v7425
        %v7427 = vmul.f32 %v7421, 1.442695
        %v7428 = vpow.pop %v7427
        %v7429 = vmul.f32 %v7422, 1.442695
        %v7430 = vpow.pop %v7429
        %v7431 = vsel %vm2859, %v7424, 0.0
        %7432 = vadd.xlane.f32.xlu0 %v7431
        %v7433 = vpop.xlane.xlu0 %7432
        %v7434 = vsel %vm2859, %v7426, 0.0
        %7435 = vadd.xlane.f32.xlu0 %v7434
        %v7436 = vpop.xlane.xlu0 %7435
        %v7437 = vsel %vm2859, %v7428, 0.0
        %7438 = vadd.xlane.f32.xlu0 %v7437
        %v7439 = vpop.xlane.xlu0 %7438
        %v7440 = vsel %vm2859, %v7430, 0.0
        %7441 = vadd.xlane.f32.xlu0 %v7440
        %v7442 = vpop.xlane.xlu0 %7441
        %v7443 = vrcp.pop %v7433
        %v7444 = vrcp.pop %v7436
        %v7445 = vrcp.pop %v7439
        %v7446 = vrcp.pop %v7442
        %v7447 = vmul.f32 %v7424, %v7443
        %v7448 = vmul.f32 %v7426, %v7444
        %v7449 = vmul.f32 %v7428, %v7445
        %v7450 = vmul.f32 %v7430, %v7446
        %v7451 = vpack.c.bf16 %v7447, %v7447
        %v7452 = vpack.c.bf16 %v7448, %v7448
        %v7453 = vpack.c.bf16 %v7449, %v7449
        %v7454 = vpack.c.bf16 %v7450, %v7450
        %7455 = vrot.lane.b32.xlu0 %v7207, 112
        %v7456 = vpop.permute.xlu0 %7455
        %v7458 = vsel %vm2859, %v7451, 0
        %v7461 = vsel %vm3106, %v7456, 0
        %7463 = vmatprep.subr.bf16.mxu0 0
        %7464 = vmatpush1.bf16.msra.mxu0 0
        %7465 = vmatprep.subr.bf16.mxu0 0
        %7466 = vmatpush1.bf16.msra.mxu0 0
        %7467 = vmatprep.subr.bf16.mxu0 0
        %7468 = vmatpush1.bf16.msra.mxu0 0
        %7469 = vmatprep.subr.bf16.mxu0 0
        %7470 = vmatpush1.bf16.msra.mxu0 0
        %7471 = vmatprep.subr.bf16.mxu0 0
        %7472 = vmatpush1.bf16.msra.mxu0 0
        %7473 = vmatprep.subr.bf16.mxu0 0
        %7474 = vmatpush1.bf16.msra.mxu0 0
        %7475 = vmatprep.subr.bf16.mxu0 0
        %7476 = vmatpush1.bf16.msra.mxu0 0
        %7477 = vmatprep.subr.bf16.mxu0 0
        %7478 = vmatpush1.bf16.msra.mxu0 %v7461
        %7479 = vmatprep.subr.bf16.mxu0 0
        %7480 = vmatpush2.bf16.msra.mxu0 0
        %7481 = vmatprep.subr.bf16.mxu0 0
        %7482 = vmatpush2.bf16.msra.mxu0 0
        %7483 = vmatprep.subr.bf16.mxu0 0
        %7484 = vmatpush2.bf16.msra.mxu0 0
        %7485 = vmatprep.subr.bf16.mxu0 0
        %7486 = vmatpush2.bf16.msra.mxu0 0
        %7487 = vmatprep.subr.bf16.mxu0 0
        %7488 = vmatpush2.bf16.msra.mxu0 0
        %7489 = vmatprep.subr.bf16.mxu0 0
        %7490 = vmatpush2.bf16.msra.mxu0 0
        %7491 = vmatprep.subr.bf16.mxu0 0
        %7492 = vmatpush2.bf16.msra.mxu0 0
        %7493 = vmatprep.subr.bf16.mxu0 0
        %7494 = vmatpush2.bf16.msra.mxu0 0
        %7495 = vmatprep.mubr.bf16.mxu0 0
        %7496 = vmatmul.mubr.bf16.gmra.mxu0 %v7458
        %v7497 = vpop.f32.mrf.mxu0
        %v7498 = vadd.f32 0.0, %v7497
        %v7499 = vpop.f32.mrf.mxu0
        %v7500 = vpop.f32.mrf.mxu0
        %v7501 = vpop.f32.mrf.mxu0
        %7502 = vdwg.mxu0
        %7503 = vrot.lane.b32.xlu0 %v7208, 112
        %v7504 = vpop.permute.xlu0 %7503
        %v7506 = vsel %vm2859, %v7452, 0
        %v7509 = vsel %vm3106, %v7504, 0
        %7511 = vmatprep.subr.bf16.mxu0 0
        %7512 = vmatpush1.bf16.msra.mxu0 0
        %7513 = vmatprep.subr.bf16.mxu0 0
        %7514 = vmatpush1.bf16.msra.mxu0 0
        %7515 = vmatprep.subr.bf16.mxu0 0
        %7516 = vmatpush1.bf16.msra.mxu0 0
        %7517 = vmatprep.subr.bf16.mxu0 0
        %7518 = vmatpush1.bf16.msra.mxu0 0
        %7519 = vmatprep.subr.bf16.mxu0 0
        %7520 = vmatpush1.bf16.msra.mxu0 0
        %7521 = vmatprep.subr.bf16.mxu0 0
        %7522 = vmatpush1.bf16.msra.mxu0 0
        %7523 = vmatprep.subr.bf16.mxu0 0
        %7524 = vmatpush1.bf16.msra.mxu0 0
        %7525 = vmatprep.subr.bf16.mxu0 0
        %7526 = vmatpush1.bf16.msra.mxu0 %v7509
        %7527 = vmatprep.subr.bf16.mxu0 0
        %7528 = vmatpush2.bf16.msra.mxu0 0
        %7529 = vmatprep.subr.bf16.mxu0 0
        %7530 = vmatpush2.bf16.msra.mxu0 0
        %7531 = vmatprep.subr.bf16.mxu0 0
        %7532 = vmatpush2.bf16.msra.mxu0 0
        %7533 = vmatprep.subr.bf16.mxu0 0
        %7534 = vmatpush2.bf16.msra.mxu0 0
        %7535 = vmatprep.subr.bf16.mxu0 0
        %7536 = vmatpush2.bf16.msra.mxu0 0
        %7537 = vmatprep.subr.bf16.mxu0 0
        %7538 = vmatpush2.bf16.msra.mxu0 0
        %7539 = vmatprep.subr.bf16.mxu0 0
        %7540 = vmatpush2.bf16.msra.mxu0 0
        %7541 = vmatprep.subr.bf16.mxu0 0
        %7542 = vmatpush2.bf16.msra.mxu0 0
        %7543 = vmatprep.mubr.bf16.mxu0 0
        %7544 = vmatmul.mubr.bf16.gmra.mxu0 %v7506
        %v7545 = vpop.f32.mrf.mxu0
        %v7546 = vadd.f32 0.0, %v7545
        %v7547 = vpop.f32.mrf.mxu0
        %v7548 = vpop.f32.mrf.mxu0
        %v7549 = vpop.f32.mrf.mxu0
        %7550 = vdwg.mxu0
        %7551 = vrot.lane.b32.xlu0 %v7209, 112
        %v7552 = vpop.permute.xlu0 %7551
        %v7554 = vsel %vm2859, %v7453, 0
        %v7557 = vsel %vm3106, %v7552, 0
        %7559 = vmatprep.subr.bf16.mxu0 0
        %7560 = vmatpush1.bf16.msra.mxu0 0
        %7561 = vmatprep.subr.bf16.mxu0 0
        %7562 = vmatpush1.bf16.msra.mxu0 0
        %7563 = vmatprep.subr.bf16.mxu0 0
        %7564 = vmatpush1.bf16.msra.mxu0 0
        %7565 = vmatprep.subr.bf16.mxu0 0
        %7566 = vmatpush1.bf16.msra.mxu0 0
        %7567 = vmatprep.subr.bf16.mxu0 0
        %7568 = vmatpush1.bf16.msra.mxu0 0
        %7569 = vmatprep.subr.bf16.mxu0 0
        %7570 = vmatpush1.bf16.msra.mxu0 0
        %7571 = vmatprep.subr.bf16.mxu0 0
        %7572 = vmatpush1.bf16.msra.mxu0 0
        %7573 = vmatprep.subr.bf16.mxu0 0
        %7574 = vmatpush1.bf16.msra.mxu0 %v7557
        %7575 = vmatprep.subr.bf16.mxu0 0
        %7576 = vmatpush2.bf16.msra.mxu0 0
        %7577 = vmatprep.subr.bf16.mxu0 0
        %7578 = vmatpush2.bf16.msra.mxu0 0
        %7579 = vmatprep.subr.bf16.mxu0 0
        %7580 = vmatpush2.bf16.msra.mxu0 0
        %7581 = vmatprep.subr.bf16.mxu0 0
        %7582 = vmatpush2.bf16.msra.mxu0 0
        %7583 = vmatprep.subr.bf16.mxu0 0
        %7584 = vmatpush2.bf16.msra.mxu0 0
        %7585 = vmatprep.subr.bf16.mxu0 0
        %7586 = vmatpush2.bf16.msra.mxu0 0
        %7587 = vmatprep.subr.bf16.mxu0 0
        %7588 = vmatpush2.bf16.msra.mxu0 0
        %7589 = vmatprep.subr.bf16.mxu0 0
        %7590 = vmatpush2.bf16.msra.mxu0 0
        %7591 = vmatprep.mubr.bf16.mxu0 0
        %7592 = vmatmul.mubr.bf16.gmra.mxu0 %v7554
        %v7593 = vpop.f32.mrf.mxu0
        %v7594 = vadd.f32 0.0, %v7593
        %v7595 = vpop.f32.mrf.mxu0
        %v7596 = vpop.f32.mrf.mxu0
        %v7597 = vpop.f32.mrf.mxu0
        %7598 = vdwg.mxu0
        %7599 = vrot.lane.b32.xlu0 %v7210, 112
        %v7600 = vpop.permute.xlu0 %7599
        %v7602 = vsel %vm2859, %v7454, 0
        %v7605 = vsel %vm3106, %v7600, 0
        %7607 = vmatprep.subr.bf16.mxu0 0
        %7608 = vmatpush1.bf16.msra.mxu0 0
        %7609 = vmatprep.subr.bf16.mxu0 0
        %7610 = vmatpush1.bf16.msra.mxu0 0
        %7611 = vmatprep.subr.bf16.mxu0 0
        %7612 = vmatpush1.bf16.msra.mxu0 0
        %7613 = vmatprep.subr.bf16.mxu0 0
        %7614 = vmatpush1.bf16.msra.mxu0 0
        %7615 = vmatprep.subr.bf16.mxu0 0
        %7616 = vmatpush1.bf16.msra.mxu0 0
        %7617 = vmatprep.subr.bf16.mxu0 0
        %7618 = vmatpush1.bf16.msra.mxu0 0
        %7619 = vmatprep.subr.bf16.mxu0 0
        %7620 = vmatpush1.bf16.msra.mxu0 0
        %7621 = vmatprep.subr.bf16.mxu0 0
        %7622 = vmatpush1.bf16.msra.mxu0 %v7605
        %7623 = vmatprep.subr.bf16.mxu0 0
        %7624 = vmatpush2.bf16.msra.mxu0 0
        %7625 = vmatprep.subr.bf16.mxu0 0
        %7626 = vmatpush2.bf16.msra.mxu0 0
        %7627 = vmatprep.subr.bf16.mxu0 0
        %7628 = vmatpush2.bf16.msra.mxu0 0
        %7629 = vmatprep.subr.bf16.mxu0 0
        %7630 = vmatpush2.bf16.msra.mxu0 0
        %7631 = vmatprep.subr.bf16.mxu0 0
        %7632 = vmatpush2.bf16.msra.mxu0 0
        %7633 = vmatprep.subr.bf16.mxu0 0
        %7634 = vmatpush2.bf16.msra.mxu0 0
        %7635 = vmatprep.subr.bf16.mxu0 0
        %7636 = vmatpush2.bf16.msra.mxu0 0
        %7637 = vmatprep.subr.bf16.mxu0 0
        %7638 = vmatpush2.bf16.msra.mxu0 0
        %7639 = vmatprep.mubr.bf16.mxu0 0
        %7640 = vmatmul.mubr.bf16.gmra.mxu0 %v7602
        %v7641 = vpop.f32.mrf.mxu0
        %v7642 = vadd.f32 0.0, %v7641
        %v7643 = vpop.f32.mrf.mxu0
        %v7644 = vpop.f32.mrf.mxu0
        %v7645 = vpop.f32.mrf.mxu0
        %7646 = vdwg.mxu0
        %v7647 = vpack.c.bf16 %v7498, %v7498
        %v7648 = vpack.c.bf16 %v7546, %v7546
        %v7649 = vpack.c.bf16 %v7594, %v7594
        %v7650 = vpack.c.bf16 %v7642, %v7642
        %v7652 = vsel %vm2859, %v7647, 0
        %v7655 = vsel %vm3106, %v2469, 0
        %7657 = vmatprep.subr.bf16.mxu0 0
        %7658 = vmatpush1.bf16.msra.mxu0 0
        %7659 = vmatprep.subr.bf16.mxu0 0
        %7660 = vmatpush1.bf16.msra.mxu0 0
        %7661 = vmatprep.subr.bf16.mxu0 0
        %7662 = vmatpush1.bf16.msra.mxu0 0
        %7663 = vmatprep.subr.bf16.mxu0 0
        %7664 = vmatpush1.bf16.msra.mxu0 0
        %7665 = vmatprep.subr.bf16.mxu0 0
        %7666 = vmatpush1.bf16.msra.mxu0 0
        %7667 = vmatprep.subr.bf16.mxu0 0
        %7668 = vmatpush1.bf16.msra.mxu0 0
        %7669 = vmatprep.subr.bf16.mxu0 0
        %7670 = vmatpush1.bf16.msra.mxu0 0
        %7671 = vmatprep.subr.bf16.mxu0 0
        %7672 = vmatpush1.bf16.msra.mxu0 %v7655
        %7673 = vmatprep.subr.bf16.mxu0 0
        %7674 = vmatpush2.bf16.msra.mxu0 0
        %7675 = vmatprep.subr.bf16.mxu0 0
        %7676 = vmatpush2.bf16.msra.mxu0 0
        %7677 = vmatprep.subr.bf16.mxu0 0
        %7678 = vmatpush2.bf16.msra.mxu0 0
        %7679 = vmatprep.subr.bf16.mxu0 0
        %7680 = vmatpush2.bf16.msra.mxu0 0
        %7681 = vmatprep.subr.bf16.mxu0 0
        %7682 = vmatpush2.bf16.msra.mxu0 0
        %7683 = vmatprep.subr.bf16.mxu0 0
        %7684 = vmatpush2.bf16.msra.mxu0 0
        %7685 = vmatprep.subr.bf16.mxu0 0
        %7686 = vmatpush2.bf16.msra.mxu0 0
        %7687 = vmatprep.subr.bf16.mxu0 0
        %7688 = vmatpush2.bf16.msra.mxu0 0
        %7689 = vmatprep.mubr.bf16.mxu0 0
        %7690 = vmatmul.mubr.bf16.gmra.mxu0 %v7652
        %v7691 = vpop.f32.mrf.mxu0
        %v7692 = vadd.f32 0.0, %v7691
        %v7693 = vpop.f32.mrf.mxu0
        %v7694 = vpop.f32.mrf.mxu0
        %v7695 = vpop.f32.mrf.mxu0
        %7696 = vdwg.mxu0
        %v7698 = vsel %vm2859, %v7648, 0
        %v7701 = vsel %vm3106, %v2470, 0
        %7703 = vmatprep.subr.bf16.mxu0 0
        %7704 = vmatpush1.bf16.msra.mxu0 0
        %7705 = vmatprep.subr.bf16.mxu0 0
        %7706 = vmatpush1.bf16.msra.mxu0 0
        %7707 = vmatprep.subr.bf16.mxu0 0
        %7708 = vmatpush1.bf16.msra.mxu0 0
        %7709 = vmatprep.subr.bf16.mxu0 0
        %7710 = vmatpush1.bf16.msra.mxu0 0
        %7711 = vmatprep.subr.bf16.mxu0 0
        %7712 = vmatpush1.bf16.msra.mxu0 0
        %7713 = vmatprep.subr.bf16.mxu0 0
        %7714 = vmatpush1.bf16.msra.mxu0 0
        %7715 = vmatprep.subr.bf16.mxu0 0
        %7716 = vmatpush1.bf16.msra.mxu0 0
        %7717 = vmatprep.subr.bf16.mxu0 0
        %7718 = vmatpush1.bf16.msra.mxu0 %v7701
        %7719 = vmatprep.subr.bf16.mxu0 0
        %7720 = vmatpush2.bf16.msra.mxu0 0
        %7721 = vmatprep.subr.bf16.mxu0 0
        %7722 = vmatpush2.bf16.msra.mxu0 0
        %7723 = vmatprep.subr.bf16.mxu0 0
        %7724 = vmatpush2.bf16.msra.mxu0 0
        %7725 = vmatprep.subr.bf16.mxu0 0
        %7726 = vmatpush2.bf16.msra.mxu0 0
        %7727 = vmatprep.subr.bf16.mxu0 0
        %7728 = vmatpush2.bf16.msra.mxu0 0
        %7729 = vmatprep.subr.bf16.mxu0 0
        %7730 = vmatpush2.bf16.msra.mxu0 0
        %7731 = vmatprep.subr.bf16.mxu0 0
        %7732 = vmatpush2.bf16.msra.mxu0 0
        %7733 = vmatprep.subr.bf16.mxu0 0
        %7734 = vmatpush2.bf16.msra.mxu0 0
        %7735 = vmatprep.mubr.bf16.mxu0 0
        %7736 = vmatmul.mubr.bf16.gmra.mxu0 %v7698
        %v7737 = vpop.f32.mrf.mxu0
        %v7738 = vadd.f32 0.0, %v7737
        %v7739 = vpop.f32.mrf.mxu0
        %v7740 = vpop.f32.mrf.mxu0
        %v7741 = vpop.f32.mrf.mxu0
        %7742 = vdwg.mxu0
        %v7744 = vsel %vm2859, %v7649, 0
        %v7747 = vsel %vm3106, %v2471, 0
        %7749 = vmatprep.subr.bf16.mxu0 0
        %7750 = vmatpush1.bf16.msra.mxu0 0
        %7751 = vmatprep.subr.bf16.mxu0 0
        %7752 = vmatpush1.bf16.msra.mxu0 0
        %7753 = vmatprep.subr.bf16.mxu0 0
        %7754 = vmatpush1.bf16.msra.mxu0 0
        %7755 = vmatprep.subr.bf16.mxu0 0
        %7756 = vmatpush1.bf16.msra.mxu0 0
        %7757 = vmatprep.subr.bf16.mxu0 0
        %7758 = vmatpush1.bf16.msra.mxu0 0
        %7759 = vmatprep.subr.bf16.mxu0 0
        %7760 = vmatpush1.bf16.msra.mxu0 0
        %7761 = vmatprep.subr.bf16.mxu0 0
        %7762 = vmatpush1.bf16.msra.mxu0 0
        %7763 = vmatprep.subr.bf16.mxu0 0
        %7764 = vmatpush1.bf16.msra.mxu0 %v7747
        %7765 = vmatprep.subr.bf16.mxu0 0
        %7766 = vmatpush2.bf16.msra.mxu0 0
        %7767 = vmatprep.subr.bf16.mxu0 0
        %7768 = vmatpush2.bf16.msra.mxu0 0
        %7769 = vmatprep.subr.bf16.mxu0 0
        %7770 = vmatpush2.bf16.msra.mxu0 0
        %7771 = vmatprep.subr.bf16.mxu0 0
        %7772 = vmatpush2.bf16.msra.mxu0 0
        %7773 = vmatprep.subr.bf16.mxu0 0
        %7774 = vmatpush2.bf16.msra.mxu0 0
        %7775 = vmatprep.subr.bf16.mxu0 0
        %7776 = vmatpush2.bf16.msra.mxu0 0
        %7777 = vmatprep.subr.bf16.mxu0 0
        %7778 = vmatpush2.bf16.msra.mxu0 0
        %7779 = vmatprep.subr.bf16.mxu0 0
        %7780 = vmatpush2.bf16.msra.mxu0 0
        %7781 = vmatprep.mubr.bf16.mxu0 0
        %7782 = vmatmul.mubr.bf16.gmra.mxu0 %v7744
        %v7783 = vpop.f32.mrf.mxu0
        %v7784 = vadd.f32 0.0, %v7783
        %v7785 = vpop.f32.mrf.mxu0
        %v7786 = vpop.f32.mrf.mxu0
        %v7787 = vpop.f32.mrf.mxu0
        %7788 = vdwg.mxu0
        %v7790 = vsel %vm2859, %v7650, 0
        %v7793 = vsel %vm3106, %v2472, 0
        %7795 = vmatprep.subr.bf16.mxu0 0
        %7796 = vmatpush1.bf16.msra.mxu0 0
        %7797 = vmatprep.subr.bf16.mxu0 0
        %7798 = vmatpush1.bf16.msra.mxu0 0
        %7799 = vmatprep.subr.bf16.mxu0 0
        %7800 = vmatpush1.bf16.msra.mxu0 0
        %7801 = vmatprep.subr.bf16.mxu0 0
        %7802 = vmatpush1.bf16.msra.mxu0 0
        %7803 = vmatprep.subr.bf16.mxu0 0
        %7804 = vmatpush1.bf16.msra.mxu0 0
        %7805 = vmatprep.subr.bf16.mxu0 0
        %7806 = vmatpush1.bf16.msra.mxu0 0
        %7807 = vmatprep.subr.bf16.mxu0 0
        %7808 = vmatpush1.bf16.msra.mxu0 0
        %7809 = vmatprep.subr.bf16.mxu0 0
        %7810 = vmatpush1.bf16.msra.mxu0 %v7793
        %7811 = vmatprep.subr.bf16.mxu0 0
        %7812 = vmatpush2.bf16.msra.mxu0 0
        %7813 = vmatprep.subr.bf16.mxu0 0
        %7814 = vmatpush2.bf16.msra.mxu0 0
        %7815 = vmatprep.subr.bf16.mxu0 0
        %7816 = vmatpush2.bf16.msra.mxu0 0
        %7817 = vmatprep.subr.bf16.mxu0 0
        %7818 = vmatpush2.bf16.msra.mxu0 0
        %7819 = vmatprep.subr.bf16.mxu0 0
        %7820 = vmatpush2.bf16.msra.mxu0 0
        %7821 = vmatprep.subr.bf16.mxu0 0
        %7822 = vmatpush2.bf16.msra.mxu0 0
        %7823 = vmatprep.subr.bf16.mxu0 0
        %7824 = vmatpush2.bf16.msra.mxu0 0
        %7825 = vmatprep.subr.bf16.mxu0 0
        %7826 = vmatpush2.bf16.msra.mxu0 0
        %7827 = vmatprep.mubr.bf16.mxu0 0
        %7828 = vmatmul.mubr.bf16.gmra.mxu0 %v7790
        %v7829 = vpop.f32.mrf.mxu0
        %v7830 = vadd.f32 0.0, %v7829
        %v7831 = vpop.f32.mrf.mxu0
        %v7832 = vpop.f32.mrf.mxu0
        %v7833 = vpop.f32.mrf.mxu0
        %7834 = vdwg.mxu0
        %v7835 = vsel %vm2646, %v7692, 0.0
        %v7836 = vsel %vm2646, %v7738, 0.0
        %v7837 = vadd.f32 %v7835, %v7836
        %v7838 = vsel %vm2646, %v7784, 0.0
        %v7839 = vadd.f32 %v7837, %v7838
        %v7840 = vsel %vm2646, %v7830, 0.0
        %v7841 = vadd.f32 %v7839, %v7840
        %v7842 = vadd.f32 %v6970, %v7841
        %v7844 = vlaneseq
        %v7845 = vshrl.u32 %v7844, 7
        %v7846 = vsub.s32 0, %v7845
        %v7847 = vrot.slane %v2464, %v7846
        %v7849 = vadd.f32 %v7842, %v7847
        %v7850 = vsel %vm2646, %v7849, 0.0
        %7851 = vadd.xlane.f32.xlu0 %v7850
        %v7852 = vpop.xlane.xlu0 %7851
        %v7853 = vmul.f32 %v7852, %v3500
        %v7854 = vsub.f32 %v7849, %v7853
        %v7855 = vmul.f32 %v7854, %v7854
        %v7856 = vsel %vm2646, %v7855, 0.0
        %7857 = vadd.xlane.f32.xlu0 %v7856
        %v7858 = vpop.xlane.xlu0 %7857
        %v7859 = vmul.f32 %v7858, %v3500
        %v7860 = vadd.f32 %v7859, 1e-05
        %v7861 = vrsqrt.pop %v7860
        %v7862 = vmul.f32 %v7854, %v7861
        %v7864 = vlaneseq
        %v7865 = vshrl.u32 %v7864, 7
        %v7866 = vsub.s32 0, %v7865
        %v7867 = vrot.slane %v2459, %v7866
        %v7869 = vmul.f32 %v7862, %v7867
        %v7871 = vlaneseq
        %v7872 = vshrl.u32 %v7871, 7
        %v7873 = vsub.s32 0, %v7872
        %v7874 = vrot.slane %v2458, %v7873
        %v7876 = vadd.f32 %v7869, %v7874
        %v7877 = vpack.c.bf16 %v7876, %v7876
        %v7882 = vlaneseq
        %v7883 = vshrl.u32 %v7882, 7
        %v7884 = vsub.s32 0, %v7883
        %v7885 = vrot.slane %v2418, %v7884
        %v7886 = vlaneseq
        %v7887 = vshrl.u32 %v7886, 7
        %v7888 = vsub.s32 0, %v7887
        %v7889 = vrot.slane %v2419, %v7888
        %v7890 = vlaneseq
        %v7891 = vshrl.u32 %v7890, 7
        %v7892 = vsub.s32 0, %v7891
        %v7893 = vrot.slane %v2420, %v7892
        %v7894 = vlaneseq
        %v7895 = vshrl.u32 %v7894, 7
        %v7896 = vsub.s32 0, %v7895
        %v7897 = vrot.slane %v2421, %v7896
        %v7906 = vunpack.c.l.b16 %v2442
        %v7907 = vunpack.c.l.b16 %v2443
        %v7908 = vunpack.c.l.b16 %v2444
        %v7909 = vunpack.c.l.b16 %v2445
        %v7910 = vpack.c.b16 %v7907, %v7906
        %v7911 = vpack.c.b16 %v7909, %v7908
        %v7915 = vsel %vm2646, %v7877, 0
        %7917 = vmatprep.subr.bf16.mxu0 0
        %7918 = vmatpush1.bf16.msra.mxu0 0
        %7919 = vmatprep.subr.bf16.mxu0 0
        %7920 = vmatpush1.bf16.msra.mxu0 0
        %7921 = vmatprep.subr.bf16.mxu0 0
        %7922 = vmatpush1.bf16.msra.mxu0 0
        %7923 = vmatprep.subr.bf16.mxu0 0
        %7924 = vmatpush1.bf16.msra.mxu0 0
        %7925 = vmatprep.subr.bf16.mxu0 0
        %7926 = vmatpush1.bf16.msra.mxu0 0
        %7927 = vmatprep.subr.bf16.mxu0 0
        %7928 = vmatpush1.bf16.msra.mxu0 0
        %7929 = vmatprep.subr.bf16.mxu0 0
        %7930 = vmatpush1.bf16.msra.mxu0 %v7911
        %7931 = vmatprep.subr.bf16.mxu0 0
        %7932 = vmatpush1.bf16.msra.mxu0 %v7910
        %7933 = vmatprep.subr.bf16.mxu0 0
        %7934 = vmatpush2.bf16.msra.mxu0 0
        %7935 = vmatprep.subr.bf16.mxu0 0
        %7936 = vmatpush2.bf16.msra.mxu0 0
        %7937 = vmatprep.subr.bf16.mxu0 0
        %7938 = vmatpush2.bf16.msra.mxu0 0
        %7939 = vmatprep.subr.bf16.mxu0 0
        %7940 = vmatpush2.bf16.msra.mxu0 0
        %7941 = vmatprep.subr.bf16.mxu0 0
        %7942 = vmatpush2.bf16.msra.mxu0 0
        %7943 = vmatprep.subr.bf16.mxu0 0
        %7944 = vmatpush2.bf16.msra.mxu0 0
        %7945 = vmatprep.subr.bf16.mxu0 0
        %7946 = vmatpush2.bf16.msra.mxu0 0
        %7947 = vmatprep.subr.bf16.mxu0 0
        %7948 = vmatpush2.bf16.msra.mxu0 0
        %7949 = vmatprep.mubr.bf16.mxu0 0
        %7950 = vmatmul.mubr.bf16.gmra.mxu0 %v7915
        %v7951 = vpop.f32.mrf.mxu0
        %v7952 = vadd.f32 %v7885, %v7951
        %v7953 = vpop.f32.mrf.mxu0
        %v7954 = vpop.f32.mrf.mxu0
        %v7955 = vpop.f32.mrf.mxu0
        %7956 = vdwg.mxu0
        %v7961 = vunpack.c.l.b16 %v2446
        %v7962 = vunpack.c.l.b16 %v2447
        %v7963 = vunpack.c.l.b16 %v2448
        %v7964 = vunpack.c.l.b16 %v2449
        %v7965 = vpack.c.b16 %v7962, %v7961
        %v7966 = vpack.c.b16 %v7964, %v7963
        %7969 = vmatprep.subr.bf16.mxu0 0
        %7970 = vmatpush1.bf16.msra.mxu0 0
        %7971 = vmatprep.subr.bf16.mxu0 0
        %7972 = vmatpush1.bf16.msra.mxu0 0
        %7973 = vmatprep.subr.bf16.mxu0 0
        %7974 = vmatpush1.bf16.msra.mxu0 0
        %7975 = vmatprep.subr.bf16.mxu0 0
        %7976 = vmatpush1.bf16.msra.mxu0 0
        %7977 = vmatprep.subr.bf16.mxu0 0
        %7978 = vmatpush1.bf16.msra.mxu0 0
        %7979 = vmatprep.subr.bf16.mxu0 0
        %7980 = vmatpush1.bf16.msra.mxu0 0
        %7981 = vmatprep.subr.bf16.mxu0 0
        %7982 = vmatpush1.bf16.msra.mxu0 %v7966
        %7983 = vmatprep.subr.bf16.mxu0 0
        %7984 = vmatpush1.bf16.msra.mxu0 %v7965
        %7985 = vmatprep.subr.bf16.mxu0 0
        %7986 = vmatpush2.bf16.msra.mxu0 0
        %7987 = vmatprep.subr.bf16.mxu0 0
        %7988 = vmatpush2.bf16.msra.mxu0 0
        %7989 = vmatprep.subr.bf16.mxu0 0
        %7990 = vmatpush2.bf16.msra.mxu0 0
        %7991 = vmatprep.subr.bf16.mxu0 0
        %7992 = vmatpush2.bf16.msra.mxu0 0
        %7993 = vmatprep.subr.bf16.mxu0 0
        %7994 = vmatpush2.bf16.msra.mxu0 0
        %7995 = vmatprep.subr.bf16.mxu0 0
        %7996 = vmatpush2.bf16.msra.mxu0 0
        %7997 = vmatprep.subr.bf16.mxu0 0
        %7998 = vmatpush2.bf16.msra.mxu0 0
        %7999 = vmatprep.subr.bf16.mxu0 0
        %8000 = vmatpush2.bf16.msra.mxu0 0
        %8001 = vmatprep.mubr.bf16.mxu0 0
        %8002 = vmatmul.mubr.bf16.gmra.mxu0 %v7915
        %v8003 = vpop.f32.mrf.mxu0
        %v8004 = vadd.f32 %v7889, %v8003
        %v8005 = vpop.f32.mrf.mxu0
        %v8006 = vpop.f32.mrf.mxu0
        %v8007 = vpop.f32.mrf.mxu0
        %8008 = vdwg.mxu0
        %v8013 = vunpack.c.l.b16 %v2450
        %v8014 = vunpack.c.l.b16 %v2451
        %v8015 = vunpack.c.l.b16 %v2452
        %v8016 = vunpack.c.l.b16 %v2453
        %v8017 = vpack.c.b16 %v8014, %v8013
        %v8018 = vpack.c.b16 %v8016, %v8015
        %8021 = vmatprep.subr.bf16.mxu0 0
        %8022 = vmatpush1.bf16.msra.mxu0 0
        %8023 = vmatprep.subr.bf16.mxu0 0
        %8024 = vmatpush1.bf16.msra.mxu0 0
        %8025 = vmatprep.subr.bf16.mxu0 0
        %8026 = vmatpush1.bf16.msra.mxu0 0
        %8027 = vmatprep.subr.bf16.mxu0 0
        %8028 = vmatpush1.bf16.msra.mxu0 0
        %8029 = vmatprep.subr.bf16.mxu0 0
        %8030 = vmatpush1.bf16.msra.mxu0 0
        %8031 = vmatprep.subr.bf16.mxu0 0
        %8032 = vmatpush1.bf16.msra.mxu0 0
        %8033 = vmatprep.subr.bf16.mxu0 0
        %8034 = vmatpush1.bf16.msra.mxu0 %v8018
        %8035 = vmatprep.subr.bf16.mxu0 0
        %8036 = vmatpush1.bf16.msra.mxu0 %v8017
        %8037 = vmatprep.subr.bf16.mxu0 0
        %8038 = vmatpush2.bf16.msra.mxu0 0
        %8039 = vmatprep.subr.bf16.mxu0 0
        %8040 = vmatpush2.bf16.msra.mxu0 0
        %8041 = vmatprep.subr.bf16.mxu0 0
        %8042 = vmatpush2.bf16.msra.mxu0 0
        %8043 = vmatprep.subr.bf16.mxu0 0
        %8044 = vmatpush2.bf16.msra.mxu0 0
        %8045 = vmatprep.subr.bf16.mxu0 0
        %8046 = vmatpush2.bf16.msra.mxu0 0
        %8047 = vmatprep.subr.bf16.mxu0 0
        %8048 = vmatpush2.bf16.msra.mxu0 0
        %8049 = vmatprep.subr.bf16.mxu0 0
        %8050 = vmatpush2.bf16.msra.mxu0 0
        %8051 = vmatprep.subr.bf16.mxu0 0
        %8052 = vmatpush2.bf16.msra.mxu0 0
        %8053 = vmatprep.mubr.bf16.mxu0 0
        %8054 = vmatmul.mubr.bf16.gmra.mxu0 %v7915
        %v8055 = vpop.f32.mrf.mxu0
        %v8056 = vadd.f32 %v7893, %v8055
        %v8057 = vpop.f32.mrf.mxu0
        %v8058 = vpop.f32.mrf.mxu0
        %v8059 = vpop.f32.mrf.mxu0
        %8060 = vdwg.mxu0
        %v8065 = vunpack.c.l.b16 %v2454
        %v8066 = vunpack.c.l.b16 %v2455
        %v8067 = vunpack.c.l.b16 %v2456
        %v8068 = vunpack.c.l.b16 %v2457
        %v8069 = vpack.c.b16 %v8066, %v8065
        %v8070 = vpack.c.b16 %v8068, %v8067
        %8073 = vmatprep.subr.bf16.mxu0 0
        %8074 = vmatpush1.bf16.msra.mxu0 0
        %8075 = vmatprep.subr.bf16.mxu0 0
        %8076 = vmatpush1.bf16.msra.mxu0 0
        %8077 = vmatprep.subr.bf16.mxu0 0
        %8078 = vmatpush1.bf16.msra.mxu0 0
        %8079 = vmatprep.subr.bf16.mxu0 0
        %8080 = vmatpush1.bf16.msra.mxu0 0
        %8081 = vmatprep.subr.bf16.mxu0 0
        %8082 = vmatpush1.bf16.msra.mxu0 0
        %8083 = vmatprep.subr.bf16.mxu0 0
        %8084 = vmatpush1.bf16.msra.mxu0 0
        %8085 = vmatprep.subr.bf16.mxu0 0
        %8086 = vmatpush1.bf16.msra.mxu0 %v8070
        %8087 = vmatprep.subr.bf16.mxu0 0
        %8088 = vmatpush1.bf16.msra.mxu0 %v8069
        %8089 = vmatprep.subr.bf16.mxu0 0
        %8090 = vmatpush2.bf16.msra.mxu0 0
        %8091 = vmatprep.subr.bf16.mxu0 0
        %8092 = vmatpush2.bf16.msra.mxu0 0
        %8093 = vmatprep.subr.bf16.mxu0 0
        %8094 = vmatpush2.bf16.msra.mxu0 0
        %8095 = vmatprep.subr.bf16.mxu0 0
        %8096 = vmatpush2.bf16.msra.mxu0 0
        %8097 = vmatprep.subr.bf16.mxu0 0
        %8098 = vmatpush2.bf16.msra.mxu0 0
        %8099 = vmatprep.subr.bf16.mxu0 0
        %8100 = vmatpush2.bf16.msra.mxu0 0
        %8101 = vmatprep.subr.bf16.mxu0 0
        %8102 = vmatpush2.bf16.msra.mxu0 0
        %8103 = vmatprep.subr.bf16.mxu0 0
        %8104 = vmatpush2.bf16.msra.mxu0 0
        %8105 = vmatprep.mubr.bf16.mxu0 0
        %8106 = vmatmul.mubr.bf16.gmra.mxu0 %v7915
        %v8107 = vpop.f32.mrf.mxu0
        %v8108 = vadd.f32 %v7897, %v8107
        %v8109 = vpop.f32.mrf.mxu0
        %v8110 = vpop.f32.mrf.mxu0
        %v8111 = vpop.f32.mrf.mxu0
        %8112 = vdwg.mxu0
        %v8117 = vlaneseq
        %v8118 = vshrl.u32 %v8117, 7
        %v8119 = vsub.s32 0, %v8118
        %v8120 = vrot.slane %v2413, %v8119
        %v8121 = vlaneseq
        %v8122 = vshrl.u32 %v8121, 7
        %v8123 = vsub.s32 0, %v8122
        %v8124 = vrot.slane %v2414, %v8123
        %v8125 = vlaneseq
        %v8126 = vshrl.u32 %v8125, 7
        %v8127 = vsub.s32 0, %v8126
        %v8128 = vrot.slane %v2415, %v8127
        %v8129 = vlaneseq
        %v8130 = vshrl.u32 %v8129, 7
        %v8131 = vsub.s32 0, %v8130
        %v8132 = vrot.slane %v2416, %v8131
        %v8141 = vunpack.c.l.b16 %v2422
        %v8142 = vunpack.c.l.b16 %v2423
        %v8143 = vunpack.c.l.b16 %v2424
        %v8144 = vunpack.c.l.b16 %v2425
        %v8145 = vpack.c.b16 %v8142, %v8141
        %v8146 = vpack.c.b16 %v8144, %v8143
        %8149 = vmatprep.subr.bf16.mxu0 0
        %8150 = vmatpush1.bf16.msra.mxu0 0
        %8151 = vmatprep.subr.bf16.mxu0 0
        %8152 = vmatpush1.bf16.msra.mxu0 0
        %8153 = vmatprep.subr.bf16.mxu0 0
        %8154 = vmatpush1.bf16.msra.mxu0 0
        %8155 = vmatprep.subr.bf16.mxu0 0
        %8156 = vmatpush1.bf16.msra.mxu0 0
        %8157 = vmatprep.subr.bf16.mxu0 0
        %8158 = vmatpush1.bf16.msra.mxu0 0
        %8159 = vmatprep.subr.bf16.mxu0 0
        %8160 = vmatpush1.bf16.msra.mxu0 0
        %8161 = vmatprep.subr.bf16.mxu0 0
        %8162 = vmatpush1.bf16.msra.mxu0 %v8146
        %8163 = vmatprep.subr.bf16.mxu0 0
        %8164 = vmatpush1.bf16.msra.mxu0 %v8145
        %8165 = vmatprep.subr.bf16.mxu0 0
        %8166 = vmatpush2.bf16.msra.mxu0 0
        %8167 = vmatprep.subr.bf16.mxu0 0
        %8168 = vmatpush2.bf16.msra.mxu0 0
        %8169 = vmatprep.subr.bf16.mxu0 0
        %8170 = vmatpush2.bf16.msra.mxu0 0
        %8171 = vmatprep.subr.bf16.mxu0 0
        %8172 = vmatpush2.bf16.msra.mxu0 0
        %8173 = vmatprep.subr.bf16.mxu0 0
        %8174 = vmatpush2.bf16.msra.mxu0 0
        %8175 = vmatprep.subr.bf16.mxu0 0
        %8176 = vmatpush2.bf16.msra.mxu0 0
        %8177 = vmatprep.subr.bf16.mxu0 0
        %8178 = vmatpush2.bf16.msra.mxu0 0
        %8179 = vmatprep.subr.bf16.mxu0 0
        %8180 = vmatpush2.bf16.msra.mxu0 0
        %8181 = vmatprep.mubr.bf16.mxu0 0
        %8182 = vmatmul.mubr.bf16.gmra.mxu0 %v5942
        %v8183 = vpop.f32.mrf.mxu0
        %v8184 = vadd.f32 %v8120, %v8183
        %v8185 = vpop.f32.mrf.mxu0
        %v8186 = vpop.f32.mrf.mxu0
        %v8187 = vpop.f32.mrf.mxu0
        %8188 = vdwg.mxu0
        %v8193 = vunpack.c.l.b16 %v2426
        %v8194 = vunpack.c.l.b16 %v2427
        %v8195 = vunpack.c.l.b16 %v2428
        %v8196 = vunpack.c.l.b16 %v2429
        %v8197 = vpack.c.b16 %v8194, %v8193
        %v8198 = vpack.c.b16 %v8196, %v8195
        %8201 = vmatprep.subr.bf16.mxu0 0
        %8202 = vmatpush1.bf16.msra.mxu0 0
        %8203 = vmatprep.subr.bf16.mxu0 0
        %8204 = vmatpush1.bf16.msra.mxu0 0
        %8205 = vmatprep.subr.bf16.mxu0 0
        %8206 = vmatpush1.bf16.msra.mxu0 0
        %8207 = vmatprep.subr.bf16.mxu0 0
        %8208 = vmatpush1.bf16.msra.mxu0 0
        %8209 = vmatprep.subr.bf16.mxu0 0
        %8210 = vmatpush1.bf16.msra.mxu0 0
        %8211 = vmatprep.subr.bf16.mxu0 0
        %8212 = vmatpush1.bf16.msra.mxu0 0
        %8213 = vmatprep.subr.bf16.mxu0 0
        %8214 = vmatpush1.bf16.msra.mxu0 %v8198
        %8215 = vmatprep.subr.bf16.mxu0 0
        %8216 = vmatpush1.bf16.msra.mxu0 %v8197
        %8217 = vmatprep.subr.bf16.mxu0 0
        %8218 = vmatpush2.bf16.msra.mxu0 0
        %8219 = vmatprep.subr.bf16.mxu0 0
        %8220 = vmatpush2.bf16.msra.mxu0 0
        %8221 = vmatprep.subr.bf16.mxu0 0
        %8222 = vmatpush2.bf16.msra.mxu0 0
        %8223 = vmatprep.subr.bf16.mxu0 0
        %8224 = vmatpush2.bf16.msra.mxu0 0
        %8225 = vmatprep.subr.bf16.mxu0 0
        %8226 = vmatpush2.bf16.msra.mxu0 0
        %8227 = vmatprep.subr.bf16.mxu0 0
        %8228 = vmatpush2.bf16.msra.mxu0 0
        %8229 = vmatprep.subr.bf16.mxu0 0
        %8230 = vmatpush2.bf16.msra.mxu0 0
        %8231 = vmatprep.subr.bf16.mxu0 0
        %8232 = vmatpush2.bf16.msra.mxu0 0
        %8233 = vmatprep.mubr.bf16.mxu0 0
        %8234 = vmatmul.mubr.bf16.gmra.mxu0 %v5942
        %v8235 = vpop.f32.mrf.mxu0
        %v8236 = vadd.f32 %v8124, %v8235
        %v8237 = vpop.f32.mrf.mxu0
        %v8238 = vpop.f32.mrf.mxu0
        %v8239 = vpop.f32.mrf.mxu0
        %8240 = vdwg.mxu0
        %v8245 = vunpack.c.l.b16 %v2430
        %v8246 = vunpack.c.l.b16 %v2431
        %v8247 = vunpack.c.l.b16 %v2432
        %v8248 = vunpack.c.l.b16 %v2433
        %v8249 = vpack.c.b16 %v8246, %v8245
        %v8250 = vpack.c.b16 %v8248, %v8247
        %8253 = vmatprep.subr.bf16.mxu0 0
        %8254 = vmatpush1.bf16.msra.mxu0 0
        %8255 = vmatprep.subr.bf16.mxu0 0
        %8256 = vmatpush1.bf16.msra.mxu0 0
        %8257 = vmatprep.subr.bf16.mxu0 0
        %8258 = vmatpush1.bf16.msra.mxu0 0
        %8259 = vmatprep.subr.bf16.mxu0 0
        %8260 = vmatpush1.bf16.msra.mxu0 0
        %8261 = vmatprep.subr.bf16.mxu0 0
        %8262 = vmatpush1.bf16.msra.mxu0 0
        %8263 = vmatprep.subr.bf16.mxu0 0
        %8264 = vmatpush1.bf16.msra.mxu0 0
        %8265 = vmatprep.subr.bf16.mxu0 0
        %8266 = vmatpush1.bf16.msra.mxu0 %v8250
        %8267 = vmatprep.subr.bf16.mxu0 0
        %8268 = vmatpush1.bf16.msra.mxu0 %v8249
        %8269 = vmatprep.subr.bf16.mxu0 0
        %8270 = vmatpush2.bf16.msra.mxu0 0
        %8271 = vmatprep.subr.bf16.mxu0 0
        %8272 = vmatpush2.bf16.msra.mxu0 0
        %8273 = vmatprep.subr.bf16.mxu0 0
        %8274 = vmatpush2.bf16.msra.mxu0 0
        %8275 = vmatprep.subr.bf16.mxu0 0
        %8276 = vmatpush2.bf16.msra.mxu0 0
        %8277 = vmatprep.subr.bf16.mxu0 0
        %8278 = vmatpush2.bf16.msra.mxu0 0
        %8279 = vmatprep.subr.bf16.mxu0 0
        %8280 = vmatpush2.bf16.msra.mxu0 0
        %8281 = vmatprep.subr.bf16.mxu0 0
        %8282 = vmatpush2.bf16.msra.mxu0 0
        %8283 = vmatprep.subr.bf16.mxu0 0
        %8284 = vmatpush2.bf16.msra.mxu0 0
        %8285 = vmatprep.mubr.bf16.mxu0 0
        %8286 = vmatmul.mubr.bf16.gmra.mxu0 %v5942
        %v8287 = vpop.f32.mrf.mxu0
        %v8288 = vadd.f32 %v8128, %v8287
        %v8289 = vpop.f32.mrf.mxu0
        %v8290 = vpop.f32.mrf.mxu0
        %v8291 = vpop.f32.mrf.mxu0
        %8292 = vdwg.mxu0
        %v8297 = vunpack.c.l.b16 %v2434
        %v8298 = vunpack.c.l.b16 %v2435
        %v8299 = vunpack.c.l.b16 %v2436
        %v8300 = vunpack.c.l.b16 %v2437
        %v8301 = vpack.c.b16 %v8298, %v8297
        %v8302 = vpack.c.b16 %v8300, %v8299
        %8305 = vmatprep.subr.bf16.mxu0 0
        %8306 = vmatpush1.bf16.msra.mxu0 0
        %8307 = vmatprep.subr.bf16.mxu0 0
        %8308 = vmatpush1.bf16.msra.mxu0 0
        %8309 = vmatprep.subr.bf16.mxu0 0
        %8310 = vmatpush1.bf16.msra.mxu0 0
        %8311 = vmatprep.subr.bf16.mxu0 0
        %8312 = vmatpush1.bf16.msra.mxu0 0
        %8313 = vmatprep.subr.bf16.mxu0 0
        %8314 = vmatpush1.bf16.msra.mxu0 0
        %8315 = vmatprep.subr.bf16.mxu0 0
        %8316 = vmatpush1.bf16.msra.mxu0 0
        %8317 = vmatprep.subr.bf16.mxu0 0
        %8318 = vmatpush1.bf16.msra.mxu0 %v8302
        %8319 = vmatprep.subr.bf16.mxu0 0
        %8320 = vmatpush1.bf16.msra.mxu0 %v8301
        %8321 = vmatprep.subr.bf16.mxu0 0
        %8322 = vmatpush2.bf16.msra.mxu0 0
        %8323 = vmatprep.subr.bf16.mxu0 0
        %8324 = vmatpush2.bf16.msra.mxu0 0
        %8325 = vmatprep.subr.bf16.mxu0 0
        %8326 = vmatpush2.bf16.msra.mxu0 0
        %8327 = vmatprep.subr.bf16.mxu0 0
        %8328 = vmatpush2.bf16.msra.mxu0 0
        %8329 = vmatprep.subr.bf16.mxu0 0
        %8330 = vmatpush2.bf16.msra.mxu0 0
        %8331 = vmatprep.subr.bf16.mxu0 0
        %8332 = vmatpush2.bf16.msra.mxu0 0
        %8333 = vmatprep.subr.bf16.mxu0 0
        %8334 = vmatpush2.bf16.msra.mxu0 0
        %8335 = vmatprep.subr.bf16.mxu0 0
        %8336 = vmatpush2.bf16.msra.mxu0 0
        %8337 = vmatprep.mubr.bf16.mxu0 0
        %8338 = vmatmul.mubr.bf16.gmra.mxu0 %v5942
        %v8339 = vpop.f32.mrf.mxu0
        %v8340 = vadd.f32 %v8132, %v8339
        %v8341 = vpop.f32.mrf.mxu0
        %v8342 = vpop.f32.mrf.mxu0
        %v8343 = vpop.f32.mrf.mxu0
        %8344 = vdwg.mxu0
        %v8345 = vpack.c.bf16 %v7952, %v7952
        %v8346 = vpack.c.bf16 %v8004, %v8004
        %v8347 = vpack.c.bf16 %v8056, %v8056
        %v8348 = vpack.c.bf16 %v8108, %v8108
        %v8349 = vpack.c.bf16 %v8184, %v8184
        %v8350 = vpack.c.bf16 %v8236, %v8236
        %v8351 = vpack.c.bf16 %v8288, %v8288
        %v8352 = vpack.c.bf16 %v8340, %v8340
        %v8354 = vsel %vm2859, %v8345, 0
        %v8357 = vsel %vm2859, %v8349, 0
        %8359 = vmatprep.subr.bf16.mxu0 0
        %8360 = vmatpush1.bf16.xpose.msra.mxu0 0
        %8361 = vmatprep.subr.bf16.mxu0 0
        %8362 = vmatpush1.bf16.xpose.msra.mxu0 0
        %8363 = vmatprep.subr.bf16.mxu0 0
        %8364 = vmatpush1.bf16.xpose.msra.mxu0 0
        %8365 = vmatprep.subr.bf16.mxu0 0
        %8366 = vmatpush1.bf16.xpose.msra.mxu0 0
        %8367 = vmatprep.subr.bf16.mxu0 0
        %8368 = vmatpush1.bf16.xpose.msra.mxu0 0
        %8369 = vmatprep.subr.bf16.mxu0 0
        %8370 = vmatpush1.bf16.xpose.msra.mxu0 0
        %8371 = vmatprep.subr.bf16.mxu0 0
        %8372 = vmatpush1.bf16.xpose.msra.mxu0 0
        %8373 = vmatprep.subr.bf16.mxu0 0
        %8374 = vmatpush1.bf16.xpose.msra.mxu0 %v8357
        %8375 = vmatprep.subr.bf16.mxu0 0
        %8376 = vmatpush2.bf16.xpose.msra.mxu0 0
        %8377 = vmatprep.subr.bf16.mxu0 0
        %8378 = vmatpush2.bf16.xpose.msra.mxu0 0
        %8379 = vmatprep.subr.bf16.mxu0 0
        %8380 = vmatpush2.bf16.xpose.msra.mxu0 0
        %8381 = vmatprep.subr.bf16.mxu0 0
        %8382 = vmatpush2.bf16.xpose.msra.mxu0 0
        %8383 = vmatprep.subr.bf16.mxu0 0
        %8384 = vmatpush2.bf16.xpose.msra.mxu0 0
        %8385 = vmatprep.subr.bf16.mxu0 0
        %8386 = vmatpush2.bf16.xpose.msra.mxu0 0
        %8387 = vmatprep.subr.bf16.mxu0 0
        %8388 = vmatpush2.bf16.xpose.msra.mxu0 0
        %8389 = vmatprep.subr.bf16.mxu0 0
        %8390 = vmatpush2.bf16.xpose.msra.mxu0 0
        %8391 = vmatprep.mubr.bf16.mxu0 0
        %8392 = vmatmul.mubr.bf16.gmra.mxu0 %v8354
        %v8393 = vpop.f32.mrf.mxu0
        %v8394 = vadd.f32 %v2854, %v8393
        %v8395 = vpop.f32.mrf.mxu0
        %v8396 = vpop.f32.mrf.mxu0
        %v8397 = vpop.f32.mrf.mxu0
        %8398 = vdwg.mxu0
        %v8400 = vsel %vm2859, %v8346, 0
        %v8403 = vsel %vm2859, %v8350, 0
        %8405 = vmatprep.subr.bf16.mxu0 0
        %8406 = vmatpush1.bf16.xpose.msra.mxu0 0
        %8407 = vmatprep.subr.bf16.mxu0 0
        %8408 = vmatpush1.bf16.xpose.msra.mxu0 0
        %8409 = vmatprep.subr.bf16.mxu0 0
        %8410 = vmatpush1.bf16.xpose.msra.mxu0 0
        %8411 = vmatprep.subr.bf16.mxu0 0
        %8412 = vmatpush1.bf16.xpose.msra.mxu0 0
        %8413 = vmatprep.subr.bf16.mxu0 0
        %8414 = vmatpush1.bf16.xpose.msra.mxu0 0
        %8415 = vmatprep.subr.bf16.mxu0 0
        %8416 = vmatpush1.bf16.xpose.msra.mxu0 0
        %8417 = vmatprep.subr.bf16.mxu0 0
        %8418 = vmatpush1.bf16.xpose.msra.mxu0 0
        %8419 = vmatprep.subr.bf16.mxu0 0
        %8420 = vmatpush1.bf16.xpose.msra.mxu0 %v8403
        %8421 = vmatprep.subr.bf16.mxu0 0
        %8422 = vmatpush2.bf16.xpose.msra.mxu0 0
        %8423 = vmatprep.subr.bf16.mxu0 0
        %8424 = vmatpush2.bf16.xpose.msra.mxu0 0
        %8425 = vmatprep.subr.bf16.mxu0 0
        %8426 = vmatpush2.bf16.xpose.msra.mxu0 0
        %8427 = vmatprep.subr.bf16.mxu0 0
        %8428 = vmatpush2.bf16.xpose.msra.mxu0 0
        %8429 = vmatprep.subr.bf16.mxu0 0
        %8430 = vmatpush2.bf16.xpose.msra.mxu0 0
        %8431 = vmatprep.subr.bf16.mxu0 0
        %8432 = vmatpush2.bf16.xpose.msra.mxu0 0
        %8433 = vmatprep.subr.bf16.mxu0 0
        %8434 = vmatpush2.bf16.xpose.msra.mxu0 0
        %8435 = vmatprep.subr.bf16.mxu0 0
        %8436 = vmatpush2.bf16.xpose.msra.mxu0 0
        %8437 = vmatprep.mubr.bf16.mxu0 0
        %8438 = vmatmul.mubr.bf16.gmra.mxu0 %v8400
        %v8439 = vpop.f32.mrf.mxu0
        %v8440 = vadd.f32 %v2854, %v8439
        %v8441 = vpop.f32.mrf.mxu0
        %v8442 = vpop.f32.mrf.mxu0
        %v8443 = vpop.f32.mrf.mxu0
        %8444 = vdwg.mxu0
        %v8446 = vsel %vm2859, %v8347, 0
        %v8449 = vsel %vm2859, %v8351, 0
        %8451 = vmatprep.subr.bf16.mxu0 0
        %8452 = vmatpush1.bf16.xpose.msra.mxu0 0
        %8453 = vmatprep.subr.bf16.mxu0 0
        %8454 = vmatpush1.bf16.xpose.msra.mxu0 0
        %8455 = vmatprep.subr.bf16.mxu0 0
        %8456 = vmatpush1.bf16.xpose.msra.mxu0 0
        %8457 = vmatprep.subr.bf16.mxu0 0
        %8458 = vmatpush1.bf16.xpose.msra.mxu0 0
        %8459 = vmatprep.subr.bf16.mxu0 0
        %8460 = vmatpush1.bf16.xpose.msra.mxu0 0
        %8461 = vmatprep.subr.bf16.mxu0 0
        %8462 = vmatpush1.bf16.xpose.msra.mxu0 0
        %8463 = vmatprep.subr.bf16.mxu0 0
        %8464 = vmatpush1.bf16.xpose.msra.mxu0 0
        %8465 = vmatprep.subr.bf16.mxu0 0
        %8466 = vmatpush1.bf16.xpose.msra.mxu0 %v8449
        %8467 = vmatprep.subr.bf16.mxu0 0
        %8468 = vmatpush2.bf16.xpose.msra.mxu0 0
        %8469 = vmatprep.subr.bf16.mxu0 0
        %8470 = vmatpush2.bf16.xpose.msra.mxu0 0
        %8471 = vmatprep.subr.bf16.mxu0 0
        %8472 = vmatpush2.bf16.xpose.msra.mxu0 0
        %8473 = vmatprep.subr.bf16.mxu0 0
        %8474 = vmatpush2.bf16.xpose.msra.mxu0 0
        %8475 = vmatprep.subr.bf16.mxu0 0
        %8476 = vmatpush2.bf16.xpose.msra.mxu0 0
        %8477 = vmatprep.subr.bf16.mxu0 0
        %8478 = vmatpush2.bf16.xpose.msra.mxu0 0
        %8479 = vmatprep.subr.bf16.mxu0 0
        %8480 = vmatpush2.bf16.xpose.msra.mxu0 0
        %8481 = vmatprep.subr.bf16.mxu0 0
        %8482 = vmatpush2.bf16.xpose.msra.mxu0 0
        %8483 = vmatprep.mubr.bf16.mxu0 0
        %8484 = vmatmul.mubr.bf16.gmra.mxu0 %v8446
        %v8485 = vpop.f32.mrf.mxu0
        %v8486 = vadd.f32 %v2854, %v8485
        %v8487 = vpop.f32.mrf.mxu0
        %v8488 = vpop.f32.mrf.mxu0
        %v8489 = vpop.f32.mrf.mxu0
        %8490 = vdwg.mxu0
        %v8492 = vsel %vm2859, %v8348, 0
        %v8495 = vsel %vm2859, %v8352, 0
        %8497 = vmatprep.subr.bf16.mxu0 0
        %8498 = vmatpush1.bf16.xpose.msra.mxu0 0
        %8499 = vmatprep.subr.bf16.mxu0 0
        %8500 = vmatpush1.bf16.xpose.msra.mxu0 0
        %8501 = vmatprep.subr.bf16.mxu0 0
        %8502 = vmatpush1.bf16.xpose.msra.mxu0 0
        %8503 = vmatprep.subr.bf16.mxu0 0
        %8504 = vmatpush1.bf16.xpose.msra.mxu0 0
        %8505 = vmatprep.subr.bf16.mxu0 0
        %8506 = vmatpush1.bf16.xpose.msra.mxu0 0
        %8507 = vmatprep.subr.bf16.mxu0 0
        %8508 = vmatpush1.bf16.xpose.msra.mxu0 0
        %8509 = vmatprep.subr.bf16.mxu0 0
        %8510 = vmatpush1.bf16.xpose.msra.mxu0 0
        %8511 = vmatprep.subr.bf16.mxu0 0
        %8512 = vmatpush1.bf16.xpose.msra.mxu0 %v8495
        %8513 = vmatprep.subr.bf16.mxu0 0
        %8514 = vmatpush2.bf16.xpose.msra.mxu0 0
        %8515 = vmatprep.subr.bf16.mxu0 0
        %8516 = vmatpush2.bf16.xpose.msra.mxu0 0
        %8517 = vmatprep.subr.bf16.mxu0 0
        %8518 = vmatpush2.bf16.xpose.msra.mxu0 0
        %8519 = vmatprep.subr.bf16.mxu0 0
        %8520 = vmatpush2.bf16.xpose.msra.mxu0 0
        %8521 = vmatprep.subr.bf16.mxu0 0
        %8522 = vmatpush2.bf16.xpose.msra.mxu0 0
        %8523 = vmatprep.subr.bf16.mxu0 0
        %8524 = vmatpush2.bf16.xpose.msra.mxu0 0
        %8525 = vmatprep.subr.bf16.mxu0 0
        %8526 = vmatpush2.bf16.xpose.msra.mxu0 0
        %8527 = vmatprep.subr.bf16.mxu0 0
        %8528 = vmatpush2.bf16.xpose.msra.mxu0 0
        %8529 = vmatprep.mubr.bf16.mxu0 0
        %8530 = vmatmul.mubr.bf16.gmra.mxu0 %v8492
        %v8531 = vpop.f32.mrf.mxu0
        %v8532 = vadd.f32 %v2854, %v8531
        %v8533 = vpop.f32.mrf.mxu0
        %v8534 = vpop.f32.mrf.mxu0
        %v8535 = vpop.f32.mrf.mxu0
        %8536 = vdwg.mxu0
        %v8537 = vsel %vm2859, %v8394, -inf
        %8538 = vmax.xlane.f32.xlu0 %v8537
        %v8539 = vpop.xlane.xlu0 %8538
        %v8540 = vsel %vm2859, %v8440, -inf
        %8541 = vmax.xlane.f32.xlu0 %v8540
        %v8542 = vpop.xlane.xlu0 %8541
        %v8543 = vsel %vm2859, %v8486, -inf
        %8544 = vmax.xlane.f32.xlu0 %v8543
        %v8545 = vpop.xlane.xlu0 %8544
        %v8546 = vsel %vm2859, %v8532, -inf
        %8547 = vmax.xlane.f32.xlu0 %v8546
        %v8548 = vpop.xlane.xlu0 %8547
        %v8549 = vsub.f32 %v8394, %v8539
        %v8550 = vsub.f32 %v8440, %v8542
        %v8551 = vsub.f32 %v8486, %v8545
        %v8552 = vsub.f32 %v8532, %v8548
        %v8553 = vmul.f32 %v8549, 1.442695
        %v8554 = vpow.pop %v8553
        %v8555 = vmul.f32 %v8550, 1.442695
        %v8556 = vpow.pop %v8555
        %v8557 = vmul.f32 %v8551, 1.442695
        %v8558 = vpow.pop %v8557
        %v8559 = vmul.f32 %v8552, 1.442695
        %v8560 = vpow.pop %v8559
        %v8561 = vsel %vm2859, %v8554, 0.0
        %8562 = vadd.xlane.f32.xlu0 %v8561
        %v8563 = vpop.xlane.xlu0 %8562
        %v8564 = vsel %vm2859, %v8556, 0.0
        %8565 = vadd.xlane.f32.xlu0 %v8564
        %v8566 = vpop.xlane.xlu0 %8565
        %v8567 = vsel %vm2859, %v8558, 0.0
        %8568 = vadd.xlane.f32.xlu0 %v8567
        %v8569 = vpop.xlane.xlu0 %8568
        %v8570 = vsel %vm2859, %v8560, 0.0
        %8571 = vadd.xlane.f32.xlu0 %v8570
        %v8572 = vpop.xlane.xlu0 %8571
        %v8573 = vrcp.pop %v8563
        %v8574 = vrcp.pop %v8566
        %v8575 = vrcp.pop %v8569
        %v8576 = vrcp.pop %v8572
        %v8577 = vmul.f32 %v8554, %v8573
        %v8578 = vmul.f32 %v8556, %v8574
        %v8579 = vmul.f32 %v8558, %v8575
        %v8580 = vmul.f32 %v8560, %v8576
        %v8581 = vpack.c.bf16 %v8577, %v8577
        %v8582 = vpack.c.bf16 %v8578, %v8578
        %v8583 = vpack.c.bf16 %v8579, %v8579
        %v8584 = vpack.c.bf16 %v8580, %v8580
        %8586 = vrot.lane.b32.xlu0 %v8349, 120
        %v8587 = vpop.permute.xlu0 %8586
        %v8589 = vsel %vm2859, %v8581, 0
        %v8592 = vsel %vm3106, %v8587, 0
        %8594 = vmatprep.subr.bf16.mxu0 0
        %8595 = vmatpush1.bf16.msra.mxu0 0
        %8596 = vmatprep.subr.bf16.mxu0 0
        %8597 = vmatpush1.bf16.msra.mxu0 0
        %8598 = vmatprep.subr.bf16.mxu0 0
        %8599 = vmatpush1.bf16.msra.mxu0 0
        %8600 = vmatprep.subr.bf16.mxu0 0
        %8601 = vmatpush1.bf16.msra.mxu0 0
        %8602 = vmatprep.subr.bf16.mxu0 0
        %8603 = vmatpush1.bf16.msra.mxu0 0
        %8604 = vmatprep.subr.bf16.mxu0 0
        %8605 = vmatpush1.bf16.msra.mxu0 0
        %8606 = vmatprep.subr.bf16.mxu0 0
        %8607 = vmatpush1.bf16.msra.mxu0 0
        %8608 = vmatprep.subr.bf16.mxu0 0
        %8609 = vmatpush1.bf16.msra.mxu0 %v8592
        %8610 = vmatprep.subr.bf16.mxu0 0
        %8611 = vmatpush2.bf16.msra.mxu0 0
        %8612 = vmatprep.subr.bf16.mxu0 0
        %8613 = vmatpush2.bf16.msra.mxu0 0
        %8614 = vmatprep.subr.bf16.mxu0 0
        %8615 = vmatpush2.bf16.msra.mxu0 0
        %8616 = vmatprep.subr.bf16.mxu0 0
        %8617 = vmatpush2.bf16.msra.mxu0 0
        %8618 = vmatprep.subr.bf16.mxu0 0
        %8619 = vmatpush2.bf16.msra.mxu0 0
        %8620 = vmatprep.subr.bf16.mxu0 0
        %8621 = vmatpush2.bf16.msra.mxu0 0
        %8622 = vmatprep.subr.bf16.mxu0 0
        %8623 = vmatpush2.bf16.msra.mxu0 0
        %8624 = vmatprep.subr.bf16.mxu0 0
        %8625 = vmatpush2.bf16.msra.mxu0 0
        %8626 = vmatprep.mubr.bf16.mxu0 0
        %8627 = vmatmul.mubr.bf16.gmra.mxu0 %v8589
        %v8628 = vpop.f32.mrf.mxu0
        %v8629 = vadd.f32 0.0, %v8628
        %v8630 = vpop.f32.mrf.mxu0
        %v8631 = vpop.f32.mrf.mxu0
        %v8632 = vpop.f32.mrf.mxu0
        %8633 = vdwg.mxu0
        %8635 = vrot.lane.b32.xlu0 %v8350, 120
        %v8636 = vpop.permute.xlu0 %8635
        %v8638 = vsel %vm2859, %v8582, 0
        %v8641 = vsel %vm3106, %v8636, 0
        %8643 = vmatprep.subr.bf16.mxu0 0
        %8644 = vmatpush1.bf16.msra.mxu0 0
        %8645 = vmatprep.subr.bf16.mxu0 0
        %8646 = vmatpush1.bf16.msra.mxu0 0
        %8647 = vmatprep.subr.bf16.mxu0 0
        %8648 = vmatpush1.bf16.msra.mxu0 0
        %8649 = vmatprep.subr.bf16.mxu0 0
        %8650 = vmatpush1.bf16.msra.mxu0 0
        %8651 = vmatprep.subr.bf16.mxu0 0
        %8652 = vmatpush1.bf16.msra.mxu0 0
        %8653 = vmatprep.subr.bf16.mxu0 0
        %8654 = vmatpush1.bf16.msra.mxu0 0
        %8655 = vmatprep.subr.bf16.mxu0 0
        %8656 = vmatpush1.bf16.msra.mxu0 0
        %8657 = vmatprep.subr.bf16.mxu0 0
        %8658 = vmatpush1.bf16.msra.mxu0 %v8641
        %8659 = vmatprep.subr.bf16.mxu0 0
        %8660 = vmatpush2.bf16.msra.mxu0 0
        %8661 = vmatprep.subr.bf16.mxu0 0
        %8662 = vmatpush2.bf16.msra.mxu0 0
        %8663 = vmatprep.subr.bf16.mxu0 0
        %8664 = vmatpush2.bf16.msra.mxu0 0
        %8665 = vmatprep.subr.bf16.mxu0 0
        %8666 = vmatpush2.bf16.msra.mxu0 0
        %8667 = vmatprep.subr.bf16.mxu0 0
        %8668 = vmatpush2.bf16.msra.mxu0 0
        %8669 = vmatprep.subr.bf16.mxu0 0
        %8670 = vmatpush2.bf16.msra.mxu0 0
        %8671 = vmatprep.subr.bf16.mxu0 0
        %8672 = vmatpush2.bf16.msra.mxu0 0
        %8673 = vmatprep.subr.bf16.mxu0 0
        %8674 = vmatpush2.bf16.msra.mxu0 0
        %8675 = vmatprep.mubr.bf16.mxu0 0
        %8676 = vmatmul.mubr.bf16.gmra.mxu0 %v8638
        %v8677 = vpop.f32.mrf.mxu0
        %v8678 = vadd.f32 0.0, %v8677
        %v8679 = vpop.f32.mrf.mxu0
        %v8680 = vpop.f32.mrf.mxu0
        %v8681 = vpop.f32.mrf.mxu0
        %8682 = vdwg.mxu0
        %8684 = vrot.lane.b32.xlu0 %v8351, 120
        %v8685 = vpop.permute.xlu0 %8684
        %v8687 = vsel %vm2859, %v8583, 0
        %v8690 = vsel %vm3106, %v8685, 0
        %8692 = vmatprep.subr.bf16.mxu0 0
        %8693 = vmatpush1.bf16.msra.mxu0 0
        %8694 = vmatprep.subr.bf16.mxu0 0
        %8695 = vmatpush1.bf16.msra.mxu0 0
        %8696 = vmatprep.subr.bf16.mxu0 0
        %8697 = vmatpush1.bf16.msra.mxu0 0
        %8698 = vmatprep.subr.bf16.mxu0 0
        %8699 = vmatpush1.bf16.msra.mxu0 0
        %8700 = vmatprep.subr.bf16.mxu0 0
        %8701 = vmatpush1.bf16.msra.mxu0 0
        %8702 = vmatprep.subr.bf16.mxu0 0
        %8703 = vmatpush1.bf16.msra.mxu0 0
        %8704 = vmatprep.subr.bf16.mxu0 0
        %8705 = vmatpush1.bf16.msra.mxu0 0
        %8706 = vmatprep.subr.bf16.mxu0 0
        %8707 = vmatpush1.bf16.msra.mxu0 %v8690
        %8708 = vmatprep.subr.bf16.mxu0 0
        %8709 = vmatpush2.bf16.msra.mxu0 0
        %8710 = vmatprep.subr.bf16.mxu0 0
        %8711 = vmatpush2.bf16.msra.mxu0 0
        %8712 = vmatprep.subr.bf16.mxu0 0
        %8713 = vmatpush2.bf16.msra.mxu0 0
        %8714 = vmatprep.subr.bf16.mxu0 0
        %8715 = vmatpush2.bf16.msra.mxu0 0
        %8716 = vmatprep.subr.bf16.mxu0 0
        %8717 = vmatpush2.bf16.msra.mxu0 0
        %8718 = vmatprep.subr.bf16.mxu0 0
        %8719 = vmatpush2.bf16.msra.mxu0 0
        %8720 = vmatprep.subr.bf16.mxu0 0
        %8721 = vmatpush2.bf16.msra.mxu0 0
        %8722 = vmatprep.subr.bf16.mxu0 0
        %8723 = vmatpush2.bf16.msra.mxu0 0
        %8724 = vmatprep.mubr.bf16.mxu0 0
        %8725 = vmatmul.mubr.bf16.gmra.mxu0 %v8687
        %v8726 = vpop.f32.mrf.mxu0
        %v8727 = vadd.f32 0.0, %v8726
        %v8728 = vpop.f32.mrf.mxu0
        %v8729 = vpop.f32.mrf.mxu0
        %v8730 = vpop.f32.mrf.mxu0
        %8731 = vdwg.mxu0
        %8733 = vrot.lane.b32.xlu0 %v8352, 120
        %v8734 = vpop.permute.xlu0 %8733
        %v8736 = vsel %vm2859, %v8584, 0
        %v8739 = vsel %vm3106, %v8734, 0
        %8741 = vmatprep.subr.bf16.mxu0 0
        %8742 = vmatpush1.bf16.msra.mxu0 0
        %8743 = vmatprep.subr.bf16.mxu0 0
        %8744 = vmatpush1.bf16.msra.mxu0 0
        %8745 = vmatprep.subr.bf16.mxu0 0
        %8746 = vmatpush1.bf16.msra.mxu0 0
        %8747 = vmatprep.subr.bf16.mxu0 0
        %8748 = vmatpush1.bf16.msra.mxu0 0
        %8749 = vmatprep.subr.bf16.mxu0 0
        %8750 = vmatpush1.bf16.msra.mxu0 0
        %8751 = vmatprep.subr.bf16.mxu0 0
        %8752 = vmatpush1.bf16.msra.mxu0 0
        %8753 = vmatprep.subr.bf16.mxu0 0
        %8754 = vmatpush1.bf16.msra.mxu0 0
        %8755 = vmatprep.subr.bf16.mxu0 0
        %8756 = vmatpush1.bf16.msra.mxu0 %v8739
        %8757 = vmatprep.subr.bf16.mxu0 0
        %8758 = vmatpush2.bf16.msra.mxu0 0
        %8759 = vmatprep.subr.bf16.mxu0 0
        %8760 = vmatpush2.bf16.msra.mxu0 0
        %8761 = vmatprep.subr.bf16.mxu0 0
        %8762 = vmatpush2.bf16.msra.mxu0 0
        %8763 = vmatprep.subr.bf16.mxu0 0
        %8764 = vmatpush2.bf16.msra.mxu0 0
        %8765 = vmatprep.subr.bf16.mxu0 0
        %8766 = vmatpush2.bf16.msra.mxu0 0
        %8767 = vmatprep.subr.bf16.mxu0 0
        %8768 = vmatpush2.bf16.msra.mxu0 0
        %8769 = vmatprep.subr.bf16.mxu0 0
        %8770 = vmatpush2.bf16.msra.mxu0 0
        %8771 = vmatprep.subr.bf16.mxu0 0
        %8772 = vmatpush2.bf16.msra.mxu0 0
        %8773 = vmatprep.mubr.bf16.mxu0 0
        %8774 = vmatmul.mubr.bf16.gmra.mxu0 %v8736
        %v8775 = vpop.f32.mrf.mxu0
        %v8776 = vadd.f32 0.0, %v8775
        %v8777 = vpop.f32.mrf.mxu0
        %v8778 = vpop.f32.mrf.mxu0
        %v8779 = vpop.f32.mrf.mxu0
        %8780 = vdwg.mxu0
        %v8781 = vpack.c.bf16 %v8629, %v8629
        %v8782 = vpack.c.bf16 %v8678, %v8678
        %v8783 = vpack.c.bf16 %v8727, %v8727
        %v8784 = vpack.c.bf16 %v8776, %v8776
        %v8786 = vsel %vm2859, %v8781, 0
        %v8789 = vsel %vm3106, %v2438, 0
        %8791 = vmatprep.subr.bf16.mxu0 0
        %8792 = vmatpush1.bf16.msra.mxu0 0
        %8793 = vmatprep.subr.bf16.mxu0 0
        %8794 = vmatpush1.bf16.msra.mxu0 0
        %8795 = vmatprep.subr.bf16.mxu0 0
        %8796 = vmatpush1.bf16.msra.mxu0 0
        %8797 = vmatprep.subr.bf16.mxu0 0
        %8798 = vmatpush1.bf16.msra.mxu0 0
        %8799 = vmatprep.subr.bf16.mxu0 0
        %8800 = vmatpush1.bf16.msra.mxu0 0
        %8801 = vmatprep.subr.bf16.mxu0 0
        %8802 = vmatpush1.bf16.msra.mxu0 0
        %8803 = vmatprep.subr.bf16.mxu0 0
        %8804 = vmatpush1.bf16.msra.mxu0 0
        %8805 = vmatprep.subr.bf16.mxu0 0
        %8806 = vmatpush1.bf16.msra.mxu0 %v8789
        %8807 = vmatprep.subr.bf16.mxu0 0
        %8808 = vmatpush2.bf16.msra.mxu0 0
        %8809 = vmatprep.subr.bf16.mxu0 0
        %8810 = vmatpush2.bf16.msra.mxu0 0
        %8811 = vmatprep.subr.bf16.mxu0 0
        %8812 = vmatpush2.bf16.msra.mxu0 0
        %8813 = vmatprep.subr.bf16.mxu0 0
        %8814 = vmatpush2.bf16.msra.mxu0 0
        %8815 = vmatprep.subr.bf16.mxu0 0
        %8816 = vmatpush2.bf16.msra.mxu0 0
        %8817 = vmatprep.subr.bf16.mxu0 0
        %8818 = vmatpush2.bf16.msra.mxu0 0
        %8819 = vmatprep.subr.bf16.mxu0 0
        %8820 = vmatpush2.bf16.msra.mxu0 0
        %8821 = vmatprep.subr.bf16.mxu0 0
        %8822 = vmatpush2.bf16.msra.mxu0 0
        %8823 = vmatprep.mubr.bf16.mxu0 0
        %8824 = vmatmul.mubr.bf16.gmra.mxu0 %v8786
        %v8825 = vpop.f32.mrf.mxu0
        %v8826 = vadd.f32 0.0, %v8825
        %v8827 = vpop.f32.mrf.mxu0
        %v8828 = vpop.f32.mrf.mxu0
        %v8829 = vpop.f32.mrf.mxu0
        %8830 = vdwg.mxu0
        %v8832 = vsel %vm2859, %v8782, 0
        %v8835 = vsel %vm3106, %v2439, 0
        %8837 = vmatprep.subr.bf16.mxu0 0
        %8838 = vmatpush1.bf16.msra.mxu0 0
        %8839 = vmatprep.subr.bf16.mxu0 0
        %8840 = vmatpush1.bf16.msra.mxu0 0
        %8841 = vmatprep.subr.bf16.mxu0 0
        %8842 = vmatpush1.bf16.msra.mxu0 0
        %8843 = vmatprep.subr.bf16.mxu0 0
        %8844 = vmatpush1.bf16.msra.mxu0 0
        %8845 = vmatprep.subr.bf16.mxu0 0
        %8846 = vmatpush1.bf16.msra.mxu0 0
        %8847 = vmatprep.subr.bf16.mxu0 0
        %8848 = vmatpush1.bf16.msra.mxu0 0
        %8849 = vmatprep.subr.bf16.mxu0 0
        %8850 = vmatpush1.bf16.msra.mxu0 0
        %8851 = vmatprep.subr.bf16.mxu0 0
        %8852 = vmatpush1.bf16.msra.mxu0 %v8835
        %8853 = vmatprep.subr.bf16.mxu0 0
        %8854 = vmatpush2.bf16.msra.mxu0 0
        %8855 = vmatprep.subr.bf16.mxu0 0
        %8856 = vmatpush2.bf16.msra.mxu0 0
        %8857 = vmatprep.subr.bf16.mxu0 0
        %8858 = vmatpush2.bf16.msra.mxu0 0
        %8859 = vmatprep.subr.bf16.mxu0 0
        %8860 = vmatpush2.bf16.msra.mxu0 0
        %8861 = vmatprep.subr.bf16.mxu0 0
        %8862 = vmatpush2.bf16.msra.mxu0 0
        %8863 = vmatprep.subr.bf16.mxu0 0
        %8864 = vmatpush2.bf16.msra.mxu0 0
        %8865 = vmatprep.subr.bf16.mxu0 0
        %8866 = vmatpush2.bf16.msra.mxu0 0
        %8867 = vmatprep.subr.bf16.mxu0 0
        %8868 = vmatpush2.bf16.msra.mxu0 0
        %8869 = vmatprep.mubr.bf16.mxu0 0
        %8870 = vmatmul.mubr.bf16.gmra.mxu0 %v8832
        %v8871 = vpop.f32.mrf.mxu0
        %v8872 = vadd.f32 0.0, %v8871
        %v8873 = vpop.f32.mrf.mxu0
        %v8874 = vpop.f32.mrf.mxu0
        %v8875 = vpop.f32.mrf.mxu0
        %8876 = vdwg.mxu0
        %v8878 = vsel %vm2859, %v8783, 0
        %v8881 = vsel %vm3106, %v2440, 0
        %8883 = vmatprep.subr.bf16.mxu0 0
        %8884 = vmatpush1.bf16.msra.mxu0 0
        %8885 = vmatprep.subr.bf16.mxu0 0
        %8886 = vmatpush1.bf16.msra.mxu0 0
        %8887 = vmatprep.subr.bf16.mxu0 0
        %8888 = vmatpush1.bf16.msra.mxu0 0
        %8889 = vmatprep.subr.bf16.mxu0 0
        %8890 = vmatpush1.bf16.msra.mxu0 0
        %8891 = vmatprep.subr.bf16.mxu0 0
        %8892 = vmatpush1.bf16.msra.mxu0 0
        %8893 = vmatprep.subr.bf16.mxu0 0
        %8894 = vmatpush1.bf16.msra.mxu0 0
        %8895 = vmatprep.subr.bf16.mxu0 0
        %8896 = vmatpush1.bf16.msra.mxu0 0
        %8897 = vmatprep.subr.bf16.mxu0 0
        %8898 = vmatpush1.bf16.msra.mxu0 %v8881
        %8899 = vmatprep.subr.bf16.mxu0 0
        %8900 = vmatpush2.bf16.msra.mxu0 0
        %8901 = vmatprep.subr.bf16.mxu0 0
        %8902 = vmatpush2.bf16.msra.mxu0 0
        %8903 = vmatprep.subr.bf16.mxu0 0
        %8904 = vmatpush2.bf16.msra.mxu0 0
        %8905 = vmatprep.subr.bf16.mxu0 0
        %8906 = vmatpush2.bf16.msra.mxu0 0
        %8907 = vmatprep.subr.bf16.mxu0 0
        %8908 = vmatpush2.bf16.msra.mxu0 0
        %8909 = vmatprep.subr.bf16.mxu0 0
        %8910 = vmatpush2.bf16.msra.mxu0 0
        %8911 = vmatprep.subr.bf16.mxu0 0
        %8912 = vmatpush2.bf16.msra.mxu0 0
        %8913 = vmatprep.subr.bf16.mxu0 0
        %8914 = vmatpush2.bf16.msra.mxu0 0
        %8915 = vmatprep.mubr.bf16.mxu0 0
        %8916 = vmatmul.mubr.bf16.gmra.mxu0 %v8878
        %v8917 = vpop.f32.mrf.mxu0
        %v8918 = vadd.f32 0.0, %v8917
        %v8919 = vpop.f32.mrf.mxu0
        %v8920 = vpop.f32.mrf.mxu0
        %v8921 = vpop.f32.mrf.mxu0
        %8922 = vdwg.mxu0
        %v8924 = vsel %vm2859, %v8784, 0
        %v8927 = vsel %vm3106, %v2441, 0
        %8929 = vmatprep.subr.bf16.mxu0 0
        %8930 = vmatpush1.bf16.msra.mxu0 0
        %8931 = vmatprep.subr.bf16.mxu0 0
        %8932 = vmatpush1.bf16.msra.mxu0 0
        %8933 = vmatprep.subr.bf16.mxu0 0
        %8934 = vmatpush1.bf16.msra.mxu0 0
        %8935 = vmatprep.subr.bf16.mxu0 0
        %8936 = vmatpush1.bf16.msra.mxu0 0
        %8937 = vmatprep.subr.bf16.mxu0 0
        %8938 = vmatpush1.bf16.msra.mxu0 0
        %8939 = vmatprep.subr.bf16.mxu0 0
        %8940 = vmatpush1.bf16.msra.mxu0 0
        %8941 = vmatprep.subr.bf16.mxu0 0
        %8942 = vmatpush1.bf16.msra.mxu0 0
        %8943 = vmatprep.subr.bf16.mxu0 0
        %8944 = vmatpush1.bf16.msra.mxu0 %v8927
        %8945 = vmatprep.subr.bf16.mxu0 0
        %8946 = vmatpush2.bf16.msra.mxu0 0
        %8947 = vmatprep.subr.bf16.mxu0 0
        %8948 = vmatpush2.bf16.msra.mxu0 0
        %8949 = vmatprep.subr.bf16.mxu0 0
        %8950 = vmatpush2.bf16.msra.mxu0 0
        %8951 = vmatprep.subr.bf16.mxu0 0
        %8952 = vmatpush2.bf16.msra.mxu0 0
        %8953 = vmatprep.subr.bf16.mxu0 0
        %8954 = vmatpush2.bf16.msra.mxu0 0
        %8955 = vmatprep.subr.bf16.mxu0 0
        %8956 = vmatpush2.bf16.msra.mxu0 0
        %8957 = vmatprep.subr.bf16.mxu0 0
        %8958 = vmatpush2.bf16.msra.mxu0 0
        %8959 = vmatprep.subr.bf16.mxu0 0
        %8960 = vmatpush2.bf16.msra.mxu0 0
        %8961 = vmatprep.mubr.bf16.mxu0 0
        %8962 = vmatmul.mubr.bf16.gmra.mxu0 %v8924
        %v8963 = vpop.f32.mrf.mxu0
        %v8964 = vadd.f32 0.0, %v8963
        %v8965 = vpop.f32.mrf.mxu0
        %v8966 = vpop.f32.mrf.mxu0
        %v8967 = vpop.f32.mrf.mxu0
        %8968 = vdwg.mxu0
        %v8969 = vsel %vm2646, %v8826, 0.0
        %v8970 = vsel %vm2646, %v8872, 0.0
        %v8971 = vadd.f32 %v8969, %v8970
        %v8972 = vsel %vm2646, %v8918, 0.0
        %v8973 = vadd.f32 %v8971, %v8972
        %v8974 = vsel %vm2646, %v8964, 0.0
        %v8975 = vadd.f32 %v8973, %v8974
        %v8976 = vadd.f32 %v7876, %v8975
        %v8978 = vlaneseq
        %v8979 = vshrl.u32 %v8978, 7
        %v8980 = vsub.s32 0, %v8979
        %v8981 = vrot.slane %v2417, %v8980
        %v8983 = vadd.f32 %v8976, %v8981
        %v8984 = vsel %vm2646, %v8983, 0.0
        %8985 = vadd.xlane.f32.xlu0 %v8984
        %v8986 = vpop.xlane.xlu0 %8985
        %v8987 = vmul.f32 %v8986, %v3500
        %v8988 = vsub.f32 %v8983, %v8987
        %v8989 = vmul.f32 %v8988, %v8988
        %v8990 = vsel %vm2646, %v8989, 0.0
        %8991 = vadd.xlane.f32.xlu0 %v8990
        %v8992 = vpop.xlane.xlu0 %8991
        %v8993 = vmul.f32 %v8992, %v3500
        %v8994 = vadd.f32 %v8993, 1e-05
        %v8995 = vrsqrt.pop %v8994
        %v8996 = vmul.f32 %v8988, %v8995
        %v8998 = vlaneseq
        %v8999 = vshrl.u32 %v8998, 7
        %v9000 = vsub.s32 0, %v8999
        %v9001 = vrot.slane %v2461, %v9000
        %v9003 = vmul.f32 %v8996, %v9001
        %v9005 = vlaneseq
        %v9006 = vshrl.u32 %v9005, 7
        %v9007 = vsub.s32 0, %v9006
        %v9008 = vrot.slane %v2460, %v9007
        %v9010 = vadd.f32 %v9003, %v9008
        %v9011 = vpack.c.bf16 %v9010, %v9010
        %v9013 = vlaneseq
        %v9014 = vshrl.u32 %v9013, 7
        %v9015 = vsub.s32 0, %v9014
        %v9016 = vrot.slane %v2411, %v9015
        %v9022 = vunpack.c.l.b16 %v2489
        %v9023 = vunpack.c.l.b16 %v2490
        %v9024 = vunpack.c.l.b16 %v2491
        %v9025 = vunpack.c.l.b16 %v2492
        %v9026 = vpack.c.b16 %v9023, %v9022
        %v9027 = vpack.c.b16 %v9025, %v9024
        %v9031 = vsel %vm2646, %v9011, 0
        %9033 = vmatprep.subr.bf16.mxu0 0
        %9034 = vmatpush1.bf16.msra.mxu0 0
        %9035 = vmatprep.subr.bf16.mxu0 0
        %9036 = vmatpush1.bf16.msra.mxu0 0
        %9037 = vmatprep.subr.bf16.mxu0 0
        %9038 = vmatpush1.bf16.msra.mxu0 0
        %9039 = vmatprep.subr.bf16.mxu0 0
        %9040 = vmatpush1.bf16.msra.mxu0 0
        %9041 = vmatprep.subr.bf16.mxu0 0
        %9042 = vmatpush1.bf16.msra.mxu0 0
        %9043 = vmatprep.subr.bf16.mxu0 0
        %9044 = vmatpush1.bf16.msra.mxu0 0
        %9045 = vmatprep.subr.bf16.mxu0 0
        %9046 = vmatpush1.bf16.msra.mxu0 %v9027
        %9047 = vmatprep.subr.bf16.mxu0 0
        %9048 = vmatpush1.bf16.msra.mxu0 %v9026
        %9049 = vmatprep.subr.bf16.mxu0 0
        %9050 = vmatpush2.bf16.msra.mxu0 0
        %9051 = vmatprep.subr.bf16.mxu0 0
        %9052 = vmatpush2.bf16.msra.mxu0 0
        %9053 = vmatprep.subr.bf16.mxu0 0
        %9054 = vmatpush2.bf16.msra.mxu0 0
        %9055 = vmatprep.subr.bf16.mxu0 0
        %9056 = vmatpush2.bf16.msra.mxu0 0
        %9057 = vmatprep.subr.bf16.mxu0 0
        %9058 = vmatpush2.bf16.msra.mxu0 0
        %9059 = vmatprep.subr.bf16.mxu0 0
        %9060 = vmatpush2.bf16.msra.mxu0 0
        %9061 = vmatprep.subr.bf16.mxu0 0
        %9062 = vmatpush2.bf16.msra.mxu0 0
        %9063 = vmatprep.subr.bf16.mxu0 0
        %9064 = vmatpush2.bf16.msra.mxu0 0
        %9065 = vmatprep.mubr.bf16.mxu0 0
        %9066 = vmatmul.mubr.bf16.gmra.mxu0 %v9031
        %v9067 = vpop.f32.mrf.mxu0
        %v9068 = vadd.f32 %v9016, %v9067
        %v9069 = vpop.f32.mrf.mxu0
        %v9070 = vpop.f32.mrf.mxu0
        %v9071 = vpop.f32.mrf.mxu0
        %9072 = vdwg.mxu0
        %v9073 = vmax.f32 %v9068, 0.0
        %v9074 = vpack.c.bf16 %v9073, %v9073
        %v9076 = vlaneseq
        %v9077 = vshrl.u32 %v9076, 7
        %v9078 = vsub.s32 0, %v9077
        %v9079 = vrot.slane %v2412, %v9078
        %v9089 = vunpack.c.l.b16 %v2493
        %v9090 = vunpack.c.l.b16 %v2494
        %v9091 = vunpack.c.l.b16 %v2495
        %v9092 = vunpack.c.l.b16 %v2496
        %v9093 = vunpack.c.l.b16 %v2497
        %v9094 = vunpack.c.l.b16 %v2498
        %v9095 = vunpack.c.l.b16 %v2499
        %v9096 = vunpack.c.l.b16 %v2500
        %v9097 = vpack.c.b16 %v9090, %v9089
        %v9098 = vpack.c.b16 %v9092, %v9091
        %v9099 = vpack.c.b16 %v9094, %v9093
        %v9100 = vpack.c.b16 %v9096, %v9095
        %v9106 = vsel %vm3619, %v9074, 0
        %9108 = vmatprep.subr.bf16.mxu0 0
        %9109 = vmatpush1.bf16.msra.mxu0 0
        %9110 = vmatprep.subr.bf16.mxu0 0
        %9111 = vmatpush1.bf16.msra.mxu0 0
        %9112 = vmatprep.subr.bf16.mxu0 0
        %9113 = vmatpush1.bf16.msra.mxu0 0
        %9114 = vmatprep.subr.bf16.mxu0 0
        %9115 = vmatpush1.bf16.msra.mxu0 0
        %9116 = vmatprep.subr.bf16.mxu0 0
        %9117 = vmatpush1.bf16.msra.mxu0 %v9100
        %9118 = vmatprep.subr.bf16.mxu0 0
        %9119 = vmatpush1.bf16.msra.mxu0 %v9099
        %9120 = vmatprep.subr.bf16.mxu0 0
        %9121 = vmatpush1.bf16.msra.mxu0 %v9098
        %9122 = vmatprep.subr.bf16.mxu0 0
        %9123 = vmatpush1.bf16.msra.mxu0 %v9097
        %9124 = vmatprep.subr.bf16.mxu0 0
        %9125 = vmatpush2.bf16.msra.mxu0 0
        %9126 = vmatprep.subr.bf16.mxu0 0
        %9127 = vmatpush2.bf16.msra.mxu0 0
        %9128 = vmatprep.subr.bf16.mxu0 0
        %9129 = vmatpush2.bf16.msra.mxu0 0
        %9130 = vmatprep.subr.bf16.mxu0 0
        %9131 = vmatpush2.bf16.msra.mxu0 0
        %9132 = vmatprep.subr.bf16.mxu0 0
        %9133 = vmatpush2.bf16.msra.mxu0 0
        %9134 = vmatprep.subr.bf16.mxu0 0
        %9135 = vmatpush2.bf16.msra.mxu0 0
        %9136 = vmatprep.subr.bf16.mxu0 0
        %9137 = vmatpush2.bf16.msra.mxu0 0
        %9138 = vmatprep.subr.bf16.mxu0 0
        %9139 = vmatpush2.bf16.msra.mxu0 0
        %9140 = vmatprep.mubr.bf16.mxu0 0
        %9141 = vmatmul.mubr.bf16.gmra.mxu0 %v9106
        %v9142 = vpop.f32.mrf.mxu0
        %v9143 = vadd.f32 %v9079, %v9142
        %v9144 = vpop.f32.mrf.mxu0
        %v9145 = vpop.f32.mrf.mxu0
        %v9146 = vpop.f32.mrf.mxu0
        %9147 = vdwg.mxu0
        %v9148 = vadd.f32 %v9010, %v9143
        %v9149 = vsel %vm2646, %v9148, 0.0
        %9150 = vadd.xlane.f32.xlu0 %v9149
        %v9151 = vpop.xlane.xlu0 %9150
        %v9152 = vmul.f32 %v9151, %v3500
        %v9153 = vsub.f32 %v9148, %v9152
        %v9154 = vmul.f32 %v9153, %v9153
        %v9155 = vsel %vm2646, %v9154, 0.0
        %9156 = vadd.xlane.f32.xlu0 %v9155
        %v9157 = vpop.xlane.xlu0 %9156
        %v9158 = vmul.f32 %v9157, %v3500
        %v9159 = vadd.f32 %v9158, 1e-05
        %v9160 = vrsqrt.pop %v9159
        %v9161 = vmul.f32 %v9153, %v9160
        %v9163 = vlaneseq
        %v9164 = vshrl.u32 %v9163, 7
        %v9165 = vsub.s32 0, %v9164
        %v9166 = vrot.slane %v2463, %v9165
        %v9168 = vmul.f32 %v9161, %v9166
        %v9170 = vlaneseq
        %v9171 = vshrl.u32 %v9170, 7
        %v9172 = vsub.s32 0, %v9171
        %v9173 = vrot.slane %v2462, %v9172
        %v9175 = vadd.f32 %v9168, %v9173
        %v9176 = vpack.c.bf16 %v9175, %v9175
        %v9178 = vlaneseq
        %v9179 = vshrl.u32 %v9178, 7
        %v9180 = vsub.s32 0, %v9179
        %v9181 = vrot.slane %v2587, %v9180
        %v9187 = vunpack.c.l.b16 %v2588
        %v9188 = vunpack.c.l.b16 %v2589
        %v9189 = vunpack.c.l.b16 %v2590
        %v9190 = vunpack.c.l.b16 %v2591
        %v9191 = vpack.c.b16 %v9188, %v9187
        %v9192 = vpack.c.b16 %v9190, %v9189
        %v9196 = vsel %vm2646, %v9176, 0
        %9198 = vmatprep.subr.bf16.mxu0 0
        %9199 = vmatpush1.bf16.msra.mxu0 0
        %9200 = vmatprep.subr.bf16.mxu0 0
        %9201 = vmatpush1.bf16.msra.mxu0 0
        %9202 = vmatprep.subr.bf16.mxu0 0
        %9203 = vmatpush1.bf16.msra.mxu0 0
        %9204 = vmatprep.subr.bf16.mxu0 0
        %9205 = vmatpush1.bf16.msra.mxu0 0
        %9206 = vmatprep.subr.bf16.mxu0 0
        %9207 = vmatpush1.bf16.msra.mxu0 0
        %9208 = vmatprep.subr.bf16.mxu0 0
        %9209 = vmatpush1.bf16.msra.mxu0 0
        %9210 = vmatprep.subr.bf16.mxu0 0
        %9211 = vmatpush1.bf16.msra.mxu0 %v9192
        %9212 = vmatprep.subr.bf16.mxu0 0
        %9213 = vmatpush1.bf16.msra.mxu0 %v9191
        %9214 = vmatprep.subr.bf16.mxu0 0
        %9215 = vmatpush2.bf16.msra.mxu0 0
        %9216 = vmatprep.subr.bf16.mxu0 0
        %9217 = vmatpush2.bf16.msra.mxu0 0
        %9218 = vmatprep.subr.bf16.mxu0 0
        %9219 = vmatpush2.bf16.msra.mxu0 0
        %9220 = vmatprep.subr.bf16.mxu0 0
        %9221 = vmatpush2.bf16.msra.mxu0 0
        %9222 = vmatprep.subr.bf16.mxu0 0
        %9223 = vmatpush2.bf16.msra.mxu0 0
        %9224 = vmatprep.subr.bf16.mxu0 0
        %9225 = vmatpush2.bf16.msra.mxu0 0
        %9226 = vmatprep.subr.bf16.mxu0 0
        %9227 = vmatpush2.bf16.msra.mxu0 0
        %9228 = vmatprep.subr.bf16.mxu0 0
        %9229 = vmatpush2.bf16.msra.mxu0 0
        %9230 = vmatprep.mubr.bf16.mxu0 0
        %9231 = vmatmul.mubr.bf16.gmra.mxu0 %v9196
        %v9232 = vpop.f32.mrf.mxu0
        %v9233 = vadd.f32 %v9181, %v9232
        %v9234 = vpop.f32.mrf.mxu0
        %v9235 = vpop.f32.mrf.mxu0
        %v9236 = vpop.f32.mrf.mxu0
        %9237 = vdwg.mxu0
        %9238 = vst [vmem:[%s2304] sm:$0xff] %v9233
        %s9239 = sand.u32 %s1663, 1
        %s9240 = scalar_lea.sflag [#allocation4], %s9239
        %s9241 = sand.u32 %s1663, 1
        %s9242 = smul.addr %s9241, 8
        %s9243 = scalar_lea.vmem [#allocation31], %s9242
        // Predicated region
        $region373: #{transformer_forward.1} parent=299 // pred_check
          %p9244 = pneg %p1673
        $region374: #{transformer_forward.1} parent=299 // pred_check_branch
          %9246 = sbr.rel (%p9244) target = $region376
        $region375: #{transformer_forward.1} parent=299 // pred_region
          %s9248 = ssub.s32 128, 128
          %9249 = vsyncadd %s9240, %s9248
          %s9250 = smul.addr %s165, 128
          %s9251 = scalar_lea.hbm %s141, %s9250
          %s9253 = sshll.u32 %s9243, 4
          %s9254 = int_to_ptr.vmem [resolvable:$true] %s9253
          %9256 = dma.vmem_to_hbm [thread:$0]  %s9254, 128, %s9251, %s9240
        $region376: #{transformer_forward.1} parent=299 // pred_fallthru
          _
      $region300: #{transformer_forward.1} parent=5 // pred_fallthru
        _
      %p9257 = scmp.le.s32.totalorder 2, %s160
      // Predicated region
      $region377: #{transformer_forward.1} parent=5 // pred_check
        %p9258 = pneg %p9257
      $region378: #{transformer_forward.1} parent=5 // pred_check_branch
        %9260 = sbr.rel (%p9258) target = $region380
      $region379: #{transformer_forward.1} parent=5 // pred_region
        %s9261 = ssub.s32 %s160, 2
        // Predicated region
        $region381: #{transformer_forward.1} parent=379 // pred_check
          %p9262 = pneg %p1679
        $region382: #{transformer_forward.1} parent=379 // pred_check_branch
          %9264 = sbr.rel (%p9262) target = $region384
        $region383: #{transformer_forward.1} parent=379 // pred_region
          %s9265 = sand.u32 %s1664, 1
          %s9266 = scalar_lea.sflag [#allocation4], %s9265
          %s9267 = sand.u32 %s1664, 1
          %s9268 = smul.addr %s9267, 8
          %s9269 = scalar_lea.vmem [#allocation31], %s9268
          %9270 = dma.done %s9266, 128
        $region384: #{transformer_forward.1} parent=379 // pred_fallthru
          _
      $region380: #{transformer_forward.1} parent=5 // pred_fallthru
        _
    $region6: #{transformer_forward.1} parent=1 // loop_footer
      %s164 = sadd.s32 1, %s160
    $region7: #{transformer_forward.1} parent=1 // loop_footer_branch
      %159 = sbr.rel target = $region3
    $region8: #{transformer_forward.1} parent=1 // loop_exit
      _
    %9271 = vsyncpa [#allocation3], 1
    %s9272 = scalar_lea.sflag [#allocation3], 1
    %9273 = vsyncpa %s9272, 1
    %9274 = vsyncpa [#allocation6], 1
    %9275 = vsyncpa [#allocation9], 1
    %9276 = vsyncpa [#allocation12], 1
    %9277 = vsyncpa [#allocation15], 1
    %9278 = vsyncpa [#allocation18], 1
    %9279 = vsyncpa [#allocation21], 1
    %9280 = vsyncpa [#allocation24], 1
    %9281 = vsyncpa [#allocation27], 1
    %9282 = vsyncpa [#allocation30], 1
    %9283 = vsyncpa [#allocation4], 1
    %s9284 = scalar_lea.sflag [#allocation4], 1
    %9285 = vsyncpa %s9284, 1

</llo_original>
